<compile_context>
chip_gen: v7x
topology: tpu7x:2x2x1
jax: 0.10.0
libtpu: 0.0.40
codegen_flags: <defaults>
</compile_context>

<pallas_src>
import jax
import jax.numpy as jnp
from jax import lax
from jax.experimental import pallas as pl
from jax.experimental.pallas import tpu as pltpu

PAD_ID = 1


# --------------------------------------------------------------------------
# Pallas kernel: bidirectional LSTM over one block of Nb words (lane axis = N).
# --------------------------------------------------------------------------
def _bilstm_kernel(emb_ref, lens_ref, wf_ref, bf_ref, wb_ref, bb_ref, out_ref):
    T, _, Nb = emb_ref.shape
    H = wf_ref.shape[0] // 4

    w_f = wf_ref[...]                                     # (4H, E+H) bf16, resident
    w_b = wb_ref[...]
    # Hoist broadcasts out of the unrolled loop (JAX does not CSE broadcasts).
    b_f = jnp.broadcast_to(bf_ref[...], (4 * H, Nb))      # (4H, Nb) f32
    b_b = jnp.broadcast_to(bb_ref[...], (4 * H, Nb))
    lens_b = jnp.broadcast_to(lens_ref[...], (H, Nb))     # (H, Nb) int32

    def cell(x_t, h, c, w, b):
        # One fused matmul per direction per step: gates = W @ [x_t ; h] + b.
        rhs = jnp.concatenate([x_t, h.astype(jnp.bfloat16)], axis=0)    # (E+H, Nb)
        gates = jnp.dot(w, rhs, preferred_element_type=jnp.float32) + b  # (4H, Nb) f32
        # PyTorch gate order (i, f, g, o) along the 4H (sublane) axis; H is a
        # multiple of 8 so these are aligned sublane slices.
        sig_if = jax.nn.sigmoid(gates[0:2 * H])
        i_g = sig_if[0:H]
        f_g = sig_if[H:2 * H]
        g_g = jnp.tanh(gates[2 * H:3 * H])
        o_g = jax.nn.sigmoid(gates[3 * H:4 * H])
        c_new = f_g * c + i_g * g_g
        h_new = o_g * jnp.tanh(c_new)
        return h_new, c_new

    zeros = jnp.zeros((H, Nb), jnp.float32)
    h_f, c_f, h_b, c_b = zeros, zeros, zeros, zeros

    # Statically unrolled time loop (T is a small compile-time constant): static
    # slice indices everywhere and full scheduler visibility.  Forward step t
    # and backward step T-1-t are independent chains and run interleaved.
    for t in range(T):
        tb = T - 1 - t
        x_f = emb_ref[t]                                  # (E, Nb) bf16, contiguous
        x_b = emb_ref[tb]
        hf_new, cf_new = cell(x_f, h_f, c_f, w_f, b_f)
        hb_new, cb_new = cell(x_b, h_b, c_b, w_b, b_b)
        m_f = t < lens_b                                  # (H, Nb) bool
        m_b = tb < lens_b
        h_f = jnp.where(m_f, hf_new, h_f)
        c_f = jnp.where(m_f, cf_new, c_f)
        h_b = jnp.where(m_b, hb_new, h_b)
        c_b = jnp.where(m_b, cb_new, c_b)

    out_ref[...] = jnp.concatenate([h_f, h_b], axis=0)    # (2H, Nb), lane-dense store


# --------------------------------------------------------------------------
# Wrapper: embedding gather (time/feature-major), padding, pallas_call, reshape.
# --------------------------------------------------------------------------
def char_lstm_forward(x_char, params, *, block_n=512):
    batch, seq_len, fix_len = x_char.shape
    T = fix_len
    E = params["embed"].shape[1]
    H = params["b_f"].shape[0] // 4
    N = batch * seq_len

    # Pad the word axis to a lane-aligned multiple of the block size.  Padded
    # words get length 0 and therefore stay zero inside the kernel.
    N_pad = ((N + 127) // 128) * 128
    block_n = max(128, (min(block_n, N_pad) // 128) * 128)
    N_pad = ((N_pad + block_n - 1) // block_n) * block_n

    flat_ids = x_char.reshape(N, T).astype(jnp.int32)
    lens = (flat_ids != PAD_ID).sum(-1).astype(jnp.int32)          # (N,)
    pad = N_pad - N
    flat_ids = jnp.pad(flat_ids, ((0, pad), (0, 0)), constant_values=PAD_ID)
    lens = jnp.pad(lens, (0, pad)).reshape(1, N_pad)

    # Embedding gather directly into the kernel's (T, E, N) layout, bf16 — no
    # materialized transpose of the embedded tensor.
    ids_tn = flat_ids.T                                            # (T, N_pad)
    embed_t = params["embed"].astype(jnp.bfloat16).T               # (E, n_char)
    emb = jax.vmap(lambda row: jnp.take(embed_t, row, axis=1))(ids_tn)  # (T, E, N_pad)

    grid = (N_pad // block_n,)
    out = pl.pallas_call(
        _bilstm_kernel,
        out_shape=jax.ShapeDtypeStruct((2 * H, N_pad), jnp.float32),
        grid=grid,
        in_specs=[
            pl.BlockSpec((T, E, block_n), lambda i: (0, 0, i)),    # emb tile
            pl.BlockSpec((1, block_n), lambda i: (0, i)),          # word lengths
            pl.BlockSpec((4 * H, E + H), lambda i: (0, 0)),        # W fwd (resident)
            pl.BlockSpec((4 * H, 1), lambda i: (0, 0)),            # b fwd (resident)
            pl.BlockSpec((4 * H, E + H), lambda i: (0, 0)),        # W bwd (resident)
            pl.BlockSpec((4 * H, 1), lambda i: (0, 0)),            # b bwd (resident)
        ],
        out_specs=pl.BlockSpec((2 * H, block_n), lambda i: (0, i)),
        compiler_params=pltpu.CompilerParams(
            dimension_semantics=("parallel",),
        ),
    )(emb, lens, params["wf"], params["b_f"], params["wb"], params["b_b"])

    return out[:, :N].T.reshape(batch, seq_len, 2 * H)


# --------------------------------------------------------------------------
# Pure-JAX reference (same math / same bf16 rounding of MXU inputs).
# --------------------------------------------------------------------------
def char_lstm_reference(x_char, params):
    batch, seq_len, T = x_char.shape
    E = params["embed"].shape[1]
    H = params["b_f"].shape[0] // 4
    N = batch * seq_len

    flat_ids = x_char.reshape(N, T)
    lens = (flat_ids != PAD_ID).sum(-1)
    emb = jnp.take(params["embed"].astype(jnp.bfloat16).astype(jnp.float32),
                   flat_ids, axis=0)                               # (N, T, E)
    emb_tm = jnp.transpose(emb, (1, 0, 2))                         # (T, N, E)
    valid = jnp.arange(T)[:, None] < lens[None, :]                 # (T, N) bool

    def run(wcat, b, reverse):
        wih = wcat[:, :E].astype(jnp.float32).T                    # (E, 4H)
        whh = wcat[:, E:].astype(jnp.float32).T                    # (H, 4H)
        bb = b.reshape(1, 4 * H)
        xs = emb_tm[::-1] if reverse else emb_tm
        ms = valid[::-1] if reverse else valid

        def step(carry, xm):
            h, c = carry
            x_t, m = xm
            hq = h.astype(jnp.bfloat16).astype(jnp.float32)        # mirror kernel cast
            gates = x_t @ wih + hq @ whh + bb
            i = jax.nn.sigmoid(gates[:, 0:H])
            f = jax.nn.sigmoid(gates[:, H:2 * H])
            g = jnp.tanh(gates[:, 2 * H:3 * H])
            o = jax.nn.sigmoid(gates[:, 3 * H:4 * H])
            c_new = f * c + i * g
            h_new = o * jnp.tanh(c_new)
            m2 = m[:, None]
            return (jnp.where(m2, h_new, h), jnp.where(m2, c_new, c)), None

        init = (jnp.zeros((N, H), jnp.float32), jnp.zeros((N, H), jnp.float32))
        (h, _), _ = lax.scan(step, init, (xs, ms))
        return h

    out = jnp.concatenate([run(params["wf"], params["b_f"], False),
                           run(params["wb"], params["b_b"], True)], axis=-1)
    return out.reshape(batch, seq_len, 2 * H)


# --------------------------------------------------------------------------
# Deterministic parameter init (mirrors nn.Embedding / nn.LSTM shapes).
# Weights are stored pre-fused: W = [W_ih | W_hh] (4H, E+H) bf16, b = b_ih + b_hh.
# --------------------------------------------------------------------------
def init_params(key, n_char, n_embed, n_out):
    keys = jax.random.split(key, 9)
    k = 1.0 / jnp.sqrt(jnp.float32(n_out))

    def uni(kk, shape):
        return jax.random.uniform(kk, shape, jnp.float32, -k, k)

    embed = jax.random.normal(keys[0], (n_char, n_embed), jnp.float32)

    w_ih_f = uni(keys[1], (4 * n_out, n_embed))
    w_hh_f = uni(keys[2], (4 * n_out, n_out))
    b_ih_f = uni(keys[3], (4 * n_out,))
    b_hh_f = uni(keys[4], (4 * n_out,))
    w_ih_b = uni(keys[5], (4 * n_out, n_embed))
    w_hh_b = uni(keys[6], (4 * n_out, n_out))
    b_ih_b = uni(keys[7], (4 * n_out,))
    b_hh_b = uni(keys[8], (4 * n_out,))

    return {
        "embed": embed,
        "wf": jnp.concatenate([w_ih_f, w_hh_f], axis=1).astype(jnp.bfloat16),
        "wb": jnp.concatenate([w_ih_b, w_hh_b], axis=1).astype(jnp.bfloat16),
        "b_f": (b_ih_f + b_hh_f).reshape(4 * n_out, 1),
        "b_b": (b_ih_b + b_hh_b).reshape(4 * n_out, 1),
    }


if __name__ == "__main__":
    batch, seq_len, fix_len = 2, 8, 16
    n_char, n_embed, n_out = 50, 32, 32

    key = jax.random.PRNGKey(0)
    k_ids, k_len, k_par = jax.random.split(key, 3)

    ids = jax.random.randint(k_ids, (batch, seq_len, fix_len), 2, n_char)
    lengths = jax.random.randint(k_len, (batch, seq_len), 0, fix_len + 1)
    # guarantee both an empty word and a full-length word are present
    lengths = lengths.at[0, 0].set(0)
    lengths = lengths.at[1, 3].set(fix_len)
    x_char = jnp.where(jnp.arange(fix_len)[None, None, :] < lengths[:, :, None],
                       ids, PAD_ID).astype(jnp.int32)

    params = init_params(k_par, n_char, n_embed, n_out)

    out = jax.block_until_ready(char_lstm_forward(x_char, params))
    ref = jax.block_until_ready(char_lstm_reference(x_char, params))

    assert out.shape == (batch, seq_len, 2 * n_out)
    assert jnp.allclose(out, ref, atol=2e-2, rtol=0), "kernel mismatch vs reference"

    print("KERNEL_OK")
</pallas_src>

<mosaic_0001>
module attributes {stable_mosaic.version = 11 : i64} {
  func.func @_bilstm_kernel(%arg0: i32, %arg1: memref<16x32x128xbf16, #tpu.memory_space<vmem>>, %arg2: memref<1x128xi32, #tpu.memory_space<vmem>>, %arg3: memref<128x64xbf16, #tpu.memory_space<vmem>>, %arg4: memref<128x1xf32, #tpu.memory_space<vmem>>, %arg5: memref<128x64xbf16, #tpu.memory_space<vmem>>, %arg6: memref<128x1xf32, #tpu.memory_space<vmem>>, %arg7: memref<64x128xf32, #tpu.memory_space<vmem>>) attributes {dimension_semantics = [#tpu.dimension_semantics<parallel>], iteration_bounds = array<i64: 1>, scalar_prefetch = 0 : i64, scratch_operands = 0 : i64, tpu.core_type = #tpu.core_type<tc>, window_params = [{transform_indices = @transform_0, window_bounds = array<i64: 16, 32, 128>}, {transform_indices = @transform_1, window_bounds = array<i64: 1, 128>}, {pipeline_mode = #tpu.pipeline_mode<synchronous>, transform_indices = @transform_2, window_bounds = array<i64: 128, 64>}, {pipeline_mode = #tpu.pipeline_mode<synchronous>, transform_indices = @transform_3, window_bounds = array<i64: 128, 1>}, {pipeline_mode = #tpu.pipeline_mode<synchronous>, transform_indices = @transform_4, window_bounds = array<i64: 128, 64>}, {pipeline_mode = #tpu.pipeline_mode<synchronous>, transform_indices = @transform_5, window_bounds = array<i64: 128, 1>}, {transform_indices = @transform_6, window_bounds = array<i64: 64, 128>}]} {
    %c0 = arith.constant 0 : index
    %c0_0 = arith.constant 0 : index
    %0 = vector.load %arg3[%c0, %c0_0] : memref<128x64xbf16, #tpu.memory_space<vmem>>, vector<128x64xbf16>
    %c0_1 = arith.constant 0 : index
    %c0_2 = arith.constant 0 : index
    %1 = vector.load %arg5[%c0_1, %c0_2] : memref<128x64xbf16, #tpu.memory_space<vmem>>, vector<128x64xbf16>
    %c0_3 = arith.constant 0 : index
    %c0_4 = arith.constant 0 : index
    %2 = vector.load %arg4[%c0_3, %c0_4] : memref<128x1xf32, #tpu.memory_space<vmem>>, vector<128x1xf32>
    %3 = vector.shape_cast %2 : vector<128x1xf32> to vector<128x1xf32>
    %4 = vector.broadcast %3 : vector<128x1xf32> to vector<128x128xf32>
    %c0_5 = arith.constant 0 : index
    %c0_6 = arith.constant 0 : index
    %5 = vector.load %arg6[%c0_5, %c0_6] : memref<128x1xf32, #tpu.memory_space<vmem>>, vector<128x1xf32>
    %6 = vector.shape_cast %5 : vector<128x1xf32> to vector<128x1xf32>
    %7 = vector.broadcast %6 : vector<128x1xf32> to vector<128x128xf32>
    %c0_7 = arith.constant 0 : index
    %c0_8 = arith.constant 0 : index
    %8 = vector.load %arg2[%c0_7, %c0_8] : memref<1x128xi32, #tpu.memory_space<vmem>>, vector<1x128xi32>
    %9 = vector.shape_cast %8 : vector<1x128xi32> to vector<1x128xi32>
    %10 = vector.broadcast %9 : vector<1x128xi32> to vector<32x128xi32>
    %cst = arith.constant 0.000000e+00 : f32
    %11 = vector.broadcast %cst : f32 to vector<32x128xf32>
    %c0_9 = arith.constant 0 : index
    %c0_10 = arith.constant 0 : index
    %c0_11 = arith.constant 0 : index
    %12 = vector.load %arg1[%c0_9, %c0_10, %c0_11] : memref<16x32x128xbf16, #tpu.memory_space<vmem>>, vector<1x32x128xbf16>
    %13 = vector.shape_cast %12 : vector<1x32x128xbf16> to vector<32x128xbf16>
    %c15 = arith.constant 15 : index
    %c0_12 = arith.constant 0 : index
    %c0_13 = arith.constant 0 : index
    %14 = vector.load %arg1[%c15, %c0_12, %c0_13] : memref<16x32x128xbf16, #tpu.memory_space<vmem>>, vector<1x32x128xbf16>
    %15 = vector.shape_cast %14 : vector<1x32x128xbf16> to vector<32x128xbf16>
    %16 = arith.truncf %11 : vector<32x128xf32> to vector<32x128xbf16>
    %17 = tpu.concatenate %13, %16 in 0 : vector<32x128xbf16>, vector<32x128xbf16> -> vector<64x128xbf16>
    %cst_14 = arith.constant dense<0.000000e+00> : vector<128x128xf32>
    %18 = tpu.matmul %0, %17, %cst_14 {dimension_numbers = #tpu.dot_dimension_numbers<[1], [0], [0], [1], [0, 0, 1, 1], [], []>} : vector<128x64xbf16>, vector<64x128xbf16>, vector<128x128xf32> -> vector<128x128xf32>
    %19 = arith.addf %18, %4 : vector<128x128xf32>
    %20 = vector.extract_strided_slice %19 {offsets = [0, 0], sizes = [64, 128], strides = [1, 1]} : vector<128x128xf32> to vector<64x128xf32>
    %21 = arith.negf %20 : vector<64x128xf32>
    %22 = math.exp %21 : vector<64x128xf32>
    %cst_15 = arith.constant 1.000000e+00 : f32
    %23 = vector.broadcast %cst_15 : f32 to vector<64x128xf32>
    %24 = arith.addf %23, %22 : vector<64x128xf32>
    %25 = arith.divf %23, %24 : vector<64x128xf32>
    %26 = vector.extract_strided_slice %25 {offsets = [0, 0], sizes = [32, 128], strides = [1, 1]} : vector<64x128xf32> to vector<32x128xf32>
    %27 = vector.extract_strided_slice %25 {offsets = [32, 0], sizes = [32, 128], strides = [1, 1]} : vector<64x128xf32> to vector<32x128xf32>
    %28 = vector.extract_strided_slice %19 {offsets = [64, 0], sizes = [32, 128], strides = [1, 1]} : vector<128x128xf32> to vector<32x128xf32>
    %29 = math.tanh %28 : vector<32x128xf32>
    %30 = vector.extract_strided_slice %19 {offsets = [96, 0], sizes = [32, 128], strides = [1, 1]} : vector<128x128xf32> to vector<32x128xf32>
    %31 = arith.negf %30 : vector<32x128xf32>
    %32 = math.exp %31 : vector<32x128xf32>
    %cst_16 = arith.constant 1.000000e+00 : f32
    %33 = vector.broadcast %cst_16 : f32 to vector<32x128xf32>
    %34 = arith.addf %33, %32 : vector<32x128xf32>
    %35 = arith.divf %33, %34 : vector<32x128xf32>
    %36 = arith.mulf %27, %11 : vector<32x128xf32>
    %37 = arith.mulf %26, %29 : vector<32x128xf32>
    %38 = arith.addf %36, %37 : vector<32x128xf32>
    %39 = math.tanh %38 : vector<32x128xf32>
    %40 = arith.mulf %35, %39 : vector<32x128xf32>
    %41 = arith.truncf %11 : vector<32x128xf32> to vector<32x128xbf16>
    %42 = tpu.concatenate %15, %41 in 0 : vector<32x128xbf16>, vector<32x128xbf16> -> vector<64x128xbf16>
    %cst_17 = arith.constant dense<0.000000e+00> : vector<128x128xf32>
    %43 = tpu.matmul %1, %42, %cst_17 {dimension_numbers = #tpu.dot_dimension_numbers<[1], [0], [0], [1], [0, 0, 1, 1], [], []>} : vector<128x64xbf16>, vector<64x128xbf16>, vector<128x128xf32> -> vector<128x128xf32>
    %44 = arith.addf %43, %7 : vector<128x128xf32>
    %45 = vector.extract_strided_slice %44 {offsets = [0, 0], sizes = [64, 128], strides = [1, 1]} : vector<128x128xf32> to vector<64x128xf32>
    %46 = arith.negf %45 : vector<64x128xf32>
    %47 = math.exp %46 : vector<64x128xf32>
    %cst_18 = arith.constant 1.000000e+00 : f32
    %48 = vector.broadcast %cst_18 : f32 to vector<64x128xf32>
    %49 = arith.addf %48, %47 : vector<64x128xf32>
    %50 = arith.divf %48, %49 : vector<64x128xf32>
    %51 = vector.extract_strided_slice %50 {offsets = [0, 0], sizes = [32, 128], strides = [1, 1]} : vector<64x128xf32> to vector<32x128xf32>
    %52 = vector.extract_strided_slice %50 {offsets = [32, 0], sizes = [32, 128], strides = [1, 1]} : vector<64x128xf32> to vector<32x128xf32>
    %53 = vector.extract_strided_slice %44 {offsets = [64, 0], sizes = [32, 128], strides = [1, 1]} : vector<128x128xf32> to vector<32x128xf32>
    %54 = math.tanh %53 : vector<32x128xf32>
    %55 = vector.extract_strided_slice %44 {offsets = [96, 0], sizes = [32, 128], strides = [1, 1]} : vector<128x128xf32> to vector<32x128xf32>
    %56 = arith.negf %55 : vector<32x128xf32>
    %57 = math.exp %56 : vector<32x128xf32>
    %cst_19 = arith.constant 1.000000e+00 : f32
    %58 = vector.broadcast %cst_19 : f32 to vector<32x128xf32>
    %59 = arith.addf %58, %57 : vector<32x128xf32>
    %60 = arith.divf %58, %59 : vector<32x128xf32>
    %61 = arith.mulf %52, %11 : vector<32x128xf32>
    %62 = arith.mulf %51, %54 : vector<32x128xf32>
    %63 = arith.addf %61, %62 : vector<32x128xf32>
    %64 = math.tanh %63 : vector<32x128xf32>
    %65 = arith.mulf %60, %64 : vector<32x128xf32>
    %c0_i32 = arith.constant 0 : i32
    %66 = vector.broadcast %c0_i32 : i32 to vector<32x128xi32>
    %67 = arith.cmpi sgt, %10, %66 : vector<32x128xi32>
    %c15_i32 = arith.constant 15 : i32
    %68 = vector.broadcast %c15_i32 : i32 to vector<32x128xi32>
    %69 = arith.cmpi sgt, %10, %68 : vector<32x128xi32>
    %70 = arith.select %67, %40, %11 : vector<32x128xi1>, vector<32x128xf32>
    %71 = arith.select %67, %38, %11 : vector<32x128xi1>, vector<32x128xf32>
    %72 = arith.select %69, %65, %11 : vector<32x128xi1>, vector<32x128xf32>
    %73 = arith.select %69, %63, %11 : vector<32x128xi1>, vector<32x128xf32>
    %c1 = arith.constant 1 : index
    %c0_20 = arith.constant 0 : index
    %c0_21 = arith.constant 0 : index
    %74 = vector.load %arg1[%c1, %c0_20, %c0_21] : memref<16x32x128xbf16, #tpu.memory_space<vmem>>, vector<1x32x128xbf16>
    %75 = vector.shape_cast %74 : vector<1x32x128xbf16> to vector<32x128xbf16>
    %c14 = arith.constant 14 : index
    %c0_22 = arith.constant 0 : index
    %c0_23 = arith.constant 0 : index
    %76 = vector.load %arg1[%c14, %c0_22, %c0_23] : memref<16x32x128xbf16, #tpu.memory_space<vmem>>, vector<1x32x128xbf16>
    %77 = vector.shape_cast %76 : vector<1x32x128xbf16> to vector<32x128xbf16>
    %78 = arith.truncf %70 : vector<32x128xf32> to vector<32x128xbf16>
    %79 = tpu.concatenate %75, %78 in 0 : vector<32x128xbf16>, vector<32x128xbf16> -> vector<64x128xbf16>
    %cst_24 = arith.constant dense<0.000000e+00> : vector<128x128xf32>
    %80 = tpu.matmul %0, %79, %cst_24 {dimension_numbers = #tpu.dot_dimension_numbers<[1], [0], [0], [1], [0, 0, 1, 1], [], []>} : vector<128x64xbf16>, vector<64x128xbf16>, vector<128x128xf32> -> vector<128x128xf32>
    %81 = arith.addf %80, %4 : vector<128x128xf32>
    %82 = vector.extract_strided_slice %81 {offsets = [0, 0], sizes = [64, 128], strides = [1, 1]} : vector<128x128xf32> to vector<64x128xf32>
    %83 = arith.negf %82 : vector<64x128xf32>
    %84 = math.exp %83 : vector<64x128xf32>
    %cst_25 = arith.constant 1.000000e+00 : f32
    %85 = vector.broadcast %cst_25 : f32 to vector<64x128xf32>
    %86 = arith.addf %85, %84 : vector<64x128xf32>
    %87 = arith.divf %85, %86 : vector<64x128xf32>
    %88 = vector.extract_strided_slice %87 {offsets = [0, 0], sizes = [32, 128], strides = [1, 1]} : vector<64x128xf32> to vector<32x128xf32>
    %89 = vector.extract_strided_slice %87 {offsets = [32, 0], sizes = [32, 128], strides = [1, 1]} : vector<64x128xf32> to vector<32x128xf32>
    %90 = vector.extract_strided_slice %81 {offsets = [64, 0], sizes = [32, 128], strides = [1, 1]} : vector<128x128xf32> to vector<32x128xf32>
    %91 = math.tanh %90 : vector<32x128xf32>
    %92 = vector.extract_strided_slice %81 {offsets = [96, 0], sizes = [32, 128], strides = [1, 1]} : vector<128x128xf32> to vector<32x128xf32>
    %93 = arith.negf %92 : vector<32x128xf32>
    %94 = math.exp %93 : vector<32x128xf32>
    %cst_26 = arith.constant 1.000000e+00 : f32
    %95 = vector.broadcast %cst_26 : f32 to vector<32x128xf32>
    %96 = arith.addf %95, %94 : vector<32x128xf32>
    %97 = arith.divf %95, %96 : vector<32x128xf32>
    %98 = arith.mulf %89, %71 : vector<32x128xf32>
    %99 = arith.mulf %88, %91 : vector<32x128xf32>
    %100 = arith.addf %98, %99 : vector<32x128xf32>
    %101 = math.tanh %100 : vector<32x128xf32>
    %102 = arith.mulf %97, %101 : vector<32x128xf32>
    %103 = arith.truncf %72 : vector<32x128xf32> to vector<32x128xbf16>
    %104 = tpu.concatenate %77, %103 in 0 : vector<32x128xbf16>, vector<32x128xbf16> -> vector<64x128xbf16>
    %cst_27 = arith.constant dense<0.000000e+00> : vector<128x128xf32>
    %105 = tpu.matmul %1, %104, %cst_27 {dimension_numbers = #tpu.dot_dimension_numbers<[1], [0], [0], [1], [0, 0, 1, 1], [], []>} : vector<128x64xbf16>, vector<64x128xbf16>, vector<128x128xf32> -> vector<128x128xf32>
    %106 = arith.addf %105, %7 : vector<128x128xf32>
    %107 = vector.extract_strided_slice %106 {offsets = [0, 0], sizes = [64, 128], strides = [1, 1]} : vector<128x128xf32> to vector<64x128xf32>
    %108 = arith.negf %107 : vector<64x128xf32>
    %109 = math.exp %108 : vector<64x128xf32>
    %cst_28 = arith.constant 1.000000e+00 : f32
    %110 = vector.broadcast %cst_28 : f32 to vector<64x128xf32>
    %111 = arith.addf %110, %109 : vector<64x128xf32>
    %112 = arith.divf %110, %111 : vector<64x128xf32>
    %113 = vector.extract_strided_slice %112 {offsets = [0, 0], sizes = [32, 128], strides = [1, 1]} : vector<64x128xf32> to vector<32x128xf32>
    %114 = vector.extract_strided_slice %112 {offsets = [32, 0], sizes = [32, 128], strides = [1, 1]} : vector<64x128xf32> to vector<32x128xf32>
    %115 = vector.extract_strided_slice %106 {offsets = [64, 0], sizes = [32, 128], strides = [1, 1]} : vector<128x128xf32> to vector<32x128xf32>
    %116 = math.tanh %115 : vector<32x128xf32>
    %117 = vector.extract_strided_slice %106 {offsets = [96, 0], sizes = [32, 128], strides = [1, 1]} : vector<128x128xf32> to vector<32x128xf32>
    %118 = arith.negf %117 : vector<32x128xf32>
    %119 = math.exp %118 : vector<32x128xf32>
    %cst_29 = arith.constant 1.000000e+00 : f32
    %120 = vector.broadcast %cst_29 : f32 to vector<32x128xf32>
    %121 = arith.addf %120, %119 : vector<32x128xf32>
    %122 = arith.divf %120, %121 : vector<32x128xf32>
    %123 = arith.mulf %114, %73 : vector<32x128xf32>
    %124 = arith.mulf %113, %116 : vector<32x128xf32>
    %125 = arith.addf %123, %124 : vector<32x128xf32>
    %126 = math.tanh %125 : vector<32x128xf32>
    %127 = arith.mulf %122, %126 : vector<32x128xf32>
    %c1_i32 = arith.constant 1 : i32
    %128 = vector.broadcast %c1_i32 : i32 to vector<32x128xi32>
    %129 = arith.cmpi sgt, %10, %128 : vector<32x128xi32>
    %c14_i32 = arith.constant 14 : i32
    %130 = vector.broadcast %c14_i32 : i32 to vector<32x128xi32>
    %131 = arith.cmpi sgt, %10, %130 : vector<32x128xi32>
    %132 = arith.select %129, %102, %70 : vector<32x128xi1>, vector<32x128xf32>
    %133 = arith.select %129, %100, %71 : vector<32x128xi1>, vector<32x128xf32>
    %134 = arith.select %131, %127, %72 : vector<32x128xi1>, vector<32x128xf32>
    %135 = arith.select %131, %125, %73 : vector<32x128xi1>, vector<32x128xf32>
    %c2 = arith.constant 2 : index
    %c0_30 = arith.constant 0 : index
    %c0_31 = arith.constant 0 : index
    %136 = vector.load %arg1[%c2, %c0_30, %c0_31] : memref<16x32x128xbf16, #tpu.memory_space<vmem>>, vector<1x32x128xbf16>
    %137 = vector.shape_cast %136 : vector<1x32x128xbf16> to vector<32x128xbf16>
    %c13 = arith.constant 13 : index
    %c0_32 = arith.constant 0 : index
    %c0_33 = arith.constant 0 : index
    %138 = vector.load %arg1[%c13, %c0_32, %c0_33] : memref<16x32x128xbf16, #tpu.memory_space<vmem>>, vector<1x32x128xbf16>
    %139 = vector.shape_cast %138 : vector<1x32x128xbf16> to vector<32x128xbf16>
    %140 = arith.truncf %132 : vector<32x128xf32> to vector<32x128xbf16>
    %141 = tpu.concatenate %137, %140 in 0 : vector<32x128xbf16>, vector<32x128xbf16> -> vector<64x128xbf16>
    %cst_34 = arith.constant dense<0.000000e+00> : vector<128x128xf32>
    %142 = tpu.matmul %0, %141, %cst_34 {dimension_numbers = #tpu.dot_dimension_numbers<[1], [0], [0], [1], [0, 0, 1, 1], [], []>} : vector<128x64xbf16>, vector<64x128xbf16>, vector<128x128xf32> -> vector<128x128xf32>
    %143 = arith.addf %142, %4 : vector<128x128xf32>
    %144 = vector.extract_strided_slice %143 {offsets = [0, 0], sizes = [64, 128], strides = [1, 1]} : vector<128x128xf32> to vector<64x128xf32>
    %145 = arith.negf %144 : vector<64x128xf32>
    %146 = math.exp %145 : vector<64x128xf32>
    %cst_35 = arith.constant 1.000000e+00 : f32
    %147 = vector.broadcast %cst_35 : f32 to vector<64x128xf32>
    %148 = arith.addf %147, %146 : vector<64x128xf32>
    %149 = arith.divf %147, %148 : vector<64x128xf32>
    %150 = vector.extract_strided_slice %149 {offsets = [0, 0], sizes = [32, 128], strides = [1, 1]} : vector<64x128xf32> to vector<32x128xf32>
    %151 = vector.extract_strided_slice %149 {offsets = [32, 0], sizes = [32, 128], strides = [1, 1]} : vector<64x128xf32> to vector<32x128xf32>
    %152 = vector.extract_strided_slice %143 {offsets = [64, 0], sizes = [32, 128], strides = [1, 1]} : vector<128x128xf32> to vector<32x128xf32>
    %153 = math.tanh %152 : vector<32x128xf32>
    %154 = vector.extract_strided_slice %143 {offsets = [96, 0], sizes = [32, 128], strides = [1, 1]} : vector<128x128xf32> to vector<32x128xf32>
    %155 = arith.negf %154 : vector<32x128xf32>
    %156 = math.exp %155 : vector<32x128xf32>
    %cst_36 = arith.constant 1.000000e+00 : f32
    %157 = vector.broadcast %cst_36 : f32 to vector<32x128xf32>
    %158 = arith.addf %157, %156 : vector<32x128xf32>
    %159 = arith.divf %157, %158 : vector<32x128xf32>
    %160 = arith.mulf %151, %133 : vector<32x128xf32>
    %161 = arith.mulf %150, %153 : vector<32x128xf32>
    %162 = arith.addf %160, %161 : vector<32x128xf32>
    %163 = math.tanh %162 : vector<32x128xf32>
    %164 = arith.mulf %159, %163 : vector<32x128xf32>
    %165 = arith.truncf %134 : vector<32x128xf32> to vector<32x128xbf16>
    %166 = tpu.concatenate %139, %165 in 0 : vector<32x128xbf16>, vector<32x128xbf16> -> vector<64x128xbf16>
    %cst_37 = arith.constant dense<0.000000e+00> : vector<128x128xf32>
    %167 = tpu.matmul %1, %166, %cst_37 {dimension_numbers = #tpu.dot_dimension_numbers<[1], [0], [0], [1], [0, 0, 1, 1], [], []>} : vector<128x64xbf16>, vector<64x128xbf16>, vector<128x128xf32> -> vector<128x128xf32>
    %168 = arith.addf %167, %7 : vector<128x128xf32>
    %169 = vector.extract_strided_slice %168 {offsets = [0, 0], sizes = [64, 128], strides = [1, 1]} : vector<128x128xf32> to vector<64x128xf32>
    %170 = arith.negf %169 : vector<64x128xf32>
    %171 = math.exp %170 : vector<64x128xf32>
    %cst_38 = arith.constant 1.000000e+00 : f32
    %172 = vector.broadcast %cst_38 : f32 to vector<64x128xf32>
    %173 = arith.addf %172, %171 : vector<64x128xf32>
    %174 = arith.divf %172, %173 : vector<64x128xf32>
    %175 = vector.extract_strided_slice %174 {offsets = [0, 0], sizes = [32, 128], strides = [1, 1]} : vector<64x128xf32> to vector<32x128xf32>
    %176 = vector.extract_strided_slice %174 {offsets = [32, 0], sizes = [32, 128], strides = [1, 1]} : vector<64x128xf32> to vector<32x128xf32>
    %177 = vector.extract_strided_slice %168 {offsets = [64, 0], sizes = [32, 128], strides = [1, 1]} : vector<128x128xf32> to vector<32x128xf32>
    %178 = math.tanh %177 : vector<32x128xf32>
    %179 = vector.extract_strided_slice %168 {offsets = [96, 0], sizes = [32, 128], strides = [1, 1]} : vector<128x128xf32> to vector<32x128xf32>
    %180 = arith.negf %179 : vector<32x128xf32>
    %181 = math.exp %180 : vector<32x128xf32>
    %cst_39 = arith.constant 1.000000e+00 : f32
    %182 = vector.broadcast %cst_39 : f32 to vector<32x128xf32>
    %183 = arith.addf %182, %181 : vector<32x128xf32>
    %184 = arith.divf %182, %183 : vector<32x128xf32>
    %185 = arith.mulf %176, %135 : vector<32x128xf32>
    %186 = arith.mulf %175, %178 : vector<32x128xf32>
    %187 = arith.addf %185, %186 : vector<32x128xf32>
    %188 = math.tanh %187 : vector<32x128xf32>
    %189 = arith.mulf %184, %188 : vector<32x128xf32>
    %c2_i32 = arith.constant 2 : i32
    %190 = vector.broadcast %c2_i32 : i32 to vector<32x128xi32>
    %191 = arith.cmpi sgt, %10, %190 : vector<32x128xi32>
    %c13_i32 = arith.constant 13 : i32
    %192 = vector.broadcast %c13_i32 : i32 to vector<32x128xi32>
    %193 = arith.cmpi sgt, %10, %192 : vector<32x128xi32>
    %194 = arith.select %191, %164, %132 : vector<32x128xi1>, vector<32x128xf32>
    %195 = arith.select %191, %162, %133 : vector<32x128xi1>, vector<32x128xf32>
    %196 = arith.select %193, %189, %134 : vector<32x128xi1>, vector<32x128xf32>
    %197 = arith.select %193, %187, %135 : vector<32x128xi1>, vector<32x128xf32>
    %c3 = arith.constant 3 : index
    %c0_40 = arith.constant 0 : index
    %c0_41 = arith.constant 0 : index
    %198 = vector.load %arg1[%c3, %c0_40, %c0_41] : memref<16x32x128xbf16, #tpu.memory_space<vmem>>, vector<1x32x128xbf16>
    %199 = vector.shape_cast %198 : vector<1x32x128xbf16> to vector<32x128xbf16>
    %c12 = arith.constant 12 : index
    %c0_42 = arith.constant 0 : index
    %c0_43 = arith.constant 0 : index
    %200 = vector.load %arg1[%c12, %c0_42, %c0_43] : memref<16x32x128xbf16, #tpu.memory_space<vmem>>, vector<1x32x128xbf16>
    %201 = vector.shape_cast %200 : vector<1x32x128xbf16> to vector<32x128xbf16>
    %202 = arith.truncf %194 : vector<32x128xf32> to vector<32x128xbf16>
    %203 = tpu.concatenate %199, %202 in 0 : vector<32x128xbf16>, vector<32x128xbf16> -> vector<64x128xbf16>
    %cst_44 = arith.constant dense<0.000000e+00> : vector<128x128xf32>
    %204 = tpu.matmul %0, %203, %cst_44 {dimension_numbers = #tpu.dot_dimension_numbers<[1], [0], [0], [1], [0, 0, 1, 1], [], []>} : vector<128x64xbf16>, vector<64x128xbf16>, vector<128x128xf32> -> vector<128x128xf32>
    %205 = arith.addf %204, %4 : vector<128x128xf32>
    %206 = vector.extract_strided_slice %205 {offsets = [0, 0], sizes = [64, 128], strides = [1, 1]} : vector<128x128xf32> to vector<64x128xf32>
    %207 = arith.negf %206 : vector<64x128xf32>
    %208 = math.exp %207 : vector<64x128xf32>
    %cst_45 = arith.constant 1.000000e+00 : f32
    %209 = vector.broadcast %cst_45 : f32 to vector<64x128xf32>
    %210 = arith.addf %209, %208 : vector<64x128xf32>
    %211 = arith.divf %209, %210 : vector<64x128xf32>
    %212 = vector.extract_strided_slice %211 {offsets = [0, 0], sizes = [32, 128], strides = [1, 1]} : vector<64x128xf32> to vector<32x128xf32>
    %213 = vector.extract_strided_slice %211 {offsets = [32, 0], sizes = [32, 128], strides = [1, 1]} : vector<64x128xf32> to vector<32x128xf32>
    %214 = vector.extract_strided_slice %205 {offsets = [64, 0], sizes = [32, 128], strides = [1, 1]} : vector<128x128xf32> to vector<32x128xf32>
    %215 = math.tanh %214 : vector<32x128xf32>
    %216 = vector.extract_strided_slice %205 {offsets = [96, 0], sizes = [32, 128], strides = [1, 1]} : vector<128x128xf32> to vector<32x128xf32>
    %217 = arith.negf %216 : vector<32x128xf32>
    %218 = math.exp %217 : vector<32x128xf32>
    %cst_46 = arith.constant 1.000000e+00 : f32
    %219 = vector.broadcast %cst_46 : f32 to vector<32x128xf32>
    %220 = arith.addf %219, %218 : vector<32x128xf32>
    %221 = arith.divf %219, %220 : vector<32x128xf32>
    %222 = arith.mulf %213, %195 : vector<32x128xf32>
    %223 = arith.mulf %212, %215 : vector<32x128xf32>
    %224 = arith.addf %222, %223 : vector<32x128xf32>
    %225 = math.tanh %224 : vector<32x128xf32>
    %226 = arith.mulf %221, %225 : vector<32x128xf32>
    %227 = arith.truncf %196 : vector<32x128xf32> to vector<32x128xbf16>
    %228 = tpu.concatenate %201, %227 in 0 : vector<32x128xbf16>, vector<32x128xbf16> -> vector<64x128xbf16>
    %cst_47 = arith.constant dense<0.000000e+00> : vector<128x128xf32>
    %229 = tpu.matmul %1, %228, %cst_47 {dimension_numbers = #tpu.dot_dimension_numbers<[1], [0], [0], [1], [0, 0, 1, 1], [], []>} : vector<128x64xbf16>, vector<64x128xbf16>, vector<128x128xf32> -> vector<128x128xf32>
    %230 = arith.addf %229, %7 : vector<128x128xf32>
    %231 = vector.extract_strided_slice %230 {offsets = [0, 0], sizes = [64, 128], strides = [1, 1]} : vector<128x128xf32> to vector<64x128xf32>
    %232 = arith.negf %231 : vector<64x128xf32>
    %233 = math.exp %232 : vector<64x128xf32>
    %cst_48 = arith.constant 1.000000e+00 : f32
    %234 = vector.broadcast %cst_48 : f32 to vector<64x128xf32>
    %235 = arith.addf %234, %233 : vector<64x128xf32>
    %236 = arith.divf %234, %235 : vector<64x128xf32>
    %237 = vector.extract_strided_slice %236 {offsets = [0, 0], sizes = [32, 128], strides = [1, 1]} : vector<64x128xf32> to vector<32x128xf32>
    %238 = vector.extract_strided_slice %236 {offsets = [32, 0], sizes = [32, 128], strides = [1, 1]} : vector<64x128xf32> to vector<32x128xf32>
    %239 = vector.extract_strided_slice %230 {offsets = [64, 0], sizes = [32, 128], strides = [1, 1]} : vector<128x128xf32> to vector<32x128xf32>
    %240 = math.tanh %239 : vector<32x128xf32>
    %241 = vector.extract_strided_slice %230 {offsets = [96, 0], sizes = [32, 128], strides = [1, 1]} : vector<128x128xf32> to vector<32x128xf32>
    %242 = arith.negf %241 : vector<32x128xf32>
    %243 = math.exp %242 : vector<32x128xf32>
    %cst_49 = arith.constant 1.000000e+00 : f32
    %244 = vector.broadcast %cst_49 : f32 to vector<32x128xf32>
    %245 = arith.addf %244, %243 : vector<32x128xf32>
    %246 = arith.divf %244, %245 : vector<32x128xf32>
    %247 = arith.mulf %238, %197 : vector<32x128xf32>
    %248 = arith.mulf %237, %240 : vector<32x128xf32>
    %249 = arith.addf %247, %248 : vector<32x128xf32>
    %250 = math.tanh %249 : vector<32x128xf32>
    %251 = arith.mulf %246, %250 : vector<32x128xf32>
    %c3_i32 = arith.constant 3 : i32
    %252 = vector.broadcast %c3_i32 : i32 to vector<32x128xi32>
    %253 = arith.cmpi sgt, %10, %252 : vector<32x128xi32>
    %c12_i32 = arith.constant 12 : i32
    %254 = vector.broadcast %c12_i32 : i32 to vector<32x128xi32>
    %255 = arith.cmpi sgt, %10, %254 : vector<32x128xi32>
    %256 = arith.select %253, %226, %194 : vector<32x128xi1>, vector<32x128xf32>
    %257 = arith.select %253, %224, %195 : vector<32x128xi1>, vector<32x128xf32>
    %258 = arith.select %255, %251, %196 : vector<32x128xi1>, vector<32x128xf32>
    %259 = arith.select %255, %249, %197 : vector<32x128xi1>, vector<32x128xf32>
    %c4 = arith.constant 4 : index
    %c0_50 = arith.constant 0 : index
    %c0_51 = arith.constant 0 : index
    %260 = vector.load %arg1[%c4, %c0_50, %c0_51] : memref<16x32x128xbf16, #tpu.memory_space<vmem>>, vector<1x32x128xbf16>
    %261 = vector.shape_cast %260 : vector<1x32x128xbf16> to vector<32x128xbf16>
    %c11 = arith.constant 11 : index
    %c0_52 = arith.constant 0 : index
    %c0_53 = arith.constant 0 : index
    %262 = vector.load %arg1[%c11, %c0_52, %c0_53] : memref<16x32x128xbf16, #tpu.memory_space<vmem>>, vector<1x32x128xbf16>
    %263 = vector.shape_cast %262 : vector<1x32x128xbf16> to vector<32x128xbf16>
    %264 = arith.truncf %256 : vector<32x128xf32> to vector<32x128xbf16>
    %265 = tpu.concatenate %261, %264 in 0 : vector<32x128xbf16>, vector<32x128xbf16> -> vector<64x128xbf16>
    %cst_54 = arith.constant dense<0.000000e+00> : vector<128x128xf32>
    %266 = tpu.matmul %0, %265, %cst_54 {dimension_numbers = #tpu.dot_dimension_numbers<[1], [0], [0], [1], [0, 0, 1, 1], [], []>} : vector<128x64xbf16>, vector<64x128xbf16>, vector<128x128xf32> -> vector<128x128xf32>
    %267 = arith.addf %266, %4 : vector<128x128xf32>
    %268 = vector.extract_strided_slice %267 {offsets = [0, 0], sizes = [64, 128], strides = [1, 1]} : vector<128x128xf32> to vector<64x128xf32>
    %269 = arith.negf %268 : vector<64x128xf32>
    %270 = math.exp %269 : vector<64x128xf32>
    %cst_55 = arith.constant 1.000000e+00 : f32
    %271 = vector.broadcast %cst_55 : f32 to vector<64x128xf32>
    %272 = arith.addf %271, %270 : vector<64x128xf32>
    %273 = arith.divf %271, %272 : vector<64x128xf32>
    %274 = vector.extract_strided_slice %273 {offsets = [0, 0], sizes = [32, 128], strides = [1, 1]} : vector<64x128xf32> to vector<32x128xf32>
    %275 = vector.extract_strided_slice %273 {offsets = [32, 0], sizes = [32, 128], strides = [1, 1]} : vector<64x128xf32> to vector<32x128xf32>
    %276 = vector.extract_strided_slice %267 {offsets = [64, 0], sizes = [32, 128], strides = [1, 1]} : vector<128x128xf32> to vector<32x128xf32>
    %277 = math.tanh %276 : vector<32x128xf32>
    %278 = vector.extract_strided_slice %267 {offsets = [96, 0], sizes = [32, 128], strides = [1, 1]} : vector<128x128xf32> to vector<32x128xf32>
    %279 = arith.negf %278 : vector<32x128xf32>
    %280 = math.exp %279 : vector<32x128xf32>
    %cst_56 = arith.constant 1.000000e+00 : f32
    %281 = vector.broadcast %cst_56 : f32 to vector<32x128xf32>
    %282 = arith.addf %281, %280 : vector<32x128xf32>
    %283 = arith.divf %281, %282 : vector<32x128xf32>
    %284 = arith.mulf %275, %257 : vector<32x128xf32>
    %285 = arith.mulf %274, %277 : vector<32x128xf32>
    %286 = arith.addf %284, %285 : vector<32x128xf32>
    %287 = math.tanh %286 : vector<32x128xf32>
    %288 = arith.mulf %283, %287 : vector<32x128xf32>
    %289 = arith.truncf %258 : vector<32x128xf32> to vector<32x128xbf16>
    %290 = tpu.concatenate %263, %289 in 0 : vector<32x128xbf16>, vector<32x128xbf16> -> vector<64x128xbf16>
    %cst_57 = arith.constant dense<0.000000e+00> : vector<128x128xf32>
    %291 = tpu.matmul %1, %290, %cst_57 {dimension_numbers = #tpu.dot_dimension_numbers<[1], [0], [0], [1], [0, 0, 1, 1], [], []>} : vector<128x64xbf16>, vector<64x128xbf16>, vector<128x128xf32> -> vector<128x128xf32>
    %292 = arith.addf %291, %7 : vector<128x128xf32>
    %293 = vector.extract_strided_slice %292 {offsets = [0, 0], sizes = [64, 128], strides = [1, 1]} : vector<128x128xf32> to vector<64x128xf32>
    %294 = arith.negf %293 : vector<64x128xf32>
    %295 = math.exp %294 : vector<64x128xf32>
    %cst_58 = arith.constant 1.000000e+00 : f32
    %296 = vector.broadcast %cst_58 : f32 to vector<64x128xf32>
    %297 = arith.addf %296, %295 : vector<64x128xf32>
    %298 = arith.divf %296, %297 : vector<64x128xf32>
    %299 = vector.extract_strided_slice %298 {offsets = [0, 0], sizes = [32, 128], strides = [1, 1]} : vector<64x128xf32> to vector<32x128xf32>
    %300 = vector.extract_strided_slice %298 {offsets = [32, 0], sizes = [32, 128], strides = [1, 1]} : vector<64x128xf32> to vector<32x128xf32>
    %301 = vector.extract_strided_slice %292 {offsets = [64, 0], sizes = [32, 128], strides = [1, 1]} : vector<128x128xf32> to vector<32x128xf32>
    %302 = math.tanh %301 : vector<32x128xf32>
    %303 = vector.extract_strided_slice %292 {offsets = [96, 0], sizes = [32, 128], strides = [1, 1]} : vector<128x128xf32> to vector<32x128xf32>
    %304 = arith.negf %303 : vector<32x128xf32>
    %305 = math.exp %304 : vector<32x128xf32>
    %cst_59 = arith.constant 1.000000e+00 : f32
    %306 = vector.broadcast %cst_59 : f32 to vector<32x128xf32>
    %307 = arith.addf %306, %305 : vector<32x128xf32>
    %308 = arith.divf %306, %307 : vector<32x128xf32>
    %309 = arith.mulf %300, %259 : vector<32x128xf32>
    %310 = arith.mulf %299, %302 : vector<32x128xf32>
    %311 = arith.addf %309, %310 : vector<32x128xf32>
    %312 = math.tanh %311 : vector<32x128xf32>
    %313 = arith.mulf %308, %312 : vector<32x128xf32>
    %c4_i32 = arith.constant 4 : i32
    %314 = vector.broadcast %c4_i32 : i32 to vector<32x128xi32>
    %315 = arith.cmpi sgt, %10, %314 : vector<32x128xi32>
    %c11_i32 = arith.constant 11 : i32
    %316 = vector.broadcast %c11_i32 : i32 to vector<32x128xi32>
    %317 = arith.cmpi sgt, %10, %316 : vector<32x128xi32>
    %318 = arith.select %315, %288, %256 : vector<32x128xi1>, vector<32x128xf32>
    %319 = arith.select %315, %286, %257 : vector<32x128xi1>, vector<32x128xf32>
    %320 = arith.select %317, %313, %258 : vector<32x128xi1>, vector<32x128xf32>
    %321 = arith.select %317, %311, %259 : vector<32x128xi1>, vector<32x128xf32>
    %c5 = arith.constant 5 : index
    %c0_60 = arith.constant 0 : index
    %c0_61 = arith.constant 0 : index
    %322 = vector.load %arg1[%c5, %c0_60, %c0_61] : memref<16x32x128xbf16, #tpu.memory_space<vmem>>, vector<1x32x128xbf16>
    %323 = vector.shape_cast %322 : vector<1x32x128xbf16> to vector<32x128xbf16>
    %c10 = arith.constant 10 : index
    %c0_62 = arith.constant 0 : index
    %c0_63 = arith.constant 0 : index
    %324 = vector.load %arg1[%c10, %c0_62, %c0_63] : memref<16x32x128xbf16, #tpu.memory_space<vmem>>, vector<1x32x128xbf16>
    %325 = vector.shape_cast %324 : vector<1x32x128xbf16> to vector<32x128xbf16>
    %326 = arith.truncf %318 : vector<32x128xf32> to vector<32x128xbf16>
    %327 = tpu.concatenate %323, %326 in 0 : vector<32x128xbf16>, vector<32x128xbf16> -> vector<64x128xbf16>
    %cst_64 = arith.constant dense<0.000000e+00> : vector<128x128xf32>
    %328 = tpu.matmul %0, %327, %cst_64 {dimension_numbers = #tpu.dot_dimension_numbers<[1], [0], [0], [1], [0, 0, 1, 1], [], []>} : vector<128x64xbf16>, vector<64x128xbf16>, vector<128x128xf32> -> vector<128x128xf32>
    %329 = arith.addf %328, %4 : vector<128x128xf32>
    %330 = vector.extract_strided_slice %329 {offsets = [0, 0], sizes = [64, 128], strides = [1, 1]} : vector<128x128xf32> to vector<64x128xf32>
    %331 = arith.negf %330 : vector<64x128xf32>
    %332 = math.exp %331 : vector<64x128xf32>
    %cst_65 = arith.constant 1.000000e+00 : f32
    %333 = vector.broadcast %cst_65 : f32 to vector<64x128xf32>
    %334 = arith.addf %333, %332 : vector<64x128xf32>
    %335 = arith.divf %333, %334 : vector<64x128xf32>
    %336 = vector.extract_strided_slice %335 {offsets = [0, 0], sizes = [32, 128], strides = [1, 1]} : vector<64x128xf32> to vector<32x128xf32>
    %337 = vector.extract_strided_slice %335 {offsets = [32, 0], sizes = [32, 128], strides = [1, 1]} : vector<64x128xf32> to vector<32x128xf32>
    %338 = vector.extract_strided_slice %329 {offsets = [64, 0], sizes = [32, 128], strides = [1, 1]} : vector<128x128xf32> to vector<32x128xf32>
    %339 = math.tanh %338 : vector<32x128xf32>
    %340 = vector.extract_strided_slice %329 {offsets = [96, 0], sizes = [32, 128], strides = [1, 1]} : vector<128x128xf32> to vector<32x128xf32>
    %341 = arith.negf %340 : vector<32x128xf32>
    %342 = math.exp %341 : vector<32x128xf32>
    %cst_66 = arith.constant 1.000000e+00 : f32
    %343 = vector.broadcast %cst_66 : f32 to vector<32x128xf32>
    %344 = arith.addf %343, %342 : vector<32x128xf32>
    %345 = arith.divf %343, %344 : vector<32x128xf32>
    %346 = arith.mulf %337, %319 : vector<32x128xf32>
    %347 = arith.mulf %336, %339 : vector<32x128xf32>
    %348 = arith.addf %346, %347 : vector<32x128xf32>
    %349 = math.tanh %348 : vector<32x128xf32>
    %350 = arith.mulf %345, %349 : vector<32x128xf32>
    %351 = arith.truncf %320 : vector<32x128xf32> to vector<32x128xbf16>
    %352 = tpu.concatenate %325, %351 in 0 : vector<32x128xbf16>, vector<32x128xbf16> -> vector<64x128xbf16>
    %cst_67 = arith.constant dense<0.000000e+00> : vector<128x128xf32>
    %353 = tpu.matmul %1, %352, %cst_67 {dimension_numbers = #tpu.dot_dimension_numbers<[1], [0], [0], [1], [0, 0, 1, 1], [], []>} : vector<128x64xbf16>, vector<64x128xbf16>, vector<128x128xf32> -> vector<128x128xf32>
    %354 = arith.addf %353, %7 : vector<128x128xf32>
    %355 = vector.extract_strided_slice %354 {offsets = [0, 0], sizes = [64, 128], strides = [1, 1]} : vector<128x128xf32> to vector<64x128xf32>
    %356 = arith.negf %355 : vector<64x128xf32>
    %357 = math.exp %356 : vector<64x128xf32>
    %cst_68 = arith.constant 1.000000e+00 : f32
    %358 = vector.broadcast %cst_68 : f32 to vector<64x128xf32>
    %359 = arith.addf %358, %357 : vector<64x128xf32>
    %360 = arith.divf %358, %359 : vector<64x128xf32>
    %361 = vector.extract_strided_slice %360 {offsets = [0, 0], sizes = [32, 128], strides = [1, 1]} : vector<64x128xf32> to vector<32x128xf32>
    %362 = vector.extract_strided_slice %360 {offsets = [32, 0], sizes = [32, 128], strides = [1, 1]} : vector<64x128xf32> to vector<32x128xf32>
    %363 = vector.extract_strided_slice %354 {offsets = [64, 0], sizes = [32, 128], strides = [1, 1]} : vector<128x128xf32> to vector<32x128xf32>
    %364 = math.tanh %363 : vector<32x128xf32>
    %365 = vector.extract_strided_slice %354 {offsets = [96, 0], sizes = [32, 128], strides = [1, 1]} : vector<128x128xf32> to vector<32x128xf32>
    %366 = arith.negf %365 : vector<32x128xf32>
    %367 = math.exp %366 : vector<32x128xf32>
    %cst_69 = arith.constant 1.000000e+00 : f32
    %368 = vector.broadcast %cst_69 : f32 to vector<32x128xf32>
    %369 = arith.addf %368, %367 : vector<32x128xf32>
    %370 = arith.divf %368, %369 : vector<32x128xf32>
    %371 = arith.mulf %362, %321 : vector<32x128xf32>
    %372 = arith.mulf %361, %364 : vector<32x128xf32>
    %373 = arith.addf %371, %372 : vector<32x128xf32>
    %374 = math.tanh %373 : vector<32x128xf32>
    %375 = arith.mulf %370, %374 : vector<32x128xf32>
    %c5_i32 = arith.constant 5 : i32
    %376 = vector.broadcast %c5_i32 : i32 to vector<32x128xi32>
    %377 = arith.cmpi sgt, %10, %376 : vector<32x128xi32>
    %c10_i32 = arith.constant 10 : i32
    %378 = vector.broadcast %c10_i32 : i32 to vector<32x128xi32>
    %379 = arith.cmpi sgt, %10, %378 : vector<32x128xi32>
    %380 = arith.select %377, %350, %318 : vector<32x128xi1>, vector<32x128xf32>
    %381 = arith.select %377, %348, %319 : vector<32x128xi1>, vector<32x128xf32>
    %382 = arith.select %379, %375, %320 : vector<32x128xi1>, vector<32x128xf32>
    %383 = arith.select %379, %373, %321 : vector<32x128xi1>, vector<32x128xf32>
    %c6 = arith.constant 6 : index
    %c0_70 = arith.constant 0 : index
    %c0_71 = arith.constant 0 : index
    %384 = vector.load %arg1[%c6, %c0_70, %c0_71] : memref<16x32x128xbf16, #tpu.memory_space<vmem>>, vector<1x32x128xbf16>
    %385 = vector.shape_cast %384 : vector<1x32x128xbf16> to vector<32x128xbf16>
    %c9 = arith.constant 9 : index
    %c0_72 = arith.constant 0 : index
    %c0_73 = arith.constant 0 : index
    %386 = vector.load %arg1[%c9, %c0_72, %c0_73] : memref<16x32x128xbf16, #tpu.memory_space<vmem>>, vector<1x32x128xbf16>
    %387 = vector.shape_cast %386 : vector<1x32x128xbf16> to vector<32x128xbf16>
    %388 = arith.truncf %380 : vector<32x128xf32> to vector<32x128xbf16>
    %389 = tpu.concatenate %385, %388 in 0 : vector<32x128xbf16>, vector<32x128xbf16> -> vector<64x128xbf16>
    %cst_74 = arith.constant dense<0.000000e+00> : vector<128x128xf32>
    %390 = tpu.matmul %0, %389, %cst_74 {dimension_numbers = #tpu.dot_dimension_numbers<[1], [0], [0], [1], [0, 0, 1, 1], [], []>} : vector<128x64xbf16>, vector<64x128xbf16>, vector<128x128xf32> -> vector<128x128xf32>
    %391 = arith.addf %390, %4 : vector<128x128xf32>
    %392 = vector.extract_strided_slice %391 {offsets = [0, 0], sizes = [64, 128], strides = [1, 1]} : vector<128x128xf32> to vector<64x128xf32>
    %393 = arith.negf %392 : vector<64x128xf32>
    %394 = math.exp %393 : vector<64x128xf32>
    %cst_75 = arith.constant 1.000000e+00 : f32
    %395 = vector.broadcast %cst_75 : f32 to vector<64x128xf32>
    %396 = arith.addf %395, %394 : vector<64x128xf32>
    %397 = arith.divf %395, %396 : vector<64x128xf32>
    %398 = vector.extract_strided_slice %397 {offsets = [0, 0], sizes = [32, 128], strides = [1, 1]} : vector<64x128xf32> to vector<32x128xf32>
    %399 = vector.extract_strided_slice %397 {offsets = [32, 0], sizes = [32, 128], strides = [1, 1]} : vector<64x128xf32> to vector<32x128xf32>
    %400 = vector.extract_strided_slice %391 {offsets = [64, 0], sizes = [32, 128], strides = [1, 1]} : vector<128x128xf32> to vector<32x128xf32>
    %401 = math.tanh %400 : vector<32x128xf32>
    %402 = vector.extract_strided_slice %391 {offsets = [96, 0], sizes = [32, 128], strides = [1, 1]} : vector<128x128xf32> to vector<32x128xf32>
    %403 = arith.negf %402 : vector<32x128xf32>
    %404 = math.exp %403 : vector<32x128xf32>
    %cst_76 = arith.constant 1.000000e+00 : f32
    %405 = vector.broadcast %cst_76 : f32 to vector<32x128xf32>
    %406 = arith.addf %405, %404 : vector<32x128xf32>
    %407 = arith.divf %405, %406 : vector<32x128xf32>
    %408 = arith.mulf %399, %381 : vector<32x128xf32>
    %409 = arith.mulf %398, %401 : vector<32x128xf32>
    %410 = arith.addf %408, %409 : vector<32x128xf32>
    %411 = math.tanh %410 : vector<32x128xf32>
    %412 = arith.mulf %407, %411 : vector<32x128xf32>
    %413 = arith.truncf %382 : vector<32x128xf32> to vector<32x128xbf16>
    %414 = tpu.concatenate %387, %413 in 0 : vector<32x128xbf16>, vector<32x128xbf16> -> vector<64x128xbf16>
    %cst_77 = arith.constant dense<0.000000e+00> : vector<128x128xf32>
    %415 = tpu.matmul %1, %414, %cst_77 {dimension_numbers = #tpu.dot_dimension_numbers<[1], [0], [0], [1], [0, 0, 1, 1], [], []>} : vector<128x64xbf16>, vector<64x128xbf16>, vector<128x128xf32> -> vector<128x128xf32>
    %416 = arith.addf %415, %7 : vector<128x128xf32>
    %417 = vector.extract_strided_slice %416 {offsets = [0, 0], sizes = [64, 128], strides = [1, 1]} : vector<128x128xf32> to vector<64x128xf32>
    %418 = arith.negf %417 : vector<64x128xf32>
    %419 = math.exp %418 : vector<64x128xf32>
    %cst_78 = arith.constant 1.000000e+00 : f32
    %420 = vector.broadcast %cst_78 : f32 to vector<64x128xf32>
    %421 = arith.addf %420, %419 : vector<64x128xf32>
    %422 = arith.divf %420, %421 : vector<64x128xf32>
    %423 = vector.extract_strided_slice %422 {offsets = [0, 0], sizes = [32, 128], strides = [1, 1]} : vector<64x128xf32> to vector<32x128xf32>
    %424 = vector.extract_strided_slice %422 {offsets = [32, 0], sizes = [32, 128], strides = [1, 1]} : vector<64x128xf32> to vector<32x128xf32>
    %425 = vector.extract_strided_slice %416 {offsets = [64, 0], sizes = [32, 128], strides = [1, 1]} : vector<128x128xf32> to vector<32x128xf32>
    %426 = math.tanh %425 : vector<32x128xf32>
    %427 = vector.extract_strided_slice %416 {offsets = [96, 0], sizes = [32, 128], strides = [1, 1]} : vector<128x128xf32> to vector<32x128xf32>
    %428 = arith.negf %427 : vector<32x128xf32>
    %429 = math.exp %428 : vector<32x128xf32>
    %cst_79 = arith.constant 1.000000e+00 : f32
    %430 = vector.broadcast %cst_79 : f32 to vector<32x128xf32>
    %431 = arith.addf %430, %429 : vector<32x128xf32>
    %432 = arith.divf %430, %431 : vector<32x128xf32>
    %433 = arith.mulf %424, %383 : vector<32x128xf32>
    %434 = arith.mulf %423, %426 : vector<32x128xf32>
    %435 = arith.addf %433, %434 : vector<32x128xf32>
    %436 = math.tanh %435 : vector<32x128xf32>
    %437 = arith.mulf %432, %436 : vector<32x128xf32>
    %c6_i32 = arith.constant 6 : i32
    %438 = vector.broadcast %c6_i32 : i32 to vector<32x128xi32>
    %439 = arith.cmpi sgt, %10, %438 : vector<32x128xi32>
    %c9_i32 = arith.constant 9 : i32
    %440 = vector.broadcast %c9_i32 : i32 to vector<32x128xi32>
    %441 = arith.cmpi sgt, %10, %440 : vector<32x128xi32>
    %442 = arith.select %439, %412, %380 : vector<32x128xi1>, vector<32x128xf32>
    %443 = arith.select %439, %410, %381 : vector<32x128xi1>, vector<32x128xf32>
    %444 = arith.select %441, %437, %382 : vector<32x128xi1>, vector<32x128xf32>
    %445 = arith.select %441, %435, %383 : vector<32x128xi1>, vector<32x128xf32>
    %c7 = arith.constant 7 : index
    %c0_80 = arith.constant 0 : index
    %c0_81 = arith.constant 0 : index
    %446 = vector.load %arg1[%c7, %c0_80, %c0_81] : memref<16x32x128xbf16, #tpu.memory_space<vmem>>, vector<1x32x128xbf16>
    %447 = vector.shape_cast %446 : vector<1x32x128xbf16> to vector<32x128xbf16>
    %c8 = arith.constant 8 : index
    %c0_82 = arith.constant 0 : index
    %c0_83 = arith.constant 0 : index
    %448 = vector.load %arg1[%c8, %c0_82, %c0_83] : memref<16x32x128xbf16, #tpu.memory_space<vmem>>, vector<1x32x128xbf16>
    %449 = vector.shape_cast %448 : vector<1x32x128xbf16> to vector<32x128xbf16>
    %450 = arith.truncf %442 : vector<32x128xf32> to vector<32x128xbf16>
    %451 = tpu.concatenate %447, %450 in 0 : vector<32x128xbf16>, vector<32x128xbf16> -> vector<64x128xbf16>
    %cst_84 = arith.constant dense<0.000000e+00> : vector<128x128xf32>
    %452 = tpu.matmul %0, %451, %cst_84 {dimension_numbers = #tpu.dot_dimension_numbers<[1], [0], [0], [1], [0, 0, 1, 1], [], []>} : vector<128x64xbf16>, vector<64x128xbf16>, vector<128x128xf32> -> vector<128x128xf32>
    %453 = arith.addf %452, %4 : vector<128x128xf32>
    %454 = vector.extract_strided_slice %453 {offsets = [0, 0], sizes = [64, 128], strides = [1, 1]} : vector<128x128xf32> to vector<64x128xf32>
    %455 = arith.negf %454 : vector<64x128xf32>
    %456 = math.exp %455 : vector<64x128xf32>
    %cst_85 = arith.constant 1.000000e+00 : f32
    %457 = vector.broadcast %cst_85 : f32 to vector<64x128xf32>
    %458 = arith.addf %457, %456 : vector<64x128xf32>
    %459 = arith.divf %457, %458 : vector<64x128xf32>
    %460 = vector.extract_strided_slice %459 {offsets = [0, 0], sizes = [32, 128], strides = [1, 1]} : vector<64x128xf32> to vector<32x128xf32>
    %461 = vector.extract_strided_slice %459 {offsets = [32, 0], sizes = [32, 128], strides = [1, 1]} : vector<64x128xf32> to vector<32x128xf32>
    %462 = vector.extract_strided_slice %453 {offsets = [64, 0], sizes = [32, 128], strides = [1, 1]} : vector<128x128xf32> to vector<32x128xf32>
    %463 = math.tanh %462 : vector<32x128xf32>
    %464 = vector.extract_strided_slice %453 {offsets = [96, 0], sizes = [32, 128], strides = [1, 1]} : vector<128x128xf32> to vector<32x128xf32>
    %465 = arith.negf %464 : vector<32x128xf32>
    %466 = math.exp %465 : vector<32x128xf32>
    %cst_86 = arith.constant 1.000000e+00 : f32
    %467 = vector.broadcast %cst_86 : f32 to vector<32x128xf32>
    %468 = arith.addf %467, %466 : vector<32x128xf32>
    %469 = arith.divf %467, %468 : vector<32x128xf32>
    %470 = arith.mulf %461, %443 : vector<32x128xf32>
    %471 = arith.mulf %460, %463 : vector<32x128xf32>
    %472 = arith.addf %470, %471 : vector<32x128xf32>
    %473 = math.tanh %472 : vector<32x128xf32>
    %474 = arith.mulf %469, %473 : vector<32x128xf32>
    %475 = arith.truncf %444 : vector<32x128xf32> to vector<32x128xbf16>
    %476 = tpu.concatenate %449, %475 in 0 : vector<32x128xbf16>, vector<32x128xbf16> -> vector<64x128xbf16>
    %cst_87 = arith.constant dense<0.000000e+00> : vector<128x128xf32>
    %477 = tpu.matmul %1, %476, %cst_87 {dimension_numbers = #tpu.dot_dimension_numbers<[1], [0], [0], [1], [0, 0, 1, 1], [], []>} : vector<128x64xbf16>, vector<64x128xbf16>, vector<128x128xf32> -> vector<128x128xf32>
    %478 = arith.addf %477, %7 : vector<128x128xf32>
    %479 = vector.extract_strided_slice %478 {offsets = [0, 0], sizes = [64, 128], strides = [1, 1]} : vector<128x128xf32> to vector<64x128xf32>
    %480 = arith.negf %479 : vector<64x128xf32>
    %481 = math.exp %480 : vector<64x128xf32>
    %cst_88 = arith.constant 1.000000e+00 : f32
    %482 = vector.broadcast %cst_88 : f32 to vector<64x128xf32>
    %483 = arith.addf %482, %481 : vector<64x128xf32>
    %484 = arith.divf %482, %483 : vector<64x128xf32>
    %485 = vector.extract_strided_slice %484 {offsets = [0, 0], sizes = [32, 128], strides = [1, 1]} : vector<64x128xf32> to vector<32x128xf32>
    %486 = vector.extract_strided_slice %484 {offsets = [32, 0], sizes = [32, 128], strides = [1, 1]} : vector<64x128xf32> to vector<32x128xf32>
    %487 = vector.extract_strided_slice %478 {offsets = [64, 0], sizes = [32, 128], strides = [1, 1]} : vector<128x128xf32> to vector<32x128xf32>
    %488 = math.tanh %487 : vector<32x128xf32>
    %489 = vector.extract_strided_slice %478 {offsets = [96, 0], sizes = [32, 128], strides = [1, 1]} : vector<128x128xf32> to vector<32x128xf32>
    %490 = arith.negf %489 : vector<32x128xf32>
    %491 = math.exp %490 : vector<32x128xf32>
    %cst_89 = arith.constant 1.000000e+00 : f32
    %492 = vector.broadcast %cst_89 : f32 to vector<32x128xf32>
    %493 = arith.addf %492, %491 : vector<32x128xf32>
    %494 = arith.divf %492, %493 : vector<32x128xf32>
    %495 = arith.mulf %486, %445 : vector<32x128xf32>
    %496 = arith.mulf %485, %488 : vector<32x128xf32>
    %497 = arith.addf %495, %496 : vector<32x128xf32>
    %498 = math.tanh %497 : vector<32x128xf32>
    %499 = arith.mulf %494, %498 : vector<32x128xf32>
    %c7_i32 = arith.constant 7 : i32
    %500 = vector.broadcast %c7_i32 : i32 to vector<32x128xi32>
    %501 = arith.cmpi sgt, %10, %500 : vector<32x128xi32>
    %c8_i32 = arith.constant 8 : i32
    %502 = vector.broadcast %c8_i32 : i32 to vector<32x128xi32>
    %503 = arith.cmpi sgt, %10, %502 : vector<32x128xi32>
    %504 = arith.select %501, %474, %442 : vector<32x128xi1>, vector<32x128xf32>
    %505 = arith.select %501, %472, %443 : vector<32x128xi1>, vector<32x128xf32>
    %506 = arith.select %503, %499, %444 : vector<32x128xi1>, vector<32x128xf32>
    %507 = arith.select %503, %497, %445 : vector<32x128xi1>, vector<32x128xf32>
    %c8_90 = arith.constant 8 : index
    %c0_91 = arith.constant 0 : index
    %c0_92 = arith.constant 0 : index
    %508 = vector.load %arg1[%c8_90, %c0_91, %c0_92] : memref<16x32x128xbf16, #tpu.memory_space<vmem>>, vector<1x32x128xbf16>
    %509 = vector.shape_cast %508 : vector<1x32x128xbf16> to vector<32x128xbf16>
    %c7_93 = arith.constant 7 : index
    %c0_94 = arith.constant 0 : index
    %c0_95 = arith.constant 0 : index
    %510 = vector.load %arg1[%c7_93, %c0_94, %c0_95] : memref<16x32x128xbf16, #tpu.memory_space<vmem>>, vector<1x32x128xbf16>
    %511 = vector.shape_cast %510 : vector<1x32x128xbf16> to vector<32x128xbf16>
    %512 = arith.truncf %504 : vector<32x128xf32> to vector<32x128xbf16>
    %513 = tpu.concatenate %509, %512 in 0 : vector<32x128xbf16>, vector<32x128xbf16> -> vector<64x128xbf16>
    %cst_96 = arith.constant dense<0.000000e+00> : vector<128x128xf32>
    %514 = tpu.matmul %0, %513, %cst_96 {dimension_numbers = #tpu.dot_dimension_numbers<[1], [0], [0], [1], [0, 0, 1, 1], [], []>} : vector<128x64xbf16>, vector<64x128xbf16>, vector<128x128xf32> -> vector<128x128xf32>
    %515 = arith.addf %514, %4 : vector<128x128xf32>
    %516 = vector.extract_strided_slice %515 {offsets = [0, 0], sizes = [64, 128], strides = [1, 1]} : vector<128x128xf32> to vector<64x128xf32>
    %517 = arith.negf %516 : vector<64x128xf32>
    %518 = math.exp %517 : vector<64x128xf32>
    %cst_97 = arith.constant 1.000000e+00 : f32
    %519 = vector.broadcast %cst_97 : f32 to vector<64x128xf32>
    %520 = arith.addf %519, %518 : vector<64x128xf32>
    %521 = arith.divf %519, %520 : vector<64x128xf32>
    %522 = vector.extract_strided_slice %521 {offsets = [0, 0], sizes = [32, 128], strides = [1, 1]} : vector<64x128xf32> to vector<32x128xf32>
    %523 = vector.extract_strided_slice %521 {offsets = [32, 0], sizes = [32, 128], strides = [1, 1]} : vector<64x128xf32> to vector<32x128xf32>
    %524 = vector.extract_strided_slice %515 {offsets = [64, 0], sizes = [32, 128], strides = [1, 1]} : vector<128x128xf32> to vector<32x128xf32>
    %525 = math.tanh %524 : vector<32x128xf32>
    %526 = vector.extract_strided_slice %515 {offsets = [96, 0], sizes = [32, 128], strides = [1, 1]} : vector<128x128xf32> to vector<32x128xf32>
    %527 = arith.negf %526 : vector<32x128xf32>
    %528 = math.exp %527 : vector<32x128xf32>
    %cst_98 = arith.constant 1.000000e+00 : f32
    %529 = vector.broadcast %cst_98 : f32 to vector<32x128xf32>
    %530 = arith.addf %529, %528 : vector<32x128xf32>
    %531 = arith.divf %529, %530 : vector<32x128xf32>
    %532 = arith.mulf %523, %505 : vector<32x128xf32>
    %533 = arith.mulf %522, %525 : vector<32x128xf32>
    %534 = arith.addf %532, %533 : vector<32x128xf32>
    %535 = math.tanh %534 : vector<32x128xf32>
    %536 = arith.mulf %531, %535 : vector<32x128xf32>
    %537 = arith.truncf %506 : vector<32x128xf32> to vector<32x128xbf16>
    %538 = tpu.concatenate %511, %537 in 0 : vector<32x128xbf16>, vector<32x128xbf16> -> vector<64x128xbf16>
    %cst_99 = arith.constant dense<0.000000e+00> : vector<128x128xf32>
    %539 = tpu.matmul %1, %538, %cst_99 {dimension_numbers = #tpu.dot_dimension_numbers<[1], [0], [0], [1], [0, 0, 1, 1], [], []>} : vector<128x64xbf16>, vector<64x128xbf16>, vector<128x128xf32> -> vector<128x128xf32>
    %540 = arith.addf %539, %7 : vector<128x128xf32>
    %541 = vector.extract_strided_slice %540 {offsets = [0, 0], sizes = [64, 128], strides = [1, 1]} : vector<128x128xf32> to vector<64x128xf32>
    %542 = arith.negf %541 : vector<64x128xf32>
    %543 = math.exp %542 : vector<64x128xf32>
    %cst_100 = arith.constant 1.000000e+00 : f32
    %544 = vector.broadcast %cst_100 : f32 to vector<64x128xf32>
    %545 = arith.addf %544, %543 : vector<64x128xf32>
    %546 = arith.divf %544, %545 : vector<64x128xf32>
    %547 = vector.extract_strided_slice %546 {offsets = [0, 0], sizes = [32, 128], strides = [1, 1]} : vector<64x128xf32> to vector<32x128xf32>
    %548 = vector.extract_strided_slice %546 {offsets = [32, 0], sizes = [32, 128], strides = [1, 1]} : vector<64x128xf32> to vector<32x128xf32>
    %549 = vector.extract_strided_slice %540 {offsets = [64, 0], sizes = [32, 128], strides = [1, 1]} : vector<128x128xf32> to vector<32x128xf32>
    %550 = math.tanh %549 : vector<32x128xf32>
    %551 = vector.extract_strided_slice %540 {offsets = [96, 0], sizes = [32, 128], strides = [1, 1]} : vector<128x128xf32> to vector<32x128xf32>
    %552 = arith.negf %551 : vector<32x128xf32>
    %553 = math.exp %552 : vector<32x128xf32>
    %cst_101 = arith.constant 1.000000e+00 : f32
    %554 = vector.broadcast %cst_101 : f32 to vector<32x128xf32>
    %555 = arith.addf %554, %553 : vector<32x128xf32>
    %556 = arith.divf %554, %555 : vector<32x128xf32>
    %557 = arith.mulf %548, %507 : vector<32x128xf32>
    %558 = arith.mulf %547, %550 : vector<32x128xf32>
    %559 = arith.addf %557, %558 : vector<32x128xf32>
    %560 = math.tanh %559 : vector<32x128xf32>
    %561 = arith.mulf %556, %560 : vector<32x128xf32>
    %c8_i32_102 = arith.constant 8 : i32
    %562 = vector.broadcast %c8_i32_102 : i32 to vector<32x128xi32>
    %563 = arith.cmpi sgt, %10, %562 : vector<32x128xi32>
    %c7_i32_103 = arith.constant 7 : i32
    %564 = vector.broadcast %c7_i32_103 : i32 to vector<32x128xi32>
    %565 = arith.cmpi sgt, %10, %564 : vector<32x128xi32>
    %566 = arith.select %563, %536, %504 : vector<32x128xi1>, vector<32x128xf32>
    %567 = arith.select %563, %534, %505 : vector<32x128xi1>, vector<32x128xf32>
    %568 = arith.select %565, %561, %506 : vector<32x128xi1>, vector<32x128xf32>
    %569 = arith.select %565, %559, %507 : vector<32x128xi1>, vector<32x128xf32>
    %c9_104 = arith.constant 9 : index
    %c0_105 = arith.constant 0 : index
    %c0_106 = arith.constant 0 : index
    %570 = vector.load %arg1[%c9_104, %c0_105, %c0_106] : memref<16x32x128xbf16, #tpu.memory_space<vmem>>, vector<1x32x128xbf16>
    %571 = vector.shape_cast %570 : vector<1x32x128xbf16> to vector<32x128xbf16>
    %c6_107 = arith.constant 6 : index
    %c0_108 = arith.constant 0 : index
    %c0_109 = arith.constant 0 : index
    %572 = vector.load %arg1[%c6_107, %c0_108, %c0_109] : memref<16x32x128xbf16, #tpu.memory_space<vmem>>, vector<1x32x128xbf16>
    %573 = vector.shape_cast %572 : vector<1x32x128xbf16> to vector<32x128xbf16>
    %574 = arith.truncf %566 : vector<32x128xf32> to vector<32x128xbf16>
    %575 = tpu.concatenate %571, %574 in 0 : vector<32x128xbf16>, vector<32x128xbf16> -> vector<64x128xbf16>
    %cst_110 = arith.constant dense<0.000000e+00> : vector<128x128xf32>
    %576 = tpu.matmul %0, %575, %cst_110 {dimension_numbers = #tpu.dot_dimension_numbers<[1], [0], [0], [1], [0, 0, 1, 1], [], []>} : vector<128x64xbf16>, vector<64x128xbf16>, vector<128x128xf32> -> vector<128x128xf32>
    %577 = arith.addf %576, %4 : vector<128x128xf32>
    %578 = vector.extract_strided_slice %577 {offsets = [0, 0], sizes = [64, 128], strides = [1, 1]} : vector<128x128xf32> to vector<64x128xf32>
    %579 = arith.negf %578 : vector<64x128xf32>
    %580 = math.exp %579 : vector<64x128xf32>
    %cst_111 = arith.constant 1.000000e+00 : f32
    %581 = vector.broadcast %cst_111 : f32 to vector<64x128xf32>
    %582 = arith.addf %581, %580 : vector<64x128xf32>
    %583 = arith.divf %581, %582 : vector<64x128xf32>
    %584 = vector.extract_strided_slice %583 {offsets = [0, 0], sizes = [32, 128], strides = [1, 1]} : vector<64x128xf32> to vector<32x128xf32>
    %585 = vector.extract_strided_slice %583 {offsets = [32, 0], sizes = [32, 128], strides = [1, 1]} : vector<64x128xf32> to vector<32x128xf32>
    %586 = vector.extract_strided_slice %577 {offsets = [64, 0], sizes = [32, 128], strides = [1, 1]} : vector<128x128xf32> to vector<32x128xf32>
    %587 = math.tanh %586 : vector<32x128xf32>
    %588 = vector.extract_strided_slice %577 {offsets = [96, 0], sizes = [32, 128], strides = [1, 1]} : vector<128x128xf32> to vector<32x128xf32>
    %589 = arith.negf %588 : vector<32x128xf32>
    %590 = math.exp %589 : vector<32x128xf32>
    %cst_112 = arith.constant 1.000000e+00 : f32
    %591 = vector.broadcast %cst_112 : f32 to vector<32x128xf32>
    %592 = arith.addf %591, %590 : vector<32x128xf32>
    %593 = arith.divf %591, %592 : vector<32x128xf32>
    %594 = arith.mulf %585, %567 : vector<32x128xf32>
    %595 = arith.mulf %584, %587 : vector<32x128xf32>
    %596 = arith.addf %594, %595 : vector<32x128xf32>
    %597 = math.tanh %596 : vector<32x128xf32>
    %598 = arith.mulf %593, %597 : vector<32x128xf32>
    %599 = arith.truncf %568 : vector<32x128xf32> to vector<32x128xbf16>
    %600 = tpu.concatenate %573, %599 in 0 : vector<32x128xbf16>, vector<32x128xbf16> -> vector<64x128xbf16>
    %cst_113 = arith.constant dense<0.000000e+00> : vector<128x128xf32>
    %601 = tpu.matmul %1, %600, %cst_113 {dimension_numbers = #tpu.dot_dimension_numbers<[1], [0], [0], [1], [0, 0, 1, 1], [], []>} : vector<128x64xbf16>, vector<64x128xbf16>, vector<128x128xf32> -> vector<128x128xf32>
    %602 = arith.addf %601, %7 : vector<128x128xf32>
    %603 = vector.extract_strided_slice %602 {offsets = [0, 0], sizes = [64, 128], strides = [1, 1]} : vector<128x128xf32> to vector<64x128xf32>
    %604 = arith.negf %603 : vector<64x128xf32>
    %605 = math.exp %604 : vector<64x128xf32>
    %cst_114 = arith.constant 1.000000e+00 : f32
    %606 = vector.broadcast %cst_114 : f32 to vector<64x128xf32>
    %607 = arith.addf %606, %605 : vector<64x128xf32>
    %608 = arith.divf %606, %607 : vector<64x128xf32>
    %609 = vector.extract_strided_slice %608 {offsets = [0, 0], sizes = [32, 128], strides = [1, 1]} : vector<64x128xf32> to vector<32x128xf32>
    %610 = vector.extract_strided_slice %608 {offsets = [32, 0], sizes = [32, 128], strides = [1, 1]} : vector<64x128xf32> to vector<32x128xf32>
    %611 = vector.extract_strided_slice %602 {offsets = [64, 0], sizes = [32, 128], strides = [1, 1]} : vector<128x128xf32> to vector<32x128xf32>
    %612 = math.tanh %611 : vector<32x128xf32>
    %613 = vector.extract_strided_slice %602 {offsets = [96, 0], sizes = [32, 128], strides = [1, 1]} : vector<128x128xf32> to vector<32x128xf32>
    %614 = arith.negf %613 : vector<32x128xf32>
    %615 = math.exp %614 : vector<32x128xf32>
    %cst_115 = arith.constant 1.000000e+00 : f32
    %616 = vector.broadcast %cst_115 : f32 to vector<32x128xf32>
    %617 = arith.addf %616, %615 : vector<32x128xf32>
    %618 = arith.divf %616, %617 : vector<32x128xf32>
    %619 = arith.mulf %610, %569 : vector<32x128xf32>
    %620 = arith.mulf %609, %612 : vector<32x128xf32>
    %621 = arith.addf %619, %620 : vector<32x128xf32>
    %622 = math.tanh %621 : vector<32x128xf32>
    %623 = arith.mulf %618, %622 : vector<32x128xf32>
    %c9_i32_116 = arith.constant 9 : i32
    %624 = vector.broadcast %c9_i32_116 : i32 to vector<32x128xi32>
    %625 = arith.cmpi sgt, %10, %624 : vector<32x128xi32>
    %c6_i32_117 = arith.constant 6 : i32
    %626 = vector.broadcast %c6_i32_117 : i32 to vector<32x128xi32>
    %627 = arith.cmpi sgt, %10, %626 : vector<32x128xi32>
    %628 = arith.select %625, %598, %566 : vector<32x128xi1>, vector<32x128xf32>
    %629 = arith.select %625, %596, %567 : vector<32x128xi1>, vector<32x128xf32>
    %630 = arith.select %627, %623, %568 : vector<32x128xi1>, vector<32x128xf32>
    %631 = arith.select %627, %621, %569 : vector<32x128xi1>, vector<32x128xf32>
    %c10_118 = arith.constant 10 : index
    %c0_119 = arith.constant 0 : index
    %c0_120 = arith.constant 0 : index
    %632 = vector.load %arg1[%c10_118, %c0_119, %c0_120] : memref<16x32x128xbf16, #tpu.memory_space<vmem>>, vector<1x32x128xbf16>
    %633 = vector.shape_cast %632 : vector<1x32x128xbf16> to vector<32x128xbf16>
    %c5_121 = arith.constant 5 : index
    %c0_122 = arith.constant 0 : index
    %c0_123 = arith.constant 0 : index
    %634 = vector.load %arg1[%c5_121, %c0_122, %c0_123] : memref<16x32x128xbf16, #tpu.memory_space<vmem>>, vector<1x32x128xbf16>
    %635 = vector.shape_cast %634 : vector<1x32x128xbf16> to vector<32x128xbf16>
    %636 = arith.truncf %628 : vector<32x128xf32> to vector<32x128xbf16>
    %637 = tpu.concatenate %633, %636 in 0 : vector<32x128xbf16>, vector<32x128xbf16> -> vector<64x128xbf16>
    %cst_124 = arith.constant dense<0.000000e+00> : vector<128x128xf32>
    %638 = tpu.matmul %0, %637, %cst_124 {dimension_numbers = #tpu.dot_dimension_numbers<[1], [0], [0], [1], [0, 0, 1, 1], [], []>} : vector<128x64xbf16>, vector<64x128xbf16>, vector<128x128xf32> -> vector<128x128xf32>
    %639 = arith.addf %638, %4 : vector<128x128xf32>
    %640 = vector.extract_strided_slice %639 {offsets = [0, 0], sizes = [64, 128], strides = [1, 1]} : vector<128x128xf32> to vector<64x128xf32>
    %641 = arith.negf %640 : vector<64x128xf32>
    %642 = math.exp %641 : vector<64x128xf32>
    %cst_125 = arith.constant 1.000000e+00 : f32
    %643 = vector.broadcast %cst_125 : f32 to vector<64x128xf32>
    %644 = arith.addf %643, %642 : vector<64x128xf32>
    %645 = arith.divf %643, %644 : vector<64x128xf32>
    %646 = vector.extract_strided_slice %645 {offsets = [0, 0], sizes = [32, 128], strides = [1, 1]} : vector<64x128xf32> to vector<32x128xf32>
    %647 = vector.extract_strided_slice %645 {offsets = [32, 0], sizes = [32, 128], strides = [1, 1]} : vector<64x128xf32> to vector<32x128xf32>
    %648 = vector.extract_strided_slice %639 {offsets = [64, 0], sizes = [32, 128], strides = [1, 1]} : vector<128x128xf32> to vector<32x128xf32>
    %649 = math.tanh %648 : vector<32x128xf32>
    %650 = vector.extract_strided_slice %639 {offsets = [96, 0], sizes = [32, 128], strides = [1, 1]} : vector<128x128xf32> to vector<32x128xf32>
    %651 = arith.negf %650 : vector<32x128xf32>
    %652 = math.exp %651 : vector<32x128xf32>
    %cst_126 = arith.constant 1.000000e+00 : f32
    %653 = vector.broadcast %cst_126 : f32 to vector<32x128xf32>
    %654 = arith.addf %653, %652 : vector<32x128xf32>
    %655 = arith.divf %653, %654 : vector<32x128xf32>
    %656 = arith.mulf %647, %629 : vector<32x128xf32>
    %657 = arith.mulf %646, %649 : vector<32x128xf32>
    %658 = arith.addf %656, %657 : vector<32x128xf32>
    %659 = math.tanh %658 : vector<32x128xf32>
    %660 = arith.mulf %655, %659 : vector<32x128xf32>
    %661 = arith.truncf %630 : vector<32x128xf32> to vector<32x128xbf16>
    %662 = tpu.concatenate %635, %661 in 0 : vector<32x128xbf16>, vector<32x128xbf16> -> vector<64x128xbf16>
    %cst_127 = arith.constant dense<0.000000e+00> : vector<128x128xf32>
    %663 = tpu.matmul %1, %662, %cst_127 {dimension_numbers = #tpu.dot_dimension_numbers<[1], [0], [0], [1], [0, 0, 1, 1], [], []>} : vector<128x64xbf16>, vector<64x128xbf16>, vector<128x128xf32> -> vector<128x128xf32>
    %664 = arith.addf %663, %7 : vector<128x128xf32>
    %665 = vector.extract_strided_slice %664 {offsets = [0, 0], sizes = [64, 128], strides = [1, 1]} : vector<128x128xf32> to vector<64x128xf32>
    %666 = arith.negf %665 : vector<64x128xf32>
    %667 = math.exp %666 : vector<64x128xf32>
    %cst_128 = arith.constant 1.000000e+00 : f32
    %668 = vector.broadcast %cst_128 : f32 to vector<64x128xf32>
    %669 = arith.addf %668, %667 : vector<64x128xf32>
    %670 = arith.divf %668, %669 : vector<64x128xf32>
    %671 = vector.extract_strided_slice %670 {offsets = [0, 0], sizes = [32, 128], strides = [1, 1]} : vector<64x128xf32> to vector<32x128xf32>
    %672 = vector.extract_strided_slice %670 {offsets = [32, 0], sizes = [32, 128], strides = [1, 1]} : vector<64x128xf32> to vector<32x128xf32>
    %673 = vector.extract_strided_slice %664 {offsets = [64, 0], sizes = [32, 128], strides = [1, 1]} : vector<128x128xf32> to vector<32x128xf32>
    %674 = math.tanh %673 : vector<32x128xf32>
    %675 = vector.extract_strided_slice %664 {offsets = [96, 0], sizes = [32, 128], strides = [1, 1]} : vector<128x128xf32> to vector<32x128xf32>
    %676 = arith.negf %675 : vector<32x128xf32>
    %677 = math.exp %676 : vector<32x128xf32>
    %cst_129 = arith.constant 1.000000e+00 : f32
    %678 = vector.broadcast %cst_129 : f32 to vector<32x128xf32>
    %679 = arith.addf %678, %677 : vector<32x128xf32>
    %680 = arith.divf %678, %679 : vector<32x128xf32>
    %681 = arith.mulf %672, %631 : vector<32x128xf32>
    %682 = arith.mulf %671, %674 : vector<32x128xf32>
    %683 = arith.addf %681, %682 : vector<32x128xf32>
    %684 = math.tanh %683 : vector<32x128xf32>
    %685 = arith.mulf %680, %684 : vector<32x128xf32>
    %c10_i32_130 = arith.constant 10 : i32
    %686 = vector.broadcast %c10_i32_130 : i32 to vector<32x128xi32>
    %687 = arith.cmpi sgt, %10, %686 : vector<32x128xi32>
    %c5_i32_131 = arith.constant 5 : i32
    %688 = vector.broadcast %c5_i32_131 : i32 to vector<32x128xi32>
    %689 = arith.cmpi sgt, %10, %688 : vector<32x128xi32>
    %690 = arith.select %687, %660, %628 : vector<32x128xi1>, vector<32x128xf32>
    %691 = arith.select %687, %658, %629 : vector<32x128xi1>, vector<32x128xf32>
    %692 = arith.select %689, %685, %630 : vector<32x128xi1>, vector<32x128xf32>
    %693 = arith.select %689, %683, %631 : vector<32x128xi1>, vector<32x128xf32>
    %c11_132 = arith.constant 11 : index
    %c0_133 = arith.constant 0 : index
    %c0_134 = arith.constant 0 : index
    %694 = vector.load %arg1[%c11_132, %c0_133, %c0_134] : memref<16x32x128xbf16, #tpu.memory_space<vmem>>, vector<1x32x128xbf16>
    %695 = vector.shape_cast %694 : vector<1x32x128xbf16> to vector<32x128xbf16>
    %c4_135 = arith.constant 4 : index
    %c0_136 = arith.constant 0 : index
    %c0_137 = arith.constant 0 : index
    %696 = vector.load %arg1[%c4_135, %c0_136, %c0_137] : memref<16x32x128xbf16, #tpu.memory_space<vmem>>, vector<1x32x128xbf16>
    %697 = vector.shape_cast %696 : vector<1x32x128xbf16> to vector<32x128xbf16>
    %698 = arith.truncf %690 : vector<32x128xf32> to vector<32x128xbf16>
    %699 = tpu.concatenate %695, %698 in 0 : vector<32x128xbf16>, vector<32x128xbf16> -> vector<64x128xbf16>
    %cst_138 = arith.constant dense<0.000000e+00> : vector<128x128xf32>
    %700 = tpu.matmul %0, %699, %cst_138 {dimension_numbers = #tpu.dot_dimension_numbers<[1], [0], [0], [1], [0, 0, 1, 1], [], []>} : vector<128x64xbf16>, vector<64x128xbf16>, vector<128x128xf32> -> vector<128x128xf32>
    %701 = arith.addf %700, %4 : vector<128x128xf32>
    %702 = vector.extract_strided_slice %701 {offsets = [0, 0], sizes = [64, 128], strides = [1, 1]} : vector<128x128xf32> to vector<64x128xf32>
    %703 = arith.negf %702 : vector<64x128xf32>
    %704 = math.exp %703 : vector<64x128xf32>
    %cst_139 = arith.constant 1.000000e+00 : f32
    %705 = vector.broadcast %cst_139 : f32 to vector<64x128xf32>
    %706 = arith.addf %705, %704 : vector<64x128xf32>
    %707 = arith.divf %705, %706 : vector<64x128xf32>
    %708 = vector.extract_strided_slice %707 {offsets = [0, 0], sizes = [32, 128], strides = [1, 1]} : vector<64x128xf32> to vector<32x128xf32>
    %709 = vector.extract_strided_slice %707 {offsets = [32, 0], sizes = [32, 128], strides = [1, 1]} : vector<64x128xf32> to vector<32x128xf32>
    %710 = vector.extract_strided_slice %701 {offsets = [64, 0], sizes = [32, 128], strides = [1, 1]} : vector<128x128xf32> to vector<32x128xf32>
    %711 = math.tanh %710 : vector<32x128xf32>
    %712 = vector.extract_strided_slice %701 {offsets = [96, 0], sizes = [32, 128], strides = [1, 1]} : vector<128x128xf32> to vector<32x128xf32>
    %713 = arith.negf %712 : vector<32x128xf32>
    %714 = math.exp %713 : vector<32x128xf32>
    %cst_140 = arith.constant 1.000000e+00 : f32
    %715 = vector.broadcast %cst_140 : f32 to vector<32x128xf32>
    %716 = arith.addf %715, %714 : vector<32x128xf32>
    %717 = arith.divf %715, %716 : vector<32x128xf32>
    %718 = arith.mulf %709, %691 : vector<32x128xf32>
    %719 = arith.mulf %708, %711 : vector<32x128xf32>
    %720 = arith.addf %718, %719 : vector<32x128xf32>
    %721 = math.tanh %720 : vector<32x128xf32>
    %722 = arith.mulf %717, %721 : vector<32x128xf32>
    %723 = arith.truncf %692 : vector<32x128xf32> to vector<32x128xbf16>
    %724 = tpu.concatenate %697, %723 in 0 : vector<32x128xbf16>, vector<32x128xbf16> -> vector<64x128xbf16>
    %cst_141 = arith.constant dense<0.000000e+00> : vector<128x128xf32>
    %725 = tpu.matmul %1, %724, %cst_141 {dimension_numbers = #tpu.dot_dimension_numbers<[1], [0], [0], [1], [0, 0, 1, 1], [], []>} : vector<128x64xbf16>, vector<64x128xbf16>, vector<128x128xf32> -> vector<128x128xf32>
    %726 = arith.addf %725, %7 : vector<128x128xf32>
    %727 = vector.extract_strided_slice %726 {offsets = [0, 0], sizes = [64, 128], strides = [1, 1]} : vector<128x128xf32> to vector<64x128xf32>
    %728 = arith.negf %727 : vector<64x128xf32>
    %729 = math.exp %728 : vector<64x128xf32>
    %cst_142 = arith.constant 1.000000e+00 : f32
    %730 = vector.broadcast %cst_142 : f32 to vector<64x128xf32>
    %731 = arith.addf %730, %729 : vector<64x128xf32>
    %732 = arith.divf %730, %731 : vector<64x128xf32>
    %733 = vector.extract_strided_slice %732 {offsets = [0, 0], sizes = [32, 128], strides = [1, 1]} : vector<64x128xf32> to vector<32x128xf32>
    %734 = vector.extract_strided_slice %732 {offsets = [32, 0], sizes = [32, 128], strides = [1, 1]} : vector<64x128xf32> to vector<32x128xf32>
    %735 = vector.extract_strided_slice %726 {offsets = [64, 0], sizes = [32, 128], strides = [1, 1]} : vector<128x128xf32> to vector<32x128xf32>
    %736 = math.tanh %735 : vector<32x128xf32>
    %737 = vector.extract_strided_slice %726 {offsets = [96, 0], sizes = [32, 128], strides = [1, 1]} : vector<128x128xf32> to vector<32x128xf32>
    %738 = arith.negf %737 : vector<32x128xf32>
    %739 = math.exp %738 : vector<32x128xf32>
    %cst_143 = arith.constant 1.000000e+00 : f32
    %740 = vector.broadcast %cst_143 : f32 to vector<32x128xf32>
    %741 = arith.addf %740, %739 : vector<32x128xf32>
    %742 = arith.divf %740, %741 : vector<32x128xf32>
    %743 = arith.mulf %734, %693 : vector<32x128xf32>
    %744 = arith.mulf %733, %736 : vector<32x128xf32>
    %745 = arith.addf %743, %744 : vector<32x128xf32>
    %746 = math.tanh %745 : vector<32x128xf32>
    %747 = arith.mulf %742, %746 : vector<32x128xf32>
    %c11_i32_144 = arith.constant 11 : i32
    %748 = vector.broadcast %c11_i32_144 : i32 to vector<32x128xi32>
    %749 = arith.cmpi sgt, %10, %748 : vector<32x128xi32>
    %c4_i32_145 = arith.constant 4 : i32
    %750 = vector.broadcast %c4_i32_145 : i32 to vector<32x128xi32>
    %751 = arith.cmpi sgt, %10, %750 : vector<32x128xi32>
    %752 = arith.select %749, %722, %690 : vector<32x128xi1>, vector<32x128xf32>
    %753 = arith.select %749, %720, %691 : vector<32x128xi1>, vector<32x128xf32>
    %754 = arith.select %751, %747, %692 : vector<32x128xi1>, vector<32x128xf32>
    %755 = arith.select %751, %745, %693 : vector<32x128xi1>, vector<32x128xf32>
    %c12_146 = arith.constant 12 : index
    %c0_147 = arith.constant 0 : index
    %c0_148 = arith.constant 0 : index
    %756 = vector.load %arg1[%c12_146, %c0_147, %c0_148] : memref<16x32x128xbf16, #tpu.memory_space<vmem>>, vector<1x32x128xbf16>
    %757 = vector.shape_cast %756 : vector<1x32x128xbf16> to vector<32x128xbf16>
    %c3_149 = arith.constant 3 : index
    %c0_150 = arith.constant 0 : index
    %c0_151 = arith.constant 0 : index
    %758 = vector.load %arg1[%c3_149, %c0_150, %c0_151] : memref<16x32x128xbf16, #tpu.memory_space<vmem>>, vector<1x32x128xbf16>
    %759 = vector.shape_cast %758 : vector<1x32x128xbf16> to vector<32x128xbf16>
    %760 = arith.truncf %752 : vector<32x128xf32> to vector<32x128xbf16>
    %761 = tpu.concatenate %757, %760 in 0 : vector<32x128xbf16>, vector<32x128xbf16> -> vector<64x128xbf16>
    %cst_152 = arith.constant dense<0.000000e+00> : vector<128x128xf32>
    %762 = tpu.matmul %0, %761, %cst_152 {dimension_numbers = #tpu.dot_dimension_numbers<[1], [0], [0], [1], [0, 0, 1, 1], [], []>} : vector<128x64xbf16>, vector<64x128xbf16>, vector<128x128xf32> -> vector<128x128xf32>
    %763 = arith.addf %762, %4 : vector<128x128xf32>
    %764 = vector.extract_strided_slice %763 {offsets = [0, 0], sizes = [64, 128], strides = [1, 1]} : vector<128x128xf32> to vector<64x128xf32>
    %765 = arith.negf %764 : vector<64x128xf32>
    %766 = math.exp %765 : vector<64x128xf32>
    %cst_153 = arith.constant 1.000000e+00 : f32
    %767 = vector.broadcast %cst_153 : f32 to vector<64x128xf32>
    %768 = arith.addf %767, %766 : vector<64x128xf32>
    %769 = arith.divf %767, %768 : vector<64x128xf32>
    %770 = vector.extract_strided_slice %769 {offsets = [0, 0], sizes = [32, 128], strides = [1, 1]} : vector<64x128xf32> to vector<32x128xf32>
    %771 = vector.extract_strided_slice %769 {offsets = [32, 0], sizes = [32, 128], strides = [1, 1]} : vector<64x128xf32> to vector<32x128xf32>
    %772 = vector.extract_strided_slice %763 {offsets = [64, 0], sizes = [32, 128], strides = [1, 1]} : vector<128x128xf32> to vector<32x128xf32>
    %773 = math.tanh %772 : vector<32x128xf32>
    %774 = vector.extract_strided_slice %763 {offsets = [96, 0], sizes = [32, 128], strides = [1, 1]} : vector<128x128xf32> to vector<32x128xf32>
    %775 = arith.negf %774 : vector<32x128xf32>
    %776 = math.exp %775 : vector<32x128xf32>
    %cst_154 = arith.constant 1.000000e+00 : f32
    %777 = vector.broadcast %cst_154 : f32 to vector<32x128xf32>
    %778 = arith.addf %777, %776 : vector<32x128xf32>
    %779 = arith.divf %777, %778 : vector<32x128xf32>
    %780 = arith.mulf %771, %753 : vector<32x128xf32>
    %781 = arith.mulf %770, %773 : vector<32x128xf32>
    %782 = arith.addf %780, %781 : vector<32x128xf32>
    %783 = math.tanh %782 : vector<32x128xf32>
    %784 = arith.mulf %779, %783 : vector<32x128xf32>
    %785 = arith.truncf %754 : vector<32x128xf32> to vector<32x128xbf16>
    %786 = tpu.concatenate %759, %785 in 0 : vector<32x128xbf16>, vector<32x128xbf16> -> vector<64x128xbf16>
    %cst_155 = arith.constant dense<0.000000e+00> : vector<128x128xf32>
    %787 = tpu.matmul %1, %786, %cst_155 {dimension_numbers = #tpu.dot_dimension_numbers<[1], [0], [0], [1], [0, 0, 1, 1], [], []>} : vector<128x64xbf16>, vector<64x128xbf16>, vector<128x128xf32> -> vector<128x128xf32>
    %788 = arith.addf %787, %7 : vector<128x128xf32>
    %789 = vector.extract_strided_slice %788 {offsets = [0, 0], sizes = [64, 128], strides = [1, 1]} : vector<128x128xf32> to vector<64x128xf32>
    %790 = arith.negf %789 : vector<64x128xf32>
    %791 = math.exp %790 : vector<64x128xf32>
    %cst_156 = arith.constant 1.000000e+00 : f32
    %792 = vector.broadcast %cst_156 : f32 to vector<64x128xf32>
    %793 = arith.addf %792, %791 : vector<64x128xf32>
    %794 = arith.divf %792, %793 : vector<64x128xf32>
    %795 = vector.extract_strided_slice %794 {offsets = [0, 0], sizes = [32, 128], strides = [1, 1]} : vector<64x128xf32> to vector<32x128xf32>
    %796 = vector.extract_strided_slice %794 {offsets = [32, 0], sizes = [32, 128], strides = [1, 1]} : vector<64x128xf32> to vector<32x128xf32>
    %797 = vector.extract_strided_slice %788 {offsets = [64, 0], sizes = [32, 128], strides = [1, 1]} : vector<128x128xf32> to vector<32x128xf32>
    %798 = math.tanh %797 : vector<32x128xf32>
    %799 = vector.extract_strided_slice %788 {offsets = [96, 0], sizes = [32, 128], strides = [1, 1]} : vector<128x128xf32> to vector<32x128xf32>
    %800 = arith.negf %799 : vector<32x128xf32>
    %801 = math.exp %800 : vector<32x128xf32>
    %cst_157 = arith.constant 1.000000e+00 : f32
    %802 = vector.broadcast %cst_157 : f32 to vector<32x128xf32>
    %803 = arith.addf %802, %801 : vector<32x128xf32>
    %804 = arith.divf %802, %803 : vector<32x128xf32>
    %805 = arith.mulf %796, %755 : vector<32x128xf32>
    %806 = arith.mulf %795, %798 : vector<32x128xf32>
    %807 = arith.addf %805, %806 : vector<32x128xf32>
    %808 = math.tanh %807 : vector<32x128xf32>
    %809 = arith.mulf %804, %808 : vector<32x128xf32>
    %c12_i32_158 = arith.constant 12 : i32
    %810 = vector.broadcast %c12_i32_158 : i32 to vector<32x128xi32>
    %811 = arith.cmpi sgt, %10, %810 : vector<32x128xi32>
    %c3_i32_159 = arith.constant 3 : i32
    %812 = vector.broadcast %c3_i32_159 : i32 to vector<32x128xi32>
    %813 = arith.cmpi sgt, %10, %812 : vector<32x128xi32>
    %814 = arith.select %811, %784, %752 : vector<32x128xi1>, vector<32x128xf32>
    %815 = arith.select %811, %782, %753 : vector<32x128xi1>, vector<32x128xf32>
    %816 = arith.select %813, %809, %754 : vector<32x128xi1>, vector<32x128xf32>
    %817 = arith.select %813, %807, %755 : vector<32x128xi1>, vector<32x128xf32>
    %c13_160 = arith.constant 13 : index
    %c0_161 = arith.constant 0 : index
    %c0_162 = arith.constant 0 : index
    %818 = vector.load %arg1[%c13_160, %c0_161, %c0_162] : memref<16x32x128xbf16, #tpu.memory_space<vmem>>, vector<1x32x128xbf16>
    %819 = vector.shape_cast %818 : vector<1x32x128xbf16> to vector<32x128xbf16>
    %c2_163 = arith.constant 2 : index
    %c0_164 = arith.constant 0 : index
    %c0_165 = arith.constant 0 : index
    %820 = vector.load %arg1[%c2_163, %c0_164, %c0_165] : memref<16x32x128xbf16, #tpu.memory_space<vmem>>, vector<1x32x128xbf16>
    %821 = vector.shape_cast %820 : vector<1x32x128xbf16> to vector<32x128xbf16>
    %822 = arith.truncf %814 : vector<32x128xf32> to vector<32x128xbf16>
    %823 = tpu.concatenate %819, %822 in 0 : vector<32x128xbf16>, vector<32x128xbf16> -> vector<64x128xbf16>
    %cst_166 = arith.constant dense<0.000000e+00> : vector<128x128xf32>
    %824 = tpu.matmul %0, %823, %cst_166 {dimension_numbers = #tpu.dot_dimension_numbers<[1], [0], [0], [1], [0, 0, 1, 1], [], []>} : vector<128x64xbf16>, vector<64x128xbf16>, vector<128x128xf32> -> vector<128x128xf32>
    %825 = arith.addf %824, %4 : vector<128x128xf32>
    %826 = vector.extract_strided_slice %825 {offsets = [0, 0], sizes = [64, 128], strides = [1, 1]} : vector<128x128xf32> to vector<64x128xf32>
    %827 = arith.negf %826 : vector<64x128xf32>
    %828 = math.exp %827 : vector<64x128xf32>
    %cst_167 = arith.constant 1.000000e+00 : f32
    %829 = vector.broadcast %cst_167 : f32 to vector<64x128xf32>
    %830 = arith.addf %829, %828 : vector<64x128xf32>
    %831 = arith.divf %829, %830 : vector<64x128xf32>
    %832 = vector.extract_strided_slice %831 {offsets = [0, 0], sizes = [32, 128], strides = [1, 1]} : vector<64x128xf32> to vector<32x128xf32>
    %833 = vector.extract_strided_slice %831 {offsets = [32, 0], sizes = [32, 128], strides = [1, 1]} : vector<64x128xf32> to vector<32x128xf32>
    %834 = vector.extract_strided_slice %825 {offsets = [64, 0], sizes = [32, 128], strides = [1, 1]} : vector<128x128xf32> to vector<32x128xf32>
    %835 = math.tanh %834 : vector<32x128xf32>
    %836 = vector.extract_strided_slice %825 {offsets = [96, 0], sizes = [32, 128], strides = [1, 1]} : vector<128x128xf32> to vector<32x128xf32>
    %837 = arith.negf %836 : vector<32x128xf32>
    %838 = math.exp %837 : vector<32x128xf32>
    %cst_168 = arith.constant 1.000000e+00 : f32
    %839 = vector.broadcast %cst_168 : f32 to vector<32x128xf32>
    %840 = arith.addf %839, %838 : vector<32x128xf32>
    %841 = arith.divf %839, %840 : vector<32x128xf32>
    %842 = arith.mulf %833, %815 : vector<32x128xf32>
    %843 = arith.mulf %832, %835 : vector<32x128xf32>
    %844 = arith.addf %842, %843 : vector<32x128xf32>
    %845 = math.tanh %844 : vector<32x128xf32>
    %846 = arith.mulf %841, %845 : vector<32x128xf32>
    %847 = arith.truncf %816 : vector<32x128xf32> to vector<32x128xbf16>
    %848 = tpu.concatenate %821, %847 in 0 : vector<32x128xbf16>, vector<32x128xbf16> -> vector<64x128xbf16>
    %cst_169 = arith.constant dense<0.000000e+00> : vector<128x128xf32>
    %849 = tpu.matmul %1, %848, %cst_169 {dimension_numbers = #tpu.dot_dimension_numbers<[1], [0], [0], [1], [0, 0, 1, 1], [], []>} : vector<128x64xbf16>, vector<64x128xbf16>, vector<128x128xf32> -> vector<128x128xf32>
    %850 = arith.addf %849, %7 : vector<128x128xf32>
    %851 = vector.extract_strided_slice %850 {offsets = [0, 0], sizes = [64, 128], strides = [1, 1]} : vector<128x128xf32> to vector<64x128xf32>
    %852 = arith.negf %851 : vector<64x128xf32>
    %853 = math.exp %852 : vector<64x128xf32>
    %cst_170 = arith.constant 1.000000e+00 : f32
    %854 = vector.broadcast %cst_170 : f32 to vector<64x128xf32>
    %855 = arith.addf %854, %853 : vector<64x128xf32>
    %856 = arith.divf %854, %855 : vector<64x128xf32>
    %857 = vector.extract_strided_slice %856 {offsets = [0, 0], sizes = [32, 128], strides = [1, 1]} : vector<64x128xf32> to vector<32x128xf32>
    %858 = vector.extract_strided_slice %856 {offsets = [32, 0], sizes = [32, 128], strides = [1, 1]} : vector<64x128xf32> to vector<32x128xf32>
    %859 = vector.extract_strided_slice %850 {offsets = [64, 0], sizes = [32, 128], strides = [1, 1]} : vector<128x128xf32> to vector<32x128xf32>
    %860 = math.tanh %859 : vector<32x128xf32>
    %861 = vector.extract_strided_slice %850 {offsets = [96, 0], sizes = [32, 128], strides = [1, 1]} : vector<128x128xf32> to vector<32x128xf32>
    %862 = arith.negf %861 : vector<32x128xf32>
    %863 = math.exp %862 : vector<32x128xf32>
    %cst_171 = arith.constant 1.000000e+00 : f32
    %864 = vector.broadcast %cst_171 : f32 to vector<32x128xf32>
    %865 = arith.addf %864, %863 : vector<32x128xf32>
    %866 = arith.divf %864, %865 : vector<32x128xf32>
    %867 = arith.mulf %858, %817 : vector<32x128xf32>
    %868 = arith.mulf %857, %860 : vector<32x128xf32>
    %869 = arith.addf %867, %868 : vector<32x128xf32>
    %870 = math.tanh %869 : vector<32x128xf32>
    %871 = arith.mulf %866, %870 : vector<32x128xf32>
    %c13_i32_172 = arith.constant 13 : i32
    %872 = vector.broadcast %c13_i32_172 : i32 to vector<32x128xi32>
    %873 = arith.cmpi sgt, %10, %872 : vector<32x128xi32>
    %c2_i32_173 = arith.constant 2 : i32
    %874 = vector.broadcast %c2_i32_173 : i32 to vector<32x128xi32>
    %875 = arith.cmpi sgt, %10, %874 : vector<32x128xi32>
    %876 = arith.select %873, %846, %814 : vector<32x128xi1>, vector<32x128xf32>
    %877 = arith.select %873, %844, %815 : vector<32x128xi1>, vector<32x128xf32>
    %878 = arith.select %875, %871, %816 : vector<32x128xi1>, vector<32x128xf32>
    %879 = arith.select %875, %869, %817 : vector<32x128xi1>, vector<32x128xf32>
    %c14_174 = arith.constant 14 : index
    %c0_175 = arith.constant 0 : index
    %c0_176 = arith.constant 0 : index
    %880 = vector.load %arg1[%c14_174, %c0_175, %c0_176] : memref<16x32x128xbf16, #tpu.memory_space<vmem>>, vector<1x32x128xbf16>
    %881 = vector.shape_cast %880 : vector<1x32x128xbf16> to vector<32x128xbf16>
    %c1_177 = arith.constant 1 : index
    %c0_178 = arith.constant 0 : index
    %c0_179 = arith.constant 0 : index
    %882 = vector.load %arg1[%c1_177, %c0_178, %c0_179] : memref<16x32x128xbf16, #tpu.memory_space<vmem>>, vector<1x32x128xbf16>
    %883 = vector.shape_cast %882 : vector<1x32x128xbf16> to vector<32x128xbf16>
    %884 = arith.truncf %876 : vector<32x128xf32> to vector<32x128xbf16>
    %885 = tpu.concatenate %881, %884 in 0 : vector<32x128xbf16>, vector<32x128xbf16> -> vector<64x128xbf16>
    %cst_180 = arith.constant dense<0.000000e+00> : vector<128x128xf32>
    %886 = tpu.matmul %0, %885, %cst_180 {dimension_numbers = #tpu.dot_dimension_numbers<[1], [0], [0], [1], [0, 0, 1, 1], [], []>} : vector<128x64xbf16>, vector<64x128xbf16>, vector<128x128xf32> -> vector<128x128xf32>
    %887 = arith.addf %886, %4 : vector<128x128xf32>
    %888 = vector.extract_strided_slice %887 {offsets = [0, 0], sizes = [64, 128], strides = [1, 1]} : vector<128x128xf32> to vector<64x128xf32>
    %889 = arith.negf %888 : vector<64x128xf32>
    %890 = math.exp %889 : vector<64x128xf32>
    %cst_181 = arith.constant 1.000000e+00 : f32
    %891 = vector.broadcast %cst_181 : f32 to vector<64x128xf32>
    %892 = arith.addf %891, %890 : vector<64x128xf32>
    %893 = arith.divf %891, %892 : vector<64x128xf32>
    %894 = vector.extract_strided_slice %893 {offsets = [0, 0], sizes = [32, 128], strides = [1, 1]} : vector<64x128xf32> to vector<32x128xf32>
    %895 = vector.extract_strided_slice %893 {offsets = [32, 0], sizes = [32, 128], strides = [1, 1]} : vector<64x128xf32> to vector<32x128xf32>
    %896 = vector.extract_strided_slice %887 {offsets = [64, 0], sizes = [32, 128], strides = [1, 1]} : vector<128x128xf32> to vector<32x128xf32>
    %897 = math.tanh %896 : vector<32x128xf32>
    %898 = vector.extract_strided_slice %887 {offsets = [96, 0], sizes = [32, 128], strides = [1, 1]} : vector<128x128xf32> to vector<32x128xf32>
    %899 = arith.negf %898 : vector<32x128xf32>
    %900 = math.exp %899 : vector<32x128xf32>
    %cst_182 = arith.constant 1.000000e+00 : f32
    %901 = vector.broadcast %cst_182 : f32 to vector<32x128xf32>
    %902 = arith.addf %901, %900 : vector<32x128xf32>
    %903 = arith.divf %901, %902 : vector<32x128xf32>
    %904 = arith.mulf %895, %877 : vector<32x128xf32>
    %905 = arith.mulf %894, %897 : vector<32x128xf32>
    %906 = arith.addf %904, %905 : vector<32x128xf32>
    %907 = math.tanh %906 : vector<32x128xf32>
    %908 = arith.mulf %903, %907 : vector<32x128xf32>
    %909 = arith.truncf %878 : vector<32x128xf32> to vector<32x128xbf16>
    %910 = tpu.concatenate %883, %909 in 0 : vector<32x128xbf16>, vector<32x128xbf16> -> vector<64x128xbf16>
    %cst_183 = arith.constant dense<0.000000e+00> : vector<128x128xf32>
    %911 = tpu.matmul %1, %910, %cst_183 {dimension_numbers = #tpu.dot_dimension_numbers<[1], [0], [0], [1], [0, 0, 1, 1], [], []>} : vector<128x64xbf16>, vector<64x128xbf16>, vector<128x128xf32> -> vector<128x128xf32>
    %912 = arith.addf %911, %7 : vector<128x128xf32>
    %913 = vector.extract_strided_slice %912 {offsets = [0, 0], sizes = [64, 128], strides = [1, 1]} : vector<128x128xf32> to vector<64x128xf32>
    %914 = arith.negf %913 : vector<64x128xf32>
    %915 = math.exp %914 : vector<64x128xf32>
    %cst_184 = arith.constant 1.000000e+00 : f32
    %916 = vector.broadcast %cst_184 : f32 to vector<64x128xf32>
    %917 = arith.addf %916, %915 : vector<64x128xf32>
    %918 = arith.divf %916, %917 : vector<64x128xf32>
    %919 = vector.extract_strided_slice %918 {offsets = [0, 0], sizes = [32, 128], strides = [1, 1]} : vector<64x128xf32> to vector<32x128xf32>
    %920 = vector.extract_strided_slice %918 {offsets = [32, 0], sizes = [32, 128], strides = [1, 1]} : vector<64x128xf32> to vector<32x128xf32>
    %921 = vector.extract_strided_slice %912 {offsets = [64, 0], sizes = [32, 128], strides = [1, 1]} : vector<128x128xf32> to vector<32x128xf32>
    %922 = math.tanh %921 : vector<32x128xf32>
    %923 = vector.extract_strided_slice %912 {offsets = [96, 0], sizes = [32, 128], strides = [1, 1]} : vector<128x128xf32> to vector<32x128xf32>
    %924 = arith.negf %923 : vector<32x128xf32>
    %925 = math.exp %924 : vector<32x128xf32>
    %cst_185 = arith.constant 1.000000e+00 : f32
    %926 = vector.broadcast %cst_185 : f32 to vector<32x128xf32>
    %927 = arith.addf %926, %925 : vector<32x128xf32>
    %928 = arith.divf %926, %927 : vector<32x128xf32>
    %929 = arith.mulf %920, %879 : vector<32x128xf32>
    %930 = arith.mulf %919, %922 : vector<32x128xf32>
    %931 = arith.addf %929, %930 : vector<32x128xf32>
    %932 = math.tanh %931 : vector<32x128xf32>
    %933 = arith.mulf %928, %932 : vector<32x128xf32>
    %c14_i32_186 = arith.constant 14 : i32
    %934 = vector.broadcast %c14_i32_186 : i32 to vector<32x128xi32>
    %935 = arith.cmpi sgt, %10, %934 : vector<32x128xi32>
    %c1_i32_187 = arith.constant 1 : i32
    %936 = vector.broadcast %c1_i32_187 : i32 to vector<32x128xi32>
    %937 = arith.cmpi sgt, %10, %936 : vector<32x128xi32>
    %938 = arith.select %935, %908, %876 : vector<32x128xi1>, vector<32x128xf32>
    %939 = arith.select %935, %906, %877 : vector<32x128xi1>, vector<32x128xf32>
    %940 = arith.select %937, %933, %878 : vector<32x128xi1>, vector<32x128xf32>
    %941 = arith.select %937, %931, %879 : vector<32x128xi1>, vector<32x128xf32>
    %c15_188 = arith.constant 15 : index
    %c0_189 = arith.constant 0 : index
    %c0_190 = arith.constant 0 : index
    %942 = vector.load %arg1[%c15_188, %c0_189, %c0_190] : memref<16x32x128xbf16, #tpu.memory_space<vmem>>, vector<1x32x128xbf16>
    %943 = vector.shape_cast %942 : vector<1x32x128xbf16> to vector<32x128xbf16>
    %c0_191 = arith.constant 0 : index
    %c0_192 = arith.constant 0 : index
    %c0_193 = arith.constant 0 : index
    %944 = vector.load %arg1[%c0_191, %c0_192, %c0_193] : memref<16x32x128xbf16, #tpu.memory_space<vmem>>, vector<1x32x128xbf16>
    %945 = vector.shape_cast %944 : vector<1x32x128xbf16> to vector<32x128xbf16>
    %946 = arith.truncf %938 : vector<32x128xf32> to vector<32x128xbf16>
    %947 = tpu.concatenate %943, %946 in 0 : vector<32x128xbf16>, vector<32x128xbf16> -> vector<64x128xbf16>
    %cst_194 = arith.constant dense<0.000000e+00> : vector<128x128xf32>
    %948 = tpu.matmul %0, %947, %cst_194 {dimension_numbers = #tpu.dot_dimension_numbers<[1], [0], [0], [1], [0, 0, 1, 1], [], []>} : vector<128x64xbf16>, vector<64x128xbf16>, vector<128x128xf32> -> vector<128x128xf32>
    %949 = arith.addf %948, %4 : vector<128x128xf32>
    %950 = vector.extract_strided_slice %949 {offsets = [0, 0], sizes = [64, 128], strides = [1, 1]} : vector<128x128xf32> to vector<64x128xf32>
    %951 = arith.negf %950 : vector<64x128xf32>
    %952 = math.exp %951 : vector<64x128xf32>
    %cst_195 = arith.constant 1.000000e+00 : f32
    %953 = vector.broadcast %cst_195 : f32 to vector<64x128xf32>
    %954 = arith.addf %953, %952 : vector<64x128xf32>
    %955 = arith.divf %953, %954 : vector<64x128xf32>
    %956 = vector.extract_strided_slice %955 {offsets = [0, 0], sizes = [32, 128], strides = [1, 1]} : vector<64x128xf32> to vector<32x128xf32>
    %957 = vector.extract_strided_slice %955 {offsets = [32, 0], sizes = [32, 128], strides = [1, 1]} : vector<64x128xf32> to vector<32x128xf32>
    %958 = vector.extract_strided_slice %949 {offsets = [64, 0], sizes = [32, 128], strides = [1, 1]} : vector<128x128xf32> to vector<32x128xf32>
    %959 = math.tanh %958 : vector<32x128xf32>
    %960 = vector.extract_strided_slice %949 {offsets = [96, 0], sizes = [32, 128], strides = [1, 1]} : vector<128x128xf32> to vector<32x128xf32>
    %961 = arith.negf %960 : vector<32x128xf32>
    %962 = math.exp %961 : vector<32x128xf32>
    %cst_196 = arith.constant 1.000000e+00 : f32
    %963 = vector.broadcast %cst_196 : f32 to vector<32x128xf32>
    %964 = arith.addf %963, %962 : vector<32x128xf32>
    %965 = arith.divf %963, %964 : vector<32x128xf32>
    %966 = arith.mulf %957, %939 : vector<32x128xf32>
    %967 = arith.mulf %956, %959 : vector<32x128xf32>
    %968 = arith.addf %966, %967 : vector<32x128xf32>
    %969 = math.tanh %968 : vector<32x128xf32>
    %970 = arith.mulf %965, %969 : vector<32x128xf32>
    %971 = arith.truncf %940 : vector<32x128xf32> to vector<32x128xbf16>
    %972 = tpu.concatenate %945, %971 in 0 : vector<32x128xbf16>, vector<32x128xbf16> -> vector<64x128xbf16>
    %cst_197 = arith.constant dense<0.000000e+00> : vector<128x128xf32>
    %973 = tpu.matmul %1, %972, %cst_197 {dimension_numbers = #tpu.dot_dimension_numbers<[1], [0], [0], [1], [0, 0, 1, 1], [], []>} : vector<128x64xbf16>, vector<64x128xbf16>, vector<128x128xf32> -> vector<128x128xf32>
    %974 = arith.addf %973, %7 : vector<128x128xf32>
    %975 = vector.extract_strided_slice %974 {offsets = [0, 0], sizes = [64, 128], strides = [1, 1]} : vector<128x128xf32> to vector<64x128xf32>
    %976 = arith.negf %975 : vector<64x128xf32>
    %977 = math.exp %976 : vector<64x128xf32>
    %cst_198 = arith.constant 1.000000e+00 : f32
    %978 = vector.broadcast %cst_198 : f32 to vector<64x128xf32>
    %979 = arith.addf %978, %977 : vector<64x128xf32>
    %980 = arith.divf %978, %979 : vector<64x128xf32>
    %981 = vector.extract_strided_slice %980 {offsets = [0, 0], sizes = [32, 128], strides = [1, 1]} : vector<64x128xf32> to vector<32x128xf32>
    %982 = vector.extract_strided_slice %980 {offsets = [32, 0], sizes = [32, 128], strides = [1, 1]} : vector<64x128xf32> to vector<32x128xf32>
    %983 = vector.extract_strided_slice %974 {offsets = [64, 0], sizes = [32, 128], strides = [1, 1]} : vector<128x128xf32> to vector<32x128xf32>
    %984 = math.tanh %983 : vector<32x128xf32>
    %985 = vector.extract_strided_slice %974 {offsets = [96, 0], sizes = [32, 128], strides = [1, 1]} : vector<128x128xf32> to vector<32x128xf32>
    %986 = arith.negf %985 : vector<32x128xf32>
    %987 = math.exp %986 : vector<32x128xf32>
    %cst_199 = arith.constant 1.000000e+00 : f32
    %988 = vector.broadcast %cst_199 : f32 to vector<32x128xf32>
    %989 = arith.addf %988, %987 : vector<32x128xf32>
    %990 = arith.divf %988, %989 : vector<32x128xf32>
    %991 = arith.mulf %982, %941 : vector<32x128xf32>
    %992 = arith.mulf %981, %984 : vector<32x128xf32>
    %993 = arith.addf %991, %992 : vector<32x128xf32>
    %994 = math.tanh %993 : vector<32x128xf32>
    %995 = arith.mulf %990, %994 : vector<32x128xf32>
    %c15_i32_200 = arith.constant 15 : i32
    %996 = vector.broadcast %c15_i32_200 : i32 to vector<32x128xi32>
    %997 = arith.cmpi sgt, %10, %996 : vector<32x128xi32>
    %c0_i32_201 = arith.constant 0 : i32
    %998 = vector.broadcast %c0_i32_201 : i32 to vector<32x128xi32>
    %999 = arith.cmpi sgt, %10, %998 : vector<32x128xi32>
    %1000 = arith.select %997, %970, %938 : vector<32x128xi1>, vector<32x128xf32>
    %1001 = arith.select %999, %995, %940 : vector<32x128xi1>, vector<32x128xf32>
    %1002 = tpu.concatenate %1000, %1001 in 0 : vector<32x128xf32>, vector<32x128xf32> -> vector<64x128xf32>
    %c0_202 = arith.constant 0 : index
    %c0_203 = arith.constant 0 : index
    %1003 = vector.load %arg7[%c0_202, %c0_203] : memref<64x128xf32, #tpu.memory_space<vmem>>, vector<64x128xf32>
    tpu.vector_store %arg7[%c0_202, %c0_203], %1002 {strides = array<i32>} : memref<64x128xf32, #tpu.memory_space<vmem>>, vector<64x128xf32>,
    return
  }
  func.func @transform_0(%arg0: i32) -> (i32, i32, i32) {
    %c0_i32 = arith.constant 0 : i32
    %c0_i32_0 = arith.constant 0 : i32
    %c0_i32_1 = arith.constant 0 : i32
    return %c0_i32, %c0_i32_0, %arg0 : i32, i32, i32
  }
  func.func @transform_1(%arg0: i32) -> (i32, i32) {
    %c0_i32 = arith.constant 0 : i32
    %c0_i32_0 = arith.constant 0 : i32
    return %c0_i32, %arg0 : i32, i32
  }
  func.func @transform_2(%arg0: i32) -> (i32, i32) {
    %c0_i32 = arith.constant 0 : i32
    %c0_i32_0 = arith.constant 0 : i32
    %c0_i32_1 = arith.constant 0 : i32
    return %c0_i32, %c0_i32_0 : i32, i32
  }
  func.func @transform_3(%arg0: i32) -> (i32, i32) {
    %c0_i32 = arith.constant 0 : i32
    %c0_i32_0 = arith.constant 0 : i32
    %c0_i32_1 = arith.constant 0 : i32
    return %c0_i32, %c0_i32_0 : i32, i32
  }
  func.func @transform_4(%arg0: i32) -> (i32, i32) {
    %c0_i32 = arith.constant 0 : i32
    %c0_i32_0 = arith.constant 0 : i32
    %c0_i32_1 = arith.constant 0 : i32
    return %c0_i32, %c0_i32_0 : i32, i32
  }
  func.func @transform_5(%arg0: i32) -> (i32, i32) {
    %c0_i32 = arith.constant 0 : i32
    %c0_i32_0 = arith.constant 0 : i32
    %c0_i32_1 = arith.constant 0 : i32
    return %c0_i32, %c0_i32_0 : i32, i32
  }
  func.func @transform_6(%arg0: i32) -> (i32, i32) {
    %c0_i32 = arith.constant 0 : i32
    %c0_i32_0 = arith.constant 0 : i32
    return %c0_i32, %arg0 : i32, i32
  }
}

</mosaic_0001>

<llo_original>
// kernel: tpu_custom_call.1
$region0: #{tpu_custom_call.1}
  #allocation0 [shape = 'u32[]', space=smem, size = 0x4, offset = 0x4, fixed_abs, tag = 'smem constant byte address 0x4 - core index']
  #allocation1 [shape = 'u32[144,128]{1,0:T(1,128)}', space=vmem, size = 0x12000, scoped, tag = 'internal scratch']
  %s0 = inlined_call_operand.vmem [shape: bf16[16,32,128], index: 0, kind: input, shape index: {}]
  %s1 = inlined_call_operand.vmem [shape: s32[1,128], index: 1, kind: input, shape index: {}]
  %s2 = inlined_call_operand.vmem [shape: bf16[128,64], index: 2, kind: input, shape index: {}]
  %s3 = inlined_call_operand.vmem [shape: f32[128,1], index: 3, kind: input, shape index: {}]
  %s4 = inlined_call_operand.vmem [shape: bf16[128,64], index: 4, kind: input, shape index: {}]
  %s5 = inlined_call_operand.vmem [shape: f32[128,1], index: 5, kind: input, shape index: {}]
  %s6 = inlined_call_operand.hbm [shape: f32[64,128], index: 6, kind: output, shape index: {}]
  %s7 = sld [smem:[#allocation0]]
  $region34: #{tpu_custom_call.1} parent=0
    _
  %s9 = ssub.s32 1, %s7
  %s10 = scalar_select 0, %s9, %s7
  $region1: #{tpu_custom_call.1} parent=0
    #allocation2 [shape = 'u8[32768]{0}', space=vmem, size = 0x8000, scoped, tag = 'output window, operand 0, single buffered']
    #allocation3 [shape = 's32[1]{0}', space=sflag, size = 0x4, scoped, tag = 'scoped memory for tpu_custom_call.1']
    %11 = vsyncpa [#allocation3], 0
    // Predicated region
    $region2: #{tpu_custom_call.1} parent=1 // pred_check
      _
    $region3: #{tpu_custom_call.1} parent=1 // pred_check_branch
      %13 = sbr.rel (0) target = $region5
    $region4: #{tpu_custom_call.1} parent=1 // pred_region
      _
    $region5: #{tpu_custom_call.1} parent=1 // pred_fallthru
      _
    // Predicated region
    $region6: #{tpu_custom_call.1} parent=1 // pred_check
      _
    $region7: #{tpu_custom_call.1} parent=1 // pred_check_branch
      %15 = sbr.rel (0) target = $region9
    $region8: #{tpu_custom_call.1} parent=1 // pred_region
      _
    $region9: #{tpu_custom_call.1} parent=1 // pred_fallthru
      _
    // Predicated region
    $region10: #{tpu_custom_call.1} parent=1 // pred_check
      _
    $region11: #{tpu_custom_call.1} parent=1 // pred_check_branch
      %17 = sbr.rel (0) target = $region13
    $region12: #{tpu_custom_call.1} parent=1 // pred_region
      _
    $region13: #{tpu_custom_call.1} parent=1 // pred_fallthru
      _
    // Predicated region
    $region14: #{tpu_custom_call.1} parent=1 // pred_check
      _
    $region15: #{tpu_custom_call.1} parent=1 // pred_check_branch
      %19 = sbr.rel (0) target = $region17
    $region16: #{tpu_custom_call.1} parent=1 // pred_region
      _
    $region17: #{tpu_custom_call.1} parent=1 // pred_fallthru
      _
    // Predicated region
    $region18: #{tpu_custom_call.1} parent=1 // pred_check
      _
    $region19: #{tpu_custom_call.1} parent=1 // pred_check_branch
      %21 = sbr.rel (0) target = $region21
    $region20: #{tpu_custom_call.1} parent=1 // pred_region
      _
    $region21: #{tpu_custom_call.1} parent=1 // pred_fallthru
      _
    // Predicated region
    $region22: #{tpu_custom_call.1} parent=1 // pred_check
      _
    $region23: #{tpu_custom_call.1} parent=1 // pred_check_branch
      %23 = sbr.rel (0) target = $region25
    $region24: #{tpu_custom_call.1} parent=1 // pred_region
      _
    $region25: #{tpu_custom_call.1} parent=1 // pred_fallthru
      _
    %v25 = vld [vmem:[%s2] sm:$0xf]
    %v26 = vld [vmem:[%s2 + $0x4] sm:$0xf]
    %v27 = vld [vmem:[%s2 + $0x8] sm:$0xf]
    %v28 = vld [vmem:[%s2 + $0xc] sm:$0xf]
    %v29 = vld [vmem:[%s2 + $0x10] sm:$0xf]
    %v30 = vld [vmem:[%s2 + $0x14] sm:$0xf]
    %v31 = vld [vmem:[%s2 + $0x18] sm:$0xf]
    %v32 = vld [vmem:[%s2 + $0x1c] sm:$0xf]
    %v33 = vld [vmem:[%s2 + $0x20] sm:$0xf]
    %v34 = vld [vmem:[%s2 + $0x24] sm:$0xf]
    %v35 = vld [vmem:[%s2 + $0x28] sm:$0xf]
    %v36 = vld [vmem:[%s2 + $0x2c] sm:$0xf]
    %v37 = vld [vmem:[%s2 + $0x30] sm:$0xf]
    %v38 = vld [vmem:[%s2 + $0x34] sm:$0xf]
    %v39 = vld [vmem:[%s2 + $0x38] sm:$0xf]
    %v40 = vld [vmem:[%s2 + $0x3c] sm:$0xf]
    %v41 = vld [vmem:[%s4] sm:$0xf]
    %v42 = vld [vmem:[%s4 + $0x4] sm:$0xf]
    %v43 = vld [vmem:[%s4 + $0x8] sm:$0xf]
    %v44 = vld [vmem:[%s4 + $0xc] sm:$0xf]
    %v45 = vld [vmem:[%s4 + $0x10] sm:$0xf]
    %v46 = vld [vmem:[%s4 + $0x14] sm:$0xf]
    %v47 = vld [vmem:[%s4 + $0x18] sm:$0xf]
    %v48 = vld [vmem:[%s4 + $0x1c] sm:$0xf]
    %v49 = vld [vmem:[%s4 + $0x20] sm:$0xf]
    %v50 = vld [vmem:[%s4 + $0x24] sm:$0xf]
    %v51 = vld [vmem:[%s4 + $0x28] sm:$0xf]
    %v52 = vld [vmem:[%s4 + $0x2c] sm:$0xf]
    %v53 = vld [vmem:[%s4 + $0x30] sm:$0xf]
    %v54 = vld [vmem:[%s4 + $0x34] sm:$0xf]
    %v55 = vld [vmem:[%s4 + $0x38] sm:$0xf]
    %v56 = vld [vmem:[%s4 + $0x3c] sm:$0xf]
    %v57 = vld [vmem:[%s3] sm:$0xff]
    %v58 = vld [vmem:[%s3 + $0x8] sm:$0xff]
    %v59 = vld [vmem:[%s3 + $0x10] sm:$0xff]
    %v60 = vld [vmem:[%s3 + $0x18] sm:$0xff]
    %v61 = vld [vmem:[%s3 + $0x20] sm:$0xff]
    %v62 = vld [vmem:[%s3 + $0x28] sm:$0xff]
    %v63 = vld [vmem:[%s3 + $0x30] sm:$0xff]
    %v64 = vld [vmem:[%s3 + $0x38] sm:$0xff]
    %v65 = vld [vmem:[%s3 + $0x40] sm:$0xff]
    %v66 = vld [vmem:[%s3 + $0x48] sm:$0xff]
    %v67 = vld [vmem:[%s3 + $0x50] sm:$0xff]
    %v68 = vld [vmem:[%s3 + $0x58] sm:$0xff]
    %v69 = vld [vmem:[%s3 + $0x60] sm:$0xff]
    %v70 = vld [vmem:[%s3 + $0x68] sm:$0xff]
    %v71 = vld [vmem:[%s3 + $0x70] sm:$0xff]
    %v72 = vld [vmem:[%s3 + $0x78] sm:$0xff]
    %74 = vset.pattern.permute.xlu0 0
    %75 = vperm.xlu0 %74, %v57
    %v76 = vpop.permute.xlu0 %75
    %79 = vset.pattern.permute.xlu0 0
    %80 = vperm.xlu0 %79, %v58
    %v81 = vpop.permute.xlu0 %80
    %84 = vset.pattern.permute.xlu0 0
    %85 = vperm.xlu0 %84, %v59
    %v86 = vpop.permute.xlu0 %85
    %89 = vset.pattern.permute.xlu0 0
    %90 = vperm.xlu0 %89, %v60
    %v91 = vpop.permute.xlu0 %90
    %94 = vset.pattern.permute.xlu0 0
    %95 = vperm.xlu0 %94, %v61
    %v96 = vpop.permute.xlu0 %95
    %99 = vset.pattern.permute.xlu0 0
    %100 = vperm.xlu0 %99, %v62
    %v101 = vpop.permute.xlu0 %100
    %104 = vset.pattern.permute.xlu0 0
    %105 = vperm.xlu0 %104, %v63
    %v106 = vpop.permute.xlu0 %105
    %109 = vset.pattern.permute.xlu0 0
    %110 = vperm.xlu0 %109, %v64
    %v111 = vpop.permute.xlu0 %110
    %114 = vset.pattern.permute.xlu0 0
    %115 = vperm.xlu0 %114, %v65
    %v116 = vpop.permute.xlu0 %115
    %119 = vset.pattern.permute.xlu0 0
    %120 = vperm.xlu0 %119, %v66
    %v121 = vpop.permute.xlu0 %120
    %124 = vset.pattern.permute.xlu0 0
    %125 = vperm.xlu0 %124, %v67
    %v126 = vpop.permute.xlu0 %125
    %129 = vset.pattern.permute.xlu0 0
    %130 = vperm.xlu0 %129, %v68
    %v131 = vpop.permute.xlu0 %130
    %134 = vset.pattern.permute.xlu0 0
    %135 = vperm.xlu0 %134, %v69
    %v136 = vpop.permute.xlu0 %135
    %139 = vset.pattern.permute.xlu0 0
    %140 = vperm.xlu0 %139, %v70
    %v141 = vpop.permute.xlu0 %140
    %144 = vset.pattern.permute.xlu0 0
    %145 = vperm.xlu0 %144, %v71
    %v146 = vpop.permute.xlu0 %145
    %149 = vset.pattern.permute.xlu0 0
    %150 = vperm.xlu0 %149, %v72
    %v151 = vpop.permute.xlu0 %150
    %v153 = vld [vmem:[%s5] sm:$0xff]
    %v154 = vld [vmem:[%s5 + $0x8] sm:$0xff]
    %v155 = vld [vmem:[%s5 + $0x10] sm:$0xff]
    %v156 = vld [vmem:[%s5 + $0x18] sm:$0xff]
    %v157 = vld [vmem:[%s5 + $0x20] sm:$0xff]
    %v158 = vld [vmem:[%s5 + $0x28] sm:$0xff]
    %v159 = vld [vmem:[%s5 + $0x30] sm:$0xff]
    %v160 = vld [vmem:[%s5 + $0x38] sm:$0xff]
    %v161 = vld [vmem:[%s5 + $0x40] sm:$0xff]
    %v162 = vld [vmem:[%s5 + $0x48] sm:$0xff]
    %v163 = vld [vmem:[%s5 + $0x50] sm:$0xff]
    %v164 = vld [vmem:[%s5 + $0x58] sm:$0xff]
    %v165 = vld [vmem:[%s5 + $0x60] sm:$0xff]
    %v166 = vld [vmem:[%s5 + $0x68] sm:$0xff]
    %v167 = vld [vmem:[%s5 + $0x70] sm:$0xff]
    %v168 = vld [vmem:[%s5 + $0x78] sm:$0xff]
    %170 = vset.pattern.permute.xlu0 0
    %171 = vperm.xlu0 %170, %v153
    %v172 = vpop.permute.xlu0 %171
    %175 = vset.pattern.permute.xlu0 0
    %176 = vperm.xlu0 %175, %v154
    %v177 = vpop.permute.xlu0 %176
    %180 = vset.pattern.permute.xlu0 0
    %181 = vperm.xlu0 %180, %v155
    %v182 = vpop.permute.xlu0 %181
    %185 = vset.pattern.permute.xlu0 0
    %186 = vperm.xlu0 %185, %v156
    %v187 = vpop.permute.xlu0 %186
    %190 = vset.pattern.permute.xlu0 0
    %191 = vperm.xlu0 %190, %v157
    %v192 = vpop.permute.xlu0 %191
    %195 = vset.pattern.permute.xlu0 0
    %196 = vperm.xlu0 %195, %v158
    %v197 = vpop.permute.xlu0 %196
    %200 = vset.pattern.permute.xlu0 0
    %201 = vperm.xlu0 %200, %v159
    %v202 = vpop.permute.xlu0 %201
    %205 = vset.pattern.permute.xlu0 0
    %206 = vperm.xlu0 %205, %v160
    %v207 = vpop.permute.xlu0 %206
    %210 = vset.pattern.permute.xlu0 0
    %211 = vperm.xlu0 %210, %v161
    %v212 = vpop.permute.xlu0 %211
    %215 = vset.pattern.permute.xlu0 0
    %216 = vperm.xlu0 %215, %v162
    %v217 = vpop.permute.xlu0 %216
    %220 = vset.pattern.permute.xlu0 0
    %221 = vperm.xlu0 %220, %v163
    %v222 = vpop.permute.xlu0 %221
    %225 = vset.pattern.permute.xlu0 0
    %226 = vperm.xlu0 %225, %v164
    %v227 = vpop.permute.xlu0 %226
    %230 = vset.pattern.permute.xlu0 0
    %231 = vperm.xlu0 %230, %v165
    %v232 = vpop.permute.xlu0 %231
    %235 = vset.pattern.permute.xlu0 0
    %236 = vperm.xlu0 %235, %v166
    %v237 = vpop.permute.xlu0 %236
    %240 = vset.pattern.permute.xlu0 0
    %241 = vperm.xlu0 %240, %v167
    %v242 = vpop.permute.xlu0 %241
    %245 = vset.pattern.permute.xlu0 0
    %246 = vperm.xlu0 %245, %v168
    %v247 = vpop.permute.xlu0 %246
    %v249 = vld [vmem:[%s1] sm:$0x1]
    %v250 = vlaneseq
    %v251 = vshrl.u32 %v250, 7
    %v252 = vsub.s32 0, %v251
    %v253 = vrot.slane %v249, %v252
    %v254 = vld [vmem:[%s0] sm:$0xf]
    %v255 = vld [vmem:[%s0 + $0x4] sm:$0xf]
    %v256 = vld [vmem:[%s0 + $0x8] sm:$0xf]
    %v257 = vld [vmem:[%s0 + $0xc] sm:$0xf]
    %s258 = scalar_lea.vmem %s0, 240
    %v259 = vld [vmem:[%s258] sm:$0xf]
    %v260 = vld [vmem:[%s258 + $0x4] sm:$0xf]
    %v261 = vld [vmem:[%s258 + $0x8] sm:$0xf]
    %v262 = vld [vmem:[%s258 + $0xc] sm:$0xf]
    %v267 = vunpack.c.l.b16 %v254
    %v268 = vunpack.c.l.b16 %v255
    %v269 = vunpack.c.l.b16 %v256
    %v270 = vunpack.c.l.b16 %v257
    %v271 = vpack.c.b16 %v268, %v267
    %v272 = vpack.c.b16 %v270, %v269
    %v291 = vunpack.c.l.b16 %v25
    %v292 = vunpack.c.l.b16 %v26
    %v293 = vunpack.c.l.b16 %v27
    %v294 = vunpack.c.l.b16 %v28
    %v295 = vunpack.c.l.b16 %v29
    %v296 = vunpack.c.l.b16 %v30
    %v297 = vunpack.c.l.b16 %v31
    %v298 = vunpack.c.l.b16 %v32
    %v299 = vunpack.c.l.b16 %v33
    %v300 = vunpack.c.l.b16 %v34
    %v301 = vunpack.c.l.b16 %v35
    %v302 = vunpack.c.l.b16 %v36
    %v303 = vunpack.c.l.b16 %v37
    %v304 = vunpack.c.l.b16 %v38
    %v305 = vunpack.c.l.b16 %v39
    %v306 = vunpack.c.l.b16 %v40
    %v307 = vpack.c.b16 %v292, %v291
    %v308 = vpack.c.b16 %v294, %v293
    %v309 = vpack.c.b16 %v296, %v295
    %v310 = vpack.c.b16 %v298, %v297
    %v311 = vpack.c.b16 %v300, %v299
    %v312 = vpack.c.b16 %v302, %v301
    %v313 = vpack.c.b16 %v304, %v303
    %v314 = vpack.c.b16 %v306, %v305
    %vm315 = vcmask 523264
    %v317 = vsel %vm315, %v307, 0
    %v320 = vsel %vm315, %v308, 0
    %v323 = vsel %vm315, %v309, 0
    %v326 = vsel %vm315, %v310, 0
    %v329 = vsel %vm315, %v311, 0
    %v332 = vsel %vm315, %v312, 0
    %v335 = vsel %vm315, %v313, 0
    %v338 = vsel %vm315, %v314, 0
    %340 = vmatprep.subr.bf16.mxu0 0
    %341 = vmatpush1.bf16.msra.mxu0 %v271
    %342 = vmatprep.subr.bf16.mxu0 0
    %343 = vmatpush1.bf16.msra.mxu0 %v272
    %344 = vmatprep.subr.bf16.mxu0 0
    %345 = vmatpush1.bf16.msra.mxu0 0
    %346 = vmatprep.subr.bf16.mxu0 0
    %347 = vmatpush1.bf16.msra.mxu0 0
    %348 = vmatprep.subr.bf16.mxu0 0
    %349 = vmatpush1.bf16.msra.mxu0 0
    %350 = vmatprep.subr.bf16.mxu0 0
    %351 = vmatpush1.bf16.msra.mxu0 0
    %352 = vmatprep.subr.bf16.mxu0 0
    %353 = vmatpush1.bf16.msra.mxu0 0
    %354 = vmatprep.subr.bf16.mxu0 0
    %355 = vmatpush1.bf16.msra.mxu0 0
    %356 = vmatprep.subr.bf16.mxu0 0
    %357 = vmatpush1.bf16.msra.mxu0 0
    %358 = vmatprep.subr.bf16.mxu0 0
    %359 = vmatpush1.bf16.msra.mxu0 0
    %360 = vmatprep.subr.bf16.mxu0 0
    %361 = vmatpush1.bf16.msra.mxu0 0
    %362 = vmatprep.subr.bf16.mxu0 0
    %363 = vmatpush1.bf16.msra.mxu0 0
    %364 = vmatprep.subr.bf16.mxu0 0
    %365 = vmatpush1.bf16.msra.mxu0 0
    %366 = vmatprep.subr.bf16.mxu0 0
    %367 = vmatpush1.bf16.msra.mxu0 0
    %368 = vmatprep.subr.bf16.mxu0 0
    %369 = vmatpush1.bf16.msra.mxu0 0
    %370 = vmatprep.subr.bf16.mxu0 0
    %371 = vmatpush1.bf16.msra.mxu0 0
    %372 = vmatprep.mubr.bf16.mxu0 0
    %373 = vmatmul.mubr.bf16.gmra.mrb[0].mxu0 %v317
    %v374 = vpop.f32.mrb[0].mxu0
    %v375 = vadd.f32 %v76, %v374
    %v376 = vpop.f32.mrb[0].mxu0
    %v377 = vpop.f32.mrb[0].mxu0
    %v378 = vadd.f32 %v81, %v377
    %v379 = vpop.f32.mrb[0].mxu0
    %380 = vmatprep.mubr.bf16.mxu0 0
    %381 = vmatmul.mubr.bf16.gmra.mrb[0].mxu0 %v320
    %v382 = vpop.f32.mrb[0].mxu0
    %v383 = vadd.f32 %v86, %v382
    %v384 = vpop.f32.mrb[0].mxu0
    %v385 = vpop.f32.mrb[0].mxu0
    %v386 = vadd.f32 %v91, %v385
    %v387 = vpop.f32.mrb[0].mxu0
    %388 = vmatprep.mubr.bf16.mxu0 0
    %389 = vmatmul.mubr.bf16.gmra.mrb[0].mxu0 %v323
    %v390 = vpop.f32.mrb[0].mxu0
    %v391 = vadd.f32 %v96, %v390
    %v392 = vpop.f32.mrb[0].mxu0
    %v393 = vpop.f32.mrb[0].mxu0
    %v394 = vadd.f32 %v101, %v393
    %v395 = vpop.f32.mrb[0].mxu0
    %396 = vmatprep.mubr.bf16.mxu0 0
    %397 = vmatmul.mubr.bf16.gmra.mrb[0].mxu0 %v326
    %v398 = vpop.f32.mrb[0].mxu0
    %v399 = vadd.f32 %v106, %v398
    %v400 = vpop.f32.mrb[0].mxu0
    %v401 = vpop.f32.mrb[0].mxu0
    %v402 = vadd.f32 %v111, %v401
    %v403 = vpop.f32.mrb[0].mxu0
    %404 = vmatprep.mubr.bf16.mxu0 0
    %405 = vmatmul.mubr.bf16.gmra.mrb[0].mxu0 %v329
    %v406 = vpop.f32.mrb[0].mxu0
    %v407 = vadd.f32 %v116, %v406
    %v408 = vpop.f32.mrb[0].mxu0
    %v409 = vpop.f32.mrb[0].mxu0
    %v410 = vadd.f32 %v121, %v409
    %v411 = vpop.f32.mrb[0].mxu0
    %412 = vmatprep.mubr.bf16.mxu0 0
    %413 = vmatmul.mubr.bf16.gmra.mrb[0].mxu0 %v332
    %v414 = vpop.f32.mrb[0].mxu0
    %v415 = vadd.f32 %v126, %v414
    %v416 = vpop.f32.mrb[0].mxu0
    %v417 = vpop.f32.mrb[0].mxu0
    %v418 = vadd.f32 %v131, %v417
    %v419 = vpop.f32.mrb[0].mxu0
    %420 = vmatprep.mubr.bf16.mxu0 0
    %421 = vmatmul.mubr.bf16.gmra.mrb[0].mxu0 %v335
    %v422 = vpop.f32.mrb[0].mxu0
    %v423 = vadd.f32 %v136, %v422
    %v424 = vpop.f32.mrb[0].mxu0
    %v425 = vpop.f32.mrb[0].mxu0
    %v426 = vadd.f32 %v141, %v425
    %v427 = vpop.f32.mrb[0].mxu0
    %428 = vmatprep.mubr.bf16.mxu0 0
    %429 = vmatmul.mubr.bf16.gmra.mrb[0].mxu0 %v338
    %v430 = vpop.f32.mrb[0].mxu0
    %v431 = vadd.f32 %v146, %v430
    %v432 = vpop.f32.mrb[0].mxu0
    %v433 = vpop.f32.mrb[0].mxu0
    %v434 = vadd.f32 %v151, %v433
    %v435 = vpop.f32.mrb[0].mxu0
    %436 = vdwg.mxu0
    %v437 = vxor.u32 %v375, 2147483648
    %v438 = vxor.u32 %v378, 2147483648
    %v439 = vxor.u32 %v383, 2147483648
    %v440 = vxor.u32 %v386, 2147483648
    %v441 = vxor.u32 %v391, 2147483648
    %v442 = vxor.u32 %v394, 2147483648
    %v443 = vxor.u32 %v399, 2147483648
    %v444 = vxor.u32 %v402, 2147483648
    %v445 = vmul.f32 %v437, 1.442695
    %v446 = vpow.pop %v445
    %v447 = vmul.f32 %v438, 1.442695
    %v448 = vpow.pop %v447
    %v449 = vmul.f32 %v439, 1.442695
    %v450 = vpow.pop %v449
    %v451 = vmul.f32 %v440, 1.442695
    %v452 = vpow.pop %v451
    %v453 = vmul.f32 %v441, 1.442695
    %v454 = vpow.pop %v453
    %v455 = vmul.f32 %v442, 1.442695
    %v456 = vpow.pop %v455
    %v457 = vmul.f32 %v443, 1.442695
    %v458 = vpow.pop %v457
    %v459 = vmul.f32 %v444, 1.442695
    %v460 = vpow.pop %v459
    %v461 = vadd.f32 %v446, 1.0
    %v462 = vadd.f32 %v448, 1.0
    %v463 = vadd.f32 %v450, 1.0
    %v464 = vadd.f32 %v452, 1.0
    %v465 = vadd.f32 %v454, 1.0
    %v466 = vadd.f32 %v456, 1.0
    %v467 = vadd.f32 %v458, 1.0
    %v468 = vadd.f32 %v460, 1.0
    %v469 = vrcp.pop %v461
    %v470 = vmul.f32 1.0, %v469
    %v471 = vrcp.pop %v462
    %v472 = vmul.f32 1.0, %v471
    %v473 = vrcp.pop %v463
    %v474 = vmul.f32 1.0, %v473
    %v475 = vrcp.pop %v464
    %v476 = vmul.f32 1.0, %v475
    %v477 = vrcp.pop %v465
    %v478 = vmul.f32 1.0, %v477
    %v479 = vrcp.pop %v466
    %v480 = vmul.f32 1.0, %v479
    %v481 = vrcp.pop %v467
    %v482 = vmul.f32 1.0, %v481
    %v483 = vrcp.pop %v468
    %v484 = vmul.f32 1.0, %v483
    %v485 = vtanh.pop %v407
    %v486 = vtanh.pop %v410
    %v487 = vtanh.pop %v415
    %v488 = vtanh.pop %v418
    %v489 = vxor.u32 %v423, 2147483648
    %v490 = vxor.u32 %v426, 2147483648
    %v491 = vxor.u32 %v431, 2147483648
    %v492 = vxor.u32 %v434, 2147483648
    %v493 = vmul.f32 %v489, 1.442695
    %v494 = vpow.pop %v493
    %v495 = vmul.f32 %v490, 1.442695
    %v496 = vpow.pop %v495
    %v497 = vmul.f32 %v491, 1.442695
    %v498 = vpow.pop %v497
    %v499 = vmul.f32 %v492, 1.442695
    %v500 = vpow.pop %v499
    %v501 = vadd.f32 %v494, 1.0
    %v502 = vadd.f32 %v496, 1.0
    %v503 = vadd.f32 %v498, 1.0
    %v504 = vadd.f32 %v500, 1.0
    %v505 = vrcp.pop %v501
    %v506 = vmul.f32 1.0, %v505
    %v507 = vrcp.pop %v502
    %v508 = vmul.f32 1.0, %v507
    %v509 = vrcp.pop %v503
    %v510 = vmul.f32 1.0, %v509
    %v511 = vrcp.pop %v504
    %v512 = vmul.f32 1.0, %v511
    %v513 = vmul.f32 %v478, 0.0
    %v514 = vmul.f32 %v480, 0.0
    %v515 = vmul.f32 %v482, 0.0
    %v516 = vmul.f32 %v484, 0.0
    %v517 = vmul.f32 %v470, %v485
    %v518 = vmul.f32 %v472, %v486
    %v519 = vmul.f32 %v474, %v487
    %v520 = vmul.f32 %v476, %v488
    %v521 = vadd.f32 %v513, %v517
    %v522 = vadd.f32 %v514, %v518
    %v523 = vadd.f32 %v515, %v519
    %v524 = vadd.f32 %v516, %v520
    %v525 = vtanh.pop %v521
    %v526 = vtanh.pop %v522
    %v527 = vtanh.pop %v523
    %v528 = vtanh.pop %v524
    %v529 = vmul.f32 %v506, %v525
    %v530 = vmul.f32 %v508, %v526
    %v531 = vmul.f32 %v510, %v527
    %v532 = vmul.f32 %v512, %v528
    %v537 = vunpack.c.l.b16 %v259
    %v538 = vunpack.c.l.b16 %v260
    %v539 = vunpack.c.l.b16 %v261
    %v540 = vunpack.c.l.b16 %v262
    %v541 = vpack.c.b16 %v538, %v537
    %v542 = vpack.c.b16 %v540, %v539
    %v561 = vunpack.c.l.b16 %v41
    %v562 = vunpack.c.l.b16 %v42
    %v563 = vunpack.c.l.b16 %v43
    %v564 = vunpack.c.l.b16 %v44
    %v565 = vunpack.c.l.b16 %v45
    %v566 = vunpack.c.l.b16 %v46
    %v567 = vunpack.c.l.b16 %v47
    %v568 = vunpack.c.l.b16 %v48
    %v569 = vunpack.c.l.b16 %v49
    %v570 = vunpack.c.l.b16 %v50
    %v571 = vunpack.c.l.b16 %v51
    %v572 = vunpack.c.l.b16 %v52
    %v573 = vunpack.c.l.b16 %v53
    %v574 = vunpack.c.l.b16 %v54
    %v575 = vunpack.c.l.b16 %v55
    %v576 = vunpack.c.l.b16 %v56
    %v577 = vpack.c.b16 %v562, %v561
    %v578 = vpack.c.b16 %v564, %v563
    %v579 = vpack.c.b16 %v566, %v565
    %v580 = vpack.c.b16 %v568, %v567
    %v581 = vpack.c.b16 %v570, %v569
    %v582 = vpack.c.b16 %v572, %v571
    %v583 = vpack.c.b16 %v574, %v573
    %v584 = vpack.c.b16 %v576, %v575
    %v586 = vsel %vm315, %v577, 0
    %v589 = vsel %vm315, %v578, 0
    %v592 = vsel %vm315, %v579, 0
    %v595 = vsel %vm315, %v580, 0
    %v598 = vsel %vm315, %v581, 0
    %v601 = vsel %vm315, %v582, 0
    %v604 = vsel %vm315, %v583, 0
    %v607 = vsel %vm315, %v584, 0
    %609 = vmatprep.subr.bf16.mxu0 0
    %610 = vmatpush1.bf16.msra.mxu0 %v541
    %611 = vmatprep.subr.bf16.mxu0 0
    %612 = vmatpush1.bf16.msra.mxu0 %v542
    %613 = vmatprep.subr.bf16.mxu0 0
    %614 = vmatpush1.bf16.msra.mxu0 0
    %615 = vmatprep.subr.bf16.mxu0 0
    %616 = vmatpush1.bf16.msra.mxu0 0
    %617 = vmatprep.subr.bf16.mxu0 0
    %618 = vmatpush1.bf16.msra.mxu0 0
    %619 = vmatprep.subr.bf16.mxu0 0
    %620 = vmatpush1.bf16.msra.mxu0 0
    %621 = vmatprep.subr.bf16.mxu0 0
    %622 = vmatpush1.bf16.msra.mxu0 0
    %623 = vmatprep.subr.bf16.mxu0 0
    %624 = vmatpush1.bf16.msra.mxu0 0
    %625 = vmatprep.subr.bf16.mxu0 0
    %626 = vmatpush1.bf16.msra.mxu0 0
    %627 = vmatprep.subr.bf16.mxu0 0
    %628 = vmatpush1.bf16.msra.mxu0 0
    %629 = vmatprep.subr.bf16.mxu0 0
    %630 = vmatpush1.bf16.msra.mxu0 0
    %631 = vmatprep.subr.bf16.mxu0 0
    %632 = vmatpush1.bf16.msra.mxu0 0
    %633 = vmatprep.subr.bf16.mxu0 0
    %634 = vmatpush1.bf16.msra.mxu0 0
    %635 = vmatprep.subr.bf16.mxu0 0
    %636 = vmatpush1.bf16.msra.mxu0 0
    %637 = vmatprep.subr.bf16.mxu0 0
    %638 = vmatpush1.bf16.msra.mxu0 0
    %639 = vmatprep.subr.bf16.mxu0 0
    %640 = vmatpush1.bf16.msra.mxu0 0
    %641 = vmatprep.mubr.bf16.mxu0 0
    %642 = vmatmul.mubr.bf16.gmra.mrb[0].mxu0 %v586
    %v643 = vpop.f32.mrb[0].mxu0
    %v644 = vadd.f32 %v172, %v643
    %v645 = vpop.f32.mrb[0].mxu0
    %v646 = vpop.f32.mrb[0].mxu0
    %v647 = vadd.f32 %v177, %v646
    %v648 = vpop.f32.mrb[0].mxu0
    %649 = vmatprep.mubr.bf16.mxu0 0
    %650 = vmatmul.mubr.bf16.gmra.mrb[0].mxu0 %v589
    %v651 = vpop.f32.mrb[0].mxu0
    %v652 = vadd.f32 %v182, %v651
    %v653 = vpop.f32.mrb[0].mxu0
    %v654 = vpop.f32.mrb[0].mxu0
    %v655 = vadd.f32 %v187, %v654
    %v656 = vpop.f32.mrb[0].mxu0
    %657 = vmatprep.mubr.bf16.mxu0 0
    %658 = vmatmul.mubr.bf16.gmra.mrb[0].mxu0 %v592
    %v659 = vpop.f32.mrb[0].mxu0
    %v660 = vadd.f32 %v192, %v659
    %v661 = vpop.f32.mrb[0].mxu0
    %v662 = vpop.f32.mrb[0].mxu0
    %v663 = vadd.f32 %v197, %v662
    %v664 = vpop.f32.mrb[0].mxu0
    %665 = vmatprep.mubr.bf16.mxu0 0
    %666 = vmatmul.mubr.bf16.gmra.mrb[0].mxu0 %v595
    %v667 = vpop.f32.mrb[0].mxu0
    %v668 = vadd.f32 %v202, %v667
    %v669 = vpop.f32.mrb[0].mxu0
    %v670 = vpop.f32.mrb[0].mxu0
    %v671 = vadd.f32 %v207, %v670
    %v672 = vpop.f32.mrb[0].mxu0
    %673 = vmatprep.mubr.bf16.mxu0 0
    %674 = vmatmul.mubr.bf16.gmra.mrb[0].mxu0 %v598
    %v675 = vpop.f32.mrb[0].mxu0
    %v676 = vadd.f32 %v212, %v675
    %v677 = vpop.f32.mrb[0].mxu0
    %v678 = vpop.f32.mrb[0].mxu0
    %v679 = vadd.f32 %v217, %v678
    %v680 = vpop.f32.mrb[0].mxu0
    %681 = vmatprep.mubr.bf16.mxu0 0
    %682 = vmatmul.mubr.bf16.gmra.mrb[0].mxu0 %v601
    %v683 = vpop.f32.mrb[0].mxu0
    %v684 = vadd.f32 %v222, %v683
    %v685 = vpop.f32.mrb[0].mxu0
    %v686 = vpop.f32.mrb[0].mxu0
    %v687 = vadd.f32 %v227, %v686
    %v688 = vpop.f32.mrb[0].mxu0
    %689 = vmatprep.mubr.bf16.mxu0 0
    %690 = vmatmul.mubr.bf16.gmra.mrb[0].mxu0 %v604
    %v691 = vpop.f32.mrb[0].mxu0
    %v692 = vadd.f32 %v232, %v691
    %v693 = vpop.f32.mrb[0].mxu0
    %v694 = vpop.f32.mrb[0].mxu0
    %v695 = vadd.f32 %v237, %v694
    %v696 = vpop.f32.mrb[0].mxu0
    %697 = vmatprep.mubr.bf16.mxu0 0
    %698 = vmatmul.mubr.bf16.gmra.mrb[0].mxu0 %v607
    %v699 = vpop.f32.mrb[0].mxu0
    %v700 = vadd.f32 %v242, %v699
    %v701 = vpop.f32.mrb[0].mxu0
    %v702 = vpop.f32.mrb[0].mxu0
    %v703 = vadd.f32 %v247, %v702
    %v704 = vpop.f32.mrb[0].mxu0
    %705 = vdwg.mxu0
    %v706 = vxor.u32 %v644, 2147483648
    %v707 = vxor.u32 %v647, 2147483648
    %v708 = vxor.u32 %v652, 2147483648
    %v709 = vxor.u32 %v655, 2147483648
    %v710 = vxor.u32 %v660, 2147483648
    %v711 = vxor.u32 %v663, 2147483648
    %v712 = vxor.u32 %v668, 2147483648
    %v713 = vxor.u32 %v671, 2147483648
    %v714 = vmul.f32 %v706, 1.442695
    %v715 = vpow.pop %v714
    %v716 = vmul.f32 %v707, 1.442695
    %v717 = vpow.pop %v716
    %v718 = vmul.f32 %v708, 1.442695
    %v719 = vpow.pop %v718
    %v720 = vmul.f32 %v709, 1.442695
    %v721 = vpow.pop %v720
    %v722 = vmul.f32 %v710, 1.442695
    %v723 = vpow.pop %v722
    %v724 = vmul.f32 %v711, 1.442695
    %v725 = vpow.pop %v724
    %v726 = vmul.f32 %v712, 1.442695
    %v727 = vpow.pop %v726
    %v728 = vmul.f32 %v713, 1.442695
    %v729 = vpow.pop %v728
    %v730 = vadd.f32 %v715, 1.0
    %v731 = vadd.f32 %v717, 1.0
    %v732 = vadd.f32 %v719, 1.0
    %v733 = vadd.f32 %v721, 1.0
    %v734 = vadd.f32 %v723, 1.0
    %v735 = vadd.f32 %v725, 1.0
    %v736 = vadd.f32 %v727, 1.0
    %v737 = vadd.f32 %v729, 1.0
    %v738 = vrcp.pop %v730
    %v739 = vmul.f32 1.0, %v738
    %v740 = vrcp.pop %v731
    %v741 = vmul.f32 1.0, %v740
    %v742 = vrcp.pop %v732
    %v743 = vmul.f32 1.0, %v742
    %v744 = vrcp.pop %v733
    %v745 = vmul.f32 1.0, %v744
    %v746 = vrcp.pop %v734
    %v747 = vmul.f32 1.0, %v746
    %v748 = vrcp.pop %v735
    %v749 = vmul.f32 1.0, %v748
    %v750 = vrcp.pop %v736
    %v751 = vmul.f32 1.0, %v750
    %v752 = vrcp.pop %v737
    %v753 = vmul.f32 1.0, %v752
    %v754 = vtanh.pop %v676
    %v755 = vtanh.pop %v679
    %v756 = vtanh.pop %v684
    %v757 = vtanh.pop %v687
    %v758 = vxor.u32 %v692, 2147483648
    %v759 = vxor.u32 %v695, 2147483648
    %v760 = vxor.u32 %v700, 2147483648
    %v761 = vxor.u32 %v703, 2147483648
    %v762 = vmul.f32 %v758, 1.442695
    %v763 = vpow.pop %v762
    %v764 = vmul.f32 %v759, 1.442695
    %v765 = vpow.pop %v764
    %v766 = vmul.f32 %v760, 1.442695
    %v767 = vpow.pop %v766
    %v768 = vmul.f32 %v761, 1.442695
    %v769 = vpow.pop %v768
    %v770 = vadd.f32 %v763, 1.0
    %v771 = vadd.f32 %v765, 1.0
    %v772 = vadd.f32 %v767, 1.0
    %v773 = vadd.f32 %v769, 1.0
    %v774 = vrcp.pop %v770
    %v775 = vmul.f32 1.0, %v774
    %v776 = vrcp.pop %v771
    %v777 = vmul.f32 1.0, %v776
    %v778 = vrcp.pop %v772
    %v779 = vmul.f32 1.0, %v778
    %v780 = vrcp.pop %v773
    %v781 = vmul.f32 1.0, %v780
    %v782 = vmul.f32 %v747, 0.0
    %v783 = vmul.f32 %v749, 0.0
    %v784 = vmul.f32 %v751, 0.0
    %v785 = vmul.f32 %v753, 0.0
    %v786 = vmul.f32 %v739, %v754
    %v787 = vmul.f32 %v741, %v755
    %v788 = vmul.f32 %v743, %v756
    %v789 = vmul.f32 %v745, %v757
    %v790 = vadd.f32 %v782, %v786
    %v791 = vadd.f32 %v783, %v787
    %v792 = vadd.f32 %v784, %v788
    %v793 = vadd.f32 %v785, %v789
    %v794 = vtanh.pop %v790
    %v795 = vtanh.pop %v791
    %v796 = vtanh.pop %v792
    %v797 = vtanh.pop %v793
    %v798 = vmul.f32 %v775, %v794
    %v799 = vmul.f32 %v777, %v795
    %v800 = vmul.f32 %v779, %v796
    %v801 = vmul.f32 %v781, %v797
    %vm802 = vcmp.gt.s32.totalorder %v253, 0
    %vm803 = vcmp.gt.s32.totalorder %v253, 15
    %v804 = vsel %vm802, %v529, 0.0
    %v805 = vsel %vm802, %v530, 0.0
    %v806 = vsel %vm802, %v531, 0.0
    %v807 = vsel %vm802, %v532, 0.0
    %v808 = vsel %vm802, %v521, 0.0
    %v809 = vsel %vm802, %v522, 0.0
    %v810 = vsel %vm802, %v523, 0.0
    %v811 = vsel %vm802, %v524, 0.0
    %v812 = vsel %vm803, %v798, 0.0
    %v813 = vsel %vm803, %v799, 0.0
    %v814 = vsel %vm803, %v800, 0.0
    %v815 = vsel %vm803, %v801, 0.0
    %v816 = vsel %vm803, %v790, 0.0
    %v817 = vsel %vm803, %v791, 0.0
    %v818 = vsel %vm803, %v792, 0.0
    %v819 = vsel %vm803, %v793, 0.0
    %s820 = scalar_lea.vmem %s0, 16
    %v821 = vld [vmem:[%s820] sm:$0xf]
    %v822 = vld [vmem:[%s820 + $0x4] sm:$0xf]
    %v823 = vld [vmem:[%s820 + $0x8] sm:$0xf]
    %v824 = vld [vmem:[%s820 + $0xc] sm:$0xf]
    %s825 = scalar_lea.vmem %s0, 224
    %v826 = vld [vmem:[%s825] sm:$0xf]
    %v827 = vld [vmem:[%s825 + $0x4] sm:$0xf]
    %v828 = vld [vmem:[%s825 + $0x8] sm:$0xf]
    %v829 = vld [vmem:[%s825 + $0xc] sm:$0xf]
    %v830 = vpack.c.bf16 %v805, %v804
    %v831 = vpack.c.bf16 %v807, %v806
    %v836 = vunpack.c.l.b16 %v821
    %v837 = vunpack.c.l.b16 %v822
    %v838 = vunpack.c.l.b16 %v823
    %v839 = vunpack.c.l.b16 %v824
    %v840 = vpack.c.b16 %v837, %v836
    %v841 = vpack.c.b16 %v839, %v838
    %844 = vmatprep.subr.bf16.mxu0 0
    %845 = vmatpush1.bf16.msra.mxu0 %v840
    %846 = vmatprep.subr.bf16.mxu0 0
    %847 = vmatpush1.bf16.msra.mxu0 %v841
    %848 = vmatprep.subr.bf16.mxu0 0
    %849 = vmatpush1.bf16.msra.mxu0 %v830
    %850 = vmatprep.subr.bf16.mxu0 0
    %851 = vmatpush1.bf16.msra.mxu0 %v831
    %852 = vmatprep.subr.bf16.mxu0 0
    %853 = vmatpush1.bf16.msra.mxu0 0
    %854 = vmatprep.subr.bf16.mxu0 0
    %855 = vmatpush1.bf16.msra.mxu0 0
    %856 = vmatprep.subr.bf16.mxu0 0
    %857 = vmatpush1.bf16.msra.mxu0 0
    %858 = vmatprep.subr.bf16.mxu0 0
    %859 = vmatpush1.bf16.msra.mxu0 0
    %860 = vmatprep.subr.bf16.mxu0 0
    %861 = vmatpush1.bf16.msra.mxu0 0
    %862 = vmatprep.subr.bf16.mxu0 0
    %863 = vmatpush1.bf16.msra.mxu0 0
    %864 = vmatprep.subr.bf16.mxu0 0
    %865 = vmatpush1.bf16.msra.mxu0 0
    %866 = vmatprep.subr.bf16.mxu0 0
    %867 = vmatpush1.bf16.msra.mxu0 0
    %868 = vmatprep.subr.bf16.mxu0 0
    %869 = vmatpush1.bf16.msra.mxu0 0
    %870 = vmatprep.subr.bf16.mxu0 0
    %871 = vmatpush1.bf16.msra.mxu0 0
    %872 = vmatprep.subr.bf16.mxu0 0
    %873 = vmatpush1.bf16.msra.mxu0 0
    %874 = vmatprep.subr.bf16.mxu0 0
    %875 = vmatpush1.bf16.msra.mxu0 0
    %876 = vmatprep.mubr.bf16.mxu0 0
    %877 = vmatmul.mubr.bf16.gmra.mrb[0].mxu0 %v317
    %v878 = vpop.f32.mrb[0].mxu0
    %v879 = vadd.f32 %v76, %v878
    %v880 = vpop.f32.mrb[0].mxu0
    %v881 = vpop.f32.mrb[0].mxu0
    %v882 = vadd.f32 %v81, %v881
    %v883 = vpop.f32.mrb[0].mxu0
    %884 = vmatprep.mubr.bf16.mxu0 0
    %885 = vmatmul.mubr.bf16.gmra.mrb[0].mxu0 %v320
    %v886 = vpop.f32.mrb[0].mxu0
    %v887 = vadd.f32 %v86, %v886
    %v888 = vpop.f32.mrb[0].mxu0
    %v889 = vpop.f32.mrb[0].mxu0
    %v890 = vadd.f32 %v91, %v889
    %v891 = vpop.f32.mrb[0].mxu0
    %892 = vmatprep.mubr.bf16.mxu0 0
    %893 = vmatmul.mubr.bf16.gmra.mrb[0].mxu0 %v323
    %v894 = vpop.f32.mrb[0].mxu0
    %v895 = vadd.f32 %v96, %v894
    %v896 = vpop.f32.mrb[0].mxu0
    %v897 = vpop.f32.mrb[0].mxu0
    %v898 = vadd.f32 %v101, %v897
    %v899 = vpop.f32.mrb[0].mxu0
    %900 = vmatprep.mubr.bf16.mxu0 0
    %901 = vmatmul.mubr.bf16.gmra.mrb[0].mxu0 %v326
    %v902 = vpop.f32.mrb[0].mxu0
    %v903 = vadd.f32 %v106, %v902
    %v904 = vpop.f32.mrb[0].mxu0
    %v905 = vpop.f32.mrb[0].mxu0
    %v906 = vadd.f32 %v111, %v905
    %v907 = vpop.f32.mrb[0].mxu0
    %908 = vmatprep.mubr.bf16.mxu0 0
    %909 = vmatmul.mubr.bf16.gmra.mrb[0].mxu0 %v329
    %v910 = vpop.f32.mrb[0].mxu0
    %v911 = vadd.f32 %v116, %v910
    %v912 = vpop.f32.mrb[0].mxu0
    %v913 = vpop.f32.mrb[0].mxu0
    %v914 = vadd.f32 %v121, %v913
    %v915 = vpop.f32.mrb[0].mxu0
    %916 = vmatprep.mubr.bf16.mxu0 0
    %917 = vmatmul.mubr.bf16.gmra.mrb[0].mxu0 %v332
    %v918 = vpop.f32.mrb[0].mxu0
    %v919 = vadd.f32 %v126, %v918
    %v920 = vpop.f32.mrb[0].mxu0
    %v921 = vpop.f32.mrb[0].mxu0
    %v922 = vadd.f32 %v131, %v921
    %v923 = vpop.f32.mrb[0].mxu0
    %924 = vmatprep.mubr.bf16.mxu0 0
    %925 = vmatmul.mubr.bf16.gmra.mrb[0].mxu0 %v335
    %v926 = vpop.f32.mrb[0].mxu0
    %v927 = vadd.f32 %v136, %v926
    %v928 = vpop.f32.mrb[0].mxu0
    %v929 = vpop.f32.mrb[0].mxu0
    %v930 = vadd.f32 %v141, %v929
    %v931 = vpop.f32.mrb[0].mxu0
    %932 = vmatprep.mubr.bf16.mxu0 0
    %933 = vmatmul.mubr.bf16.gmra.mrb[0].mxu0 %v338
    %v934 = vpop.f32.mrb[0].mxu0
    %v935 = vadd.f32 %v146, %v934
    %v936 = vpop.f32.mrb[0].mxu0
    %v937 = vpop.f32.mrb[0].mxu0
    %v938 = vadd.f32 %v151, %v937
    %v939 = vpop.f32.mrb[0].mxu0
    %940 = vdwg.mxu0
    %v941 = vxor.u32 %v879, 2147483648
    %v942 = vxor.u32 %v882, 2147483648
    %v943 = vxor.u32 %v887, 2147483648
    %v944 = vxor.u32 %v890, 2147483648
    %v945 = vxor.u32 %v895, 2147483648
    %v946 = vxor.u32 %v898, 2147483648
    %v947 = vxor.u32 %v903, 2147483648
    %v948 = vxor.u32 %v906, 2147483648
    %v949 = vmul.f32 %v941, 1.442695
    %v950 = vpow.pop %v949
    %v951 = vmul.f32 %v942, 1.442695
    %v952 = vpow.pop %v951
    %v953 = vmul.f32 %v943, 1.442695
    %v954 = vpow.pop %v953
    %v955 = vmul.f32 %v944, 1.442695
    %v956 = vpow.pop %v955
    %v957 = vmul.f32 %v945, 1.442695
    %v958 = vpow.pop %v957
    %v959 = vmul.f32 %v946, 1.442695
    %v960 = vpow.pop %v959
    %v961 = vmul.f32 %v947, 1.442695
    %v962 = vpow.pop %v961
    %v963 = vmul.f32 %v948, 1.442695
    %v964 = vpow.pop %v963
    %v965 = vadd.f32 %v950, 1.0
    %v966 = vadd.f32 %v952, 1.0
    %v967 = vadd.f32 %v954, 1.0
    %v968 = vadd.f32 %v956, 1.0
    %v969 = vadd.f32 %v958, 1.0
    %v970 = vadd.f32 %v960, 1.0
    %v971 = vadd.f32 %v962, 1.0
    %v972 = vadd.f32 %v964, 1.0
    %v973 = vrcp.pop %v965
    %v974 = vmul.f32 1.0, %v973
    %v975 = vrcp.pop %v966
    %v976 = vmul.f32 1.0, %v975
    %v977 = vrcp.pop %v967
    %v978 = vmul.f32 1.0, %v977
    %v979 = vrcp.pop %v968
    %v980 = vmul.f32 1.0, %v979
    %v981 = vrcp.pop %v969
    %v982 = vmul.f32 1.0, %v981
    %v983 = vrcp.pop %v970
    %v984 = vmul.f32 1.0, %v983
    %v985 = vrcp.pop %v971
    %v986 = vmul.f32 1.0, %v985
    %v987 = vrcp.pop %v972
    %v988 = vmul.f32 1.0, %v987
    %v989 = vtanh.pop %v911
    %v990 = vtanh.pop %v914
    %v991 = vtanh.pop %v919
    %v992 = vtanh.pop %v922
    %v993 = vxor.u32 %v927, 2147483648
    %v994 = vxor.u32 %v930, 2147483648
    %v995 = vxor.u32 %v935, 2147483648
    %v996 = vxor.u32 %v938, 2147483648
    %v997 = vmul.f32 %v993, 1.442695
    %v998 = vpow.pop %v997
    %v999 = vmul.f32 %v994, 1.442695
    %v1000 = vpow.pop %v999
    %v1001 = vmul.f32 %v995, 1.442695
    %v1002 = vpow.pop %v1001
    %v1003 = vmul.f32 %v996, 1.442695
    %v1004 = vpow.pop %v1003
    %v1005 = vadd.f32 %v998, 1.0
    %v1006 = vadd.f32 %v1000, 1.0
    %v1007 = vadd.f32 %v1002, 1.0
    %v1008 = vadd.f32 %v1004, 1.0
    %v1009 = vrcp.pop %v1005
    %v1010 = vmul.f32 1.0, %v1009
    %v1011 = vrcp.pop %v1006
    %v1012 = vmul.f32 1.0, %v1011
    %v1013 = vrcp.pop %v1007
    %v1014 = vmul.f32 1.0, %v1013
    %v1015 = vrcp.pop %v1008
    %v1016 = vmul.f32 1.0, %v1015
    %v1017 = vmul.f32 %v982, %v808
    %v1018 = vmul.f32 %v984, %v809
    %v1019 = vmul.f32 %v986, %v810
    %v1020 = vmul.f32 %v988, %v811
    %v1021 = vmul.f32 %v974, %v989
    %v1022 = vmul.f32 %v976, %v990
    %v1023 = vmul.f32 %v978, %v991
    %v1024 = vmul.f32 %v980, %v992
    %v1025 = vadd.f32 %v1017, %v1021
    %v1026 = vadd.f32 %v1018, %v1022
    %v1027 = vadd.f32 %v1019, %v1023
    %v1028 = vadd.f32 %v1020, %v1024
    %v1029 = vtanh.pop %v1025
    %v1030 = vtanh.pop %v1026
    %v1031 = vtanh.pop %v1027
    %v1032 = vtanh.pop %v1028
    %v1033 = vmul.f32 %v1010, %v1029
    %v1034 = vmul.f32 %v1012, %v1030
    %v1035 = vmul.f32 %v1014, %v1031
    %v1036 = vmul.f32 %v1016, %v1032
    %v1037 = vpack.c.bf16 %v813, %v812
    %v1038 = vpack.c.bf16 %v815, %v814
    %v1043 = vunpack.c.l.b16 %v826
    %v1044 = vunpack.c.l.b16 %v827
    %v1045 = vunpack.c.l.b16 %v828
    %v1046 = vunpack.c.l.b16 %v829
    %v1047 = vpack.c.b16 %v1044, %v1043
    %v1048 = vpack.c.b16 %v1046, %v1045
    %1051 = vmatprep.subr.bf16.mxu0 0
    %1052 = vmatpush1.bf16.msra.mxu0 %v1047
    %1053 = vmatprep.subr.bf16.mxu0 0
    %1054 = vmatpush1.bf16.msra.mxu0 %v1048
    %1055 = vmatprep.subr.bf16.mxu0 0
    %1056 = vmatpush1.bf16.msra.mxu0 %v1037
    %1057 = vmatprep.subr.bf16.mxu0 0
    %1058 = vmatpush1.bf16.msra.mxu0 %v1038
    %1059 = vmatprep.subr.bf16.mxu0 0
    %1060 = vmatpush1.bf16.msra.mxu0 0
    %1061 = vmatprep.subr.bf16.mxu0 0
    %1062 = vmatpush1.bf16.msra.mxu0 0
    %1063 = vmatprep.subr.bf16.mxu0 0
    %1064 = vmatpush1.bf16.msra.mxu0 0
    %1065 = vmatprep.subr.bf16.mxu0 0
    %1066 = vmatpush1.bf16.msra.mxu0 0
    %1067 = vmatprep.subr.bf16.mxu0 0
    %1068 = vmatpush1.bf16.msra.mxu0 0
    %1069 = vmatprep.subr.bf16.mxu0 0
    %1070 = vmatpush1.bf16.msra.mxu0 0
    %1071 = vmatprep.subr.bf16.mxu0 0
    %1072 = vmatpush1.bf16.msra.mxu0 0
    %1073 = vmatprep.subr.bf16.mxu0 0
    %1074 = vmatpush1.bf16.msra.mxu0 0
    %1075 = vmatprep.subr.bf16.mxu0 0
    %1076 = vmatpush1.bf16.msra.mxu0 0
    %1077 = vmatprep.subr.bf16.mxu0 0
    %1078 = vmatpush1.bf16.msra.mxu0 0
    %1079 = vmatprep.subr.bf16.mxu0 0
    %1080 = vmatpush1.bf16.msra.mxu0 0
    %1081 = vmatprep.subr.bf16.mxu0 0
    %1082 = vmatpush1.bf16.msra.mxu0 0
    %1083 = vmatprep.mubr.bf16.mxu0 0
    %1084 = vmatmul.mubr.bf16.gmra.mrb[0].mxu0 %v586
    %v1085 = vpop.f32.mrb[0].mxu0
    %v1086 = vadd.f32 %v172, %v1085
    %v1087 = vpop.f32.mrb[0].mxu0
    %v1088 = vpop.f32.mrb[0].mxu0
    %v1089 = vadd.f32 %v177, %v1088
    %v1090 = vpop.f32.mrb[0].mxu0
    %1091 = vmatprep.mubr.bf16.mxu0 0
    %1092 = vmatmul.mubr.bf16.gmra.mrb[0].mxu0 %v589
    %v1093 = vpop.f32.mrb[0].mxu0
    %v1094 = vadd.f32 %v182, %v1093
    %v1095 = vpop.f32.mrb[0].mxu0
    %v1096 = vpop.f32.mrb[0].mxu0
    %v1097 = vadd.f32 %v187, %v1096
    %v1098 = vpop.f32.mrb[0].mxu0
    %1099 = vmatprep.mubr.bf16.mxu0 0
    %1100 = vmatmul.mubr.bf16.gmra.mrb[0].mxu0 %v592
    %v1101 = vpop.f32.mrb[0].mxu0
    %v1102 = vadd.f32 %v192, %v1101
    %v1103 = vpop.f32.mrb[0].mxu0
    %v1104 = vpop.f32.mrb[0].mxu0
    %v1105 = vadd.f32 %v197, %v1104
    %v1106 = vpop.f32.mrb[0].mxu0
    %1107 = vmatprep.mubr.bf16.mxu0 0
    %1108 = vmatmul.mubr.bf16.gmra.mrb[0].mxu0 %v595
    %v1109 = vpop.f32.mrb[0].mxu0
    %v1110 = vadd.f32 %v202, %v1109
    %v1111 = vpop.f32.mrb[0].mxu0
    %v1112 = vpop.f32.mrb[0].mxu0
    %v1113 = vadd.f32 %v207, %v1112
    %v1114 = vpop.f32.mrb[0].mxu0
    %1115 = vmatprep.mubr.bf16.mxu0 0
    %1116 = vmatmul.mubr.bf16.gmra.mrb[0].mxu0 %v598
    %v1117 = vpop.f32.mrb[0].mxu0
    %v1118 = vadd.f32 %v212, %v1117
    %v1119 = vpop.f32.mrb[0].mxu0
    %v1120 = vpop.f32.mrb[0].mxu0
    %v1121 = vadd.f32 %v217, %v1120
    %v1122 = vpop.f32.mrb[0].mxu0
    %1123 = vmatprep.mubr.bf16.mxu0 0
    %1124 = vmatmul.mubr.bf16.gmra.mrb[0].mxu0 %v601
    %v1125 = vpop.f32.mrb[0].mxu0
    %v1126 = vadd.f32 %v222, %v1125
    %v1127 = vpop.f32.mrb[0].mxu0
    %v1128 = vpop.f32.mrb[0].mxu0
    %v1129 = vadd.f32 %v227, %v1128
    %v1130 = vpop.f32.mrb[0].mxu0
    %1131 = vmatprep.mubr.bf16.mxu0 0
    %1132 = vmatmul.mubr.bf16.gmra.mrb[0].mxu0 %v604
    %v1133 = vpop.f32.mrb[0].mxu0
    %v1134 = vadd.f32 %v232, %v1133
    %v1135 = vpop.f32.mrb[0].mxu0
    %v1136 = vpop.f32.mrb[0].mxu0
    %v1137 = vadd.f32 %v237, %v1136
    %v1138 = vpop.f32.mrb[0].mxu0
    %1139 = vmatprep.mubr.bf16.mxu0 0
    %1140 = vmatmul.mubr.bf16.gmra.mrb[0].mxu0 %v607
    %v1141 = vpop.f32.mrb[0].mxu0
    %v1142 = vadd.f32 %v242, %v1141
    %v1143 = vpop.f32.mrb[0].mxu0
    %v1144 = vpop.f32.mrb[0].mxu0
    %v1145 = vadd.f32 %v247, %v1144
    %v1146 = vpop.f32.mrb[0].mxu0
    %1147 = vdwg.mxu0
    %v1148 = vxor.u32 %v1086, 2147483648
    %v1149 = vxor.u32 %v1089, 2147483648
    %v1150 = vxor.u32 %v1094, 2147483648
    %v1151 = vxor.u32 %v1097, 2147483648
    %v1152 = vxor.u32 %v1102, 2147483648
    %v1153 = vxor.u32 %v1105, 2147483648
    %v1154 = vxor.u32 %v1110, 2147483648
    %v1155 = vxor.u32 %v1113, 2147483648
    %v1156 = vmul.f32 %v1148, 1.442695
    %v1157 = vpow.pop %v1156
    %v1158 = vmul.f32 %v1149, 1.442695
    %v1159 = vpow.pop %v1158
    %v1160 = vmul.f32 %v1150, 1.442695
    %v1161 = vpow.pop %v1160
    %v1162 = vmul.f32 %v1151, 1.442695
    %v1163 = vpow.pop %v1162
    %v1164 = vmul.f32 %v1152, 1.442695
    %v1165 = vpow.pop %v1164
    %v1166 = vmul.f32 %v1153, 1.442695
    %v1167 = vpow.pop %v1166
    %v1168 = vmul.f32 %v1154, 1.442695
    %v1169 = vpow.pop %v1168
    %v1170 = vmul.f32 %v1155, 1.442695
    %v1171 = vpow.pop %v1170
    %v1172 = vadd.f32 %v1157, 1.0
    %v1173 = vadd.f32 %v1159, 1.0
    %v1174 = vadd.f32 %v1161, 1.0
    %v1175 = vadd.f32 %v1163, 1.0
    %v1176 = vadd.f32 %v1165, 1.0
    %v1177 = vadd.f32 %v1167, 1.0
    %v1178 = vadd.f32 %v1169, 1.0
    %v1179 = vadd.f32 %v1171, 1.0
    %v1180 = vrcp.pop %v1172
    %v1181 = vmul.f32 1.0, %v1180
    %v1182 = vrcp.pop %v1173
    %v1183 = vmul.f32 1.0, %v1182
    %v1184 = vrcp.pop %v1174
    %v1185 = vmul.f32 1.0, %v1184
    %v1186 = vrcp.pop %v1175
    %v1187 = vmul.f32 1.0, %v1186
    %v1188 = vrcp.pop %v1176
    %v1189 = vmul.f32 1.0, %v1188
    %v1190 = vrcp.pop %v1177
    %v1191 = vmul.f32 1.0, %v1190
    %v1192 = vrcp.pop %v1178
    %v1193 = vmul.f32 1.0, %v1192
    %v1194 = vrcp.pop %v1179
    %v1195 = vmul.f32 1.0, %v1194
    %v1196 = vtanh.pop %v1118
    %v1197 = vtanh.pop %v1121
    %v1198 = vtanh.pop %v1126
    %v1199 = vtanh.pop %v1129
    %v1200 = vxor.u32 %v1134, 2147483648
    %v1201 = vxor.u32 %v1137, 2147483648
    %v1202 = vxor.u32 %v1142, 2147483648
    %v1203 = vxor.u32 %v1145, 2147483648
    %v1204 = vmul.f32 %v1200, 1.442695
    %v1205 = vpow.pop %v1204
    %v1206 = vmul.f32 %v1201, 1.442695
    %v1207 = vpow.pop %v1206
    %v1208 = vmul.f32 %v1202, 1.442695
    %v1209 = vpow.pop %v1208
    %v1210 = vmul.f32 %v1203, 1.442695
    %v1211 = vpow.pop %v1210
    %v1212 = vadd.f32 %v1205, 1.0
    %v1213 = vadd.f32 %v1207, 1.0
    %v1214 = vadd.f32 %v1209, 1.0
    %v1215 = vadd.f32 %v1211, 1.0
    %v1216 = vrcp.pop %v1212
    %v1217 = vmul.f32 1.0, %v1216
    %v1218 = vrcp.pop %v1213
    %v1219 = vmul.f32 1.0, %v1218
    %v1220 = vrcp.pop %v1214
    %v1221 = vmul.f32 1.0, %v1220
    %v1222 = vrcp.pop %v1215
    %v1223 = vmul.f32 1.0, %v1222
    %v1224 = vmul.f32 %v1189, %v816
    %v1225 = vmul.f32 %v1191, %v817
    %v1226 = vmul.f32 %v1193, %v818
    %v1227 = vmul.f32 %v1195, %v819
    %v1228 = vmul.f32 %v1181, %v1196
    %v1229 = vmul.f32 %v1183, %v1197
    %v1230 = vmul.f32 %v1185, %v1198
    %v1231 = vmul.f32 %v1187, %v1199
    %v1232 = vadd.f32 %v1224, %v1228
    %v1233 = vadd.f32 %v1225, %v1229
    %v1234 = vadd.f32 %v1226, %v1230
    %v1235 = vadd.f32 %v1227, %v1231
    %v1236 = vtanh.pop %v1232
    %v1237 = vtanh.pop %v1233
    %v1238 = vtanh.pop %v1234
    %v1239 = vtanh.pop %v1235
    %v1240 = vmul.f32 %v1217, %v1236
    %v1241 = vmul.f32 %v1219, %v1237
    %v1242 = vmul.f32 %v1221, %v1238
    %v1243 = vmul.f32 %v1223, %v1239
    %vm1244 = vcmp.gt.s32.totalorder %v253, 1
    %vm1245 = vcmp.gt.s32.totalorder %v253, 14
    %v1246 = vsel %vm1244, %v1033, %v804
    %v1247 = vsel %vm1244, %v1034, %v805
    %v1248 = vsel %vm1244, %v1035, %v806
    %v1249 = vsel %vm1244, %v1036, %v807
    %v1250 = vsel %vm1244, %v1025, %v808
    %v1251 = vsel %vm1244, %v1026, %v809
    %v1252 = vsel %vm1244, %v1027, %v810
    %v1253 = vsel %vm1244, %v1028, %v811
    %v1254 = vsel %vm1245, %v1240, %v812
    %v1255 = vsel %vm1245, %v1241, %v813
    %v1256 = vsel %vm1245, %v1242, %v814
    %v1257 = vsel %vm1245, %v1243, %v815
    %v1258 = vsel %vm1245, %v1232, %v816
    %v1259 = vsel %vm1245, %v1233, %v817
    %v1260 = vsel %vm1245, %v1234, %v818
    %v1261 = vsel %vm1245, %v1235, %v819
    %s1262 = scalar_lea.vmem %s0, 32
    %v1263 = vld [vmem:[%s1262] sm:$0xf]
    %v1264 = vld [vmem:[%s1262 + $0x4] sm:$0xf]
    %v1265 = vld [vmem:[%s1262 + $0x8] sm:$0xf]
    %v1266 = vld [vmem:[%s1262 + $0xc] sm:$0xf]
    %s1267 = scalar_lea.vmem %s0, 208
    %v1268 = vld [vmem:[%s1267] sm:$0xf]
    %v1269 = vld [vmem:[%s1267 + $0x4] sm:$0xf]
    %v1270 = vld [vmem:[%s1267 + $0x8] sm:$0xf]
    %v1271 = vld [vmem:[%s1267 + $0xc] sm:$0xf]
    %v1272 = vpack.c.bf16 %v1247, %v1246
    %v1273 = vpack.c.bf16 %v1249, %v1248
    %v1278 = vunpack.c.l.b16 %v1263
    %v1279 = vunpack.c.l.b16 %v1264
    %v1280 = vunpack.c.l.b16 %v1265
    %v1281 = vunpack.c.l.b16 %v1266
    %v1282 = vpack.c.b16 %v1279, %v1278
    %v1283 = vpack.c.b16 %v1281, %v1280
    %1286 = vmatprep.subr.bf16.mxu0 0
    %1287 = vmatpush1.bf16.msra.mxu0 %v1282
    %1288 = vmatprep.subr.bf16.mxu0 0
    %1289 = vmatpush1.bf16.msra.mxu0 %v1283
    %1290 = vmatprep.subr.bf16.mxu0 0
    %1291 = vmatpush1.bf16.msra.mxu0 %v1272
    %1292 = vmatprep.subr.bf16.mxu0 0
    %1293 = vmatpush1.bf16.msra.mxu0 %v1273
    %1294 = vmatprep.subr.bf16.mxu0 0
    %1295 = vmatpush1.bf16.msra.mxu0 0
    %1296 = vmatprep.subr.bf16.mxu0 0
    %1297 = vmatpush1.bf16.msra.mxu0 0
    %1298 = vmatprep.subr.bf16.mxu0 0
    %1299 = vmatpush1.bf16.msra.mxu0 0
    %1300 = vmatprep.subr.bf16.mxu0 0
    %1301 = vmatpush1.bf16.msra.mxu0 0
    %1302 = vmatprep.subr.bf16.mxu0 0
    %1303 = vmatpush1.bf16.msra.mxu0 0
    %1304 = vmatprep.subr.bf16.mxu0 0
    %1305 = vmatpush1.bf16.msra.mxu0 0
    %1306 = vmatprep.subr.bf16.mxu0 0
    %1307 = vmatpush1.bf16.msra.mxu0 0
    %1308 = vmatprep.subr.bf16.mxu0 0
    %1309 = vmatpush1.bf16.msra.mxu0 0
    %1310 = vmatprep.subr.bf16.mxu0 0
    %1311 = vmatpush1.bf16.msra.mxu0 0
    %1312 = vmatprep.subr.bf16.mxu0 0
    %1313 = vmatpush1.bf16.msra.mxu0 0
    %1314 = vmatprep.subr.bf16.mxu0 0
    %1315 = vmatpush1.bf16.msra.mxu0 0
    %1316 = vmatprep.subr.bf16.mxu0 0
    %1317 = vmatpush1.bf16.msra.mxu0 0
    %1318 = vmatprep.mubr.bf16.mxu0 0
    %1319 = vmatmul.mubr.bf16.gmra.mrb[0].mxu0 %v317
    %v1320 = vpop.f32.mrb[0].mxu0
    %v1321 = vadd.f32 %v76, %v1320
    %v1322 = vpop.f32.mrb[0].mxu0
    %v1323 = vpop.f32.mrb[0].mxu0
    %v1324 = vadd.f32 %v81, %v1323
    %v1325 = vpop.f32.mrb[0].mxu0
    %1326 = vmatprep.mubr.bf16.mxu0 0
    %1327 = vmatmul.mubr.bf16.gmra.mrb[0].mxu0 %v320
    %v1328 = vpop.f32.mrb[0].mxu0
    %v1329 = vadd.f32 %v86, %v1328
    %v1330 = vpop.f32.mrb[0].mxu0
    %v1331 = vpop.f32.mrb[0].mxu0
    %v1332 = vadd.f32 %v91, %v1331
    %v1333 = vpop.f32.mrb[0].mxu0
    %1334 = vmatprep.mubr.bf16.mxu0 0
    %1335 = vmatmul.mubr.bf16.gmra.mrb[0].mxu0 %v323
    %v1336 = vpop.f32.mrb[0].mxu0
    %v1337 = vadd.f32 %v96, %v1336
    %v1338 = vpop.f32.mrb[0].mxu0
    %v1339 = vpop.f32.mrb[0].mxu0
    %v1340 = vadd.f32 %v101, %v1339
    %v1341 = vpop.f32.mrb[0].mxu0
    %1342 = vmatprep.mubr.bf16.mxu0 0
    %1343 = vmatmul.mubr.bf16.gmra.mrb[0].mxu0 %v326
    %v1344 = vpop.f32.mrb[0].mxu0
    %v1345 = vadd.f32 %v106, %v1344
    %v1346 = vpop.f32.mrb[0].mxu0
    %v1347 = vpop.f32.mrb[0].mxu0
    %v1348 = vadd.f32 %v111, %v1347
    %v1349 = vpop.f32.mrb[0].mxu0
    %1350 = vmatprep.mubr.bf16.mxu0 0
    %1351 = vmatmul.mubr.bf16.gmra.mrb[0].mxu0 %v329
    %v1352 = vpop.f32.mrb[0].mxu0
    %v1353 = vadd.f32 %v116, %v1352
    %v1354 = vpop.f32.mrb[0].mxu0
    %v1355 = vpop.f32.mrb[0].mxu0
    %v1356 = vadd.f32 %v121, %v1355
    %v1357 = vpop.f32.mrb[0].mxu0
    %1358 = vmatprep.mubr.bf16.mxu0 0
    %1359 = vmatmul.mubr.bf16.gmra.mrb[0].mxu0 %v332
    %v1360 = vpop.f32.mrb[0].mxu0
    %v1361 = vadd.f32 %v126, %v1360
    %v1362 = vpop.f32.mrb[0].mxu0
    %v1363 = vpop.f32.mrb[0].mxu0
    %v1364 = vadd.f32 %v131, %v1363
    %v1365 = vpop.f32.mrb[0].mxu0
    %1366 = vmatprep.mubr.bf16.mxu0 0
    %1367 = vmatmul.mubr.bf16.gmra.mrb[0].mxu0 %v335
    %v1368 = vpop.f32.mrb[0].mxu0
    %v1369 = vadd.f32 %v136, %v1368
    %v1370 = vpop.f32.mrb[0].mxu0
    %v1371 = vpop.f32.mrb[0].mxu0
    %v1372 = vadd.f32 %v141, %v1371
    %v1373 = vpop.f32.mrb[0].mxu0
    %1374 = vmatprep.mubr.bf16.mxu0 0
    %1375 = vmatmul.mubr.bf16.gmra.mrb[0].mxu0 %v338
    %v1376 = vpop.f32.mrb[0].mxu0
    %v1377 = vadd.f32 %v146, %v1376
    %v1378 = vpop.f32.mrb[0].mxu0
    %v1379 = vpop.f32.mrb[0].mxu0
    %v1380 = vadd.f32 %v151, %v1379
    %v1381 = vpop.f32.mrb[0].mxu0
    %1382 = vdwg.mxu0
    %v1383 = vxor.u32 %v1321, 2147483648
    %v1384 = vxor.u32 %v1324, 2147483648
    %v1385 = vxor.u32 %v1329, 2147483648
    %v1386 = vxor.u32 %v1332, 2147483648
    %v1387 = vxor.u32 %v1337, 2147483648
    %v1388 = vxor.u32 %v1340, 2147483648
    %v1389 = vxor.u32 %v1345, 2147483648
    %v1390 = vxor.u32 %v1348, 2147483648
    %v1391 = vmul.f32 %v1383, 1.442695
    %v1392 = vpow.pop %v1391
    %v1393 = vmul.f32 %v1384, 1.442695
    %v1394 = vpow.pop %v1393
    %v1395 = vmul.f32 %v1385, 1.442695
    %v1396 = vpow.pop %v1395
    %v1397 = vmul.f32 %v1386, 1.442695
    %v1398 = vpow.pop %v1397
    %v1399 = vmul.f32 %v1387, 1.442695
    %v1400 = vpow.pop %v1399
    %v1401 = vmul.f32 %v1388, 1.442695
    %v1402 = vpow.pop %v1401
    %v1403 = vmul.f32 %v1389, 1.442695
    %v1404 = vpow.pop %v1403
    %v1405 = vmul.f32 %v1390, 1.442695
    %v1406 = vpow.pop %v1405
    %v1407 = vadd.f32 %v1392, 1.0
    %v1408 = vadd.f32 %v1394, 1.0
    %v1409 = vadd.f32 %v1396, 1.0
    %v1410 = vadd.f32 %v1398, 1.0
    %v1411 = vadd.f32 %v1400, 1.0
    %v1412 = vadd.f32 %v1402, 1.0
    %v1413 = vadd.f32 %v1404, 1.0
    %v1414 = vadd.f32 %v1406, 1.0
    %v1415 = vrcp.pop %v1407
    %v1416 = vmul.f32 1.0, %v1415
    %v1417 = vrcp.pop %v1408
    %v1418 = vmul.f32 1.0, %v1417
    %v1419 = vrcp.pop %v1409
    %v1420 = vmul.f32 1.0, %v1419
    %v1421 = vrcp.pop %v1410
    %v1422 = vmul.f32 1.0, %v1421
    %v1423 = vrcp.pop %v1411
    %v1424 = vmul.f32 1.0, %v1423
    %v1425 = vrcp.pop %v1412
    %v1426 = vmul.f32 1.0, %v1425
    %v1427 = vrcp.pop %v1413
    %v1428 = vmul.f32 1.0, %v1427
    %v1429 = vrcp.pop %v1414
    %v1430 = vmul.f32 1.0, %v1429
    %v1431 = vtanh.pop %v1353
    %v1432 = vtanh.pop %v1356
    %v1433 = vtanh.pop %v1361
    %v1434 = vtanh.pop %v1364
    %v1435 = vxor.u32 %v1369, 2147483648
    %v1436 = vxor.u32 %v1372, 2147483648
    %v1437 = vxor.u32 %v1377, 2147483648
    %v1438 = vxor.u32 %v1380, 2147483648
    %v1439 = vmul.f32 %v1435, 1.442695
    %v1440 = vpow.pop %v1439
    %v1441 = vmul.f32 %v1436, 1.442695
    %v1442 = vpow.pop %v1441
    %v1443 = vmul.f32 %v1437, 1.442695
    %v1444 = vpow.pop %v1443
    %v1445 = vmul.f32 %v1438, 1.442695
    %v1446 = vpow.pop %v1445
    %v1447 = vadd.f32 %v1440, 1.0
    %v1448 = vadd.f32 %v1442, 1.0
    %v1449 = vadd.f32 %v1444, 1.0
    %v1450 = vadd.f32 %v1446, 1.0
    %v1451 = vrcp.pop %v1447
    %v1452 = vmul.f32 1.0, %v1451
    %v1453 = vrcp.pop %v1448
    %v1454 = vmul.f32 1.0, %v1453
    %v1455 = vrcp.pop %v1449
    %v1456 = vmul.f32 1.0, %v1455
    %v1457 = vrcp.pop %v1450
    %v1458 = vmul.f32 1.0, %v1457
    %v1459 = vmul.f32 %v1424, %v1250
    %v1460 = vmul.f32 %v1426, %v1251
    %v1461 = vmul.f32 %v1428, %v1252
    %v1462 = vmul.f32 %v1430, %v1253
    %v1463 = vmul.f32 %v1416, %v1431
    %v1464 = vmul.f32 %v1418, %v1432
    %v1465 = vmul.f32 %v1420, %v1433
    %v1466 = vmul.f32 %v1422, %v1434
    %v1467 = vadd.f32 %v1459, %v1463
    %v1468 = vadd.f32 %v1460, %v1464
    %v1469 = vadd.f32 %v1461, %v1465
    %v1470 = vadd.f32 %v1462, %v1466
    %v1471 = vtanh.pop %v1467
    %v1472 = vtanh.pop %v1468
    %v1473 = vtanh.pop %v1469
    %v1474 = vtanh.pop %v1470
    %v1475 = vmul.f32 %v1452, %v1471
    %v1476 = vmul.f32 %v1454, %v1472
    %v1477 = vmul.f32 %v1456, %v1473
    %v1478 = vmul.f32 %v1458, %v1474
    %v1479 = vpack.c.bf16 %v1255, %v1254
    %v1480 = vpack.c.bf16 %v1257, %v1256
    %v1485 = vunpack.c.l.b16 %v1268
    %v1486 = vunpack.c.l.b16 %v1269
    %v1487 = vunpack.c.l.b16 %v1270
    %v1488 = vunpack.c.l.b16 %v1271
    %v1489 = vpack.c.b16 %v1486, %v1485
    %v1490 = vpack.c.b16 %v1488, %v1487
    %1493 = vmatprep.subr.bf16.mxu0 0
    %1494 = vmatpush1.bf16.msra.mxu0 %v1489
    %1495 = vmatprep.subr.bf16.mxu0 0
    %1496 = vmatpush1.bf16.msra.mxu0 %v1490
    %1497 = vmatprep.subr.bf16.mxu0 0
    %1498 = vmatpush1.bf16.msra.mxu0 %v1479
    %1499 = vmatprep.subr.bf16.mxu0 0
    %1500 = vmatpush1.bf16.msra.mxu0 %v1480
    %1501 = vmatprep.subr.bf16.mxu0 0
    %1502 = vmatpush1.bf16.msra.mxu0 0
    %1503 = vmatprep.subr.bf16.mxu0 0
    %1504 = vmatpush1.bf16.msra.mxu0 0
    %1505 = vmatprep.subr.bf16.mxu0 0
    %1506 = vmatpush1.bf16.msra.mxu0 0
    %1507 = vmatprep.subr.bf16.mxu0 0
    %1508 = vmatpush1.bf16.msra.mxu0 0
    %1509 = vmatprep.subr.bf16.mxu0 0
    %1510 = vmatpush1.bf16.msra.mxu0 0
    %1511 = vmatprep.subr.bf16.mxu0 0
    %1512 = vmatpush1.bf16.msra.mxu0 0
    %1513 = vmatprep.subr.bf16.mxu0 0
    %1514 = vmatpush1.bf16.msra.mxu0 0
    %1515 = vmatprep.subr.bf16.mxu0 0
    %1516 = vmatpush1.bf16.msra.mxu0 0
    %1517 = vmatprep.subr.bf16.mxu0 0
    %1518 = vmatpush1.bf16.msra.mxu0 0
    %1519 = vmatprep.subr.bf16.mxu0 0
    %1520 = vmatpush1.bf16.msra.mxu0 0
    %1521 = vmatprep.subr.bf16.mxu0 0
    %1522 = vmatpush1.bf16.msra.mxu0 0
    %1523 = vmatprep.subr.bf16.mxu0 0
    %1524 = vmatpush1.bf16.msra.mxu0 0
    %1525 = vmatprep.mubr.bf16.mxu0 0
    %1526 = vmatmul.mubr.bf16.gmra.mrb[0].mxu0 %v586
    %v1527 = vpop.f32.mrb[0].mxu0
    %v1528 = vadd.f32 %v172, %v1527
    %v1529 = vpop.f32.mrb[0].mxu0
    %v1530 = vpop.f32.mrb[0].mxu0
    %v1531 = vadd.f32 %v177, %v1530
    %v1532 = vpop.f32.mrb[0].mxu0
    %1533 = vmatprep.mubr.bf16.mxu0 0
    %1534 = vmatmul.mubr.bf16.gmra.mrb[0].mxu0 %v589
    %v1535 = vpop.f32.mrb[0].mxu0
    %v1536 = vadd.f32 %v182, %v1535
    %v1537 = vpop.f32.mrb[0].mxu0
    %v1538 = vpop.f32.mrb[0].mxu0
    %v1539 = vadd.f32 %v187, %v1538
    %v1540 = vpop.f32.mrb[0].mxu0
    %1541 = vmatprep.mubr.bf16.mxu0 0
    %1542 = vmatmul.mubr.bf16.gmra.mrb[0].mxu0 %v592
    %v1543 = vpop.f32.mrb[0].mxu0
    %v1544 = vadd.f32 %v192, %v1543
    %v1545 = vpop.f32.mrb[0].mxu0
    %v1546 = vpop.f32.mrb[0].mxu0
    %v1547 = vadd.f32 %v197, %v1546
    %v1548 = vpop.f32.mrb[0].mxu0
    %1549 = vmatprep.mubr.bf16.mxu0 0
    %1550 = vmatmul.mubr.bf16.gmra.mrb[0].mxu0 %v595
    %v1551 = vpop.f32.mrb[0].mxu0
    %v1552 = vadd.f32 %v202, %v1551
    %v1553 = vpop.f32.mrb[0].mxu0
    %v1554 = vpop.f32.mrb[0].mxu0
    %v1555 = vadd.f32 %v207, %v1554
    %v1556 = vpop.f32.mrb[0].mxu0
    %1557 = vmatprep.mubr.bf16.mxu0 0
    %1558 = vmatmul.mubr.bf16.gmra.mrb[0].mxu0 %v598
    %v1559 = vpop.f32.mrb[0].mxu0
    %v1560 = vadd.f32 %v212, %v1559
    %v1561 = vpop.f32.mrb[0].mxu0
    %v1562 = vpop.f32.mrb[0].mxu0
    %v1563 = vadd.f32 %v217, %v1562
    %v1564 = vpop.f32.mrb[0].mxu0
    %1565 = vmatprep.mubr.bf16.mxu0 0
    %1566 = vmatmul.mubr.bf16.gmra.mrb[0].mxu0 %v601
    %v1567 = vpop.f32.mrb[0].mxu0
    %v1568 = vadd.f32 %v222, %v1567
    %v1569 = vpop.f32.mrb[0].mxu0
    %v1570 = vpop.f32.mrb[0].mxu0
    %v1571 = vadd.f32 %v227, %v1570
    %v1572 = vpop.f32.mrb[0].mxu0
    %1573 = vmatprep.mubr.bf16.mxu0 0
    %1574 = vmatmul.mubr.bf16.gmra.mrb[0].mxu0 %v604
    %v1575 = vpop.f32.mrb[0].mxu0
    %v1576 = vadd.f32 %v232, %v1575
    %v1577 = vpop.f32.mrb[0].mxu0
    %v1578 = vpop.f32.mrb[0].mxu0
    %v1579 = vadd.f32 %v237, %v1578
    %v1580 = vpop.f32.mrb[0].mxu0
    %1581 = vmatprep.mubr.bf16.mxu0 0
    %1582 = vmatmul.mubr.bf16.gmra.mrb[0].mxu0 %v607
    %v1583 = vpop.f32.mrb[0].mxu0
    %v1584 = vadd.f32 %v242, %v1583
    %v1585 = vpop.f32.mrb[0].mxu0
    %v1586 = vpop.f32.mrb[0].mxu0
    %v1587 = vadd.f32 %v247, %v1586
    %v1588 = vpop.f32.mrb[0].mxu0
    %1589 = vdwg.mxu0
    %v1590 = vxor.u32 %v1528, 2147483648
    %v1591 = vxor.u32 %v1531, 2147483648
    %v1592 = vxor.u32 %v1536, 2147483648
    %v1593 = vxor.u32 %v1539, 2147483648
    %v1594 = vxor.u32 %v1544, 2147483648
    %v1595 = vxor.u32 %v1547, 2147483648
    %v1596 = vxor.u32 %v1552, 2147483648
    %v1597 = vxor.u32 %v1555, 2147483648
    %v1598 = vmul.f32 %v1590, 1.442695
    %v1599 = vpow.pop %v1598
    %v1600 = vmul.f32 %v1591, 1.442695
    %v1601 = vpow.pop %v1600
    %v1602 = vmul.f32 %v1592, 1.442695
    %v1603 = vpow.pop %v1602
    %v1604 = vmul.f32 %v1593, 1.442695
    %v1605 = vpow.pop %v1604
    %v1606 = vmul.f32 %v1594, 1.442695
    %v1607 = vpow.pop %v1606
    %v1608 = vmul.f32 %v1595, 1.442695
    %v1609 = vpow.pop %v1608
    %v1610 = vmul.f32 %v1596, 1.442695
    %v1611 = vpow.pop %v1610
    %v1612 = vmul.f32 %v1597, 1.442695
    %v1613 = vpow.pop %v1612
    %v1614 = vadd.f32 %v1599, 1.0
    %v1615 = vadd.f32 %v1601, 1.0
    %v1616 = vadd.f32 %v1603, 1.0
    %v1617 = vadd.f32 %v1605, 1.0
    %v1618 = vadd.f32 %v1607, 1.0
    %v1619 = vadd.f32 %v1609, 1.0
    %v1620 = vadd.f32 %v1611, 1.0
    %v1621 = vadd.f32 %v1613, 1.0
    %v1622 = vrcp.pop %v1614
    %v1623 = vmul.f32 1.0, %v1622
    %v1624 = vrcp.pop %v1615
    %v1625 = vmul.f32 1.0, %v1624
    %v1626 = vrcp.pop %v1616
    %v1627 = vmul.f32 1.0, %v1626
    %v1628 = vrcp.pop %v1617
    %v1629 = vmul.f32 1.0, %v1628
    %v1630 = vrcp.pop %v1618
    %v1631 = vmul.f32 1.0, %v1630
    %v1632 = vrcp.pop %v1619
    %v1633 = vmul.f32 1.0, %v1632
    %v1634 = vrcp.pop %v1620
    %v1635 = vmul.f32 1.0, %v1634
    %v1636 = vrcp.pop %v1621
    %v1637 = vmul.f32 1.0, %v1636
    %v1638 = vtanh.pop %v1560
    %v1639 = vtanh.pop %v1563
    %v1640 = vtanh.pop %v1568
    %v1641 = vtanh.pop %v1571
    %v1642 = vxor.u32 %v1576, 2147483648
    %v1643 = vxor.u32 %v1579, 2147483648
    %v1644 = vxor.u32 %v1584, 2147483648
    %v1645 = vxor.u32 %v1587, 2147483648
    %v1646 = vmul.f32 %v1642, 1.442695
    %v1647 = vpow.pop %v1646
    %v1648 = vmul.f32 %v1643, 1.442695
    %v1649 = vpow.pop %v1648
    %v1650 = vmul.f32 %v1644, 1.442695
    %v1651 = vpow.pop %v1650
    %v1652 = vmul.f32 %v1645, 1.442695
    %v1653 = vpow.pop %v1652
    %v1654 = vadd.f32 %v1647, 1.0
    %v1655 = vadd.f32 %v1649, 1.0
    %v1656 = vadd.f32 %v1651, 1.0
    %v1657 = vadd.f32 %v1653, 1.0
    %v1658 = vrcp.pop %v1654
    %v1659 = vmul.f32 1.0, %v1658
    %v1660 = vrcp.pop %v1655
    %v1661 = vmul.f32 1.0, %v1660
    %v1662 = vrcp.pop %v1656
    %v1663 = vmul.f32 1.0, %v1662
    %v1664 = vrcp.pop %v1657
    %v1665 = vmul.f32 1.0, %v1664
    %v1666 = vmul.f32 %v1631, %v1258
    %v1667 = vmul.f32 %v1633, %v1259
    %v1668 = vmul.f32 %v1635, %v1260
    %v1669 = vmul.f32 %v1637, %v1261
    %v1670 = vmul.f32 %v1623, %v1638
    %v1671 = vmul.f32 %v1625, %v1639
    %v1672 = vmul.f32 %v1627, %v1640
    %v1673 = vmul.f32 %v1629, %v1641
    %v1674 = vadd.f32 %v1666, %v1670
    %v1675 = vadd.f32 %v1667, %v1671
    %v1676 = vadd.f32 %v1668, %v1672
    %v1677 = vadd.f32 %v1669, %v1673
    %v1678 = vtanh.pop %v1674
    %v1679 = vtanh.pop %v1675
    %v1680 = vtanh.pop %v1676
    %v1681 = vtanh.pop %v1677
    %v1682 = vmul.f32 %v1659, %v1678
    %v1683 = vmul.f32 %v1661, %v1679
    %v1684 = vmul.f32 %v1663, %v1680
    %v1685 = vmul.f32 %v1665, %v1681
    %vm1686 = vcmp.gt.s32.totalorder %v253, 2
    %vm1687 = vcmp.gt.s32.totalorder %v253, 13
    %v1688 = vsel %vm1686, %v1475, %v1246
    %v1689 = vsel %vm1686, %v1476, %v1247
    %v1690 = vsel %vm1686, %v1477, %v1248
    %v1691 = vsel %vm1686, %v1478, %v1249
    %v1692 = vsel %vm1686, %v1467, %v1250
    %v1693 = vsel %vm1686, %v1468, %v1251
    %v1694 = vsel %vm1686, %v1469, %v1252
    %v1695 = vsel %vm1686, %v1470, %v1253
    %v1696 = vsel %vm1687, %v1682, %v1254
    %v1697 = vsel %vm1687, %v1683, %v1255
    %v1698 = vsel %vm1687, %v1684, %v1256
    %v1699 = vsel %vm1687, %v1685, %v1257
    %v1700 = vsel %vm1687, %v1674, %v1258
    %v1701 = vsel %vm1687, %v1675, %v1259
    %v1702 = vsel %vm1687, %v1676, %v1260
    %v1703 = vsel %vm1687, %v1677, %v1261
    %s1704 = scalar_lea.vmem %s0, 48
    %v1705 = vld [vmem:[%s1704] sm:$0xf]
    %v1706 = vld [vmem:[%s1704 + $0x4] sm:$0xf]
    %v1707 = vld [vmem:[%s1704 + $0x8] sm:$0xf]
    %v1708 = vld [vmem:[%s1704 + $0xc] sm:$0xf]
    %s1709 = scalar_lea.vmem %s0, 192
    %v1710 = vld [vmem:[%s1709] sm:$0xf]
    %v1711 = vld [vmem:[%s1709 + $0x4] sm:$0xf]
    %v1712 = vld [vmem:[%s1709 + $0x8] sm:$0xf]
    %v1713 = vld [vmem:[%s1709 + $0xc] sm:$0xf]
    %v1714 = vpack.c.bf16 %v1689, %v1688
    %v1715 = vpack.c.bf16 %v1691, %v1690
    %v1720 = vunpack.c.l.b16 %v1705
    %v1721 = vunpack.c.l.b16 %v1706
    %v1722 = vunpack.c.l.b16 %v1707
    %v1723 = vunpack.c.l.b16 %v1708
    %v1724 = vpack.c.b16 %v1721, %v1720
    %v1725 = vpack.c.b16 %v1723, %v1722
    %1728 = vmatprep.subr.bf16.mxu0 0
    %1729 = vmatpush1.bf16.msra.mxu0 %v1724
    %1730 = vmatprep.subr.bf16.mxu0 0
    %1731 = vmatpush1.bf16.msra.mxu0 %v1725
    %1732 = vmatprep.subr.bf16.mxu0 0
    %1733 = vmatpush1.bf16.msra.mxu0 %v1714
    %1734 = vmatprep.subr.bf16.mxu0 0
    %1735 = vmatpush1.bf16.msra.mxu0 %v1715
    %1736 = vmatprep.subr.bf16.mxu0 0
    %1737 = vmatpush1.bf16.msra.mxu0 0
    %1738 = vmatprep.subr.bf16.mxu0 0
    %1739 = vmatpush1.bf16.msra.mxu0 0
    %1740 = vmatprep.subr.bf16.mxu0 0
    %1741 = vmatpush1.bf16.msra.mxu0 0
    %1742 = vmatprep.subr.bf16.mxu0 0
    %1743 = vmatpush1.bf16.msra.mxu0 0
    %1744 = vmatprep.subr.bf16.mxu0 0
    %1745 = vmatpush1.bf16.msra.mxu0 0
    %1746 = vmatprep.subr.bf16.mxu0 0
    %1747 = vmatpush1.bf16.msra.mxu0 0
    %1748 = vmatprep.subr.bf16.mxu0 0
    %1749 = vmatpush1.bf16.msra.mxu0 0
    %1750 = vmatprep.subr.bf16.mxu0 0
    %1751 = vmatpush1.bf16.msra.mxu0 0
    %1752 = vmatprep.subr.bf16.mxu0 0
    %1753 = vmatpush1.bf16.msra.mxu0 0
    %1754 = vmatprep.subr.bf16.mxu0 0
    %1755 = vmatpush1.bf16.msra.mxu0 0
    %1756 = vmatprep.subr.bf16.mxu0 0
    %1757 = vmatpush1.bf16.msra.mxu0 0
    %1758 = vmatprep.subr.bf16.mxu0 0
    %1759 = vmatpush1.bf16.msra.mxu0 0
    %1760 = vmatprep.mubr.bf16.mxu0 0
    %1761 = vmatmul.mubr.bf16.gmra.mrb[0].mxu0 %v317
    %v1762 = vpop.f32.mrb[0].mxu0
    %v1763 = vadd.f32 %v76, %v1762
    %v1764 = vpop.f32.mrb[0].mxu0
    %v1765 = vpop.f32.mrb[0].mxu0
    %v1766 = vadd.f32 %v81, %v1765
    %v1767 = vpop.f32.mrb[0].mxu0
    %1768 = vmatprep.mubr.bf16.mxu0 0
    %1769 = vmatmul.mubr.bf16.gmra.mrb[0].mxu0 %v320
    %v1770 = vpop.f32.mrb[0].mxu0
    %v1771 = vadd.f32 %v86, %v1770
    %v1772 = vpop.f32.mrb[0].mxu0
    %v1773 = vpop.f32.mrb[0].mxu0
    %v1774 = vadd.f32 %v91, %v1773
    %v1775 = vpop.f32.mrb[0].mxu0
    %1776 = vmatprep.mubr.bf16.mxu0 0
    %1777 = vmatmul.mubr.bf16.gmra.mrb[0].mxu0 %v323
    %v1778 = vpop.f32.mrb[0].mxu0
    %v1779 = vadd.f32 %v96, %v1778
    %v1780 = vpop.f32.mrb[0].mxu0
    %v1781 = vpop.f32.mrb[0].mxu0
    %v1782 = vadd.f32 %v101, %v1781
    %v1783 = vpop.f32.mrb[0].mxu0
    %1784 = vmatprep.mubr.bf16.mxu0 0
    %1785 = vmatmul.mubr.bf16.gmra.mrb[0].mxu0 %v326
    %v1786 = vpop.f32.mrb[0].mxu0
    %v1787 = vadd.f32 %v106, %v1786
    %v1788 = vpop.f32.mrb[0].mxu0
    %v1789 = vpop.f32.mrb[0].mxu0
    %v1790 = vadd.f32 %v111, %v1789
    %v1791 = vpop.f32.mrb[0].mxu0
    %1792 = vmatprep.mubr.bf16.mxu0 0
    %1793 = vmatmul.mubr.bf16.gmra.mrb[0].mxu0 %v329
    %v1794 = vpop.f32.mrb[0].mxu0
    %v1795 = vadd.f32 %v116, %v1794
    %v1796 = vpop.f32.mrb[0].mxu0
    %v1797 = vpop.f32.mrb[0].mxu0
    %v1798 = vadd.f32 %v121, %v1797
    %v1799 = vpop.f32.mrb[0].mxu0
    %1800 = vmatprep.mubr.bf16.mxu0 0
    %1801 = vmatmul.mubr.bf16.gmra.mrb[0].mxu0 %v332
    %v1802 = vpop.f32.mrb[0].mxu0
    %v1803 = vadd.f32 %v126, %v1802
    %v1804 = vpop.f32.mrb[0].mxu0
    %v1805 = vpop.f32.mrb[0].mxu0
    %v1806 = vadd.f32 %v131, %v1805
    %v1807 = vpop.f32.mrb[0].mxu0
    %1808 = vmatprep.mubr.bf16.mxu0 0
    %1809 = vmatmul.mubr.bf16.gmra.mrb[0].mxu0 %v335
    %v1810 = vpop.f32.mrb[0].mxu0
    %v1811 = vadd.f32 %v136, %v1810
    %v1812 = vpop.f32.mrb[0].mxu0
    %v1813 = vpop.f32.mrb[0].mxu0
    %v1814 = vadd.f32 %v141, %v1813
    %v1815 = vpop.f32.mrb[0].mxu0
    %1816 = vmatprep.mubr.bf16.mxu0 0
    %1817 = vmatmul.mubr.bf16.gmra.mrb[0].mxu0 %v338
    %v1818 = vpop.f32.mrb[0].mxu0
    %v1819 = vadd.f32 %v146, %v1818
    %v1820 = vpop.f32.mrb[0].mxu0
    %v1821 = vpop.f32.mrb[0].mxu0
    %v1822 = vadd.f32 %v151, %v1821
    %v1823 = vpop.f32.mrb[0].mxu0
    %1824 = vdwg.mxu0
    %v1825 = vxor.u32 %v1763, 2147483648
    %v1826 = vxor.u32 %v1766, 2147483648
    %v1827 = vxor.u32 %v1771, 2147483648
    %v1828 = vxor.u32 %v1774, 2147483648
    %v1829 = vxor.u32 %v1779, 2147483648
    %v1830 = vxor.u32 %v1782, 2147483648
    %v1831 = vxor.u32 %v1787, 2147483648
    %v1832 = vxor.u32 %v1790, 2147483648
    %v1833 = vmul.f32 %v1825, 1.442695
    %v1834 = vpow.pop %v1833
    %v1835 = vmul.f32 %v1826, 1.442695
    %v1836 = vpow.pop %v1835
    %v1837 = vmul.f32 %v1827, 1.442695
    %v1838 = vpow.pop %v1837
    %v1839 = vmul.f32 %v1828, 1.442695
    %v1840 = vpow.pop %v1839
    %v1841 = vmul.f32 %v1829, 1.442695
    %v1842 = vpow.pop %v1841
    %v1843 = vmul.f32 %v1830, 1.442695
    %v1844 = vpow.pop %v1843
    %v1845 = vmul.f32 %v1831, 1.442695
    %v1846 = vpow.pop %v1845
    %v1847 = vmul.f32 %v1832, 1.442695
    %v1848 = vpow.pop %v1847
    %v1849 = vadd.f32 %v1834, 1.0
    %v1850 = vadd.f32 %v1836, 1.0
    %v1851 = vadd.f32 %v1838, 1.0
    %v1852 = vadd.f32 %v1840, 1.0
    %v1853 = vadd.f32 %v1842, 1.0
    %v1854 = vadd.f32 %v1844, 1.0
    %v1855 = vadd.f32 %v1846, 1.0
    %v1856 = vadd.f32 %v1848, 1.0
    %v1857 = vrcp.pop %v1849
    %v1858 = vmul.f32 1.0, %v1857
    %v1859 = vrcp.pop %v1850
    %v1860 = vmul.f32 1.0, %v1859
    %v1861 = vrcp.pop %v1851
    %v1862 = vmul.f32 1.0, %v1861
    %v1863 = vrcp.pop %v1852
    %v1864 = vmul.f32 1.0, %v1863
    %v1865 = vrcp.pop %v1853
    %v1866 = vmul.f32 1.0, %v1865
    %v1867 = vrcp.pop %v1854
    %v1868 = vmul.f32 1.0, %v1867
    %v1869 = vrcp.pop %v1855
    %v1870 = vmul.f32 1.0, %v1869
    %v1871 = vrcp.pop %v1856
    %v1872 = vmul.f32 1.0, %v1871
    %v1873 = vtanh.pop %v1795
    %v1874 = vtanh.pop %v1798
    %v1875 = vtanh.pop %v1803
    %v1876 = vtanh.pop %v1806
    %v1877 = vxor.u32 %v1811, 2147483648
    %v1878 = vxor.u32 %v1814, 2147483648
    %v1879 = vxor.u32 %v1819, 2147483648
    %v1880 = vxor.u32 %v1822, 2147483648
    %v1881 = vmul.f32 %v1877, 1.442695
    %v1882 = vpow.pop %v1881
    %v1883 = vmul.f32 %v1878, 1.442695
    %v1884 = vpow.pop %v1883
    %v1885 = vmul.f32 %v1879, 1.442695
    %v1886 = vpow.pop %v1885
    %v1887 = vmul.f32 %v1880, 1.442695
    %v1888 = vpow.pop %v1887
    %v1889 = vadd.f32 %v1882, 1.0
    %v1890 = vadd.f32 %v1884, 1.0
    %v1891 = vadd.f32 %v1886, 1.0
    %v1892 = vadd.f32 %v1888, 1.0
    %v1893 = vrcp.pop %v1889
    %v1894 = vmul.f32 1.0, %v1893
    %v1895 = vrcp.pop %v1890
    %v1896 = vmul.f32 1.0, %v1895
    %v1897 = vrcp.pop %v1891
    %v1898 = vmul.f32 1.0, %v1897
    %v1899 = vrcp.pop %v1892
    %v1900 = vmul.f32 1.0, %v1899
    %v1901 = vmul.f32 %v1866, %v1692
    %v1902 = vmul.f32 %v1868, %v1693
    %v1903 = vmul.f32 %v1870, %v1694
    %v1904 = vmul.f32 %v1872, %v1695
    %v1905 = vmul.f32 %v1858, %v1873
    %v1906 = vmul.f32 %v1860, %v1874
    %v1907 = vmul.f32 %v1862, %v1875
    %v1908 = vmul.f32 %v1864, %v1876
    %v1909 = vadd.f32 %v1901, %v1905
    %v1910 = vadd.f32 %v1902, %v1906
    %v1911 = vadd.f32 %v1903, %v1907
    %v1912 = vadd.f32 %v1904, %v1908
    %v1913 = vtanh.pop %v1909
    %v1914 = vtanh.pop %v1910
    %v1915 = vtanh.pop %v1911
    %v1916 = vtanh.pop %v1912
    %v1917 = vmul.f32 %v1894, %v1913
    %v1918 = vmul.f32 %v1896, %v1914
    %v1919 = vmul.f32 %v1898, %v1915
    %v1920 = vmul.f32 %v1900, %v1916
    %v1921 = vpack.c.bf16 %v1697, %v1696
    %v1922 = vpack.c.bf16 %v1699, %v1698
    %v1927 = vunpack.c.l.b16 %v1710
    %v1928 = vunpack.c.l.b16 %v1711
    %v1929 = vunpack.c.l.b16 %v1712
    %v1930 = vunpack.c.l.b16 %v1713
    %v1931 = vpack.c.b16 %v1928, %v1927
    %v1932 = vpack.c.b16 %v1930, %v1929
    %1935 = vmatprep.subr.bf16.mxu0 0
    %1936 = vmatpush1.bf16.msra.mxu0 %v1931
    %1937 = vmatprep.subr.bf16.mxu0 0
    %1938 = vmatpush1.bf16.msra.mxu0 %v1932
    %1939 = vmatprep.subr.bf16.mxu0 0
    %1940 = vmatpush1.bf16.msra.mxu0 %v1921
    %1941 = vmatprep.subr.bf16.mxu0 0
    %1942 = vmatpush1.bf16.msra.mxu0 %v1922
    %1943 = vmatprep.subr.bf16.mxu0 0
    %1944 = vmatpush1.bf16.msra.mxu0 0
    %1945 = vmatprep.subr.bf16.mxu0 0
    %1946 = vmatpush1.bf16.msra.mxu0 0
    %1947 = vmatprep.subr.bf16.mxu0 0
    %1948 = vmatpush1.bf16.msra.mxu0 0
    %1949 = vmatprep.subr.bf16.mxu0 0
    %1950 = vmatpush1.bf16.msra.mxu0 0
    %1951 = vmatprep.subr.bf16.mxu0 0
    %1952 = vmatpush1.bf16.msra.mxu0 0
    %1953 = vmatprep.subr.bf16.mxu0 0
    %1954 = vmatpush1.bf16.msra.mxu0 0
    %1955 = vmatprep.subr.bf16.mxu0 0
    %1956 = vmatpush1.bf16.msra.mxu0 0
    %1957 = vmatprep.subr.bf16.mxu0 0
    %1958 = vmatpush1.bf16.msra.mxu0 0
    %1959 = vmatprep.subr.bf16.mxu0 0
    %1960 = vmatpush1.bf16.msra.mxu0 0
    %1961 = vmatprep.subr.bf16.mxu0 0
    %1962 = vmatpush1.bf16.msra.mxu0 0
    %1963 = vmatprep.subr.bf16.mxu0 0
    %1964 = vmatpush1.bf16.msra.mxu0 0
    %1965 = vmatprep.subr.bf16.mxu0 0
    %1966 = vmatpush1.bf16.msra.mxu0 0
    %1967 = vmatprep.mubr.bf16.mxu0 0
    %1968 = vmatmul.mubr.bf16.gmra.mrb[0].mxu0 %v586
    %v1969 = vpop.f32.mrb[0].mxu0
    %v1970 = vadd.f32 %v172, %v1969
    %v1971 = vpop.f32.mrb[0].mxu0
    %v1972 = vpop.f32.mrb[0].mxu0
    %v1973 = vadd.f32 %v177, %v1972
    %v1974 = vpop.f32.mrb[0].mxu0
    %1975 = vmatprep.mubr.bf16.mxu0 0
    %1976 = vmatmul.mubr.bf16.gmra.mrb[0].mxu0 %v589
    %v1977 = vpop.f32.mrb[0].mxu0
    %v1978 = vadd.f32 %v182, %v1977
    %v1979 = vpop.f32.mrb[0].mxu0
    %v1980 = vpop.f32.mrb[0].mxu0
    %v1981 = vadd.f32 %v187, %v1980
    %v1982 = vpop.f32.mrb[0].mxu0
    %1983 = vmatprep.mubr.bf16.mxu0 0
    %1984 = vmatmul.mubr.bf16.gmra.mrb[0].mxu0 %v592
    %v1985 = vpop.f32.mrb[0].mxu0
    %v1986 = vadd.f32 %v192, %v1985
    %v1987 = vpop.f32.mrb[0].mxu0
    %v1988 = vpop.f32.mrb[0].mxu0
    %v1989 = vadd.f32 %v197, %v1988
    %v1990 = vpop.f32.mrb[0].mxu0
    %1991 = vmatprep.mubr.bf16.mxu0 0
    %1992 = vmatmul.mubr.bf16.gmra.mrb[0].mxu0 %v595
    %v1993 = vpop.f32.mrb[0].mxu0
    %v1994 = vadd.f32 %v202, %v1993
    %v1995 = vpop.f32.mrb[0].mxu0
    %v1996 = vpop.f32.mrb[0].mxu0
    %v1997 = vadd.f32 %v207, %v1996
    %v1998 = vpop.f32.mrb[0].mxu0
    %1999 = vmatprep.mubr.bf16.mxu0 0
    %2000 = vmatmul.mubr.bf16.gmra.mrb[0].mxu0 %v598
    %v2001 = vpop.f32.mrb[0].mxu0
    %v2002 = vadd.f32 %v212, %v2001
    %v2003 = vpop.f32.mrb[0].mxu0
    %v2004 = vpop.f32.mrb[0].mxu0
    %v2005 = vadd.f32 %v217, %v2004
    %v2006 = vpop.f32.mrb[0].mxu0
    %2007 = vmatprep.mubr.bf16.mxu0 0
    %2008 = vmatmul.mubr.bf16.gmra.mrb[0].mxu0 %v601
    %v2009 = vpop.f32.mrb[0].mxu0
    %v2010 = vadd.f32 %v222, %v2009
    %v2011 = vpop.f32.mrb[0].mxu0
    %v2012 = vpop.f32.mrb[0].mxu0
    %v2013 = vadd.f32 %v227, %v2012
    %v2014 = vpop.f32.mrb[0].mxu0
    %2015 = vmatprep.mubr.bf16.mxu0 0
    %2016 = vmatmul.mubr.bf16.gmra.mrb[0].mxu0 %v604
    %v2017 = vpop.f32.mrb[0].mxu0
    %v2018 = vadd.f32 %v232, %v2017
    %v2019 = vpop.f32.mrb[0].mxu0
    %v2020 = vpop.f32.mrb[0].mxu0
    %v2021 = vadd.f32 %v237, %v2020
    %v2022 = vpop.f32.mrb[0].mxu0
    %2023 = vmatprep.mubr.bf16.mxu0 0
    %2024 = vmatmul.mubr.bf16.gmra.mrb[0].mxu0 %v607
    %v2025 = vpop.f32.mrb[0].mxu0
    %v2026 = vadd.f32 %v242, %v2025
    %v2027 = vpop.f32.mrb[0].mxu0
    %v2028 = vpop.f32.mrb[0].mxu0
    %v2029 = vadd.f32 %v247, %v2028
    %v2030 = vpop.f32.mrb[0].mxu0
    %2031 = vdwg.mxu0
    %v2032 = vxor.u32 %v1970, 2147483648
    %v2033 = vxor.u32 %v1973, 2147483648
    %v2034 = vxor.u32 %v1978, 2147483648
    %v2035 = vxor.u32 %v1981, 2147483648
    %v2036 = vxor.u32 %v1986, 2147483648
    %v2037 = vxor.u32 %v1989, 2147483648
    %v2038 = vxor.u32 %v1994, 2147483648
    %v2039 = vxor.u32 %v1997, 2147483648
    %v2040 = vmul.f32 %v2032, 1.442695
    %v2041 = vpow.pop %v2040
    %v2042 = vmul.f32 %v2033, 1.442695
    %v2043 = vpow.pop %v2042
    %v2044 = vmul.f32 %v2034, 1.442695
    %v2045 = vpow.pop %v2044
    %v2046 = vmul.f32 %v2035, 1.442695
    %v2047 = vpow.pop %v2046
    %v2048 = vmul.f32 %v2036, 1.442695
    %v2049 = vpow.pop %v2048
    %v2050 = vmul.f32 %v2037, 1.442695
    %v2051 = vpow.pop %v2050
    %v2052 = vmul.f32 %v2038, 1.442695
    %v2053 = vpow.pop %v2052
    %v2054 = vmul.f32 %v2039, 1.442695
    %v2055 = vpow.pop %v2054
    %v2056 = vadd.f32 %v2041, 1.0
    %v2057 = vadd.f32 %v2043, 1.0
    %v2058 = vadd.f32 %v2045, 1.0
    %v2059 = vadd.f32 %v2047, 1.0
    %v2060 = vadd.f32 %v2049, 1.0
    %v2061 = vadd.f32 %v2051, 1.0
    %v2062 = vadd.f32 %v2053, 1.0
    %v2063 = vadd.f32 %v2055, 1.0
    %v2064 = vrcp.pop %v2056
    %v2065 = vmul.f32 1.0, %v2064
    %v2066 = vrcp.pop %v2057
    %v2067 = vmul.f32 1.0, %v2066
    %v2068 = vrcp.pop %v2058
    %v2069 = vmul.f32 1.0, %v2068
    %v2070 = vrcp.pop %v2059
    %v2071 = vmul.f32 1.0, %v2070
    %v2072 = vrcp.pop %v2060
    %v2073 = vmul.f32 1.0, %v2072
    %v2074 = vrcp.pop %v2061
    %v2075 = vmul.f32 1.0, %v2074
    %v2076 = vrcp.pop %v2062
    %v2077 = vmul.f32 1.0, %v2076
    %v2078 = vrcp.pop %v2063
    %v2079 = vmul.f32 1.0, %v2078
    %v2080 = vtanh.pop %v2002
    %v2081 = vtanh.pop %v2005
    %v2082 = vtanh.pop %v2010
    %v2083 = vtanh.pop %v2013
    %v2084 = vxor.u32 %v2018, 2147483648
    %v2085 = vxor.u32 %v2021, 2147483648
    %v2086 = vxor.u32 %v2026, 2147483648
    %v2087 = vxor.u32 %v2029, 2147483648
    %v2088 = vmul.f32 %v2084, 1.442695
    %v2089 = vpow.pop %v2088
    %v2090 = vmul.f32 %v2085, 1.442695
    %v2091 = vpow.pop %v2090
    %v2092 = vmul.f32 %v2086, 1.442695
    %v2093 = vpow.pop %v2092
    %v2094 = vmul.f32 %v2087, 1.442695
    %v2095 = vpow.pop %v2094
    %v2096 = vadd.f32 %v2089, 1.0
    %v2097 = vadd.f32 %v2091, 1.0
    %v2098 = vadd.f32 %v2093, 1.0
    %v2099 = vadd.f32 %v2095, 1.0
    %v2100 = vrcp.pop %v2096
    %v2101 = vmul.f32 1.0, %v2100
    %v2102 = vrcp.pop %v2097
    %v2103 = vmul.f32 1.0, %v2102
    %v2104 = vrcp.pop %v2098
    %v2105 = vmul.f32 1.0, %v2104
    %v2106 = vrcp.pop %v2099
    %v2107 = vmul.f32 1.0, %v2106
    %v2108 = vmul.f32 %v2073, %v1700
    %v2109 = vmul.f32 %v2075, %v1701
    %v2110 = vmul.f32 %v2077, %v1702
    %v2111 = vmul.f32 %v2079, %v1703
    %v2112 = vmul.f32 %v2065, %v2080
    %v2113 = vmul.f32 %v2067, %v2081
    %v2114 = vmul.f32 %v2069, %v2082
    %v2115 = vmul.f32 %v2071, %v2083
    %v2116 = vadd.f32 %v2108, %v2112
    %v2117 = vadd.f32 %v2109, %v2113
    %v2118 = vadd.f32 %v2110, %v2114
    %v2119 = vadd.f32 %v2111, %v2115
    %v2120 = vtanh.pop %v2116
    %v2121 = vtanh.pop %v2117
    %v2122 = vtanh.pop %v2118
    %v2123 = vtanh.pop %v2119
    %v2124 = vmul.f32 %v2101, %v2120
    %v2125 = vmul.f32 %v2103, %v2121
    %v2126 = vmul.f32 %v2105, %v2122
    %v2127 = vmul.f32 %v2107, %v2123
    %vm2128 = vcmp.gt.s32.totalorder %v253, 3
    %vm2129 = vcmp.gt.s32.totalorder %v253, 12
    %v2130 = vsel %vm2128, %v1917, %v1688
    %v2131 = vsel %vm2128, %v1918, %v1689
    %v2132 = vsel %vm2128, %v1919, %v1690
    %v2133 = vsel %vm2128, %v1920, %v1691
    %v2134 = vsel %vm2128, %v1909, %v1692
    %v2135 = vsel %vm2128, %v1910, %v1693
    %v2136 = vsel %vm2128, %v1911, %v1694
    %v2137 = vsel %vm2128, %v1912, %v1695
    %v2138 = vsel %vm2129, %v2124, %v1696
    %v2139 = vsel %vm2129, %v2125, %v1697
    %v2140 = vsel %vm2129, %v2126, %v1698
    %v2141 = vsel %vm2129, %v2127, %v1699
    %v2142 = vsel %vm2129, %v2116, %v1700
    %v2143 = vsel %vm2129, %v2117, %v1701
    %v2144 = vsel %vm2129, %v2118, %v1702
    %v2145 = vsel %vm2129, %v2119, %v1703
    %s2146 = scalar_lea.vmem %s0, 64
    %v2147 = vld [vmem:[%s2146] sm:$0xf]
    %v2148 = vld [vmem:[%s2146 + $0x4] sm:$0xf]
    %v2149 = vld [vmem:[%s2146 + $0x8] sm:$0xf]
    %v2150 = vld [vmem:[%s2146 + $0xc] sm:$0xf]
    %s2151 = scalar_lea.vmem %s0, 176
    %v2152 = vld [vmem:[%s2151] sm:$0xf]
    %v2153 = vld [vmem:[%s2151 + $0x4] sm:$0xf]
    %v2154 = vld [vmem:[%s2151 + $0x8] sm:$0xf]
    %v2155 = vld [vmem:[%s2151 + $0xc] sm:$0xf]
    %v2156 = vpack.c.bf16 %v2131, %v2130
    %v2157 = vpack.c.bf16 %v2133, %v2132
    %v2162 = vunpack.c.l.b16 %v2147
    %v2163 = vunpack.c.l.b16 %v2148
    %v2164 = vunpack.c.l.b16 %v2149
    %v2165 = vunpack.c.l.b16 %v2150
    %v2166 = vpack.c.b16 %v2163, %v2162
    %v2167 = vpack.c.b16 %v2165, %v2164
    %2170 = vmatprep.subr.bf16.mxu0 0
    %2171 = vmatpush1.bf16.msra.mxu0 %v2166
    %2172 = vmatprep.subr.bf16.mxu0 0
    %2173 = vmatpush1.bf16.msra.mxu0 %v2167
    %2174 = vmatprep.subr.bf16.mxu0 0
    %2175 = vmatpush1.bf16.msra.mxu0 %v2156
    %2176 = vmatprep.subr.bf16.mxu0 0
    %2177 = vmatpush1.bf16.msra.mxu0 %v2157
    %2178 = vmatprep.subr.bf16.mxu0 0
    %2179 = vmatpush1.bf16.msra.mxu0 0
    %2180 = vmatprep.subr.bf16.mxu0 0
    %2181 = vmatpush1.bf16.msra.mxu0 0
    %2182 = vmatprep.subr.bf16.mxu0 0
    %2183 = vmatpush1.bf16.msra.mxu0 0
    %2184 = vmatprep.subr.bf16.mxu0 0
    %2185 = vmatpush1.bf16.msra.mxu0 0
    %2186 = vmatprep.subr.bf16.mxu0 0
    %2187 = vmatpush1.bf16.msra.mxu0 0
    %2188 = vmatprep.subr.bf16.mxu0 0
    %2189 = vmatpush1.bf16.msra.mxu0 0
    %2190 = vmatprep.subr.bf16.mxu0 0
    %2191 = vmatpush1.bf16.msra.mxu0 0
    %2192 = vmatprep.subr.bf16.mxu0 0
    %2193 = vmatpush1.bf16.msra.mxu0 0
    %2194 = vmatprep.subr.bf16.mxu0 0
    %2195 = vmatpush1.bf16.msra.mxu0 0
    %2196 = vmatprep.subr.bf16.mxu0 0
    %2197 = vmatpush1.bf16.msra.mxu0 0
    %2198 = vmatprep.subr.bf16.mxu0 0
    %2199 = vmatpush1.bf16.msra.mxu0 0
    %2200 = vmatprep.subr.bf16.mxu0 0
    %2201 = vmatpush1.bf16.msra.mxu0 0
    %2202 = vmatprep.mubr.bf16.mxu0 0
    %2203 = vmatmul.mubr.bf16.gmra.mrb[0].mxu0 %v317
    %v2204 = vpop.f32.mrb[0].mxu0
    %v2205 = vadd.f32 %v76, %v2204
    %v2206 = vpop.f32.mrb[0].mxu0
    %v2207 = vpop.f32.mrb[0].mxu0
    %v2208 = vadd.f32 %v81, %v2207
    %v2209 = vpop.f32.mrb[0].mxu0
    %2210 = vmatprep.mubr.bf16.mxu0 0
    %2211 = vmatmul.mubr.bf16.gmra.mrb[0].mxu0 %v320
    %v2212 = vpop.f32.mrb[0].mxu0
    %v2213 = vadd.f32 %v86, %v2212
    %v2214 = vpop.f32.mrb[0].mxu0
    %v2215 = vpop.f32.mrb[0].mxu0
    %v2216 = vadd.f32 %v91, %v2215
    %v2217 = vpop.f32.mrb[0].mxu0
    %2218 = vmatprep.mubr.bf16.mxu0 0
    %2219 = vmatmul.mubr.bf16.gmra.mrb[0].mxu0 %v323
    %v2220 = vpop.f32.mrb[0].mxu0
    %v2221 = vadd.f32 %v96, %v2220
    %v2222 = vpop.f32.mrb[0].mxu0
    %v2223 = vpop.f32.mrb[0].mxu0
    %v2224 = vadd.f32 %v101, %v2223
    %v2225 = vpop.f32.mrb[0].mxu0
    %2226 = vmatprep.mubr.bf16.mxu0 0
    %2227 = vmatmul.mubr.bf16.gmra.mrb[0].mxu0 %v326
    %v2228 = vpop.f32.mrb[0].mxu0
    %v2229 = vadd.f32 %v106, %v2228
    %v2230 = vpop.f32.mrb[0].mxu0
    %v2231 = vpop.f32.mrb[0].mxu0
    %v2232 = vadd.f32 %v111, %v2231
    %v2233 = vpop.f32.mrb[0].mxu0
    %2234 = vmatprep.mubr.bf16.mxu0 0
    %2235 = vmatmul.mubr.bf16.gmra.mrb[0].mxu0 %v329
    %v2236 = vpop.f32.mrb[0].mxu0
    %v2237 = vadd.f32 %v116, %v2236
    %v2238 = vpop.f32.mrb[0].mxu0
    %v2239 = vpop.f32.mrb[0].mxu0
    %v2240 = vadd.f32 %v121, %v2239
    %v2241 = vpop.f32.mrb[0].mxu0
    %2242 = vmatprep.mubr.bf16.mxu0 0
    %2243 = vmatmul.mubr.bf16.gmra.mrb[0].mxu0 %v332
    %v2244 = vpop.f32.mrb[0].mxu0
    %v2245 = vadd.f32 %v126, %v2244
    %v2246 = vpop.f32.mrb[0].mxu0
    %v2247 = vpop.f32.mrb[0].mxu0
    %v2248 = vadd.f32 %v131, %v2247
    %v2249 = vpop.f32.mrb[0].mxu0
    %2250 = vmatprep.mubr.bf16.mxu0 0
    %2251 = vmatmul.mubr.bf16.gmra.mrb[0].mxu0 %v335
    %v2252 = vpop.f32.mrb[0].mxu0
    %v2253 = vadd.f32 %v136, %v2252
    %v2254 = vpop.f32.mrb[0].mxu0
    %v2255 = vpop.f32.mrb[0].mxu0
    %v2256 = vadd.f32 %v141, %v2255
    %v2257 = vpop.f32.mrb[0].mxu0
    %2258 = vmatprep.mubr.bf16.mxu0 0
    %2259 = vmatmul.mubr.bf16.gmra.mrb[0].mxu0 %v338
    %v2260 = vpop.f32.mrb[0].mxu0
    %v2261 = vadd.f32 %v146, %v2260
    %v2262 = vpop.f32.mrb[0].mxu0
    %v2263 = vpop.f32.mrb[0].mxu0
    %v2264 = vadd.f32 %v151, %v2263
    %v2265 = vpop.f32.mrb[0].mxu0
    %2266 = vdwg.mxu0
    %v2267 = vxor.u32 %v2205, 2147483648
    %v2268 = vxor.u32 %v2208, 2147483648
    %v2269 = vxor.u32 %v2213, 2147483648
    %v2270 = vxor.u32 %v2216, 2147483648
    %v2271 = vxor.u32 %v2221, 2147483648
    %v2272 = vxor.u32 %v2224, 2147483648
    %v2273 = vxor.u32 %v2229, 2147483648
    %v2274 = vxor.u32 %v2232, 2147483648
    %v2275 = vmul.f32 %v2267, 1.442695
    %v2276 = vpow.pop %v2275
    %v2277 = vmul.f32 %v2268, 1.442695
    %v2278 = vpow.pop %v2277
    %v2279 = vmul.f32 %v2269, 1.442695
    %v2280 = vpow.pop %v2279
    %v2281 = vmul.f32 %v2270, 1.442695
    %v2282 = vpow.pop %v2281
    %v2283 = vmul.f32 %v2271, 1.442695
    %v2284 = vpow.pop %v2283
    %v2285 = vmul.f32 %v2272, 1.442695
    %v2286 = vpow.pop %v2285
    %v2287 = vmul.f32 %v2273, 1.442695
    %v2288 = vpow.pop %v2287
    %v2289 = vmul.f32 %v2274, 1.442695
    %v2290 = vpow.pop %v2289
    %v2291 = vadd.f32 %v2276, 1.0
    %v2292 = vadd.f32 %v2278, 1.0
    %v2293 = vadd.f32 %v2280, 1.0
    %v2294 = vadd.f32 %v2282, 1.0
    %v2295 = vadd.f32 %v2284, 1.0
    %v2296 = vadd.f32 %v2286, 1.0
    %v2297 = vadd.f32 %v2288, 1.0
    %v2298 = vadd.f32 %v2290, 1.0
    %v2299 = vrcp.pop %v2291
    %v2300 = vmul.f32 1.0, %v2299
    %v2301 = vrcp.pop %v2292
    %v2302 = vmul.f32 1.0, %v2301
    %v2303 = vrcp.pop %v2293
    %v2304 = vmul.f32 1.0, %v2303
    %v2305 = vrcp.pop %v2294
    %v2306 = vmul.f32 1.0, %v2305
    %v2307 = vrcp.pop %v2295
    %v2308 = vmul.f32 1.0, %v2307
    %v2309 = vrcp.pop %v2296
    %v2310 = vmul.f32 1.0, %v2309
    %v2311 = vrcp.pop %v2297
    %v2312 = vmul.f32 1.0, %v2311
    %v2313 = vrcp.pop %v2298
    %v2314 = vmul.f32 1.0, %v2313
    %v2315 = vtanh.pop %v2237
    %v2316 = vtanh.pop %v2240
    %v2317 = vtanh.pop %v2245
    %v2318 = vtanh.pop %v2248
    %v2319 = vxor.u32 %v2253, 2147483648
    %v2320 = vxor.u32 %v2256, 2147483648
    %v2321 = vxor.u32 %v2261, 2147483648
    %v2322 = vxor.u32 %v2264, 2147483648
    %v2323 = vmul.f32 %v2319, 1.442695
    %v2324 = vpow.pop %v2323
    %v2325 = vmul.f32 %v2320, 1.442695
    %v2326 = vpow.pop %v2325
    %v2327 = vmul.f32 %v2321, 1.442695
    %v2328 = vpow.pop %v2327
    %v2329 = vmul.f32 %v2322, 1.442695
    %v2330 = vpow.pop %v2329
    %v2331 = vadd.f32 %v2324, 1.0
    %v2332 = vadd.f32 %v2326, 1.0
    %v2333 = vadd.f32 %v2328, 1.0
    %v2334 = vadd.f32 %v2330, 1.0
    %v2335 = vrcp.pop %v2331
    %v2336 = vmul.f32 1.0, %v2335
    %v2337 = vrcp.pop %v2332
    %v2338 = vmul.f32 1.0, %v2337
    %v2339 = vrcp.pop %v2333
    %v2340 = vmul.f32 1.0, %v2339
    %v2341 = vrcp.pop %v2334
    %v2342 = vmul.f32 1.0, %v2341
    %v2343 = vmul.f32 %v2308, %v2134
    %v2344 = vmul.f32 %v2310, %v2135
    %v2345 = vmul.f32 %v2312, %v2136
    %v2346 = vmul.f32 %v2314, %v2137
    %v2347 = vmul.f32 %v2300, %v2315
    %v2348 = vmul.f32 %v2302, %v2316
    %v2349 = vmul.f32 %v2304, %v2317
    %v2350 = vmul.f32 %v2306, %v2318
    %v2351 = vadd.f32 %v2343, %v2347
    %v2352 = vadd.f32 %v2344, %v2348
    %v2353 = vadd.f32 %v2345, %v2349
    %v2354 = vadd.f32 %v2346, %v2350
    %v2355 = vtanh.pop %v2351
    %v2356 = vtanh.pop %v2352
    %v2357 = vtanh.pop %v2353
    %v2358 = vtanh.pop %v2354
    %v2359 = vmul.f32 %v2336, %v2355
    %v2360 = vmul.f32 %v2338, %v2356
    %v2361 = vmul.f32 %v2340, %v2357
    %v2362 = vmul.f32 %v2342, %v2358
    %v2363 = vpack.c.bf16 %v2139, %v2138
    %v2364 = vpack.c.bf16 %v2141, %v2140
    %v2369 = vunpack.c.l.b16 %v2152
    %v2370 = vunpack.c.l.b16 %v2153
    %v2371 = vunpack.c.l.b16 %v2154
    %v2372 = vunpack.c.l.b16 %v2155
    %v2373 = vpack.c.b16 %v2370, %v2369
    %v2374 = vpack.c.b16 %v2372, %v2371
    %2377 = vmatprep.subr.bf16.mxu0 0
    %2378 = vmatpush1.bf16.msra.mxu0 %v2373
    %2379 = vmatprep.subr.bf16.mxu0 0
    %2380 = vmatpush1.bf16.msra.mxu0 %v2374
    %2381 = vmatprep.subr.bf16.mxu0 0
    %2382 = vmatpush1.bf16.msra.mxu0 %v2363
    %2383 = vmatprep.subr.bf16.mxu0 0
    %2384 = vmatpush1.bf16.msra.mxu0 %v2364
    %2385 = vmatprep.subr.bf16.mxu0 0
    %2386 = vmatpush1.bf16.msra.mxu0 0
    %2387 = vmatprep.subr.bf16.mxu0 0
    %2388 = vmatpush1.bf16.msra.mxu0 0
    %2389 = vmatprep.subr.bf16.mxu0 0
    %2390 = vmatpush1.bf16.msra.mxu0 0
    %2391 = vmatprep.subr.bf16.mxu0 0
    %2392 = vmatpush1.bf16.msra.mxu0 0
    %2393 = vmatprep.subr.bf16.mxu0 0
    %2394 = vmatpush1.bf16.msra.mxu0 0
    %2395 = vmatprep.subr.bf16.mxu0 0
    %2396 = vmatpush1.bf16.msra.mxu0 0
    %2397 = vmatprep.subr.bf16.mxu0 0
    %2398 = vmatpush1.bf16.msra.mxu0 0
    %2399 = vmatprep.subr.bf16.mxu0 0
    %2400 = vmatpush1.bf16.msra.mxu0 0
    %2401 = vmatprep.subr.bf16.mxu0 0
    %2402 = vmatpush1.bf16.msra.mxu0 0
    %2403 = vmatprep.subr.bf16.mxu0 0
    %2404 = vmatpush1.bf16.msra.mxu0 0
    %2405 = vmatprep.subr.bf16.mxu0 0
    %2406 = vmatpush1.bf16.msra.mxu0 0
    %2407 = vmatprep.subr.bf16.mxu0 0
    %2408 = vmatpush1.bf16.msra.mxu0 0
    %2409 = vmatprep.mubr.bf16.mxu0 0
    %2410 = vmatmul.mubr.bf16.gmra.mrb[0].mxu0 %v586
    %v2411 = vpop.f32.mrb[0].mxu0
    %v2412 = vadd.f32 %v172, %v2411
    %v2413 = vpop.f32.mrb[0].mxu0
    %v2414 = vpop.f32.mrb[0].mxu0
    %v2415 = vadd.f32 %v177, %v2414
    %v2416 = vpop.f32.mrb[0].mxu0
    %2417 = vmatprep.mubr.bf16.mxu0 0
    %2418 = vmatmul.mubr.bf16.gmra.mrb[0].mxu0 %v589
    %v2419 = vpop.f32.mrb[0].mxu0
    %v2420 = vadd.f32 %v182, %v2419
    %v2421 = vpop.f32.mrb[0].mxu0
    %v2422 = vpop.f32.mrb[0].mxu0
    %v2423 = vadd.f32 %v187, %v2422
    %v2424 = vpop.f32.mrb[0].mxu0
    %2425 = vmatprep.mubr.bf16.mxu0 0
    %2426 = vmatmul.mubr.bf16.gmra.mrb[0].mxu0 %v592
    %v2427 = vpop.f32.mrb[0].mxu0
    %v2428 = vadd.f32 %v192, %v2427
    %v2429 = vpop.f32.mrb[0].mxu0
    %v2430 = vpop.f32.mrb[0].mxu0
    %v2431 = vadd.f32 %v197, %v2430
    %v2432 = vpop.f32.mrb[0].mxu0
    %2433 = vmatprep.mubr.bf16.mxu0 0
    %2434 = vmatmul.mubr.bf16.gmra.mrb[0].mxu0 %v595
    %v2435 = vpop.f32.mrb[0].mxu0
    %v2436 = vadd.f32 %v202, %v2435
    %v2437 = vpop.f32.mrb[0].mxu0
    %v2438 = vpop.f32.mrb[0].mxu0
    %v2439 = vadd.f32 %v207, %v2438
    %v2440 = vpop.f32.mrb[0].mxu0
    %2441 = vmatprep.mubr.bf16.mxu0 0
    %2442 = vmatmul.mubr.bf16.gmra.mrb[0].mxu0 %v598
    %v2443 = vpop.f32.mrb[0].mxu0
    %v2444 = vadd.f32 %v212, %v2443
    %v2445 = vpop.f32.mrb[0].mxu0
    %v2446 = vpop.f32.mrb[0].mxu0
    %v2447 = vadd.f32 %v217, %v2446
    %v2448 = vpop.f32.mrb[0].mxu0
    %2449 = vmatprep.mubr.bf16.mxu0 0
    %2450 = vmatmul.mubr.bf16.gmra.mrb[0].mxu0 %v601
    %v2451 = vpop.f32.mrb[0].mxu0
    %v2452 = vadd.f32 %v222, %v2451
    %v2453 = vpop.f32.mrb[0].mxu0
    %v2454 = vpop.f32.mrb[0].mxu0
    %v2455 = vadd.f32 %v227, %v2454
    %v2456 = vpop.f32.mrb[0].mxu0
    %2457 = vmatprep.mubr.bf16.mxu0 0
    %2458 = vmatmul.mubr.bf16.gmra.mrb[0].mxu0 %v604
    %v2459 = vpop.f32.mrb[0].mxu0
    %v2460 = vadd.f32 %v232, %v2459
    %v2461 = vpop.f32.mrb[0].mxu0
    %v2462 = vpop.f32.mrb[0].mxu0
    %v2463 = vadd.f32 %v237, %v2462
    %v2464 = vpop.f32.mrb[0].mxu0
    %2465 = vmatprep.mubr.bf16.mxu0 0
    %2466 = vmatmul.mubr.bf16.gmra.mrb[0].mxu0 %v607
    %v2467 = vpop.f32.mrb[0].mxu0
    %v2468 = vadd.f32 %v242, %v2467
    %v2469 = vpop.f32.mrb[0].mxu0
    %v2470 = vpop.f32.mrb[0].mxu0
    %v2471 = vadd.f32 %v247, %v2470
    %v2472 = vpop.f32.mrb[0].mxu0
    %2473 = vdwg.mxu0
    %v2474 = vxor.u32 %v2412, 2147483648
    %v2475 = vxor.u32 %v2415, 2147483648
    %v2476 = vxor.u32 %v2420, 2147483648
    %v2477 = vxor.u32 %v2423, 2147483648
    %v2478 = vxor.u32 %v2428, 2147483648
    %v2479 = vxor.u32 %v2431, 2147483648
    %v2480 = vxor.u32 %v2436, 2147483648
    %v2481 = vxor.u32 %v2439, 2147483648
    %v2482 = vmul.f32 %v2474, 1.442695
    %v2483 = vpow.pop %v2482
    %v2484 = vmul.f32 %v2475, 1.442695
    %v2485 = vpow.pop %v2484
    %v2486 = vmul.f32 %v2476, 1.442695
    %v2487 = vpow.pop %v2486
    %v2488 = vmul.f32 %v2477, 1.442695
    %v2489 = vpow.pop %v2488
    %v2490 = vmul.f32 %v2478, 1.442695
    %v2491 = vpow.pop %v2490
    %v2492 = vmul.f32 %v2479, 1.442695
    %v2493 = vpow.pop %v2492
    %v2494 = vmul.f32 %v2480, 1.442695
    %v2495 = vpow.pop %v2494
    %v2496 = vmul.f32 %v2481, 1.442695
    %v2497 = vpow.pop %v2496
    %v2498 = vadd.f32 %v2483, 1.0
    %v2499 = vadd.f32 %v2485, 1.0
    %v2500 = vadd.f32 %v2487, 1.0
    %v2501 = vadd.f32 %v2489, 1.0
    %v2502 = vadd.f32 %v2491, 1.0
    %v2503 = vadd.f32 %v2493, 1.0
    %v2504 = vadd.f32 %v2495, 1.0
    %v2505 = vadd.f32 %v2497, 1.0
    %v2506 = vrcp.pop %v2498
    %v2507 = vmul.f32 1.0, %v2506
    %v2508 = vrcp.pop %v2499
    %v2509 = vmul.f32 1.0, %v2508
    %v2510 = vrcp.pop %v2500
    %v2511 = vmul.f32 1.0, %v2510
    %v2512 = vrcp.pop %v2501
    %v2513 = vmul.f32 1.0, %v2512
    %v2514 = vrcp.pop %v2502
    %v2515 = vmul.f32 1.0, %v2514
    %v2516 = vrcp.pop %v2503
    %v2517 = vmul.f32 1.0, %v2516
    %v2518 = vrcp.pop %v2504
    %v2519 = vmul.f32 1.0, %v2518
    %v2520 = vrcp.pop %v2505
    %v2521 = vmul.f32 1.0, %v2520
    %v2522 = vtanh.pop %v2444
    %v2523 = vtanh.pop %v2447
    %v2524 = vtanh.pop %v2452
    %v2525 = vtanh.pop %v2455
    %v2526 = vxor.u32 %v2460, 2147483648
    %v2527 = vxor.u32 %v2463, 2147483648
    %v2528 = vxor.u32 %v2468, 2147483648
    %v2529 = vxor.u32 %v2471, 2147483648
    %v2530 = vmul.f32 %v2526, 1.442695
    %v2531 = vpow.pop %v2530
    %v2532 = vmul.f32 %v2527, 1.442695
    %v2533 = vpow.pop %v2532
    %v2534 = vmul.f32 %v2528, 1.442695
    %v2535 = vpow.pop %v2534
    %v2536 = vmul.f32 %v2529, 1.442695
    %v2537 = vpow.pop %v2536
    %v2538 = vadd.f32 %v2531, 1.0
    %v2539 = vadd.f32 %v2533, 1.0
    %v2540 = vadd.f32 %v2535, 1.0
    %v2541 = vadd.f32 %v2537, 1.0
    %v2542 = vrcp.pop %v2538
    %v2543 = vmul.f32 1.0, %v2542
    %v2544 = vrcp.pop %v2539
    %v2545 = vmul.f32 1.0, %v2544
    %v2546 = vrcp.pop %v2540
    %v2547 = vmul.f32 1.0, %v2546
    %v2548 = vrcp.pop %v2541
    %v2549 = vmul.f32 1.0, %v2548
    %v2550 = vmul.f32 %v2515, %v2142
    %v2551 = vmul.f32 %v2517, %v2143
    %v2552 = vmul.f32 %v2519, %v2144
    %v2553 = vmul.f32 %v2521, %v2145
    %v2554 = vmul.f32 %v2507, %v2522
    %v2555 = vmul.f32 %v2509, %v2523
    %v2556 = vmul.f32 %v2511, %v2524
    %v2557 = vmul.f32 %v2513, %v2525
    %v2558 = vadd.f32 %v2550, %v2554
    %v2559 = vadd.f32 %v2551, %v2555
    %v2560 = vadd.f32 %v2552, %v2556
    %v2561 = vadd.f32 %v2553, %v2557
    %v2562 = vtanh.pop %v2558
    %v2563 = vtanh.pop %v2559
    %v2564 = vtanh.pop %v2560
    %v2565 = vtanh.pop %v2561
    %v2566 = vmul.f32 %v2543, %v2562
    %v2567 = vmul.f32 %v2545, %v2563
    %v2568 = vmul.f32 %v2547, %v2564
    %v2569 = vmul.f32 %v2549, %v2565
    %vm2570 = vcmp.gt.s32.totalorder %v253, 4
    %vm2571 = vcmp.gt.s32.totalorder %v253, 11
    %v2572 = vsel %vm2570, %v2359, %v2130
    %v2573 = vsel %vm2570, %v2360, %v2131
    %v2574 = vsel %vm2570, %v2361, %v2132
    %v2575 = vsel %vm2570, %v2362, %v2133
    %v2576 = vsel %vm2570, %v2351, %v2134
    %v2577 = vsel %vm2570, %v2352, %v2135
    %v2578 = vsel %vm2570, %v2353, %v2136
    %v2579 = vsel %vm2570, %v2354, %v2137
    %v2580 = vsel %vm2571, %v2566, %v2138
    %v2581 = vsel %vm2571, %v2567, %v2139
    %v2582 = vsel %vm2571, %v2568, %v2140
    %v2583 = vsel %vm2571, %v2569, %v2141
    %v2584 = vsel %vm2571, %v2558, %v2142
    %v2585 = vsel %vm2571, %v2559, %v2143
    %v2586 = vsel %vm2571, %v2560, %v2144
    %v2587 = vsel %vm2571, %v2561, %v2145
    %s2588 = scalar_lea.vmem %s0, 80
    %v2589 = vld [vmem:[%s2588] sm:$0xf]
    %v2590 = vld [vmem:[%s2588 + $0x4] sm:$0xf]
    %v2591 = vld [vmem:[%s2588 + $0x8] sm:$0xf]
    %v2592 = vld [vmem:[%s2588 + $0xc] sm:$0xf]
    %s2593 = scalar_lea.vmem %s0, 160
    %v2594 = vld [vmem:[%s2593] sm:$0xf]
    %v2595 = vld [vmem:[%s2593 + $0x4] sm:$0xf]
    %v2596 = vld [vmem:[%s2593 + $0x8] sm:$0xf]
    %v2597 = vld [vmem:[%s2593 + $0xc] sm:$0xf]
    %v2598 = vpack.c.bf16 %v2573, %v2572
    %v2599 = vpack.c.bf16 %v2575, %v2574
    %v2604 = vunpack.c.l.b16 %v2589
    %v2605 = vunpack.c.l.b16 %v2590
    %v2606 = vunpack.c.l.b16 %v2591
    %v2607 = vunpack.c.l.b16 %v2592
    %v2608 = vpack.c.b16 %v2605, %v2604
    %v2609 = vpack.c.b16 %v2607, %v2606
    %2612 = vmatprep.subr.bf16.mxu0 0
    %2613 = vmatpush1.bf16.msra.mxu0 %v2608
    %2614 = vmatprep.subr.bf16.mxu0 0
    %2615 = vmatpush1.bf16.msra.mxu0 %v2609
    %2616 = vmatprep.subr.bf16.mxu0 0
    %2617 = vmatpush1.bf16.msra.mxu0 %v2598
    %2618 = vmatprep.subr.bf16.mxu0 0
    %2619 = vmatpush1.bf16.msra.mxu0 %v2599
    %2620 = vmatprep.subr.bf16.mxu0 0
    %2621 = vmatpush1.bf16.msra.mxu0 0
    %2622 = vmatprep.subr.bf16.mxu0 0
    %2623 = vmatpush1.bf16.msra.mxu0 0
    %2624 = vmatprep.subr.bf16.mxu0 0
    %2625 = vmatpush1.bf16.msra.mxu0 0
    %2626 = vmatprep.subr.bf16.mxu0 0
    %2627 = vmatpush1.bf16.msra.mxu0 0
    %2628 = vmatprep.subr.bf16.mxu0 0
    %2629 = vmatpush1.bf16.msra.mxu0 0
    %2630 = vmatprep.subr.bf16.mxu0 0
    %2631 = vmatpush1.bf16.msra.mxu0 0
    %2632 = vmatprep.subr.bf16.mxu0 0
    %2633 = vmatpush1.bf16.msra.mxu0 0
    %2634 = vmatprep.subr.bf16.mxu0 0
    %2635 = vmatpush1.bf16.msra.mxu0 0
    %2636 = vmatprep.subr.bf16.mxu0 0
    %2637 = vmatpush1.bf16.msra.mxu0 0
    %2638 = vmatprep.subr.bf16.mxu0 0
    %2639 = vmatpush1.bf16.msra.mxu0 0
    %2640 = vmatprep.subr.bf16.mxu0 0
    %2641 = vmatpush1.bf16.msra.mxu0 0
    %2642 = vmatprep.subr.bf16.mxu0 0
    %2643 = vmatpush1.bf16.msra.mxu0 0
    %2644 = vmatprep.mubr.bf16.mxu0 0
    %2645 = vmatmul.mubr.bf16.gmra.mrb[0].mxu0 %v317
    %v2646 = vpop.f32.mrb[0].mxu0
    %v2647 = vadd.f32 %v76, %v2646
    %v2648 = vpop.f32.mrb[0].mxu0
    %v2649 = vpop.f32.mrb[0].mxu0
    %v2650 = vadd.f32 %v81, %v2649
    %v2651 = vpop.f32.mrb[0].mxu0
    %2652 = vmatprep.mubr.bf16.mxu0 0
    %2653 = vmatmul.mubr.bf16.gmra.mrb[0].mxu0 %v320
    %v2654 = vpop.f32.mrb[0].mxu0
    %v2655 = vadd.f32 %v86, %v2654
    %v2656 = vpop.f32.mrb[0].mxu0
    %v2657 = vpop.f32.mrb[0].mxu0
    %v2658 = vadd.f32 %v91, %v2657
    %v2659 = vpop.f32.mrb[0].mxu0
    %2660 = vmatprep.mubr.bf16.mxu0 0
    %2661 = vmatmul.mubr.bf16.gmra.mrb[0].mxu0 %v323
    %v2662 = vpop.f32.mrb[0].mxu0
    %v2663 = vadd.f32 %v96, %v2662
    %v2664 = vpop.f32.mrb[0].mxu0
    %v2665 = vpop.f32.mrb[0].mxu0
    %v2666 = vadd.f32 %v101, %v2665
    %v2667 = vpop.f32.mrb[0].mxu0
    %2668 = vmatprep.mubr.bf16.mxu0 0
    %2669 = vmatmul.mubr.bf16.gmra.mrb[0].mxu0 %v326
    %v2670 = vpop.f32.mrb[0].mxu0
    %v2671 = vadd.f32 %v106, %v2670
    %v2672 = vpop.f32.mrb[0].mxu0
    %v2673 = vpop.f32.mrb[0].mxu0
    %v2674 = vadd.f32 %v111, %v2673
    %v2675 = vpop.f32.mrb[0].mxu0
    %2676 = vmatprep.mubr.bf16.mxu0 0
    %2677 = vmatmul.mubr.bf16.gmra.mrb[0].mxu0 %v329
    %v2678 = vpop.f32.mrb[0].mxu0
    %v2679 = vadd.f32 %v116, %v2678
    %v2680 = vpop.f32.mrb[0].mxu0
    %v2681 = vpop.f32.mrb[0].mxu0
    %v2682 = vadd.f32 %v121, %v2681
    %v2683 = vpop.f32.mrb[0].mxu0
    %2684 = vmatprep.mubr.bf16.mxu0 0
    %2685 = vmatmul.mubr.bf16.gmra.mrb[0].mxu0 %v332
    %v2686 = vpop.f32.mrb[0].mxu0
    %v2687 = vadd.f32 %v126, %v2686
    %v2688 = vpop.f32.mrb[0].mxu0
    %v2689 = vpop.f32.mrb[0].mxu0
    %v2690 = vadd.f32 %v131, %v2689
    %v2691 = vpop.f32.mrb[0].mxu0
    %2692 = vmatprep.mubr.bf16.mxu0 0
    %2693 = vmatmul.mubr.bf16.gmra.mrb[0].mxu0 %v335
    %v2694 = vpop.f32.mrb[0].mxu0
    %v2695 = vadd.f32 %v136, %v2694
    %v2696 = vpop.f32.mrb[0].mxu0
    %v2697 = vpop.f32.mrb[0].mxu0
    %v2698 = vadd.f32 %v141, %v2697
    %v2699 = vpop.f32.mrb[0].mxu0
    %2700 = vmatprep.mubr.bf16.mxu0 0
    %2701 = vmatmul.mubr.bf16.gmra.mrb[0].mxu0 %v338
    %v2702 = vpop.f32.mrb[0].mxu0
    %v2703 = vadd.f32 %v146, %v2702
    %v2704 = vpop.f32.mrb[0].mxu0
    %v2705 = vpop.f32.mrb[0].mxu0
    %v2706 = vadd.f32 %v151, %v2705
    %v2707 = vpop.f32.mrb[0].mxu0
    %2708 = vdwg.mxu0
    %v2709 = vxor.u32 %v2647, 2147483648
    %v2710 = vxor.u32 %v2650, 2147483648
    %v2711 = vxor.u32 %v2655, 2147483648
    %v2712 = vxor.u32 %v2658, 2147483648
    %v2713 = vxor.u32 %v2663, 2147483648
    %v2714 = vxor.u32 %v2666, 2147483648
    %v2715 = vxor.u32 %v2671, 2147483648
    %v2716 = vxor.u32 %v2674, 2147483648
    %v2717 = vmul.f32 %v2709, 1.442695
    %v2718 = vpow.pop %v2717
    %v2719 = vmul.f32 %v2710, 1.442695
    %v2720 = vpow.pop %v2719
    %v2721 = vmul.f32 %v2711, 1.442695
    %v2722 = vpow.pop %v2721
    %v2723 = vmul.f32 %v2712, 1.442695
    %v2724 = vpow.pop %v2723
    %v2725 = vmul.f32 %v2713, 1.442695
    %v2726 = vpow.pop %v2725
    %v2727 = vmul.f32 %v2714, 1.442695
    %v2728 = vpow.pop %v2727
    %v2729 = vmul.f32 %v2715, 1.442695
    %v2730 = vpow.pop %v2729
    %v2731 = vmul.f32 %v2716, 1.442695
    %v2732 = vpow.pop %v2731
    %v2733 = vadd.f32 %v2718, 1.0
    %v2734 = vadd.f32 %v2720, 1.0
    %v2735 = vadd.f32 %v2722, 1.0
    %v2736 = vadd.f32 %v2724, 1.0
    %v2737 = vadd.f32 %v2726, 1.0
    %v2738 = vadd.f32 %v2728, 1.0
    %v2739 = vadd.f32 %v2730, 1.0
    %v2740 = vadd.f32 %v2732, 1.0
    %v2741 = vrcp.pop %v2733
    %v2742 = vmul.f32 1.0, %v2741
    %v2743 = vrcp.pop %v2734
    %v2744 = vmul.f32 1.0, %v2743
    %v2745 = vrcp.pop %v2735
    %v2746 = vmul.f32 1.0, %v2745
    %v2747 = vrcp.pop %v2736
    %v2748 = vmul.f32 1.0, %v2747
    %v2749 = vrcp.pop %v2737
    %v2750 = vmul.f32 1.0, %v2749
    %v2751 = vrcp.pop %v2738
    %v2752 = vmul.f32 1.0, %v2751
    %v2753 = vrcp.pop %v2739
    %v2754 = vmul.f32 1.0, %v2753
    %v2755 = vrcp.pop %v2740
    %v2756 = vmul.f32 1.0, %v2755
    %v2757 = vtanh.pop %v2679
    %v2758 = vtanh.pop %v2682
    %v2759 = vtanh.pop %v2687
    %v2760 = vtanh.pop %v2690
    %v2761 = vxor.u32 %v2695, 2147483648
    %v2762 = vxor.u32 %v2698, 2147483648
    %v2763 = vxor.u32 %v2703, 2147483648
    %v2764 = vxor.u32 %v2706, 2147483648
    %v2765 = vmul.f32 %v2761, 1.442695
    %v2766 = vpow.pop %v2765
    %v2767 = vmul.f32 %v2762, 1.442695
    %v2768 = vpow.pop %v2767
    %v2769 = vmul.f32 %v2763, 1.442695
    %v2770 = vpow.pop %v2769
    %v2771 = vmul.f32 %v2764, 1.442695
    %v2772 = vpow.pop %v2771
    %v2773 = vadd.f32 %v2766, 1.0
    %v2774 = vadd.f32 %v2768, 1.0
    %v2775 = vadd.f32 %v2770, 1.0
    %v2776 = vadd.f32 %v2772, 1.0
    %v2777 = vrcp.pop %v2773
    %v2778 = vmul.f32 1.0, %v2777
    %v2779 = vrcp.pop %v2774
    %v2780 = vmul.f32 1.0, %v2779
    %v2781 = vrcp.pop %v2775
    %v2782 = vmul.f32 1.0, %v2781
    %v2783 = vrcp.pop %v2776
    %v2784 = vmul.f32 1.0, %v2783
    %v2785 = vmul.f32 %v2750, %v2576
    %v2786 = vmul.f32 %v2752, %v2577
    %v2787 = vmul.f32 %v2754, %v2578
    %v2788 = vmul.f32 %v2756, %v2579
    %v2789 = vmul.f32 %v2742, %v2757
    %v2790 = vmul.f32 %v2744, %v2758
    %v2791 = vmul.f32 %v2746, %v2759
    %v2792 = vmul.f32 %v2748, %v2760
    %v2793 = vadd.f32 %v2785, %v2789
    %v2794 = vadd.f32 %v2786, %v2790
    %v2795 = vadd.f32 %v2787, %v2791
    %v2796 = vadd.f32 %v2788, %v2792
    %v2797 = vtanh.pop %v2793
    %v2798 = vtanh.pop %v2794
    %v2799 = vtanh.pop %v2795
    %v2800 = vtanh.pop %v2796
    %v2801 = vmul.f32 %v2778, %v2797
    %v2802 = vmul.f32 %v2780, %v2798
    %v2803 = vmul.f32 %v2782, %v2799
    %v2804 = vmul.f32 %v2784, %v2800
    %v2805 = vpack.c.bf16 %v2581, %v2580
    %v2806 = vpack.c.bf16 %v2583, %v2582
    %v2811 = vunpack.c.l.b16 %v2594
    %v2812 = vunpack.c.l.b16 %v2595
    %v2813 = vunpack.c.l.b16 %v2596
    %v2814 = vunpack.c.l.b16 %v2597
    %v2815 = vpack.c.b16 %v2812, %v2811
    %v2816 = vpack.c.b16 %v2814, %v2813
    %2819 = vmatprep.subr.bf16.mxu0 0
    %2820 = vmatpush1.bf16.msra.mxu0 %v2815
    %2821 = vmatprep.subr.bf16.mxu0 0
    %2822 = vmatpush1.bf16.msra.mxu0 %v2816
    %2823 = vmatprep.subr.bf16.mxu0 0
    %2824 = vmatpush1.bf16.msra.mxu0 %v2805
    %2825 = vmatprep.subr.bf16.mxu0 0
    %2826 = vmatpush1.bf16.msra.mxu0 %v2806
    %2827 = vmatprep.subr.bf16.mxu0 0
    %2828 = vmatpush1.bf16.msra.mxu0 0
    %2829 = vmatprep.subr.bf16.mxu0 0
    %2830 = vmatpush1.bf16.msra.mxu0 0
    %2831 = vmatprep.subr.bf16.mxu0 0
    %2832 = vmatpush1.bf16.msra.mxu0 0
    %2833 = vmatprep.subr.bf16.mxu0 0
    %2834 = vmatpush1.bf16.msra.mxu0 0
    %2835 = vmatprep.subr.bf16.mxu0 0
    %2836 = vmatpush1.bf16.msra.mxu0 0
    %2837 = vmatprep.subr.bf16.mxu0 0
    %2838 = vmatpush1.bf16.msra.mxu0 0
    %2839 = vmatprep.subr.bf16.mxu0 0
    %2840 = vmatpush1.bf16.msra.mxu0 0
    %2841 = vmatprep.subr.bf16.mxu0 0
    %2842 = vmatpush1.bf16.msra.mxu0 0
    %2843 = vmatprep.subr.bf16.mxu0 0
    %2844 = vmatpush1.bf16.msra.mxu0 0
    %2845 = vmatprep.subr.bf16.mxu0 0
    %2846 = vmatpush1.bf16.msra.mxu0 0
    %2847 = vmatprep.subr.bf16.mxu0 0
    %2848 = vmatpush1.bf16.msra.mxu0 0
    %2849 = vmatprep.subr.bf16.mxu0 0
    %2850 = vmatpush1.bf16.msra.mxu0 0
    %2851 = vmatprep.mubr.bf16.mxu0 0
    %2852 = vmatmul.mubr.bf16.gmra.mrb[0].mxu0 %v586
    %v2853 = vpop.f32.mrb[0].mxu0
    %v2854 = vadd.f32 %v172, %v2853
    %v2855 = vpop.f32.mrb[0].mxu0
    %v2856 = vpop.f32.mrb[0].mxu0
    %v2857 = vadd.f32 %v177, %v2856
    %v2858 = vpop.f32.mrb[0].mxu0
    %2859 = vmatprep.mubr.bf16.mxu0 0
    %2860 = vmatmul.mubr.bf16.gmra.mrb[0].mxu0 %v589
    %v2861 = vpop.f32.mrb[0].mxu0
    %v2862 = vadd.f32 %v182, %v2861
    %v2863 = vpop.f32.mrb[0].mxu0
    %v2864 = vpop.f32.mrb[0].mxu0
    %v2865 = vadd.f32 %v187, %v2864
    %v2866 = vpop.f32.mrb[0].mxu0
    %2867 = vmatprep.mubr.bf16.mxu0 0
    %2868 = vmatmul.mubr.bf16.gmra.mrb[0].mxu0 %v592
    %v2869 = vpop.f32.mrb[0].mxu0
    %v2870 = vadd.f32 %v192, %v2869
    %v2871 = vpop.f32.mrb[0].mxu0
    %v2872 = vpop.f32.mrb[0].mxu0
    %v2873 = vadd.f32 %v197, %v2872
    %v2874 = vpop.f32.mrb[0].mxu0
    %2875 = vmatprep.mubr.bf16.mxu0 0
    %2876 = vmatmul.mubr.bf16.gmra.mrb[0].mxu0 %v595
    %v2877 = vpop.f32.mrb[0].mxu0
    %v2878 = vadd.f32 %v202, %v2877
    %v2879 = vpop.f32.mrb[0].mxu0
    %v2880 = vpop.f32.mrb[0].mxu0
    %v2881 = vadd.f32 %v207, %v2880
    %v2882 = vpop.f32.mrb[0].mxu0
    %2883 = vmatprep.mubr.bf16.mxu0 0
    %2884 = vmatmul.mubr.bf16.gmra.mrb[0].mxu0 %v598
    %v2885 = vpop.f32.mrb[0].mxu0
    %v2886 = vadd.f32 %v212, %v2885
    %v2887 = vpop.f32.mrb[0].mxu0
    %v2888 = vpop.f32.mrb[0].mxu0
    %v2889 = vadd.f32 %v217, %v2888
    %v2890 = vpop.f32.mrb[0].mxu0
    %2891 = vmatprep.mubr.bf16.mxu0 0
    %2892 = vmatmul.mubr.bf16.gmra.mrb[0].mxu0 %v601
    %v2893 = vpop.f32.mrb[0].mxu0
    %v2894 = vadd.f32 %v222, %v2893
    %v2895 = vpop.f32.mrb[0].mxu0
    %v2896 = vpop.f32.mrb[0].mxu0
    %v2897 = vadd.f32 %v227, %v2896
    %v2898 = vpop.f32.mrb[0].mxu0
    %2899 = vmatprep.mubr.bf16.mxu0 0
    %2900 = vmatmul.mubr.bf16.gmra.mrb[0].mxu0 %v604
    %v2901 = vpop.f32.mrb[0].mxu0
    %v2902 = vadd.f32 %v232, %v2901
    %v2903 = vpop.f32.mrb[0].mxu0
    %v2904 = vpop.f32.mrb[0].mxu0
    %v2905 = vadd.f32 %v237, %v2904
    %v2906 = vpop.f32.mrb[0].mxu0
    %2907 = vmatprep.mubr.bf16.mxu0 0
    %2908 = vmatmul.mubr.bf16.gmra.mrb[0].mxu0 %v607
    %v2909 = vpop.f32.mrb[0].mxu0
    %v2910 = vadd.f32 %v242, %v2909
    %v2911 = vpop.f32.mrb[0].mxu0
    %v2912 = vpop.f32.mrb[0].mxu0
    %v2913 = vadd.f32 %v247, %v2912
    %v2914 = vpop.f32.mrb[0].mxu0
    %2915 = vdwg.mxu0
    %v2916 = vxor.u32 %v2854, 2147483648
    %v2917 = vxor.u32 %v2857, 2147483648
    %v2918 = vxor.u32 %v2862, 2147483648
    %v2919 = vxor.u32 %v2865, 2147483648
    %v2920 = vxor.u32 %v2870, 2147483648
    %v2921 = vxor.u32 %v2873, 2147483648
    %v2922 = vxor.u32 %v2878, 2147483648
    %v2923 = vxor.u32 %v2881, 2147483648
    %v2924 = vmul.f32 %v2916, 1.442695
    %v2925 = vpow.pop %v2924
    %v2926 = vmul.f32 %v2917, 1.442695
    %v2927 = vpow.pop %v2926
    %v2928 = vmul.f32 %v2918, 1.442695
    %v2929 = vpow.pop %v2928
    %v2930 = vmul.f32 %v2919, 1.442695
    %v2931 = vpow.pop %v2930
    %v2932 = vmul.f32 %v2920, 1.442695
    %v2933 = vpow.pop %v2932
    %v2934 = vmul.f32 %v2921, 1.442695
    %v2935 = vpow.pop %v2934
    %v2936 = vmul.f32 %v2922, 1.442695
    %v2937 = vpow.pop %v2936
    %v2938 = vmul.f32 %v2923, 1.442695
    %v2939 = vpow.pop %v2938
    %v2940 = vadd.f32 %v2925, 1.0
    %v2941 = vadd.f32 %v2927, 1.0
    %v2942 = vadd.f32 %v2929, 1.0
    %v2943 = vadd.f32 %v2931, 1.0
    %v2944 = vadd.f32 %v2933, 1.0
    %v2945 = vadd.f32 %v2935, 1.0
    %v2946 = vadd.f32 %v2937, 1.0
    %v2947 = vadd.f32 %v2939, 1.0
    %v2948 = vrcp.pop %v2940
    %v2949 = vmul.f32 1.0, %v2948
    %v2950 = vrcp.pop %v2941
    %v2951 = vmul.f32 1.0, %v2950
    %v2952 = vrcp.pop %v2942
    %v2953 = vmul.f32 1.0, %v2952
    %v2954 = vrcp.pop %v2943
    %v2955 = vmul.f32 1.0, %v2954
    %v2956 = vrcp.pop %v2944
    %v2957 = vmul.f32 1.0, %v2956
    %v2958 = vrcp.pop %v2945
    %v2959 = vmul.f32 1.0, %v2958
    %v2960 = vrcp.pop %v2946
    %v2961 = vmul.f32 1.0, %v2960
    %v2962 = vrcp.pop %v2947
    %v2963 = vmul.f32 1.0, %v2962
    %v2964 = vtanh.pop %v2886
    %v2965 = vtanh.pop %v2889
    %v2966 = vtanh.pop %v2894
    %v2967 = vtanh.pop %v2897
    %v2968 = vxor.u32 %v2902, 2147483648
    %v2969 = vxor.u32 %v2905, 2147483648
    %v2970 = vxor.u32 %v2910, 2147483648
    %v2971 = vxor.u32 %v2913, 2147483648
    %v2972 = vmul.f32 %v2968, 1.442695
    %v2973 = vpow.pop %v2972
    %v2974 = vmul.f32 %v2969, 1.442695
    %v2975 = vpow.pop %v2974
    %v2976 = vmul.f32 %v2970, 1.442695
    %v2977 = vpow.pop %v2976
    %v2978 = vmul.f32 %v2971, 1.442695
    %v2979 = vpow.pop %v2978
    %v2980 = vadd.f32 %v2973, 1.0
    %v2981 = vadd.f32 %v2975, 1.0
    %v2982 = vadd.f32 %v2977, 1.0
    %v2983 = vadd.f32 %v2979, 1.0
    %v2984 = vrcp.pop %v2980
    %v2985 = vmul.f32 1.0, %v2984
    %v2986 = vrcp.pop %v2981
    %v2987 = vmul.f32 1.0, %v2986
    %v2988 = vrcp.pop %v2982
    %v2989 = vmul.f32 1.0, %v2988
    %v2990 = vrcp.pop %v2983
    %v2991 = vmul.f32 1.0, %v2990
    %v2992 = vmul.f32 %v2957, %v2584
    %v2993 = vmul.f32 %v2959, %v2585
    %v2994 = vmul.f32 %v2961, %v2586
    %v2995 = vmul.f32 %v2963, %v2587
    %v2996 = vmul.f32 %v2949, %v2964
    %v2997 = vmul.f32 %v2951, %v2965
    %v2998 = vmul.f32 %v2953, %v2966
    %v2999 = vmul.f32 %v2955, %v2967
    %v3000 = vadd.f32 %v2992, %v2996
    %v3001 = vadd.f32 %v2993, %v2997
    %v3002 = vadd.f32 %v2994, %v2998
    %v3003 = vadd.f32 %v2995, %v2999
    %v3004 = vtanh.pop %v3000
    %v3005 = vtanh.pop %v3001
    %v3006 = vtanh.pop %v3002
    %v3007 = vtanh.pop %v3003
    %v3008 = vmul.f32 %v2985, %v3004
    %v3009 = vmul.f32 %v2987, %v3005
    %v3010 = vmul.f32 %v2989, %v3006
    %v3011 = vmul.f32 %v2991, %v3007
    %vm3012 = vcmp.gt.s32.totalorder %v253, 5
    %vm3013 = vcmp.gt.s32.totalorder %v253, 10
    %v3014 = vsel %vm3012, %v2801, %v2572
    %v3015 = vsel %vm3012, %v2802, %v2573
    %v3016 = vsel %vm3012, %v2803, %v2574
    %v3017 = vsel %vm3012, %v2804, %v2575
    %v3018 = vsel %vm3012, %v2793, %v2576
    %v3019 = vsel %vm3012, %v2794, %v2577
    %v3020 = vsel %vm3012, %v2795, %v2578
    %v3021 = vsel %vm3012, %v2796, %v2579
    %v3022 = vsel %vm3013, %v3008, %v2580
    %v3023 = vsel %vm3013, %v3009, %v2581
    %v3024 = vsel %vm3013, %v3010, %v2582
    %v3025 = vsel %vm3013, %v3011, %v2583
    %v3026 = vsel %vm3013, %v3000, %v2584
    %v3027 = vsel %vm3013, %v3001, %v2585
    %v3028 = vsel %vm3013, %v3002, %v2586
    %v3029 = vsel %vm3013, %v3003, %v2587
    %s3030 = scalar_lea.vmem %s0, 96
    %v3031 = vld [vmem:[%s3030] sm:$0xf]
    %v3032 = vld [vmem:[%s3030 + $0x4] sm:$0xf]
    %v3033 = vld [vmem:[%s3030 + $0x8] sm:$0xf]
    %v3034 = vld [vmem:[%s3030 + $0xc] sm:$0xf]
    %s3035 = scalar_lea.vmem %s0, 144
    %v3036 = vld [vmem:[%s3035] sm:$0xf]
    %v3037 = vld [vmem:[%s3035 + $0x4] sm:$0xf]
    %v3038 = vld [vmem:[%s3035 + $0x8] sm:$0xf]
    %v3039 = vld [vmem:[%s3035 + $0xc] sm:$0xf]
    %v3040 = vpack.c.bf16 %v3015, %v3014
    %v3041 = vpack.c.bf16 %v3017, %v3016
    %v3046 = vunpack.c.l.b16 %v3031
    %v3047 = vunpack.c.l.b16 %v3032
    %v3048 = vunpack.c.l.b16 %v3033
    %v3049 = vunpack.c.l.b16 %v3034
    %v3050 = vpack.c.b16 %v3047, %v3046
    %v3051 = vpack.c.b16 %v3049, %v3048
    %3054 = vmatprep.subr.bf16.mxu0 0
    %3055 = vmatpush1.bf16.msra.mxu0 %v3050
    %3056 = vmatprep.subr.bf16.mxu0 0
    %3057 = vmatpush1.bf16.msra.mxu0 %v3051
    %3058 = vmatprep.subr.bf16.mxu0 0
    %3059 = vmatpush1.bf16.msra.mxu0 %v3040
    %3060 = vmatprep.subr.bf16.mxu0 0
    %3061 = vmatpush1.bf16.msra.mxu0 %v3041
    %3062 = vmatprep.subr.bf16.mxu0 0
    %3063 = vmatpush1.bf16.msra.mxu0 0
    %3064 = vmatprep.subr.bf16.mxu0 0
    %3065 = vmatpush1.bf16.msra.mxu0 0
    %3066 = vmatprep.subr.bf16.mxu0 0
    %3067 = vmatpush1.bf16.msra.mxu0 0
    %3068 = vmatprep.subr.bf16.mxu0 0
    %3069 = vmatpush1.bf16.msra.mxu0 0
    %3070 = vmatprep.subr.bf16.mxu0 0
    %3071 = vmatpush1.bf16.msra.mxu0 0
    %3072 = vmatprep.subr.bf16.mxu0 0
    %3073 = vmatpush1.bf16.msra.mxu0 0
    %3074 = vmatprep.subr.bf16.mxu0 0
    %3075 = vmatpush1.bf16.msra.mxu0 0
    %3076 = vmatprep.subr.bf16.mxu0 0
    %3077 = vmatpush1.bf16.msra.mxu0 0
    %3078 = vmatprep.subr.bf16.mxu0 0
    %3079 = vmatpush1.bf16.msra.mxu0 0
    %3080 = vmatprep.subr.bf16.mxu0 0
    %3081 = vmatpush1.bf16.msra.mxu0 0
    %3082 = vmatprep.subr.bf16.mxu0 0
    %3083 = vmatpush1.bf16.msra.mxu0 0
    %3084 = vmatprep.subr.bf16.mxu0 0
    %3085 = vmatpush1.bf16.msra.mxu0 0
    %3086 = vmatprep.mubr.bf16.mxu0 0
    %3087 = vmatmul.mubr.bf16.gmra.mrb[0].mxu0 %v317
    %v3088 = vpop.f32.mrb[0].mxu0
    %v3089 = vadd.f32 %v76, %v3088
    %v3090 = vpop.f32.mrb[0].mxu0
    %v3091 = vpop.f32.mrb[0].mxu0
    %v3092 = vadd.f32 %v81, %v3091
    %v3093 = vpop.f32.mrb[0].mxu0
    %3094 = vmatprep.mubr.bf16.mxu0 0
    %3095 = vmatmul.mubr.bf16.gmra.mrb[0].mxu0 %v320
    %v3096 = vpop.f32.mrb[0].mxu0
    %v3097 = vadd.f32 %v86, %v3096
    %v3098 = vpop.f32.mrb[0].mxu0
    %v3099 = vpop.f32.mrb[0].mxu0
    %v3100 = vadd.f32 %v91, %v3099
    %v3101 = vpop.f32.mrb[0].mxu0
    %3102 = vmatprep.mubr.bf16.mxu0 0
    %3103 = vmatmul.mubr.bf16.gmra.mrb[0].mxu0 %v323
    %v3104 = vpop.f32.mrb[0].mxu0
    %v3105 = vadd.f32 %v96, %v3104
    %v3106 = vpop.f32.mrb[0].mxu0
    %v3107 = vpop.f32.mrb[0].mxu0
    %v3108 = vadd.f32 %v101, %v3107
    %v3109 = vpop.f32.mrb[0].mxu0
    %3110 = vmatprep.mubr.bf16.mxu0 0
    %3111 = vmatmul.mubr.bf16.gmra.mrb[0].mxu0 %v326
    %v3112 = vpop.f32.mrb[0].mxu0
    %v3113 = vadd.f32 %v106, %v3112
    %v3114 = vpop.f32.mrb[0].mxu0
    %v3115 = vpop.f32.mrb[0].mxu0
    %v3116 = vadd.f32 %v111, %v3115
    %v3117 = vpop.f32.mrb[0].mxu0
    %3118 = vmatprep.mubr.bf16.mxu0 0
    %3119 = vmatmul.mubr.bf16.gmra.mrb[0].mxu0 %v329
    %v3120 = vpop.f32.mrb[0].mxu0
    %v3121 = vadd.f32 %v116, %v3120
    %v3122 = vpop.f32.mrb[0].mxu0
    %v3123 = vpop.f32.mrb[0].mxu0
    %v3124 = vadd.f32 %v121, %v3123
    %v3125 = vpop.f32.mrb[0].mxu0
    %3126 = vmatprep.mubr.bf16.mxu0 0
    %3127 = vmatmul.mubr.bf16.gmra.mrb[0].mxu0 %v332
    %v3128 = vpop.f32.mrb[0].mxu0
    %v3129 = vadd.f32 %v126, %v3128
    %v3130 = vpop.f32.mrb[0].mxu0
    %v3131 = vpop.f32.mrb[0].mxu0
    %v3132 = vadd.f32 %v131, %v3131
    %v3133 = vpop.f32.mrb[0].mxu0
    %3134 = vmatprep.mubr.bf16.mxu0 0
    %3135 = vmatmul.mubr.bf16.gmra.mrb[0].mxu0 %v335
    %v3136 = vpop.f32.mrb[0].mxu0
    %v3137 = vadd.f32 %v136, %v3136
    %v3138 = vpop.f32.mrb[0].mxu0
    %v3139 = vpop.f32.mrb[0].mxu0
    %v3140 = vadd.f32 %v141, %v3139
    %v3141 = vpop.f32.mrb[0].mxu0
    %3142 = vmatprep.mubr.bf16.mxu0 0
    %3143 = vmatmul.mubr.bf16.gmra.mrb[0].mxu0 %v338
    %v3144 = vpop.f32.mrb[0].mxu0
    %v3145 = vadd.f32 %v146, %v3144
    %v3146 = vpop.f32.mrb[0].mxu0
    %v3147 = vpop.f32.mrb[0].mxu0
    %v3148 = vadd.f32 %v151, %v3147
    %v3149 = vpop.f32.mrb[0].mxu0
    %3150 = vdwg.mxu0
    %v3151 = vxor.u32 %v3089, 2147483648
    %v3152 = vxor.u32 %v3092, 2147483648
    %v3153 = vxor.u32 %v3097, 2147483648
    %v3154 = vxor.u32 %v3100, 2147483648
    %v3155 = vxor.u32 %v3105, 2147483648
    %v3156 = vxor.u32 %v3108, 2147483648
    %v3157 = vxor.u32 %v3113, 2147483648
    %v3158 = vxor.u32 %v3116, 2147483648
    %v3159 = vmul.f32 %v3151, 1.442695
    %v3160 = vpow.pop %v3159
    %v3161 = vmul.f32 %v3152, 1.442695
    %v3162 = vpow.pop %v3161
    %v3163 = vmul.f32 %v3153, 1.442695
    %v3164 = vpow.pop %v3163
    %v3165 = vmul.f32 %v3154, 1.442695
    %v3166 = vpow.pop %v3165
    %v3167 = vmul.f32 %v3155, 1.442695
    %v3168 = vpow.pop %v3167
    %v3169 = vmul.f32 %v3156, 1.442695
    %v3170 = vpow.pop %v3169
    %v3171 = vmul.f32 %v3157, 1.442695
    %v3172 = vpow.pop %v3171
    %v3173 = vmul.f32 %v3158, 1.442695
    %v3174 = vpow.pop %v3173
    %v3175 = vadd.f32 %v3160, 1.0
    %v3176 = vadd.f32 %v3162, 1.0
    %v3177 = vadd.f32 %v3164, 1.0
    %v3178 = vadd.f32 %v3166, 1.0
    %v3179 = vadd.f32 %v3168, 1.0
    %v3180 = vadd.f32 %v3170, 1.0
    %v3181 = vadd.f32 %v3172, 1.0
    %v3182 = vadd.f32 %v3174, 1.0
    %v3183 = vrcp.pop %v3175
    %v3184 = vmul.f32 1.0, %v3183
    %v3185 = vrcp.pop %v3176
    %v3186 = vmul.f32 1.0, %v3185
    %v3187 = vrcp.pop %v3177
    %v3188 = vmul.f32 1.0, %v3187
    %v3189 = vrcp.pop %v3178
    %v3190 = vmul.f32 1.0, %v3189
    %v3191 = vrcp.pop %v3179
    %v3192 = vmul.f32 1.0, %v3191
    %v3193 = vrcp.pop %v3180
    %v3194 = vmul.f32 1.0, %v3193
    %v3195 = vrcp.pop %v3181
    %v3196 = vmul.f32 1.0, %v3195
    %v3197 = vrcp.pop %v3182
    %v3198 = vmul.f32 1.0, %v3197
    %v3199 = vtanh.pop %v3121
    %v3200 = vtanh.pop %v3124
    %v3201 = vtanh.pop %v3129
    %v3202 = vtanh.pop %v3132
    %v3203 = vxor.u32 %v3137, 2147483648
    %v3204 = vxor.u32 %v3140, 2147483648
    %v3205 = vxor.u32 %v3145, 2147483648
    %v3206 = vxor.u32 %v3148, 2147483648
    %v3207 = vmul.f32 %v3203, 1.442695
    %v3208 = vpow.pop %v3207
    %v3209 = vmul.f32 %v3204, 1.442695
    %v3210 = vpow.pop %v3209
    %v3211 = vmul.f32 %v3205, 1.442695
    %v3212 = vpow.pop %v3211
    %v3213 = vmul.f32 %v3206, 1.442695
    %v3214 = vpow.pop %v3213
    %v3215 = vadd.f32 %v3208, 1.0
    %v3216 = vadd.f32 %v3210, 1.0
    %v3217 = vadd.f32 %v3212, 1.0
    %v3218 = vadd.f32 %v3214, 1.0
    %v3219 = vrcp.pop %v3215
    %v3220 = vmul.f32 1.0, %v3219
    %v3221 = vrcp.pop %v3216
    %v3222 = vmul.f32 1.0, %v3221
    %v3223 = vrcp.pop %v3217
    %v3224 = vmul.f32 1.0, %v3223
    %v3225 = vrcp.pop %v3218
    %v3226 = vmul.f32 1.0, %v3225
    %v3227 = vmul.f32 %v3192, %v3018
    %v3228 = vmul.f32 %v3194, %v3019
    %v3229 = vmul.f32 %v3196, %v3020
    %v3230 = vmul.f32 %v3198, %v3021
    %v3231 = vmul.f32 %v3184, %v3199
    %v3232 = vmul.f32 %v3186, %v3200
    %v3233 = vmul.f32 %v3188, %v3201
    %v3234 = vmul.f32 %v3190, %v3202
    %v3235 = vadd.f32 %v3227, %v3231
    %v3236 = vadd.f32 %v3228, %v3232
    %v3237 = vadd.f32 %v3229, %v3233
    %v3238 = vadd.f32 %v3230, %v3234
    %v3239 = vtanh.pop %v3235
    %v3240 = vtanh.pop %v3236
    %v3241 = vtanh.pop %v3237
    %v3242 = vtanh.pop %v3238
    %v3243 = vmul.f32 %v3220, %v3239
    %v3244 = vmul.f32 %v3222, %v3240
    %v3245 = vmul.f32 %v3224, %v3241
    %v3246 = vmul.f32 %v3226, %v3242
    %v3247 = vpack.c.bf16 %v3023, %v3022
    %v3248 = vpack.c.bf16 %v3025, %v3024
    %v3253 = vunpack.c.l.b16 %v3036
    %v3254 = vunpack.c.l.b16 %v3037
    %v3255 = vunpack.c.l.b16 %v3038
    %v3256 = vunpack.c.l.b16 %v3039
    %v3257 = vpack.c.b16 %v3254, %v3253
    %v3258 = vpack.c.b16 %v3256, %v3255
    %3261 = vmatprep.subr.bf16.mxu0 0
    %3262 = vmatpush1.bf16.msra.mxu0 %v3257
    %3263 = vmatprep.subr.bf16.mxu0 0
    %3264 = vmatpush1.bf16.msra.mxu0 %v3258
    %3265 = vmatprep.subr.bf16.mxu0 0
    %3266 = vmatpush1.bf16.msra.mxu0 %v3247
    %3267 = vmatprep.subr.bf16.mxu0 0
    %3268 = vmatpush1.bf16.msra.mxu0 %v3248
    %3269 = vmatprep.subr.bf16.mxu0 0
    %3270 = vmatpush1.bf16.msra.mxu0 0
    %3271 = vmatprep.subr.bf16.mxu0 0
    %3272 = vmatpush1.bf16.msra.mxu0 0
    %3273 = vmatprep.subr.bf16.mxu0 0
    %3274 = vmatpush1.bf16.msra.mxu0 0
    %3275 = vmatprep.subr.bf16.mxu0 0
    %3276 = vmatpush1.bf16.msra.mxu0 0
    %3277 = vmatprep.subr.bf16.mxu0 0
    %3278 = vmatpush1.bf16.msra.mxu0 0
    %3279 = vmatprep.subr.bf16.mxu0 0
    %3280 = vmatpush1.bf16.msra.mxu0 0
    %3281 = vmatprep.subr.bf16.mxu0 0
    %3282 = vmatpush1.bf16.msra.mxu0 0
    %3283 = vmatprep.subr.bf16.mxu0 0
    %3284 = vmatpush1.bf16.msra.mxu0 0
    %3285 = vmatprep.subr.bf16.mxu0 0
    %3286 = vmatpush1.bf16.msra.mxu0 0
    %3287 = vmatprep.subr.bf16.mxu0 0
    %3288 = vmatpush1.bf16.msra.mxu0 0
    %3289 = vmatprep.subr.bf16.mxu0 0
    %3290 = vmatpush1.bf16.msra.mxu0 0
    %3291 = vmatprep.subr.bf16.mxu0 0
    %3292 = vmatpush1.bf16.msra.mxu0 0
    %3293 = vmatprep.mubr.bf16.mxu0 0
    %3294 = vmatmul.mubr.bf16.gmra.mrb[0].mxu0 %v586
    %v3295 = vpop.f32.mrb[0].mxu0
    %v3296 = vadd.f32 %v172, %v3295
    %v3297 = vpop.f32.mrb[0].mxu0
    %v3298 = vpop.f32.mrb[0].mxu0
    %v3299 = vadd.f32 %v177, %v3298
    %v3300 = vpop.f32.mrb[0].mxu0
    %3301 = vmatprep.mubr.bf16.mxu0 0
    %3302 = vmatmul.mubr.bf16.gmra.mrb[0].mxu0 %v589
    %v3303 = vpop.f32.mrb[0].mxu0
    %v3304 = vadd.f32 %v182, %v3303
    %v3305 = vpop.f32.mrb[0].mxu0
    %v3306 = vpop.f32.mrb[0].mxu0
    %v3307 = vadd.f32 %v187, %v3306
    %v3308 = vpop.f32.mrb[0].mxu0
    %3309 = vmatprep.mubr.bf16.mxu0 0
    %3310 = vmatmul.mubr.bf16.gmra.mrb[0].mxu0 %v592
    %v3311 = vpop.f32.mrb[0].mxu0
    %v3312 = vadd.f32 %v192, %v3311
    %v3313 = vpop.f32.mrb[0].mxu0
    %v3314 = vpop.f32.mrb[0].mxu0
    %v3315 = vadd.f32 %v197, %v3314
    %v3316 = vpop.f32.mrb[0].mxu0
    %3317 = vmatprep.mubr.bf16.mxu0 0
    %3318 = vmatmul.mubr.bf16.gmra.mrb[0].mxu0 %v595
    %v3319 = vpop.f32.mrb[0].mxu0
    %v3320 = vadd.f32 %v202, %v3319
    %v3321 = vpop.f32.mrb[0].mxu0
    %v3322 = vpop.f32.mrb[0].mxu0
    %v3323 = vadd.f32 %v207, %v3322
    %v3324 = vpop.f32.mrb[0].mxu0
    %3325 = vmatprep.mubr.bf16.mxu0 0
    %3326 = vmatmul.mubr.bf16.gmra.mrb[0].mxu0 %v598
    %v3327 = vpop.f32.mrb[0].mxu0
    %v3328 = vadd.f32 %v212, %v3327
    %v3329 = vpop.f32.mrb[0].mxu0
    %v3330 = vpop.f32.mrb[0].mxu0
    %v3331 = vadd.f32 %v217, %v3330
    %v3332 = vpop.f32.mrb[0].mxu0
    %3333 = vmatprep.mubr.bf16.mxu0 0
    %3334 = vmatmul.mubr.bf16.gmra.mrb[0].mxu0 %v601
    %v3335 = vpop.f32.mrb[0].mxu0
    %v3336 = vadd.f32 %v222, %v3335
    %v3337 = vpop.f32.mrb[0].mxu0
    %v3338 = vpop.f32.mrb[0].mxu0
    %v3339 = vadd.f32 %v227, %v3338
    %v3340 = vpop.f32.mrb[0].mxu0
    %3341 = vmatprep.mubr.bf16.mxu0 0
    %3342 = vmatmul.mubr.bf16.gmra.mrb[0].mxu0 %v604
    %v3343 = vpop.f32.mrb[0].mxu0
    %v3344 = vadd.f32 %v232, %v3343
    %v3345 = vpop.f32.mrb[0].mxu0
    %v3346 = vpop.f32.mrb[0].mxu0
    %v3347 = vadd.f32 %v237, %v3346
    %v3348 = vpop.f32.mrb[0].mxu0
    %3349 = vmatprep.mubr.bf16.mxu0 0
    %3350 = vmatmul.mubr.bf16.gmra.mrb[0].mxu0 %v607
    %v3351 = vpop.f32.mrb[0].mxu0
    %v3352 = vadd.f32 %v242, %v3351
    %v3353 = vpop.f32.mrb[0].mxu0
    %v3354 = vpop.f32.mrb[0].mxu0
    %v3355 = vadd.f32 %v247, %v3354
    %v3356 = vpop.f32.mrb[0].mxu0
    %3357 = vdwg.mxu0
    %v3358 = vxor.u32 %v3296, 2147483648
    %v3359 = vxor.u32 %v3299, 2147483648
    %v3360 = vxor.u32 %v3304, 2147483648
    %v3361 = vxor.u32 %v3307, 2147483648
    %v3362 = vxor.u32 %v3312, 2147483648
    %v3363 = vxor.u32 %v3315, 2147483648
    %v3364 = vxor.u32 %v3320, 2147483648
    %v3365 = vxor.u32 %v3323, 2147483648
    %v3366 = vmul.f32 %v3358, 1.442695
    %v3367 = vpow.pop %v3366
    %v3368 = vmul.f32 %v3359, 1.442695
    %v3369 = vpow.pop %v3368
    %v3370 = vmul.f32 %v3360, 1.442695
    %v3371 = vpow.pop %v3370
    %v3372 = vmul.f32 %v3361, 1.442695
    %v3373 = vpow.pop %v3372
    %v3374 = vmul.f32 %v3362, 1.442695
    %v3375 = vpow.pop %v3374
    %v3376 = vmul.f32 %v3363, 1.442695
    %v3377 = vpow.pop %v3376
    %v3378 = vmul.f32 %v3364, 1.442695
    %v3379 = vpow.pop %v3378
    %v3380 = vmul.f32 %v3365, 1.442695
    %v3381 = vpow.pop %v3380
    %v3382 = vadd.f32 %v3367, 1.0
    %v3383 = vadd.f32 %v3369, 1.0
    %v3384 = vadd.f32 %v3371, 1.0
    %v3385 = vadd.f32 %v3373, 1.0
    %v3386 = vadd.f32 %v3375, 1.0
    %v3387 = vadd.f32 %v3377, 1.0
    %v3388 = vadd.f32 %v3379, 1.0
    %v3389 = vadd.f32 %v3381, 1.0
    %v3390 = vrcp.pop %v3382
    %v3391 = vmul.f32 1.0, %v3390
    %v3392 = vrcp.pop %v3383
    %v3393 = vmul.f32 1.0, %v3392
    %v3394 = vrcp.pop %v3384
    %v3395 = vmul.f32 1.0, %v3394
    %v3396 = vrcp.pop %v3385
    %v3397 = vmul.f32 1.0, %v3396
    %v3398 = vrcp.pop %v3386
    %v3399 = vmul.f32 1.0, %v3398
    %v3400 = vrcp.pop %v3387
    %v3401 = vmul.f32 1.0, %v3400
    %v3402 = vrcp.pop %v3388
    %v3403 = vmul.f32 1.0, %v3402
    %v3404 = vrcp.pop %v3389
    %v3405 = vmul.f32 1.0, %v3404
    %v3406 = vtanh.pop %v3328
    %v3407 = vtanh.pop %v3331
    %v3408 = vtanh.pop %v3336
    %v3409 = vtanh.pop %v3339
    %v3410 = vxor.u32 %v3344, 2147483648
    %v3411 = vxor.u32 %v3347, 2147483648
    %v3412 = vxor.u32 %v3352, 2147483648
    %v3413 = vxor.u32 %v3355, 2147483648
    %v3414 = vmul.f32 %v3410, 1.442695
    %v3415 = vpow.pop %v3414
    %v3416 = vmul.f32 %v3411, 1.442695
    %v3417 = vpow.pop %v3416
    %v3418 = vmul.f32 %v3412, 1.442695
    %v3419 = vpow.pop %v3418
    %v3420 = vmul.f32 %v3413, 1.442695
    %v3421 = vpow.pop %v3420
    %v3422 = vadd.f32 %v3415, 1.0
    %v3423 = vadd.f32 %v3417, 1.0
    %v3424 = vadd.f32 %v3419, 1.0
    %v3425 = vadd.f32 %v3421, 1.0
    %v3426 = vrcp.pop %v3422
    %v3427 = vmul.f32 1.0, %v3426
    %v3428 = vrcp.pop %v3423
    %v3429 = vmul.f32 1.0, %v3428
    %v3430 = vrcp.pop %v3424
    %v3431 = vmul.f32 1.0, %v3430
    %v3432 = vrcp.pop %v3425
    %v3433 = vmul.f32 1.0, %v3432
    %v3434 = vmul.f32 %v3399, %v3026
    %v3435 = vmul.f32 %v3401, %v3027
    %v3436 = vmul.f32 %v3403, %v3028
    %v3437 = vmul.f32 %v3405, %v3029
    %v3438 = vmul.f32 %v3391, %v3406
    %v3439 = vmul.f32 %v3393, %v3407
    %v3440 = vmul.f32 %v3395, %v3408
    %v3441 = vmul.f32 %v3397, %v3409
    %v3442 = vadd.f32 %v3434, %v3438
    %v3443 = vadd.f32 %v3435, %v3439
    %v3444 = vadd.f32 %v3436, %v3440
    %v3445 = vadd.f32 %v3437, %v3441
    %v3446 = vtanh.pop %v3442
    %v3447 = vtanh.pop %v3443
    %v3448 = vtanh.pop %v3444
    %v3449 = vtanh.pop %v3445
    %v3450 = vmul.f32 %v3427, %v3446
    %v3451 = vmul.f32 %v3429, %v3447
    %v3452 = vmul.f32 %v3431, %v3448
    %v3453 = vmul.f32 %v3433, %v3449
    %vm3454 = vcmp.gt.s32.totalorder %v253, 6
    %vm3455 = vcmp.gt.s32.totalorder %v253, 9
    %v3456 = vsel %vm3454, %v3243, %v3014
    %v3457 = vsel %vm3454, %v3244, %v3015
    %v3458 = vsel %vm3454, %v3245, %v3016
    %v3459 = vsel %vm3454, %v3246, %v3017
    %v3460 = vsel %vm3454, %v3235, %v3018
    %v3461 = vsel %vm3454, %v3236, %v3019
    %v3462 = vsel %vm3454, %v3237, %v3020
    %v3463 = vsel %vm3454, %v3238, %v3021
    %v3464 = vsel %vm3455, %v3450, %v3022
    %v3465 = vsel %vm3455, %v3451, %v3023
    %v3466 = vsel %vm3455, %v3452, %v3024
    %v3467 = vsel %vm3455, %v3453, %v3025
    %v3468 = vsel %vm3455, %v3442, %v3026
    %v3469 = vsel %vm3455, %v3443, %v3027
    %v3470 = vsel %vm3455, %v3444, %v3028
    %v3471 = vsel %vm3455, %v3445, %v3029
    %s3472 = scalar_lea.vmem %s0, 112
    %v3473 = vld [vmem:[%s3472] sm:$0xf]
    %v3474 = vld [vmem:[%s3472 + $0x4] sm:$0xf]
    %v3475 = vld [vmem:[%s3472 + $0x8] sm:$0xf]
    %v3476 = vld [vmem:[%s3472 + $0xc] sm:$0xf]
    %s3477 = scalar_lea.vmem %s0, 128
    %v3478 = vld [vmem:[%s3477] sm:$0xf]
    %v3479 = vld [vmem:[%s3477 + $0x4] sm:$0xf]
    %v3480 = vld [vmem:[%s3477 + $0x8] sm:$0xf]
    %v3481 = vld [vmem:[%s3477 + $0xc] sm:$0xf]
    %v3482 = vpack.c.bf16 %v3457, %v3456
    %v3483 = vpack.c.bf16 %v3459, %v3458
    %v3488 = vunpack.c.l.b16 %v3473
    %v3489 = vunpack.c.l.b16 %v3474
    %v3490 = vunpack.c.l.b16 %v3475
    %v3491 = vunpack.c.l.b16 %v3476
    %v3492 = vpack.c.b16 %v3489, %v3488
    %v3493 = vpack.c.b16 %v3491, %v3490
    %3496 = vmatprep.subr.bf16.mxu0 0
    %3497 = vmatpush1.bf16.msra.mxu0 %v3492
    %3498 = vmatprep.subr.bf16.mxu0 0
    %3499 = vmatpush1.bf16.msra.mxu0 %v3493
    %3500 = vmatprep.subr.bf16.mxu0 0
    %3501 = vmatpush1.bf16.msra.mxu0 %v3482
    %3502 = vmatprep.subr.bf16.mxu0 0
    %3503 = vmatpush1.bf16.msra.mxu0 %v3483
    %3504 = vmatprep.subr.bf16.mxu0 0
    %3505 = vmatpush1.bf16.msra.mxu0 0
    %3506 = vmatprep.subr.bf16.mxu0 0
    %3507 = vmatpush1.bf16.msra.mxu0 0
    %3508 = vmatprep.subr.bf16.mxu0 0
    %3509 = vmatpush1.bf16.msra.mxu0 0
    %3510 = vmatprep.subr.bf16.mxu0 0
    %3511 = vmatpush1.bf16.msra.mxu0 0
    %3512 = vmatprep.subr.bf16.mxu0 0
    %3513 = vmatpush1.bf16.msra.mxu0 0
    %3514 = vmatprep.subr.bf16.mxu0 0
    %3515 = vmatpush1.bf16.msra.mxu0 0
    %3516 = vmatprep.subr.bf16.mxu0 0
    %3517 = vmatpush1.bf16.msra.mxu0 0
    %3518 = vmatprep.subr.bf16.mxu0 0
    %3519 = vmatpush1.bf16.msra.mxu0 0
    %3520 = vmatprep.subr.bf16.mxu0 0
    %3521 = vmatpush1.bf16.msra.mxu0 0
    %3522 = vmatprep.subr.bf16.mxu0 0
    %3523 = vmatpush1.bf16.msra.mxu0 0
    %3524 = vmatprep.subr.bf16.mxu0 0
    %3525 = vmatpush1.bf16.msra.mxu0 0
    %3526 = vmatprep.subr.bf16.mxu0 0
    %3527 = vmatpush1.bf16.msra.mxu0 0
    %3528 = vmatprep.mubr.bf16.mxu0 0
    %3529 = vmatmul.mubr.bf16.gmra.mrb[0].mxu0 %v317
    %v3530 = vpop.f32.mrb[0].mxu0
    %v3531 = vadd.f32 %v76, %v3530
    %v3532 = vpop.f32.mrb[0].mxu0
    %v3533 = vpop.f32.mrb[0].mxu0
    %v3534 = vadd.f32 %v81, %v3533
    %v3535 = vpop.f32.mrb[0].mxu0
    %3536 = vmatprep.mubr.bf16.mxu0 0
    %3537 = vmatmul.mubr.bf16.gmra.mrb[0].mxu0 %v320
    %v3538 = vpop.f32.mrb[0].mxu0
    %v3539 = vadd.f32 %v86, %v3538
    %v3540 = vpop.f32.mrb[0].mxu0
    %v3541 = vpop.f32.mrb[0].mxu0
    %v3542 = vadd.f32 %v91, %v3541
    %v3543 = vpop.f32.mrb[0].mxu0
    %3544 = vmatprep.mubr.bf16.mxu0 0
    %3545 = vmatmul.mubr.bf16.gmra.mrb[0].mxu0 %v323
    %v3546 = vpop.f32.mrb[0].mxu0
    %v3547 = vadd.f32 %v96, %v3546
    %v3548 = vpop.f32.mrb[0].mxu0
    %v3549 = vpop.f32.mrb[0].mxu0
    %v3550 = vadd.f32 %v101, %v3549
    %v3551 = vpop.f32.mrb[0].mxu0
    %3552 = vmatprep.mubr.bf16.mxu0 0
    %3553 = vmatmul.mubr.bf16.gmra.mrb[0].mxu0 %v326
    %v3554 = vpop.f32.mrb[0].mxu0
    %v3555 = vadd.f32 %v106, %v3554
    %v3556 = vpop.f32.mrb[0].mxu0
    %v3557 = vpop.f32.mrb[0].mxu0
    %v3558 = vadd.f32 %v111, %v3557
    %v3559 = vpop.f32.mrb[0].mxu0
    %3560 = vmatprep.mubr.bf16.mxu0 0
    %3561 = vmatmul.mubr.bf16.gmra.mrb[0].mxu0 %v329
    %v3562 = vpop.f32.mrb[0].mxu0
    %v3563 = vadd.f32 %v116, %v3562
    %v3564 = vpop.f32.mrb[0].mxu0
    %v3565 = vpop.f32.mrb[0].mxu0
    %v3566 = vadd.f32 %v121, %v3565
    %v3567 = vpop.f32.mrb[0].mxu0
    %3568 = vmatprep.mubr.bf16.mxu0 0
    %3569 = vmatmul.mubr.bf16.gmra.mrb[0].mxu0 %v332
    %v3570 = vpop.f32.mrb[0].mxu0
    %v3571 = vadd.f32 %v126, %v3570
    %v3572 = vpop.f32.mrb[0].mxu0
    %v3573 = vpop.f32.mrb[0].mxu0
    %v3574 = vadd.f32 %v131, %v3573
    %v3575 = vpop.f32.mrb[0].mxu0
    %3576 = vmatprep.mubr.bf16.mxu0 0
    %3577 = vmatmul.mubr.bf16.gmra.mrb[0].mxu0 %v335
    %v3578 = vpop.f32.mrb[0].mxu0
    %v3579 = vadd.f32 %v136, %v3578
    %v3580 = vpop.f32.mrb[0].mxu0
    %v3581 = vpop.f32.mrb[0].mxu0
    %v3582 = vadd.f32 %v141, %v3581
    %v3583 = vpop.f32.mrb[0].mxu0
    %3584 = vmatprep.mubr.bf16.mxu0 0
    %3585 = vmatmul.mubr.bf16.gmra.mrb[0].mxu0 %v338
    %v3586 = vpop.f32.mrb[0].mxu0
    %v3587 = vadd.f32 %v146, %v3586
    %v3588 = vpop.f32.mrb[0].mxu0
    %v3589 = vpop.f32.mrb[0].mxu0
    %v3590 = vadd.f32 %v151, %v3589
    %v3591 = vpop.f32.mrb[0].mxu0
    %3592 = vdwg.mxu0
    %v3593 = vxor.u32 %v3531, 2147483648
    %v3594 = vxor.u32 %v3534, 2147483648
    %v3595 = vxor.u32 %v3539, 2147483648
    %v3596 = vxor.u32 %v3542, 2147483648
    %v3597 = vxor.u32 %v3547, 2147483648
    %v3598 = vxor.u32 %v3550, 2147483648
    %v3599 = vxor.u32 %v3555, 2147483648
    %v3600 = vxor.u32 %v3558, 2147483648
    %v3601 = vmul.f32 %v3593, 1.442695
    %v3602 = vpow.pop %v3601
    %v3603 = vmul.f32 %v3594, 1.442695
    %v3604 = vpow.pop %v3603
    %v3605 = vmul.f32 %v3595, 1.442695
    %v3606 = vpow.pop %v3605
    %v3607 = vmul.f32 %v3596, 1.442695
    %v3608 = vpow.pop %v3607
    %v3609 = vmul.f32 %v3597, 1.442695
    %v3610 = vpow.pop %v3609
    %v3611 = vmul.f32 %v3598, 1.442695
    %v3612 = vpow.pop %v3611
    %v3613 = vmul.f32 %v3599, 1.442695
    %v3614 = vpow.pop %v3613
    %v3615 = vmul.f32 %v3600, 1.442695
    %v3616 = vpow.pop %v3615
    %v3617 = vadd.f32 %v3602, 1.0
    %v3618 = vadd.f32 %v3604, 1.0
    %v3619 = vadd.f32 %v3606, 1.0
    %v3620 = vadd.f32 %v3608, 1.0
    %v3621 = vadd.f32 %v3610, 1.0
    %v3622 = vadd.f32 %v3612, 1.0
    %v3623 = vadd.f32 %v3614, 1.0
    %v3624 = vadd.f32 %v3616, 1.0
    %v3625 = vrcp.pop %v3617
    %v3626 = vmul.f32 1.0, %v3625
    %v3627 = vrcp.pop %v3618
    %v3628 = vmul.f32 1.0, %v3627
    %v3629 = vrcp.pop %v3619
    %v3630 = vmul.f32 1.0, %v3629
    %v3631 = vrcp.pop %v3620
    %v3632 = vmul.f32 1.0, %v3631
    %v3633 = vrcp.pop %v3621
    %v3634 = vmul.f32 1.0, %v3633
    %v3635 = vrcp.pop %v3622
    %v3636 = vmul.f32 1.0, %v3635
    %v3637 = vrcp.pop %v3623
    %v3638 = vmul.f32 1.0, %v3637
    %v3639 = vrcp.pop %v3624
    %v3640 = vmul.f32 1.0, %v3639
    %v3641 = vtanh.pop %v3563
    %v3642 = vtanh.pop %v3566
    %v3643 = vtanh.pop %v3571
    %v3644 = vtanh.pop %v3574
    %v3645 = vxor.u32 %v3579, 2147483648
    %v3646 = vxor.u32 %v3582, 2147483648
    %v3647 = vxor.u32 %v3587, 2147483648
    %v3648 = vxor.u32 %v3590, 2147483648
    %v3649 = vmul.f32 %v3645, 1.442695
    %v3650 = vpow.pop %v3649
    %v3651 = vmul.f32 %v3646, 1.442695
    %v3652 = vpow.pop %v3651
    %v3653 = vmul.f32 %v3647, 1.442695
    %v3654 = vpow.pop %v3653
    %v3655 = vmul.f32 %v3648, 1.442695
    %v3656 = vpow.pop %v3655
    %v3657 = vadd.f32 %v3650, 1.0
    %v3658 = vadd.f32 %v3652, 1.0
    %v3659 = vadd.f32 %v3654, 1.0
    %v3660 = vadd.f32 %v3656, 1.0
    %v3661 = vrcp.pop %v3657
    %v3662 = vmul.f32 1.0, %v3661
    %v3663 = vrcp.pop %v3658
    %v3664 = vmul.f32 1.0, %v3663
    %v3665 = vrcp.pop %v3659
    %v3666 = vmul.f32 1.0, %v3665
    %v3667 = vrcp.pop %v3660
    %v3668 = vmul.f32 1.0, %v3667
    %v3669 = vmul.f32 %v3634, %v3460
    %v3670 = vmul.f32 %v3636, %v3461
    %v3671 = vmul.f32 %v3638, %v3462
    %v3672 = vmul.f32 %v3640, %v3463
    %v3673 = vmul.f32 %v3626, %v3641
    %v3674 = vmul.f32 %v3628, %v3642
    %v3675 = vmul.f32 %v3630, %v3643
    %v3676 = vmul.f32 %v3632, %v3644
    %v3677 = vadd.f32 %v3669, %v3673
    %v3678 = vadd.f32 %v3670, %v3674
    %v3679 = vadd.f32 %v3671, %v3675
    %v3680 = vadd.f32 %v3672, %v3676
    %v3681 = vtanh.pop %v3677
    %v3682 = vtanh.pop %v3678
    %v3683 = vtanh.pop %v3679
    %v3684 = vtanh.pop %v3680
    %v3685 = vmul.f32 %v3662, %v3681
    %v3686 = vmul.f32 %v3664, %v3682
    %v3687 = vmul.f32 %v3666, %v3683
    %v3688 = vmul.f32 %v3668, %v3684
    %v3689 = vpack.c.bf16 %v3465, %v3464
    %v3690 = vpack.c.bf16 %v3467, %v3466
    %v3695 = vunpack.c.l.b16 %v3478
    %v3696 = vunpack.c.l.b16 %v3479
    %v3697 = vunpack.c.l.b16 %v3480
    %v3698 = vunpack.c.l.b16 %v3481
    %v3699 = vpack.c.b16 %v3696, %v3695
    %v3700 = vpack.c.b16 %v3698, %v3697
    %3703 = vmatprep.subr.bf16.mxu0 0
    %3704 = vmatpush1.bf16.msra.mxu0 %v3699
    %3705 = vmatprep.subr.bf16.mxu0 0
    %3706 = vmatpush1.bf16.msra.mxu0 %v3700
    %3707 = vmatprep.subr.bf16.mxu0 0
    %3708 = vmatpush1.bf16.msra.mxu0 %v3689
    %3709 = vmatprep.subr.bf16.mxu0 0
    %3710 = vmatpush1.bf16.msra.mxu0 %v3690
    %3711 = vmatprep.subr.bf16.mxu0 0
    %3712 = vmatpush1.bf16.msra.mxu0 0
    %3713 = vmatprep.subr.bf16.mxu0 0
    %3714 = vmatpush1.bf16.msra.mxu0 0
    %3715 = vmatprep.subr.bf16.mxu0 0
    %3716 = vmatpush1.bf16.msra.mxu0 0
    %3717 = vmatprep.subr.bf16.mxu0 0
    %3718 = vmatpush1.bf16.msra.mxu0 0
    %3719 = vmatprep.subr.bf16.mxu0 0
    %3720 = vmatpush1.bf16.msra.mxu0 0
    %3721 = vmatprep.subr.bf16.mxu0 0
    %3722 = vmatpush1.bf16.msra.mxu0 0
    %3723 = vmatprep.subr.bf16.mxu0 0
    %3724 = vmatpush1.bf16.msra.mxu0 0
    %3725 = vmatprep.subr.bf16.mxu0 0
    %3726 = vmatpush1.bf16.msra.mxu0 0
    %3727 = vmatprep.subr.bf16.mxu0 0
    %3728 = vmatpush1.bf16.msra.mxu0 0
    %3729 = vmatprep.subr.bf16.mxu0 0
    %3730 = vmatpush1.bf16.msra.mxu0 0
    %3731 = vmatprep.subr.bf16.mxu0 0
    %3732 = vmatpush1.bf16.msra.mxu0 0
    %3733 = vmatprep.subr.bf16.mxu0 0
    %3734 = vmatpush1.bf16.msra.mxu0 0
    %3735 = vmatprep.mubr.bf16.mxu0 0
    %3736 = vmatmul.mubr.bf16.gmra.mrb[0].mxu0 %v586
    %v3737 = vpop.f32.mrb[0].mxu0
    %v3738 = vadd.f32 %v172, %v3737
    %v3739 = vpop.f32.mrb[0].mxu0
    %v3740 = vpop.f32.mrb[0].mxu0
    %v3741 = vadd.f32 %v177, %v3740
    %v3742 = vpop.f32.mrb[0].mxu0
    %3743 = vmatprep.mubr.bf16.mxu0 0
    %3744 = vmatmul.mubr.bf16.gmra.mrb[0].mxu0 %v589
    %v3745 = vpop.f32.mrb[0].mxu0
    %v3746 = vadd.f32 %v182, %v3745
    %v3747 = vpop.f32.mrb[0].mxu0
    %v3748 = vpop.f32.mrb[0].mxu0
    %v3749 = vadd.f32 %v187, %v3748
    %v3750 = vpop.f32.mrb[0].mxu0
    %3751 = vmatprep.mubr.bf16.mxu0 0
    %3752 = vmatmul.mubr.bf16.gmra.mrb[0].mxu0 %v592
    %v3753 = vpop.f32.mrb[0].mxu0
    %v3754 = vadd.f32 %v192, %v3753
    %v3755 = vpop.f32.mrb[0].mxu0
    %v3756 = vpop.f32.mrb[0].mxu0
    %v3757 = vadd.f32 %v197, %v3756
    %v3758 = vpop.f32.mrb[0].mxu0
    %3759 = vmatprep.mubr.bf16.mxu0 0
    %3760 = vmatmul.mubr.bf16.gmra.mrb[0].mxu0 %v595
    %v3761 = vpop.f32.mrb[0].mxu0
    %v3762 = vadd.f32 %v202, %v3761
    %v3763 = vpop.f32.mrb[0].mxu0
    %v3764 = vpop.f32.mrb[0].mxu0
    %v3765 = vadd.f32 %v207, %v3764
    %v3766 = vpop.f32.mrb[0].mxu0
    %3767 = vmatprep.mubr.bf16.mxu0 0
    %3768 = vmatmul.mubr.bf16.gmra.mrb[0].mxu0 %v598
    %v3769 = vpop.f32.mrb[0].mxu0
    %v3770 = vadd.f32 %v212, %v3769
    %v3771 = vpop.f32.mrb[0].mxu0
    %v3772 = vpop.f32.mrb[0].mxu0
    %v3773 = vadd.f32 %v217, %v3772
    %v3774 = vpop.f32.mrb[0].mxu0
    %3775 = vmatprep.mubr.bf16.mxu0 0
    %3776 = vmatmul.mubr.bf16.gmra.mrb[0].mxu0 %v601
    %v3777 = vpop.f32.mrb[0].mxu0
    %v3778 = vadd.f32 %v222, %v3777
    %v3779 = vpop.f32.mrb[0].mxu0
    %v3780 = vpop.f32.mrb[0].mxu0
    %v3781 = vadd.f32 %v227, %v3780
    %v3782 = vpop.f32.mrb[0].mxu0
    %3783 = vmatprep.mubr.bf16.mxu0 0
    %3784 = vmatmul.mubr.bf16.gmra.mrb[0].mxu0 %v604
    %v3785 = vpop.f32.mrb[0].mxu0
    %v3786 = vadd.f32 %v232, %v3785
    %v3787 = vpop.f32.mrb[0].mxu0
    %v3788 = vpop.f32.mrb[0].mxu0
    %v3789 = vadd.f32 %v237, %v3788
    %v3790 = vpop.f32.mrb[0].mxu0
    %3791 = vmatprep.mubr.bf16.mxu0 0
    %3792 = vmatmul.mubr.bf16.gmra.mrb[0].mxu0 %v607
    %v3793 = vpop.f32.mrb[0].mxu0
    %v3794 = vadd.f32 %v242, %v3793
    %v3795 = vpop.f32.mrb[0].mxu0
    %v3796 = vpop.f32.mrb[0].mxu0
    %v3797 = vadd.f32 %v247, %v3796
    %v3798 = vpop.f32.mrb[0].mxu0
    %3799 = vdwg.mxu0
    %v3800 = vxor.u32 %v3738, 2147483648
    %v3801 = vxor.u32 %v3741, 2147483648
    %v3802 = vxor.u32 %v3746, 2147483648
    %v3803 = vxor.u32 %v3749, 2147483648
    %v3804 = vxor.u32 %v3754, 2147483648
    %v3805 = vxor.u32 %v3757, 2147483648
    %v3806 = vxor.u32 %v3762, 2147483648
    %v3807 = vxor.u32 %v3765, 2147483648
    %v3808 = vmul.f32 %v3800, 1.442695
    %v3809 = vpow.pop %v3808
    %v3810 = vmul.f32 %v3801, 1.442695
    %v3811 = vpow.pop %v3810
    %v3812 = vmul.f32 %v3802, 1.442695
    %v3813 = vpow.pop %v3812
    %v3814 = vmul.f32 %v3803, 1.442695
    %v3815 = vpow.pop %v3814
    %v3816 = vmul.f32 %v3804, 1.442695
    %v3817 = vpow.pop %v3816
    %v3818 = vmul.f32 %v3805, 1.442695
    %v3819 = vpow.pop %v3818
    %v3820 = vmul.f32 %v3806, 1.442695
    %v3821 = vpow.pop %v3820
    %v3822 = vmul.f32 %v3807, 1.442695
    %v3823 = vpow.pop %v3822
    %v3824 = vadd.f32 %v3809, 1.0
    %v3825 = vadd.f32 %v3811, 1.0
    %v3826 = vadd.f32 %v3813, 1.0
    %v3827 = vadd.f32 %v3815, 1.0
    %v3828 = vadd.f32 %v3817, 1.0
    %v3829 = vadd.f32 %v3819, 1.0
    %v3830 = vadd.f32 %v3821, 1.0
    %v3831 = vadd.f32 %v3823, 1.0
    %v3832 = vrcp.pop %v3824
    %v3833 = vmul.f32 1.0, %v3832
    %v3834 = vrcp.pop %v3825
    %v3835 = vmul.f32 1.0, %v3834
    %v3836 = vrcp.pop %v3826
    %v3837 = vmul.f32 1.0, %v3836
    %v3838 = vrcp.pop %v3827
    %v3839 = vmul.f32 1.0, %v3838
    %v3840 = vrcp.pop %v3828
    %v3841 = vmul.f32 1.0, %v3840
    %v3842 = vrcp.pop %v3829
    %v3843 = vmul.f32 1.0, %v3842
    %v3844 = vrcp.pop %v3830
    %v3845 = vmul.f32 1.0, %v3844
    %v3846 = vrcp.pop %v3831
    %v3847 = vmul.f32 1.0, %v3846
    %v3848 = vtanh.pop %v3770
    %v3849 = vtanh.pop %v3773
    %v3850 = vtanh.pop %v3778
    %v3851 = vtanh.pop %v3781
    %v3852 = vxor.u32 %v3786, 2147483648
    %v3853 = vxor.u32 %v3789, 2147483648
    %v3854 = vxor.u32 %v3794, 2147483648
    %v3855 = vxor.u32 %v3797, 2147483648
    %v3856 = vmul.f32 %v3852, 1.442695
    %v3857 = vpow.pop %v3856
    %v3858 = vmul.f32 %v3853, 1.442695
    %v3859 = vpow.pop %v3858
    %v3860 = vmul.f32 %v3854, 1.442695
    %v3861 = vpow.pop %v3860
    %v3862 = vmul.f32 %v3855, 1.442695
    %v3863 = vpow.pop %v3862
    %v3864 = vadd.f32 %v3857, 1.0
    %v3865 = vadd.f32 %v3859, 1.0
    %v3866 = vadd.f32 %v3861, 1.0
    %v3867 = vadd.f32 %v3863, 1.0
    %v3868 = vrcp.pop %v3864
    %v3869 = vmul.f32 1.0, %v3868
    %v3870 = vrcp.pop %v3865
    %v3871 = vmul.f32 1.0, %v3870
    %v3872 = vrcp.pop %v3866
    %v3873 = vmul.f32 1.0, %v3872
    %v3874 = vrcp.pop %v3867
    %v3875 = vmul.f32 1.0, %v3874
    %v3876 = vmul.f32 %v3841, %v3468
    %v3877 = vmul.f32 %v3843, %v3469
    %v3878 = vmul.f32 %v3845, %v3470
    %v3879 = vmul.f32 %v3847, %v3471
    %v3880 = vmul.f32 %v3833, %v3848
    %v3881 = vmul.f32 %v3835, %v3849
    %v3882 = vmul.f32 %v3837, %v3850
    %v3883 = vmul.f32 %v3839, %v3851
    %v3884 = vadd.f32 %v3876, %v3880
    %v3885 = vadd.f32 %v3877, %v3881
    %v3886 = vadd.f32 %v3878, %v3882
    %v3887 = vadd.f32 %v3879, %v3883
    %v3888 = vtanh.pop %v3884
    %v3889 = vtanh.pop %v3885
    %v3890 = vtanh.pop %v3886
    %v3891 = vtanh.pop %v3887
    %v3892 = vmul.f32 %v3869, %v3888
    %v3893 = vmul.f32 %v3871, %v3889
    %v3894 = vmul.f32 %v3873, %v3890
    %v3895 = vmul.f32 %v3875, %v3891
    %vm3896 = vcmp.gt.s32.totalorder %v253, 7
    %vm3897 = vcmp.gt.s32.totalorder %v253, 8
    %v3898 = vsel %vm3896, %v3685, %v3456
    %v3899 = vsel %vm3896, %v3686, %v3457
    %v3900 = vsel %vm3896, %v3687, %v3458
    %v3901 = vsel %vm3896, %v3688, %v3459
    %v3902 = vsel %vm3896, %v3677, %v3460
    %v3903 = vsel %vm3896, %v3678, %v3461
    %v3904 = vsel %vm3896, %v3679, %v3462
    %v3905 = vsel %vm3896, %v3680, %v3463
    %v3906 = vsel %vm3897, %v3892, %v3464
    %v3907 = vsel %vm3897, %v3893, %v3465
    %v3908 = vsel %vm3897, %v3894, %v3466
    %v3909 = vsel %vm3897, %v3895, %v3467
    %v3910 = vsel %vm3897, %v3884, %v3468
    %v3911 = vsel %vm3897, %v3885, %v3469
    %v3912 = vsel %vm3897, %v3886, %v3470
    %v3913 = vsel %vm3897, %v3887, %v3471
    %v3914 = vpack.c.bf16 %v3899, %v3898
    %v3915 = vpack.c.bf16 %v3901, %v3900
    %3916 = vmatprep.subr.bf16.mxu0 0
    %3917 = vmatpush1.bf16.msra.mxu0 %v3699
    %3918 = vmatprep.subr.bf16.mxu0 0
    %3919 = vmatpush1.bf16.msra.mxu0 %v3700
    %3920 = vmatprep.subr.bf16.mxu0 0
    %3921 = vmatpush1.bf16.msra.mxu0 %v3914
    %3922 = vmatprep.subr.bf16.mxu0 0
    %3923 = vmatpush1.bf16.msra.mxu0 %v3915
    %3924 = vmatprep.subr.bf16.mxu0 0
    %3925 = vmatpush1.bf16.msra.mxu0 0
    %3926 = vmatprep.subr.bf16.mxu0 0
    %3927 = vmatpush1.bf16.msra.mxu0 0
    %3928 = vmatprep.subr.bf16.mxu0 0
    %3929 = vmatpush1.bf16.msra.mxu0 0
    %3930 = vmatprep.subr.bf16.mxu0 0
    %3931 = vmatpush1.bf16.msra.mxu0 0
    %3932 = vmatprep.subr.bf16.mxu0 0
    %3933 = vmatpush1.bf16.msra.mxu0 0
    %3934 = vmatprep.subr.bf16.mxu0 0
    %3935 = vmatpush1.bf16.msra.mxu0 0
    %3936 = vmatprep.subr.bf16.mxu0 0
    %3937 = vmatpush1.bf16.msra.mxu0 0
    %3938 = vmatprep.subr.bf16.mxu0 0
    %3939 = vmatpush1.bf16.msra.mxu0 0
    %3940 = vmatprep.subr.bf16.mxu0 0
    %3941 = vmatpush1.bf16.msra.mxu0 0
    %3942 = vmatprep.subr.bf16.mxu0 0
    %3943 = vmatpush1.bf16.msra.mxu0 0
    %3944 = vmatprep.subr.bf16.mxu0 0
    %3945 = vmatpush1.bf16.msra.mxu0 0
    %3946 = vmatprep.subr.bf16.mxu0 0
    %3947 = vmatpush1.bf16.msra.mxu0 0
    %3948 = vmatprep.mubr.bf16.mxu0 0
    %3949 = vmatmul.mubr.bf16.gmra.mrb[0].mxu0 %v317
    %v3950 = vpop.f32.mrb[0].mxu0
    %v3951 = vadd.f32 %v76, %v3950
    %v3952 = vpop.f32.mrb[0].mxu0
    %v3953 = vpop.f32.mrb[0].mxu0
    %v3954 = vadd.f32 %v81, %v3953
    %v3955 = vpop.f32.mrb[0].mxu0
    %3956 = vmatprep.mubr.bf16.mxu0 0
    %3957 = vmatmul.mubr.bf16.gmra.mrb[0].mxu0 %v320
    %v3958 = vpop.f32.mrb[0].mxu0
    %v3959 = vadd.f32 %v86, %v3958
    %v3960 = vpop.f32.mrb[0].mxu0
    %v3961 = vpop.f32.mrb[0].mxu0
    %v3962 = vadd.f32 %v91, %v3961
    %v3963 = vpop.f32.mrb[0].mxu0
    %3964 = vmatprep.mubr.bf16.mxu0 0
    %3965 = vmatmul.mubr.bf16.gmra.mrb[0].mxu0 %v323
    %v3966 = vpop.f32.mrb[0].mxu0
    %v3967 = vadd.f32 %v96, %v3966
    %v3968 = vpop.f32.mrb[0].mxu0
    %v3969 = vpop.f32.mrb[0].mxu0
    %v3970 = vadd.f32 %v101, %v3969
    %v3971 = vpop.f32.mrb[0].mxu0
    %3972 = vmatprep.mubr.bf16.mxu0 0
    %3973 = vmatmul.mubr.bf16.gmra.mrb[0].mxu0 %v326
    %v3974 = vpop.f32.mrb[0].mxu0
    %v3975 = vadd.f32 %v106, %v3974
    %v3976 = vpop.f32.mrb[0].mxu0
    %v3977 = vpop.f32.mrb[0].mxu0
    %v3978 = vadd.f32 %v111, %v3977
    %v3979 = vpop.f32.mrb[0].mxu0
    %3980 = vmatprep.mubr.bf16.mxu0 0
    %3981 = vmatmul.mubr.bf16.gmra.mrb[0].mxu0 %v329
    %v3982 = vpop.f32.mrb[0].mxu0
    %v3983 = vadd.f32 %v116, %v3982
    %v3984 = vpop.f32.mrb[0].mxu0
    %v3985 = vpop.f32.mrb[0].mxu0
    %v3986 = vadd.f32 %v121, %v3985
    %v3987 = vpop.f32.mrb[0].mxu0
    %3988 = vmatprep.mubr.bf16.mxu0 0
    %3989 = vmatmul.mubr.bf16.gmra.mrb[0].mxu0 %v332
    %v3990 = vpop.f32.mrb[0].mxu0
    %v3991 = vadd.f32 %v126, %v3990
    %v3992 = vpop.f32.mrb[0].mxu0
    %v3993 = vpop.f32.mrb[0].mxu0
    %v3994 = vadd.f32 %v131, %v3993
    %v3995 = vpop.f32.mrb[0].mxu0
    %3996 = vmatprep.mubr.bf16.mxu0 0
    %3997 = vmatmul.mubr.bf16.gmra.mrb[0].mxu0 %v335
    %v3998 = vpop.f32.mrb[0].mxu0
    %v3999 = vadd.f32 %v136, %v3998
    %v4000 = vpop.f32.mrb[0].mxu0
    %v4001 = vpop.f32.mrb[0].mxu0
    %v4002 = vadd.f32 %v141, %v4001
    %v4003 = vpop.f32.mrb[0].mxu0
    %4004 = vmatprep.mubr.bf16.mxu0 0
    %4005 = vmatmul.mubr.bf16.gmra.mrb[0].mxu0 %v338
    %v4006 = vpop.f32.mrb[0].mxu0
    %v4007 = vadd.f32 %v146, %v4006
    %v4008 = vpop.f32.mrb[0].mxu0
    %v4009 = vpop.f32.mrb[0].mxu0
    %v4010 = vadd.f32 %v151, %v4009
    %v4011 = vpop.f32.mrb[0].mxu0
    %4012 = vdwg.mxu0
    %v4013 = vxor.u32 %v3951, 2147483648
    %v4014 = vxor.u32 %v3954, 2147483648
    %v4015 = vxor.u32 %v3959, 2147483648
    %v4016 = vxor.u32 %v3962, 2147483648
    %v4017 = vxor.u32 %v3967, 2147483648
    %v4018 = vxor.u32 %v3970, 2147483648
    %v4019 = vxor.u32 %v3975, 2147483648
    %v4020 = vxor.u32 %v3978, 2147483648
    %v4021 = vmul.f32 %v4013, 1.442695
    %v4022 = vpow.pop %v4021
    %v4023 = vmul.f32 %v4014, 1.442695
    %v4024 = vpow.pop %v4023
    %v4025 = vmul.f32 %v4015, 1.442695
    %v4026 = vpow.pop %v4025
    %v4027 = vmul.f32 %v4016, 1.442695
    %v4028 = vpow.pop %v4027
    %v4029 = vmul.f32 %v4017, 1.442695
    %v4030 = vpow.pop %v4029
    %v4031 = vmul.f32 %v4018, 1.442695
    %v4032 = vpow.pop %v4031
    %v4033 = vmul.f32 %v4019, 1.442695
    %v4034 = vpow.pop %v4033
    %v4035 = vmul.f32 %v4020, 1.442695
    %v4036 = vpow.pop %v4035
    %v4037 = vadd.f32 %v4022, 1.0
    %v4038 = vadd.f32 %v4024, 1.0
    %v4039 = vadd.f32 %v4026, 1.0
    %v4040 = vadd.f32 %v4028, 1.0
    %v4041 = vadd.f32 %v4030, 1.0
    %v4042 = vadd.f32 %v4032, 1.0
    %v4043 = vadd.f32 %v4034, 1.0
    %v4044 = vadd.f32 %v4036, 1.0
    %v4045 = vrcp.pop %v4037
    %v4046 = vmul.f32 1.0, %v4045
    %v4047 = vrcp.pop %v4038
    %v4048 = vmul.f32 1.0, %v4047
    %v4049 = vrcp.pop %v4039
    %v4050 = vmul.f32 1.0, %v4049
    %v4051 = vrcp.pop %v4040
    %v4052 = vmul.f32 1.0, %v4051
    %v4053 = vrcp.pop %v4041
    %v4054 = vmul.f32 1.0, %v4053
    %v4055 = vrcp.pop %v4042
    %v4056 = vmul.f32 1.0, %v4055
    %v4057 = vrcp.pop %v4043
    %v4058 = vmul.f32 1.0, %v4057
    %v4059 = vrcp.pop %v4044
    %v4060 = vmul.f32 1.0, %v4059
    %v4061 = vtanh.pop %v3983
    %v4062 = vtanh.pop %v3986
    %v4063 = vtanh.pop %v3991
    %v4064 = vtanh.pop %v3994
    %v4065 = vxor.u32 %v3999, 2147483648
    %v4066 = vxor.u32 %v4002, 2147483648
    %v4067 = vxor.u32 %v4007, 2147483648
    %v4068 = vxor.u32 %v4010, 2147483648
    %v4069 = vmul.f32 %v4065, 1.442695
    %v4070 = vpow.pop %v4069
    %v4071 = vmul.f32 %v4066, 1.442695
    %v4072 = vpow.pop %v4071
    %v4073 = vmul.f32 %v4067, 1.442695
    %v4074 = vpow.pop %v4073
    %v4075 = vmul.f32 %v4068, 1.442695
    %v4076 = vpow.pop %v4075
    %v4077 = vadd.f32 %v4070, 1.0
    %v4078 = vadd.f32 %v4072, 1.0
    %v4079 = vadd.f32 %v4074, 1.0
    %v4080 = vadd.f32 %v4076, 1.0
    %v4081 = vrcp.pop %v4077
    %v4082 = vmul.f32 1.0, %v4081
    %v4083 = vrcp.pop %v4078
    %v4084 = vmul.f32 1.0, %v4083
    %v4085 = vrcp.pop %v4079
    %v4086 = vmul.f32 1.0, %v4085
    %v4087 = vrcp.pop %v4080
    %v4088 = vmul.f32 1.0, %v4087
    %v4089 = vmul.f32 %v4054, %v3902
    %v4090 = vmul.f32 %v4056, %v3903
    %v4091 = vmul.f32 %v4058, %v3904
    %v4092 = vmul.f32 %v4060, %v3905
    %v4093 = vmul.f32 %v4046, %v4061
    %v4094 = vmul.f32 %v4048, %v4062
    %v4095 = vmul.f32 %v4050, %v4063
    %v4096 = vmul.f32 %v4052, %v4064
    %v4097 = vadd.f32 %v4089, %v4093
    %v4098 = vadd.f32 %v4090, %v4094
    %v4099 = vadd.f32 %v4091, %v4095
    %v4100 = vadd.f32 %v4092, %v4096
    %v4101 = vtanh.pop %v4097
    %v4102 = vtanh.pop %v4098
    %v4103 = vtanh.pop %v4099
    %v4104 = vtanh.pop %v4100
    %v4105 = vmul.f32 %v4082, %v4101
    %v4106 = vmul.f32 %v4084, %v4102
    %v4107 = vmul.f32 %v4086, %v4103
    %v4108 = vmul.f32 %v4088, %v4104
    %v4109 = vpack.c.bf16 %v3907, %v3906
    %v4110 = vpack.c.bf16 %v3909, %v3908
    %4111 = vmatprep.subr.bf16.mxu0 0
    %4112 = vmatpush1.bf16.msra.mxu0 %v3492
    %4113 = vmatprep.subr.bf16.mxu0 0
    %4114 = vmatpush1.bf16.msra.mxu0 %v3493
    %4115 = vmatprep.subr.bf16.mxu0 0
    %4116 = vmatpush1.bf16.msra.mxu0 %v4109
    %4117 = vmatprep.subr.bf16.mxu0 0
    %4118 = vmatpush1.bf16.msra.mxu0 %v4110
    %4119 = vmatprep.subr.bf16.mxu0 0
    %4120 = vmatpush1.bf16.msra.mxu0 0
    %4121 = vmatprep.subr.bf16.mxu0 0
    %4122 = vmatpush1.bf16.msra.mxu0 0
    %4123 = vmatprep.subr.bf16.mxu0 0
    %4124 = vmatpush1.bf16.msra.mxu0 0
    %4125 = vmatprep.subr.bf16.mxu0 0
    %4126 = vmatpush1.bf16.msra.mxu0 0
    %4127 = vmatprep.subr.bf16.mxu0 0
    %4128 = vmatpush1.bf16.msra.mxu0 0
    %4129 = vmatprep.subr.bf16.mxu0 0
    %4130 = vmatpush1.bf16.msra.mxu0 0
    %4131 = vmatprep.subr.bf16.mxu0 0
    %4132 = vmatpush1.bf16.msra.mxu0 0
    %4133 = vmatprep.subr.bf16.mxu0 0
    %4134 = vmatpush1.bf16.msra.mxu0 0
    %4135 = vmatprep.subr.bf16.mxu0 0
    %4136 = vmatpush1.bf16.msra.mxu0 0
    %4137 = vmatprep.subr.bf16.mxu0 0
    %4138 = vmatpush1.bf16.msra.mxu0 0
    %4139 = vmatprep.subr.bf16.mxu0 0
    %4140 = vmatpush1.bf16.msra.mxu0 0
    %4141 = vmatprep.subr.bf16.mxu0 0
    %4142 = vmatpush1.bf16.msra.mxu0 0
    %4143 = vmatprep.mubr.bf16.mxu0 0
    %4144 = vmatmul.mubr.bf16.gmra.mrb[0].mxu0 %v586
    %v4145 = vpop.f32.mrb[0].mxu0
    %v4146 = vadd.f32 %v172, %v4145
    %v4147 = vpop.f32.mrb[0].mxu0
    %v4148 = vpop.f32.mrb[0].mxu0
    %v4149 = vadd.f32 %v177, %v4148
    %v4150 = vpop.f32.mrb[0].mxu0
    %4151 = vmatprep.mubr.bf16.mxu0 0
    %4152 = vmatmul.mubr.bf16.gmra.mrb[0].mxu0 %v589
    %v4153 = vpop.f32.mrb[0].mxu0
    %v4154 = vadd.f32 %v182, %v4153
    %v4155 = vpop.f32.mrb[0].mxu0
    %v4156 = vpop.f32.mrb[0].mxu0
    %v4157 = vadd.f32 %v187, %v4156
    %v4158 = vpop.f32.mrb[0].mxu0
    %4159 = vmatprep.mubr.bf16.mxu0 0
    %4160 = vmatmul.mubr.bf16.gmra.mrb[0].mxu0 %v592
    %v4161 = vpop.f32.mrb[0].mxu0
    %v4162 = vadd.f32 %v192, %v4161
    %v4163 = vpop.f32.mrb[0].mxu0
    %v4164 = vpop.f32.mrb[0].mxu0
    %v4165 = vadd.f32 %v197, %v4164
    %v4166 = vpop.f32.mrb[0].mxu0
    %4167 = vmatprep.mubr.bf16.mxu0 0
    %4168 = vmatmul.mubr.bf16.gmra.mrb[0].mxu0 %v595
    %v4169 = vpop.f32.mrb[0].mxu0
    %v4170 = vadd.f32 %v202, %v4169
    %v4171 = vpop.f32.mrb[0].mxu0
    %v4172 = vpop.f32.mrb[0].mxu0
    %v4173 = vadd.f32 %v207, %v4172
    %v4174 = vpop.f32.mrb[0].mxu0
    %4175 = vmatprep.mubr.bf16.mxu0 0
    %4176 = vmatmul.mubr.bf16.gmra.mrb[0].mxu0 %v598
    %v4177 = vpop.f32.mrb[0].mxu0
    %v4178 = vadd.f32 %v212, %v4177
    %v4179 = vpop.f32.mrb[0].mxu0
    %v4180 = vpop.f32.mrb[0].mxu0
    %v4181 = vadd.f32 %v217, %v4180
    %v4182 = vpop.f32.mrb[0].mxu0
    %4183 = vmatprep.mubr.bf16.mxu0 0
    %4184 = vmatmul.mubr.bf16.gmra.mrb[0].mxu0 %v601
    %v4185 = vpop.f32.mrb[0].mxu0
    %v4186 = vadd.f32 %v222, %v4185
    %v4187 = vpop.f32.mrb[0].mxu0
    %v4188 = vpop.f32.mrb[0].mxu0
    %v4189 = vadd.f32 %v227, %v4188
    %v4190 = vpop.f32.mrb[0].mxu0
    %4191 = vmatprep.mubr.bf16.mxu0 0
    %4192 = vmatmul.mubr.bf16.gmra.mrb[0].mxu0 %v604
    %v4193 = vpop.f32.mrb[0].mxu0
    %v4194 = vadd.f32 %v232, %v4193
    %v4195 = vpop.f32.mrb[0].mxu0
    %v4196 = vpop.f32.mrb[0].mxu0
    %v4197 = vadd.f32 %v237, %v4196
    %v4198 = vpop.f32.mrb[0].mxu0
    %4199 = vmatprep.mubr.bf16.mxu0 0
    %4200 = vmatmul.mubr.bf16.gmra.mrb[0].mxu0 %v607
    %v4201 = vpop.f32.mrb[0].mxu0
    %v4202 = vadd.f32 %v242, %v4201
    %v4203 = vpop.f32.mrb[0].mxu0
    %v4204 = vpop.f32.mrb[0].mxu0
    %v4205 = vadd.f32 %v247, %v4204
    %v4206 = vpop.f32.mrb[0].mxu0
    %4207 = vdwg.mxu0
    %v4208 = vxor.u32 %v4146, 2147483648
    %v4209 = vxor.u32 %v4149, 2147483648
    %v4210 = vxor.u32 %v4154, 2147483648
    %v4211 = vxor.u32 %v4157, 2147483648
    %v4212 = vxor.u32 %v4162, 2147483648
    %v4213 = vxor.u32 %v4165, 2147483648
    %v4214 = vxor.u32 %v4170, 2147483648
    %v4215 = vxor.u32 %v4173, 2147483648
    %v4216 = vmul.f32 %v4208, 1.442695
    %v4217 = vpow.pop %v4216
    %v4218 = vmul.f32 %v4209, 1.442695
    %v4219 = vpow.pop %v4218
    %v4220 = vmul.f32 %v4210, 1.442695
    %v4221 = vpow.pop %v4220
    %v4222 = vmul.f32 %v4211, 1.442695
    %v4223 = vpow.pop %v4222
    %v4224 = vmul.f32 %v4212, 1.442695
    %v4225 = vpow.pop %v4224
    %v4226 = vmul.f32 %v4213, 1.442695
    %v4227 = vpow.pop %v4226
    %v4228 = vmul.f32 %v4214, 1.442695
    %v4229 = vpow.pop %v4228
    %v4230 = vmul.f32 %v4215, 1.442695
    %v4231 = vpow.pop %v4230
    %v4232 = vadd.f32 %v4217, 1.0
    %v4233 = vadd.f32 %v4219, 1.0
    %v4234 = vadd.f32 %v4221, 1.0
    %v4235 = vadd.f32 %v4223, 1.0
    %v4236 = vadd.f32 %v4225, 1.0
    %v4237 = vadd.f32 %v4227, 1.0
    %v4238 = vadd.f32 %v4229, 1.0
    %v4239 = vadd.f32 %v4231, 1.0
    %v4240 = vrcp.pop %v4232
    %v4241 = vmul.f32 1.0, %v4240
    %v4242 = vrcp.pop %v4233
    %v4243 = vmul.f32 1.0, %v4242
    %v4244 = vrcp.pop %v4234
    %v4245 = vmul.f32 1.0, %v4244
    %v4246 = vrcp.pop %v4235
    %v4247 = vmul.f32 1.0, %v4246
    %v4248 = vrcp.pop %v4236
    %v4249 = vmul.f32 1.0, %v4248
    %v4250 = vrcp.pop %v4237
    %v4251 = vmul.f32 1.0, %v4250
    %v4252 = vrcp.pop %v4238
    %v4253 = vmul.f32 1.0, %v4252
    %v4254 = vrcp.pop %v4239
    %v4255 = vmul.f32 1.0, %v4254
    %v4256 = vtanh.pop %v4178
    %v4257 = vtanh.pop %v4181
    %v4258 = vtanh.pop %v4186
    %v4259 = vtanh.pop %v4189
    %v4260 = vxor.u32 %v4194, 2147483648
    %v4261 = vxor.u32 %v4197, 2147483648
    %v4262 = vxor.u32 %v4202, 2147483648
    %v4263 = vxor.u32 %v4205, 2147483648
    %v4264 = vmul.f32 %v4260, 1.442695
    %v4265 = vpow.pop %v4264
    %v4266 = vmul.f32 %v4261, 1.442695
    %v4267 = vpow.pop %v4266
    %v4268 = vmul.f32 %v4262, 1.442695
    %v4269 = vpow.pop %v4268
    %v4270 = vmul.f32 %v4263, 1.442695
    %v4271 = vpow.pop %v4270
    %v4272 = vadd.f32 %v4265, 1.0
    %v4273 = vadd.f32 %v4267, 1.0
    %v4274 = vadd.f32 %v4269, 1.0
    %v4275 = vadd.f32 %v4271, 1.0
    %v4276 = vrcp.pop %v4272
    %v4277 = vmul.f32 1.0, %v4276
    %v4278 = vrcp.pop %v4273
    %v4279 = vmul.f32 1.0, %v4278
    %v4280 = vrcp.pop %v4274
    %v4281 = vmul.f32 1.0, %v4280
    %v4282 = vrcp.pop %v4275
    %v4283 = vmul.f32 1.0, %v4282
    %v4284 = vmul.f32 %v4249, %v3910
    %v4285 = vmul.f32 %v4251, %v3911
    %v4286 = vmul.f32 %v4253, %v3912
    %v4287 = vmul.f32 %v4255, %v3913
    %v4288 = vmul.f32 %v4241, %v4256
    %v4289 = vmul.f32 %v4243, %v4257
    %v4290 = vmul.f32 %v4245, %v4258
    %v4291 = vmul.f32 %v4247, %v4259
    %v4292 = vadd.f32 %v4284, %v4288
    %v4293 = vadd.f32 %v4285, %v4289
    %v4294 = vadd.f32 %v4286, %v4290
    %v4295 = vadd.f32 %v4287, %v4291
    %v4296 = vtanh.pop %v4292
    %v4297 = vtanh.pop %v4293
    %v4298 = vtanh.pop %v4294
    %v4299 = vtanh.pop %v4295
    %v4300 = vmul.f32 %v4277, %v4296
    %v4301 = vmul.f32 %v4279, %v4297
    %v4302 = vmul.f32 %v4281, %v4298
    %v4303 = vmul.f32 %v4283, %v4299
    %v4304 = vsel %vm3897, %v4105, %v3898
    %v4305 = vsel %vm3897, %v4106, %v3899
    %v4306 = vsel %vm3897, %v4107, %v3900
    %v4307 = vsel %vm3897, %v4108, %v3901
    %v4308 = vsel %vm3897, %v4097, %v3902
    %v4309 = vsel %vm3897, %v4098, %v3903
    %v4310 = vsel %vm3897, %v4099, %v3904
    %v4311 = vsel %vm3897, %v4100, %v3905
    %v4312 = vsel %vm3896, %v4300, %v3906
    %v4313 = vsel %vm3896, %v4301, %v3907
    %v4314 = vsel %vm3896, %v4302, %v3908
    %v4315 = vsel %vm3896, %v4303, %v3909
    %v4316 = vsel %vm3896, %v4292, %v3910
    %v4317 = vsel %vm3896, %v4293, %v3911
    %v4318 = vsel %vm3896, %v4294, %v3912
    %v4319 = vsel %vm3896, %v4295, %v3913
    %v4320 = vpack.c.bf16 %v4305, %v4304
    %v4321 = vpack.c.bf16 %v4307, %v4306
    %4322 = vmatprep.subr.bf16.mxu0 0
    %4323 = vmatpush1.bf16.msra.mxu0 %v3257
    %4324 = vmatprep.subr.bf16.mxu0 0
    %4325 = vmatpush1.bf16.msra.mxu0 %v3258
    %4326 = vmatprep.subr.bf16.mxu0 0
    %4327 = vmatpush1.bf16.msra.mxu0 %v4320
    %4328 = vmatprep.subr.bf16.mxu0 0
    %4329 = vmatpush1.bf16.msra.mxu0 %v4321
    %4330 = vmatprep.subr.bf16.mxu0 0
    %4331 = vmatpush1.bf16.msra.mxu0 0
    %4332 = vmatprep.subr.bf16.mxu0 0
    %4333 = vmatpush1.bf16.msra.mxu0 0
    %4334 = vmatprep.subr.bf16.mxu0 0
    %4335 = vmatpush1.bf16.msra.mxu0 0
    %4336 = vmatprep.subr.bf16.mxu0 0
    %4337 = vmatpush1.bf16.msra.mxu0 0
    %4338 = vmatprep.subr.bf16.mxu0 0
    %4339 = vmatpush1.bf16.msra.mxu0 0
    %4340 = vmatprep.subr.bf16.mxu0 0
    %4341 = vmatpush1.bf16.msra.mxu0 0
    %4342 = vmatprep.subr.bf16.mxu0 0
    %4343 = vmatpush1.bf16.msra.mxu0 0
    %4344 = vmatprep.subr.bf16.mxu0 0
    %4345 = vmatpush1.bf16.msra.mxu0 0
    %4346 = vmatprep.subr.bf16.mxu0 0
    %4347 = vmatpush1.bf16.msra.mxu0 0
    %4348 = vmatprep.subr.bf16.mxu0 0
    %4349 = vmatpush1.bf16.msra.mxu0 0
    %4350 = vmatprep.subr.bf16.mxu0 0
    %4351 = vmatpush1.bf16.msra.mxu0 0
    %4352 = vmatprep.subr.bf16.mxu0 0
    %4353 = vmatpush1.bf16.msra.mxu0 0
    %4354 = vmatprep.mubr.bf16.mxu0 0
    %4355 = vmatmul.mubr.bf16.gmra.mrb[0].mxu0 %v317
    %v4356 = vpop.f32.mrb[0].mxu0
    %v4357 = vadd.f32 %v76, %v4356
    %v4358 = vpop.f32.mrb[0].mxu0
    %v4359 = vpop.f32.mrb[0].mxu0
    %v4360 = vadd.f32 %v81, %v4359
    %v4361 = vpop.f32.mrb[0].mxu0
    %4362 = vmatprep.mubr.bf16.mxu0 0
    %4363 = vmatmul.mubr.bf16.gmra.mrb[0].mxu0 %v320
    %v4364 = vpop.f32.mrb[0].mxu0
    %v4365 = vadd.f32 %v86, %v4364
    %v4366 = vpop.f32.mrb[0].mxu0
    %v4367 = vpop.f32.mrb[0].mxu0
    %v4368 = vadd.f32 %v91, %v4367
    %v4369 = vpop.f32.mrb[0].mxu0
    %4370 = vmatprep.mubr.bf16.mxu0 0
    %4371 = vmatmul.mubr.bf16.gmra.mrb[0].mxu0 %v323
    %v4372 = vpop.f32.mrb[0].mxu0
    %v4373 = vadd.f32 %v96, %v4372
    %v4374 = vpop.f32.mrb[0].mxu0
    %v4375 = vpop.f32.mrb[0].mxu0
    %v4376 = vadd.f32 %v101, %v4375
    %v4377 = vpop.f32.mrb[0].mxu0
    %4378 = vmatprep.mubr.bf16.mxu0 0
    %4379 = vmatmul.mubr.bf16.gmra.mrb[0].mxu0 %v326
    %v4380 = vpop.f32.mrb[0].mxu0
    %v4381 = vadd.f32 %v106, %v4380
    %v4382 = vpop.f32.mrb[0].mxu0
    %v4383 = vpop.f32.mrb[0].mxu0
    %v4384 = vadd.f32 %v111, %v4383
    %v4385 = vpop.f32.mrb[0].mxu0
    %4386 = vmatprep.mubr.bf16.mxu0 0
    %4387 = vmatmul.mubr.bf16.gmra.mrb[0].mxu0 %v329
    %v4388 = vpop.f32.mrb[0].mxu0
    %v4389 = vadd.f32 %v116, %v4388
    %v4390 = vpop.f32.mrb[0].mxu0
    %v4391 = vpop.f32.mrb[0].mxu0
    %v4392 = vadd.f32 %v121, %v4391
    %v4393 = vpop.f32.mrb[0].mxu0
    %4394 = vmatprep.mubr.bf16.mxu0 0
    %4395 = vmatmul.mubr.bf16.gmra.mrb[0].mxu0 %v332
    %v4396 = vpop.f32.mrb[0].mxu0
    %v4397 = vadd.f32 %v126, %v4396
    %v4398 = vpop.f32.mrb[0].mxu0
    %v4399 = vpop.f32.mrb[0].mxu0
    %v4400 = vadd.f32 %v131, %v4399
    %v4401 = vpop.f32.mrb[0].mxu0
    %4402 = vmatprep.mubr.bf16.mxu0 0
    %4403 = vmatmul.mubr.bf16.gmra.mrb[0].mxu0 %v335
    %v4404 = vpop.f32.mrb[0].mxu0
    %v4405 = vadd.f32 %v136, %v4404
    %v4406 = vpop.f32.mrb[0].mxu0
    %v4407 = vpop.f32.mrb[0].mxu0
    %v4408 = vadd.f32 %v141, %v4407
    %v4409 = vpop.f32.mrb[0].mxu0
    %4410 = vmatprep.mubr.bf16.mxu0 0
    %4411 = vmatmul.mubr.bf16.gmra.mrb[0].mxu0 %v338
    %v4412 = vpop.f32.mrb[0].mxu0
    %v4413 = vadd.f32 %v146, %v4412
    %v4414 = vpop.f32.mrb[0].mxu0
    %v4415 = vpop.f32.mrb[0].mxu0
    %v4416 = vadd.f32 %v151, %v4415
    %v4417 = vpop.f32.mrb[0].mxu0
    %4418 = vdwg.mxu0
    %v4419 = vxor.u32 %v4357, 2147483648
    %v4420 = vxor.u32 %v4360, 2147483648
    %v4421 = vxor.u32 %v4365, 2147483648
    %v4422 = vxor.u32 %v4368, 2147483648
    %v4423 = vxor.u32 %v4373, 2147483648
    %v4424 = vxor.u32 %v4376, 2147483648
    %v4425 = vxor.u32 %v4381, 2147483648
    %v4426 = vxor.u32 %v4384, 2147483648
    %v4427 = vmul.f32 %v4419, 1.442695
    %v4428 = vpow.pop %v4427
    %v4429 = vmul.f32 %v4420, 1.442695
    %v4430 = vpow.pop %v4429
    %v4431 = vmul.f32 %v4421, 1.442695
    %v4432 = vpow.pop %v4431
    %v4433 = vmul.f32 %v4422, 1.442695
    %v4434 = vpow.pop %v4433
    %v4435 = vmul.f32 %v4423, 1.442695
    %v4436 = vpow.pop %v4435
    %v4437 = vmul.f32 %v4424, 1.442695
    %v4438 = vpow.pop %v4437
    %v4439 = vmul.f32 %v4425, 1.442695
    %v4440 = vpow.pop %v4439
    %v4441 = vmul.f32 %v4426, 1.442695
    %v4442 = vpow.pop %v4441
    %v4443 = vadd.f32 %v4428, 1.0
    %v4444 = vadd.f32 %v4430, 1.0
    %v4445 = vadd.f32 %v4432, 1.0
    %v4446 = vadd.f32 %v4434, 1.0
    %v4447 = vadd.f32 %v4436, 1.0
    %v4448 = vadd.f32 %v4438, 1.0
    %v4449 = vadd.f32 %v4440, 1.0
    %v4450 = vadd.f32 %v4442, 1.0
    %v4451 = vrcp.pop %v4443
    %v4452 = vmul.f32 1.0, %v4451
    %v4453 = vrcp.pop %v4444
    %v4454 = vmul.f32 1.0, %v4453
    %v4455 = vrcp.pop %v4445
    %v4456 = vmul.f32 1.0, %v4455
    %v4457 = vrcp.pop %v4446
    %v4458 = vmul.f32 1.0, %v4457
    %v4459 = vrcp.pop %v4447
    %v4460 = vmul.f32 1.0, %v4459
    %v4461 = vrcp.pop %v4448
    %v4462 = vmul.f32 1.0, %v4461
    %v4463 = vrcp.pop %v4449
    %v4464 = vmul.f32 1.0, %v4463
    %v4465 = vrcp.pop %v4450
    %v4466 = vmul.f32 1.0, %v4465
    %v4467 = vtanh.pop %v4389
    %v4468 = vtanh.pop %v4392
    %v4469 = vtanh.pop %v4397
    %v4470 = vtanh.pop %v4400
    %v4471 = vxor.u32 %v4405, 2147483648
    %v4472 = vxor.u32 %v4408, 2147483648
    %v4473 = vxor.u32 %v4413, 2147483648
    %v4474 = vxor.u32 %v4416, 2147483648
    %v4475 = vmul.f32 %v4471, 1.442695
    %v4476 = vpow.pop %v4475
    %v4477 = vmul.f32 %v4472, 1.442695
    %v4478 = vpow.pop %v4477
    %v4479 = vmul.f32 %v4473, 1.442695
    %v4480 = vpow.pop %v4479
    %v4481 = vmul.f32 %v4474, 1.442695
    %v4482 = vpow.pop %v4481
    %v4483 = vadd.f32 %v4476, 1.0
    %v4484 = vadd.f32 %v4478, 1.0
    %v4485 = vadd.f32 %v4480, 1.0
    %v4486 = vadd.f32 %v4482, 1.0
    %v4487 = vrcp.pop %v4483
    %v4488 = vmul.f32 1.0, %v4487
    %v4489 = vrcp.pop %v4484
    %v4490 = vmul.f32 1.0, %v4489
    %v4491 = vrcp.pop %v4485
    %v4492 = vmul.f32 1.0, %v4491
    %v4493 = vrcp.pop %v4486
    %v4494 = vmul.f32 1.0, %v4493
    %v4495 = vmul.f32 %v4460, %v4308
    %v4496 = vmul.f32 %v4462, %v4309
    %v4497 = vmul.f32 %v4464, %v4310
    %v4498 = vmul.f32 %v4466, %v4311
    %v4499 = vmul.f32 %v4452, %v4467
    %v4500 = vmul.f32 %v4454, %v4468
    %v4501 = vmul.f32 %v4456, %v4469
    %v4502 = vmul.f32 %v4458, %v4470
    %v4503 = vadd.f32 %v4495, %v4499
    %v4504 = vadd.f32 %v4496, %v4500
    %v4505 = vadd.f32 %v4497, %v4501
    %v4506 = vadd.f32 %v4498, %v4502
    %v4507 = vtanh.pop %v4503
    %v4508 = vtanh.pop %v4504
    %v4509 = vtanh.pop %v4505
    %v4510 = vtanh.pop %v4506
    %v4511 = vmul.f32 %v4488, %v4507
    %v4512 = vmul.f32 %v4490, %v4508
    %v4513 = vmul.f32 %v4492, %v4509
    %v4514 = vmul.f32 %v4494, %v4510
    %v4515 = vpack.c.bf16 %v4313, %v4312
    %v4516 = vpack.c.bf16 %v4315, %v4314
    %4517 = vmatprep.subr.bf16.mxu0 0
    %4518 = vmatpush1.bf16.msra.mxu0 %v3050
    %4519 = vmatprep.subr.bf16.mxu0 0
    %4520 = vmatpush1.bf16.msra.mxu0 %v3051
    %4521 = vmatprep.subr.bf16.mxu0 0
    %4522 = vmatpush1.bf16.msra.mxu0 %v4515
    %4523 = vmatprep.subr.bf16.mxu0 0
    %4524 = vmatpush1.bf16.msra.mxu0 %v4516
    %4525 = vmatprep.subr.bf16.mxu0 0
    %4526 = vmatpush1.bf16.msra.mxu0 0
    %4527 = vmatprep.subr.bf16.mxu0 0
    %4528 = vmatpush1.bf16.msra.mxu0 0
    %4529 = vmatprep.subr.bf16.mxu0 0
    %4530 = vmatpush1.bf16.msra.mxu0 0
    %4531 = vmatprep.subr.bf16.mxu0 0
    %4532 = vmatpush1.bf16.msra.mxu0 0
    %4533 = vmatprep.subr.bf16.mxu0 0
    %4534 = vmatpush1.bf16.msra.mxu0 0
    %4535 = vmatprep.subr.bf16.mxu0 0
    %4536 = vmatpush1.bf16.msra.mxu0 0
    %4537 = vmatprep.subr.bf16.mxu0 0
    %4538 = vmatpush1.bf16.msra.mxu0 0
    %4539 = vmatprep.subr.bf16.mxu0 0
    %4540 = vmatpush1.bf16.msra.mxu0 0
    %4541 = vmatprep.subr.bf16.mxu0 0
    %4542 = vmatpush1.bf16.msra.mxu0 0
    %4543 = vmatprep.subr.bf16.mxu0 0
    %4544 = vmatpush1.bf16.msra.mxu0 0
    %4545 = vmatprep.subr.bf16.mxu0 0
    %4546 = vmatpush1.bf16.msra.mxu0 0
    %4547 = vmatprep.subr.bf16.mxu0 0
    %4548 = vmatpush1.bf16.msra.mxu0 0
    %4549 = vmatprep.mubr.bf16.mxu0 0
    %4550 = vmatmul.mubr.bf16.gmra.mrb[0].mxu0 %v586
    %v4551 = vpop.f32.mrb[0].mxu0
    %v4552 = vadd.f32 %v172, %v4551
    %v4553 = vpop.f32.mrb[0].mxu0
    %v4554 = vpop.f32.mrb[0].mxu0
    %v4555 = vadd.f32 %v177, %v4554
    %v4556 = vpop.f32.mrb[0].mxu0
    %4557 = vmatprep.mubr.bf16.mxu0 0
    %4558 = vmatmul.mubr.bf16.gmra.mrb[0].mxu0 %v589
    %v4559 = vpop.f32.mrb[0].mxu0
    %v4560 = vadd.f32 %v182, %v4559
    %v4561 = vpop.f32.mrb[0].mxu0
    %v4562 = vpop.f32.mrb[0].mxu0
    %v4563 = vadd.f32 %v187, %v4562
    %v4564 = vpop.f32.mrb[0].mxu0
    %4565 = vmatprep.mubr.bf16.mxu0 0
    %4566 = vmatmul.mubr.bf16.gmra.mrb[0].mxu0 %v592
    %v4567 = vpop.f32.mrb[0].mxu0
    %v4568 = vadd.f32 %v192, %v4567
    %v4569 = vpop.f32.mrb[0].mxu0
    %v4570 = vpop.f32.mrb[0].mxu0
    %v4571 = vadd.f32 %v197, %v4570
    %v4572 = vpop.f32.mrb[0].mxu0
    %4573 = vmatprep.mubr.bf16.mxu0 0
    %4574 = vmatmul.mubr.bf16.gmra.mrb[0].mxu0 %v595
    %v4575 = vpop.f32.mrb[0].mxu0
    %v4576 = vadd.f32 %v202, %v4575
    %v4577 = vpop.f32.mrb[0].mxu0
    %v4578 = vpop.f32.mrb[0].mxu0
    %v4579 = vadd.f32 %v207, %v4578
    %v4580 = vpop.f32.mrb[0].mxu0
    %4581 = vmatprep.mubr.bf16.mxu0 0
    %4582 = vmatmul.mubr.bf16.gmra.mrb[0].mxu0 %v598
    %v4583 = vpop.f32.mrb[0].mxu0
    %v4584 = vadd.f32 %v212, %v4583
    %v4585 = vpop.f32.mrb[0].mxu0
    %v4586 = vpop.f32.mrb[0].mxu0
    %v4587 = vadd.f32 %v217, %v4586
    %v4588 = vpop.f32.mrb[0].mxu0
    %4589 = vmatprep.mubr.bf16.mxu0 0
    %4590 = vmatmul.mubr.bf16.gmra.mrb[0].mxu0 %v601
    %v4591 = vpop.f32.mrb[0].mxu0
    %v4592 = vadd.f32 %v222, %v4591
    %v4593 = vpop.f32.mrb[0].mxu0
    %v4594 = vpop.f32.mrb[0].mxu0
    %v4595 = vadd.f32 %v227, %v4594
    %v4596 = vpop.f32.mrb[0].mxu0
    %4597 = vmatprep.mubr.bf16.mxu0 0
    %4598 = vmatmul.mubr.bf16.gmra.mrb[0].mxu0 %v604
    %v4599 = vpop.f32.mrb[0].mxu0
    %v4600 = vadd.f32 %v232, %v4599
    %v4601 = vpop.f32.mrb[0].mxu0
    %v4602 = vpop.f32.mrb[0].mxu0
    %v4603 = vadd.f32 %v237, %v4602
    %v4604 = vpop.f32.mrb[0].mxu0
    %4605 = vmatprep.mubr.bf16.mxu0 0
    %4606 = vmatmul.mubr.bf16.gmra.mrb[0].mxu0 %v607
    %v4607 = vpop.f32.mrb[0].mxu0
    %v4608 = vadd.f32 %v242, %v4607
    %v4609 = vpop.f32.mrb[0].mxu0
    %v4610 = vpop.f32.mrb[0].mxu0
    %v4611 = vadd.f32 %v247, %v4610
    %v4612 = vpop.f32.mrb[0].mxu0
    %4613 = vdwg.mxu0
    %v4614 = vxor.u32 %v4552, 2147483648
    %v4615 = vxor.u32 %v4555, 2147483648
    %v4616 = vxor.u32 %v4560, 2147483648
    %v4617 = vxor.u32 %v4563, 2147483648
    %v4618 = vxor.u32 %v4568, 2147483648
    %v4619 = vxor.u32 %v4571, 2147483648
    %v4620 = vxor.u32 %v4576, 2147483648
    %v4621 = vxor.u32 %v4579, 2147483648
    %v4622 = vmul.f32 %v4614, 1.442695
    %v4623 = vpow.pop %v4622
    %v4624 = vmul.f32 %v4615, 1.442695
    %v4625 = vpow.pop %v4624
    %v4626 = vmul.f32 %v4616, 1.442695
    %v4627 = vpow.pop %v4626
    %v4628 = vmul.f32 %v4617, 1.442695
    %v4629 = vpow.pop %v4628
    %v4630 = vmul.f32 %v4618, 1.442695
    %v4631 = vpow.pop %v4630
    %v4632 = vmul.f32 %v4619, 1.442695
    %v4633 = vpow.pop %v4632
    %v4634 = vmul.f32 %v4620, 1.442695
    %v4635 = vpow.pop %v4634
    %v4636 = vmul.f32 %v4621, 1.442695
    %v4637 = vpow.pop %v4636
    %v4638 = vadd.f32 %v4623, 1.0
    %v4639 = vadd.f32 %v4625, 1.0
    %v4640 = vadd.f32 %v4627, 1.0
    %v4641 = vadd.f32 %v4629, 1.0
    %v4642 = vadd.f32 %v4631, 1.0
    %v4643 = vadd.f32 %v4633, 1.0
    %v4644 = vadd.f32 %v4635, 1.0
    %v4645 = vadd.f32 %v4637, 1.0
    %v4646 = vrcp.pop %v4638
    %v4647 = vmul.f32 1.0, %v4646
    %v4648 = vrcp.pop %v4639
    %v4649 = vmul.f32 1.0, %v4648
    %v4650 = vrcp.pop %v4640
    %v4651 = vmul.f32 1.0, %v4650
    %v4652 = vrcp.pop %v4641
    %v4653 = vmul.f32 1.0, %v4652
    %v4654 = vrcp.pop %v4642
    %v4655 = vmul.f32 1.0, %v4654
    %v4656 = vrcp.pop %v4643
    %v4657 = vmul.f32 1.0, %v4656
    %v4658 = vrcp.pop %v4644
    %v4659 = vmul.f32 1.0, %v4658
    %v4660 = vrcp.pop %v4645
    %v4661 = vmul.f32 1.0, %v4660
    %v4662 = vtanh.pop %v4584
    %v4663 = vtanh.pop %v4587
    %v4664 = vtanh.pop %v4592
    %v4665 = vtanh.pop %v4595
    %v4666 = vxor.u32 %v4600, 2147483648
    %v4667 = vxor.u32 %v4603, 2147483648
    %v4668 = vxor.u32 %v4608, 2147483648
    %v4669 = vxor.u32 %v4611, 2147483648
    %v4670 = vmul.f32 %v4666, 1.442695
    %v4671 = vpow.pop %v4670
    %v4672 = vmul.f32 %v4667, 1.442695
    %v4673 = vpow.pop %v4672
    %v4674 = vmul.f32 %v4668, 1.442695
    %v4675 = vpow.pop %v4674
    %v4676 = vmul.f32 %v4669, 1.442695
    %v4677 = vpow.pop %v4676
    %v4678 = vadd.f32 %v4671, 1.0
    %v4679 = vadd.f32 %v4673, 1.0
    %v4680 = vadd.f32 %v4675, 1.0
    %v4681 = vadd.f32 %v4677, 1.0
    %v4682 = vrcp.pop %v4678
    %v4683 = vmul.f32 1.0, %v4682
    %v4684 = vrcp.pop %v4679
    %v4685 = vmul.f32 1.0, %v4684
    %v4686 = vrcp.pop %v4680
    %v4687 = vmul.f32 1.0, %v4686
    %v4688 = vrcp.pop %v4681
    %v4689 = vmul.f32 1.0, %v4688
    %v4690 = vmul.f32 %v4655, %v4316
    %v4691 = vmul.f32 %v4657, %v4317
    %v4692 = vmul.f32 %v4659, %v4318
    %v4693 = vmul.f32 %v4661, %v4319
    %v4694 = vmul.f32 %v4647, %v4662
    %v4695 = vmul.f32 %v4649, %v4663
    %v4696 = vmul.f32 %v4651, %v4664
    %v4697 = vmul.f32 %v4653, %v4665
    %v4698 = vadd.f32 %v4690, %v4694
    %v4699 = vadd.f32 %v4691, %v4695
    %v4700 = vadd.f32 %v4692, %v4696
    %v4701 = vadd.f32 %v4693, %v4697
    %v4702 = vtanh.pop %v4698
    %v4703 = vtanh.pop %v4699
    %v4704 = vtanh.pop %v4700
    %v4705 = vtanh.pop %v4701
    %v4706 = vmul.f32 %v4683, %v4702
    %v4707 = vmul.f32 %v4685, %v4703
    %v4708 = vmul.f32 %v4687, %v4704
    %v4709 = vmul.f32 %v4689, %v4705
    %v4710 = vsel %vm3455, %v4511, %v4304
    %v4711 = vsel %vm3455, %v4512, %v4305
    %v4712 = vsel %vm3455, %v4513, %v4306
    %v4713 = vsel %vm3455, %v4514, %v4307
    %v4714 = vsel %vm3455, %v4503, %v4308
    %v4715 = vsel %vm3455, %v4504, %v4309
    %v4716 = vsel %vm3455, %v4505, %v4310
    %v4717 = vsel %vm3455, %v4506, %v4311
    %v4718 = vsel %vm3454, %v4706, %v4312
    %v4719 = vsel %vm3454, %v4707, %v4313
    %v4720 = vsel %vm3454, %v4708, %v4314
    %v4721 = vsel %vm3454, %v4709, %v4315
    %v4722 = vsel %vm3454, %v4698, %v4316
    %v4723 = vsel %vm3454, %v4699, %v4317
    %v4724 = vsel %vm3454, %v4700, %v4318
    %v4725 = vsel %vm3454, %v4701, %v4319
    %v4726 = vpack.c.bf16 %v4711, %v4710
    %v4727 = vpack.c.bf16 %v4713, %v4712
    %4728 = vmatprep.subr.bf16.mxu0 0
    %4729 = vmatpush1.bf16.msra.mxu0 %v2815
    %4730 = vmatprep.subr.bf16.mxu0 0
    %4731 = vmatpush1.bf16.msra.mxu0 %v2816
    %4732 = vmatprep.subr.bf16.mxu0 0
    %4733 = vmatpush1.bf16.msra.mxu0 %v4726
    %4734 = vmatprep.subr.bf16.mxu0 0
    %4735 = vmatpush1.bf16.msra.mxu0 %v4727
    %4736 = vmatprep.subr.bf16.mxu0 0
    %4737 = vmatpush1.bf16.msra.mxu0 0
    %4738 = vmatprep.subr.bf16.mxu0 0
    %4739 = vmatpush1.bf16.msra.mxu0 0
    %4740 = vmatprep.subr.bf16.mxu0 0
    %4741 = vmatpush1.bf16.msra.mxu0 0
    %4742 = vmatprep.subr.bf16.mxu0 0
    %4743 = vmatpush1.bf16.msra.mxu0 0
    %4744 = vmatprep.subr.bf16.mxu0 0
    %4745 = vmatpush1.bf16.msra.mxu0 0
    %4746 = vmatprep.subr.bf16.mxu0 0
    %4747 = vmatpush1.bf16.msra.mxu0 0
    %4748 = vmatprep.subr.bf16.mxu0 0
    %4749 = vmatpush1.bf16.msra.mxu0 0
    %4750 = vmatprep.subr.bf16.mxu0 0
    %4751 = vmatpush1.bf16.msra.mxu0 0
    %4752 = vmatprep.subr.bf16.mxu0 0
    %4753 = vmatpush1.bf16.msra.mxu0 0
    %4754 = vmatprep.subr.bf16.mxu0 0
    %4755 = vmatpush1.bf16.msra.mxu0 0
    %4756 = vmatprep.subr.bf16.mxu0 0
    %4757 = vmatpush1.bf16.msra.mxu0 0
    %4758 = vmatprep.subr.bf16.mxu0 0
    %4759 = vmatpush1.bf16.msra.mxu0 0
    %4760 = vmatprep.mubr.bf16.mxu0 0
    %4761 = vmatmul.mubr.bf16.gmra.mrb[0].mxu0 %v317
    %v4762 = vpop.f32.mrb[0].mxu0
    %v4763 = vadd.f32 %v76, %v4762
    %v4764 = vpop.f32.mrb[0].mxu0
    %v4765 = vpop.f32.mrb[0].mxu0
    %v4766 = vadd.f32 %v81, %v4765
    %v4767 = vpop.f32.mrb[0].mxu0
    %4768 = vmatprep.mubr.bf16.mxu0 0
    %4769 = vmatmul.mubr.bf16.gmra.mrb[0].mxu0 %v320
    %v4770 = vpop.f32.mrb[0].mxu0
    %v4771 = vadd.f32 %v86, %v4770
    %v4772 = vpop.f32.mrb[0].mxu0
    %v4773 = vpop.f32.mrb[0].mxu0
    %v4774 = vadd.f32 %v91, %v4773
    %v4775 = vpop.f32.mrb[0].mxu0
    %4776 = vmatprep.mubr.bf16.mxu0 0
    %4777 = vmatmul.mubr.bf16.gmra.mrb[0].mxu0 %v323
    %v4778 = vpop.f32.mrb[0].mxu0
    %v4779 = vadd.f32 %v96, %v4778
    %v4780 = vpop.f32.mrb[0].mxu0
    %v4781 = vpop.f32.mrb[0].mxu0
    %v4782 = vadd.f32 %v101, %v4781
    %v4783 = vpop.f32.mrb[0].mxu0
    %4784 = vmatprep.mubr.bf16.mxu0 0
    %4785 = vmatmul.mubr.bf16.gmra.mrb[0].mxu0 %v326
    %v4786 = vpop.f32.mrb[0].mxu0
    %v4787 = vadd.f32 %v106, %v4786
    %v4788 = vpop.f32.mrb[0].mxu0
    %v4789 = vpop.f32.mrb[0].mxu0
    %v4790 = vadd.f32 %v111, %v4789
    %v4791 = vpop.f32.mrb[0].mxu0
    %4792 = vmatprep.mubr.bf16.mxu0 0
    %4793 = vmatmul.mubr.bf16.gmra.mrb[0].mxu0 %v329
    %v4794 = vpop.f32.mrb[0].mxu0
    %v4795 = vadd.f32 %v116, %v4794
    %v4796 = vpop.f32.mrb[0].mxu0
    %v4797 = vpop.f32.mrb[0].mxu0
    %v4798 = vadd.f32 %v121, %v4797
    %v4799 = vpop.f32.mrb[0].mxu0
    %4800 = vmatprep.mubr.bf16.mxu0 0
    %4801 = vmatmul.mubr.bf16.gmra.mrb[0].mxu0 %v332
    %v4802 = vpop.f32.mrb[0].mxu0
    %v4803 = vadd.f32 %v126, %v4802
    %v4804 = vpop.f32.mrb[0].mxu0
    %v4805 = vpop.f32.mrb[0].mxu0
    %v4806 = vadd.f32 %v131, %v4805
    %v4807 = vpop.f32.mrb[0].mxu0
    %4808 = vmatprep.mubr.bf16.mxu0 0
    %4809 = vmatmul.mubr.bf16.gmra.mrb[0].mxu0 %v335
    %v4810 = vpop.f32.mrb[0].mxu0
    %v4811 = vadd.f32 %v136, %v4810
    %v4812 = vpop.f32.mrb[0].mxu0
    %v4813 = vpop.f32.mrb[0].mxu0
    %v4814 = vadd.f32 %v141, %v4813
    %v4815 = vpop.f32.mrb[0].mxu0
    %4816 = vmatprep.mubr.bf16.mxu0 0
    %4817 = vmatmul.mubr.bf16.gmra.mrb[0].mxu0 %v338
    %v4818 = vpop.f32.mrb[0].mxu0
    %v4819 = vadd.f32 %v146, %v4818
    %v4820 = vpop.f32.mrb[0].mxu0
    %v4821 = vpop.f32.mrb[0].mxu0
    %v4822 = vadd.f32 %v151, %v4821
    %v4823 = vpop.f32.mrb[0].mxu0
    %4824 = vdwg.mxu0
    %v4825 = vxor.u32 %v4763, 2147483648
    %v4826 = vxor.u32 %v4766, 2147483648
    %v4827 = vxor.u32 %v4771, 2147483648
    %v4828 = vxor.u32 %v4774, 2147483648
    %v4829 = vxor.u32 %v4779, 2147483648
    %v4830 = vxor.u32 %v4782, 2147483648
    %v4831 = vxor.u32 %v4787, 2147483648
    %v4832 = vxor.u32 %v4790, 2147483648
    %v4833 = vmul.f32 %v4825, 1.442695
    %v4834 = vpow.pop %v4833
    %v4835 = vmul.f32 %v4826, 1.442695
    %v4836 = vpow.pop %v4835
    %v4837 = vmul.f32 %v4827, 1.442695
    %v4838 = vpow.pop %v4837
    %v4839 = vmul.f32 %v4828, 1.442695
    %v4840 = vpow.pop %v4839
    %v4841 = vmul.f32 %v4829, 1.442695
    %v4842 = vpow.pop %v4841
    %v4843 = vmul.f32 %v4830, 1.442695
    %v4844 = vpow.pop %v4843
    %v4845 = vmul.f32 %v4831, 1.442695
    %v4846 = vpow.pop %v4845
    %v4847 = vmul.f32 %v4832, 1.442695
    %v4848 = vpow.pop %v4847
    %v4849 = vadd.f32 %v4834, 1.0
    %v4850 = vadd.f32 %v4836, 1.0
    %v4851 = vadd.f32 %v4838, 1.0
    %v4852 = vadd.f32 %v4840, 1.0
    %v4853 = vadd.f32 %v4842, 1.0
    %v4854 = vadd.f32 %v4844, 1.0
    %v4855 = vadd.f32 %v4846, 1.0
    %v4856 = vadd.f32 %v4848, 1.0
    %v4857 = vrcp.pop %v4849
    %v4858 = vmul.f32 1.0, %v4857
    %v4859 = vrcp.pop %v4850
    %v4860 = vmul.f32 1.0, %v4859
    %v4861 = vrcp.pop %v4851
    %v4862 = vmul.f32 1.0, %v4861
    %v4863 = vrcp.pop %v4852
    %v4864 = vmul.f32 1.0, %v4863
    %v4865 = vrcp.pop %v4853
    %v4866 = vmul.f32 1.0, %v4865
    %v4867 = vrcp.pop %v4854
    %v4868 = vmul.f32 1.0, %v4867
    %v4869 = vrcp.pop %v4855
    %v4870 = vmul.f32 1.0, %v4869
    %v4871 = vrcp.pop %v4856
    %v4872 = vmul.f32 1.0, %v4871
    %v4873 = vtanh.pop %v4795
    %v4874 = vtanh.pop %v4798
    %v4875 = vtanh.pop %v4803
    %v4876 = vtanh.pop %v4806
    %v4877 = vxor.u32 %v4811, 2147483648
    %v4878 = vxor.u32 %v4814, 2147483648
    %v4879 = vxor.u32 %v4819, 2147483648
    %v4880 = vxor.u32 %v4822, 2147483648
    %v4881 = vmul.f32 %v4877, 1.442695
    %v4882 = vpow.pop %v4881
    %v4883 = vmul.f32 %v4878, 1.442695
    %v4884 = vpow.pop %v4883
    %v4885 = vmul.f32 %v4879, 1.442695
    %v4886 = vpow.pop %v4885
    %v4887 = vmul.f32 %v4880, 1.442695
    %v4888 = vpow.pop %v4887
    %v4889 = vadd.f32 %v4882, 1.0
    %v4890 = vadd.f32 %v4884, 1.0
    %v4891 = vadd.f32 %v4886, 1.0
    %v4892 = vadd.f32 %v4888, 1.0
    %v4893 = vrcp.pop %v4889
    %v4894 = vmul.f32 1.0, %v4893
    %v4895 = vrcp.pop %v4890
    %v4896 = vmul.f32 1.0, %v4895
    %v4897 = vrcp.pop %v4891
    %v4898 = vmul.f32 1.0, %v4897
    %v4899 = vrcp.pop %v4892
    %v4900 = vmul.f32 1.0, %v4899
    %v4901 = vmul.f32 %v4866, %v4714
    %v4902 = vmul.f32 %v4868, %v4715
    %v4903 = vmul.f32 %v4870, %v4716
    %v4904 = vmul.f32 %v4872, %v4717
    %v4905 = vmul.f32 %v4858, %v4873
    %v4906 = vmul.f32 %v4860, %v4874
    %v4907 = vmul.f32 %v4862, %v4875
    %v4908 = vmul.f32 %v4864, %v4876
    %v4909 = vadd.f32 %v4901, %v4905
    %v4910 = vadd.f32 %v4902, %v4906
    %v4911 = vadd.f32 %v4903, %v4907
    %v4912 = vadd.f32 %v4904, %v4908
    %v4913 = vtanh.pop %v4909
    %v4914 = vtanh.pop %v4910
    %v4915 = vtanh.pop %v4911
    %v4916 = vtanh.pop %v4912
    %v4917 = vmul.f32 %v4894, %v4913
    %v4918 = vmul.f32 %v4896, %v4914
    %v4919 = vmul.f32 %v4898, %v4915
    %v4920 = vmul.f32 %v4900, %v4916
    %v4921 = vpack.c.bf16 %v4719, %v4718
    %v4922 = vpack.c.bf16 %v4721, %v4720
    %4923 = vmatprep.subr.bf16.mxu0 0
    %4924 = vmatpush1.bf16.msra.mxu0 %v2608
    %4925 = vmatprep.subr.bf16.mxu0 0
    %4926 = vmatpush1.bf16.msra.mxu0 %v2609
    %4927 = vmatprep.subr.bf16.mxu0 0
    %4928 = vmatpush1.bf16.msra.mxu0 %v4921
    %4929 = vmatprep.subr.bf16.mxu0 0
    %4930 = vmatpush1.bf16.msra.mxu0 %v4922
    %4931 = vmatprep.subr.bf16.mxu0 0
    %4932 = vmatpush1.bf16.msra.mxu0 0
    %4933 = vmatprep.subr.bf16.mxu0 0
    %4934 = vmatpush1.bf16.msra.mxu0 0
    %4935 = vmatprep.subr.bf16.mxu0 0
    %4936 = vmatpush1.bf16.msra.mxu0 0
    %4937 = vmatprep.subr.bf16.mxu0 0
    %4938 = vmatpush1.bf16.msra.mxu0 0
    %4939 = vmatprep.subr.bf16.mxu0 0
    %4940 = vmatpush1.bf16.msra.mxu0 0
    %4941 = vmatprep.subr.bf16.mxu0 0
    %4942 = vmatpush1.bf16.msra.mxu0 0
    %4943 = vmatprep.subr.bf16.mxu0 0
    %4944 = vmatpush1.bf16.msra.mxu0 0
    %4945 = vmatprep.subr.bf16.mxu0 0
    %4946 = vmatpush1.bf16.msra.mxu0 0
    %4947 = vmatprep.subr.bf16.mxu0 0
    %4948 = vmatpush1.bf16.msra.mxu0 0
    %4949 = vmatprep.subr.bf16.mxu0 0
    %4950 = vmatpush1.bf16.msra.mxu0 0
    %4951 = vmatprep.subr.bf16.mxu0 0
    %4952 = vmatpush1.bf16.msra.mxu0 0
    %4953 = vmatprep.subr.bf16.mxu0 0
    %4954 = vmatpush1.bf16.msra.mxu0 0
    %4955 = vmatprep.mubr.bf16.mxu0 0
    %4956 = vmatmul.mubr.bf16.gmra.mrb[0].mxu0 %v586
    %v4957 = vpop.f32.mrb[0].mxu0
    %v4958 = vadd.f32 %v172, %v4957
    %v4959 = vpop.f32.mrb[0].mxu0
    %v4960 = vpop.f32.mrb[0].mxu0
    %v4961 = vadd.f32 %v177, %v4960
    %v4962 = vpop.f32.mrb[0].mxu0
    %4963 = vmatprep.mubr.bf16.mxu0 0
    %4964 = vmatmul.mubr.bf16.gmra.mrb[0].mxu0 %v589
    %v4965 = vpop.f32.mrb[0].mxu0
    %v4966 = vadd.f32 %v182, %v4965
    %v4967 = vpop.f32.mrb[0].mxu0
    %v4968 = vpop.f32.mrb[0].mxu0
    %v4969 = vadd.f32 %v187, %v4968
    %v4970 = vpop.f32.mrb[0].mxu0
    %4971 = vmatprep.mubr.bf16.mxu0 0
    %4972 = vmatmul.mubr.bf16.gmra.mrb[0].mxu0 %v592
    %v4973 = vpop.f32.mrb[0].mxu0
    %v4974 = vadd.f32 %v192, %v4973
    %v4975 = vpop.f32.mrb[0].mxu0
    %v4976 = vpop.f32.mrb[0].mxu0
    %v4977 = vadd.f32 %v197, %v4976
    %v4978 = vpop.f32.mrb[0].mxu0
    %4979 = vmatprep.mubr.bf16.mxu0 0
    %4980 = vmatmul.mubr.bf16.gmra.mrb[0].mxu0 %v595
    %v4981 = vpop.f32.mrb[0].mxu0
    %v4982 = vadd.f32 %v202, %v4981
    %v4983 = vpop.f32.mrb[0].mxu0
    %v4984 = vpop.f32.mrb[0].mxu0
    %v4985 = vadd.f32 %v207, %v4984
    %v4986 = vpop.f32.mrb[0].mxu0
    %4987 = vmatprep.mubr.bf16.mxu0 0
    %4988 = vmatmul.mubr.bf16.gmra.mrb[0].mxu0 %v598
    %v4989 = vpop.f32.mrb[0].mxu0
    %v4990 = vadd.f32 %v212, %v4989
    %v4991 = vpop.f32.mrb[0].mxu0
    %v4992 = vpop.f32.mrb[0].mxu0
    %v4993 = vadd.f32 %v217, %v4992
    %v4994 = vpop.f32.mrb[0].mxu0
    %4995 = vmatprep.mubr.bf16.mxu0 0
    %4996 = vmatmul.mubr.bf16.gmra.mrb[0].mxu0 %v601
    %v4997 = vpop.f32.mrb[0].mxu0
    %v4998 = vadd.f32 %v222, %v4997
    %v4999 = vpop.f32.mrb[0].mxu0
    %v5000 = vpop.f32.mrb[0].mxu0
    %v5001 = vadd.f32 %v227, %v5000
    %v5002 = vpop.f32.mrb[0].mxu0
    %5003 = vmatprep.mubr.bf16.mxu0 0
    %5004 = vmatmul.mubr.bf16.gmra.mrb[0].mxu0 %v604
    %v5005 = vpop.f32.mrb[0].mxu0
    %v5006 = vadd.f32 %v232, %v5005
    %v5007 = vpop.f32.mrb[0].mxu0
    %v5008 = vpop.f32.mrb[0].mxu0
    %v5009 = vadd.f32 %v237, %v5008
    %v5010 = vpop.f32.mrb[0].mxu0
    %5011 = vmatprep.mubr.bf16.mxu0 0
    %5012 = vmatmul.mubr.bf16.gmra.mrb[0].mxu0 %v607
    %v5013 = vpop.f32.mrb[0].mxu0
    %v5014 = vadd.f32 %v242, %v5013
    %v5015 = vpop.f32.mrb[0].mxu0
    %v5016 = vpop.f32.mrb[0].mxu0
    %v5017 = vadd.f32 %v247, %v5016
    %v5018 = vpop.f32.mrb[0].mxu0
    %5019 = vdwg.mxu0
    %v5020 = vxor.u32 %v4958, 2147483648
    %v5021 = vxor.u32 %v4961, 2147483648
    %v5022 = vxor.u32 %v4966, 2147483648
    %v5023 = vxor.u32 %v4969, 2147483648
    %v5024 = vxor.u32 %v4974, 2147483648
    %v5025 = vxor.u32 %v4977, 2147483648
    %v5026 = vxor.u32 %v4982, 2147483648
    %v5027 = vxor.u32 %v4985, 2147483648
    %v5028 = vmul.f32 %v5020, 1.442695
    %v5029 = vpow.pop %v5028
    %v5030 = vmul.f32 %v5021, 1.442695
    %v5031 = vpow.pop %v5030
    %v5032 = vmul.f32 %v5022, 1.442695
    %v5033 = vpow.pop %v5032
    %v5034 = vmul.f32 %v5023, 1.442695
    %v5035 = vpow.pop %v5034
    %v5036 = vmul.f32 %v5024, 1.442695
    %v5037 = vpow.pop %v5036
    %v5038 = vmul.f32 %v5025, 1.442695
    %v5039 = vpow.pop %v5038
    %v5040 = vmul.f32 %v5026, 1.442695
    %v5041 = vpow.pop %v5040
    %v5042 = vmul.f32 %v5027, 1.442695
    %v5043 = vpow.pop %v5042
    %v5044 = vadd.f32 %v5029, 1.0
    %v5045 = vadd.f32 %v5031, 1.0
    %v5046 = vadd.f32 %v5033, 1.0
    %v5047 = vadd.f32 %v5035, 1.0
    %v5048 = vadd.f32 %v5037, 1.0
    %v5049 = vadd.f32 %v5039, 1.0
    %v5050 = vadd.f32 %v5041, 1.0
    %v5051 = vadd.f32 %v5043, 1.0
    %v5052 = vrcp.pop %v5044
    %v5053 = vmul.f32 1.0, %v5052
    %v5054 = vrcp.pop %v5045
    %v5055 = vmul.f32 1.0, %v5054
    %v5056 = vrcp.pop %v5046
    %v5057 = vmul.f32 1.0, %v5056
    %v5058 = vrcp.pop %v5047
    %v5059 = vmul.f32 1.0, %v5058
    %v5060 = vrcp.pop %v5048
    %v5061 = vmul.f32 1.0, %v5060
    %v5062 = vrcp.pop %v5049
    %v5063 = vmul.f32 1.0, %v5062
    %v5064 = vrcp.pop %v5050
    %v5065 = vmul.f32 1.0, %v5064
    %v5066 = vrcp.pop %v5051
    %v5067 = vmul.f32 1.0, %v5066
    %v5068 = vtanh.pop %v4990
    %v5069 = vtanh.pop %v4993
    %v5070 = vtanh.pop %v4998
    %v5071 = vtanh.pop %v5001
    %v5072 = vxor.u32 %v5006, 2147483648
    %v5073 = vxor.u32 %v5009, 2147483648
    %v5074 = vxor.u32 %v5014, 2147483648
    %v5075 = vxor.u32 %v5017, 2147483648
    %v5076 = vmul.f32 %v5072, 1.442695
    %v5077 = vpow.pop %v5076
    %v5078 = vmul.f32 %v5073, 1.442695
    %v5079 = vpow.pop %v5078
    %v5080 = vmul.f32 %v5074, 1.442695
    %v5081 = vpow.pop %v5080
    %v5082 = vmul.f32 %v5075, 1.442695
    %v5083 = vpow.pop %v5082
    %v5084 = vadd.f32 %v5077, 1.0
    %v5085 = vadd.f32 %v5079, 1.0
    %v5086 = vadd.f32 %v5081, 1.0
    %v5087 = vadd.f32 %v5083, 1.0
    %v5088 = vrcp.pop %v5084
    %v5089 = vmul.f32 1.0, %v5088
    %v5090 = vrcp.pop %v5085
    %v5091 = vmul.f32 1.0, %v5090
    %v5092 = vrcp.pop %v5086
    %v5093 = vmul.f32 1.0, %v5092
    %v5094 = vrcp.pop %v5087
    %v5095 = vmul.f32 1.0, %v5094
    %v5096 = vmul.f32 %v5061, %v4722
    %v5097 = vmul.f32 %v5063, %v4723
    %v5098 = vmul.f32 %v5065, %v4724
    %v5099 = vmul.f32 %v5067, %v4725
    %v5100 = vmul.f32 %v5053, %v5068
    %v5101 = vmul.f32 %v5055, %v5069
    %v5102 = vmul.f32 %v5057, %v5070
    %v5103 = vmul.f32 %v5059, %v5071
    %v5104 = vadd.f32 %v5096, %v5100
    %v5105 = vadd.f32 %v5097, %v5101
    %v5106 = vadd.f32 %v5098, %v5102
    %v5107 = vadd.f32 %v5099, %v5103
    %v5108 = vtanh.pop %v5104
    %v5109 = vtanh.pop %v5105
    %v5110 = vtanh.pop %v5106
    %v5111 = vtanh.pop %v5107
    %v5112 = vmul.f32 %v5089, %v5108
    %v5113 = vmul.f32 %v5091, %v5109
    %v5114 = vmul.f32 %v5093, %v5110
    %v5115 = vmul.f32 %v5095, %v5111
    %v5116 = vsel %vm3013, %v4917, %v4710
    %v5117 = vsel %vm3013, %v4918, %v4711
    %v5118 = vsel %vm3013, %v4919, %v4712
    %v5119 = vsel %vm3013, %v4920, %v4713
    %v5120 = vsel %vm3013, %v4909, %v4714
    %v5121 = vsel %vm3013, %v4910, %v4715
    %v5122 = vsel %vm3013, %v4911, %v4716
    %v5123 = vsel %vm3013, %v4912, %v4717
    %v5124 = vsel %vm3012, %v5112, %v4718
    %v5125 = vsel %vm3012, %v5113, %v4719
    %v5126 = vsel %vm3012, %v5114, %v4720
    %v5127 = vsel %vm3012, %v5115, %v4721
    %v5128 = vsel %vm3012, %v5104, %v4722
    %v5129 = vsel %vm3012, %v5105, %v4723
    %v5130 = vsel %vm3012, %v5106, %v4724
    %v5131 = vsel %vm3012, %v5107, %v4725
    %v5132 = vpack.c.bf16 %v5117, %v5116
    %v5133 = vpack.c.bf16 %v5119, %v5118
    %5134 = vmatprep.subr.bf16.mxu0 0
    %5135 = vmatpush1.bf16.msra.mxu0 %v2373
    %5136 = vmatprep.subr.bf16.mxu0 0
    %5137 = vmatpush1.bf16.msra.mxu0 %v2374
    %5138 = vmatprep.subr.bf16.mxu0 0
    %5139 = vmatpush1.bf16.msra.mxu0 %v5132
    %5140 = vmatprep.subr.bf16.mxu0 0
    %5141 = vmatpush1.bf16.msra.mxu0 %v5133
    %5142 = vmatprep.subr.bf16.mxu0 0
    %5143 = vmatpush1.bf16.msra.mxu0 0
    %5144 = vmatprep.subr.bf16.mxu0 0
    %5145 = vmatpush1.bf16.msra.mxu0 0
    %5146 = vmatprep.subr.bf16.mxu0 0
    %5147 = vmatpush1.bf16.msra.mxu0 0
    %5148 = vmatprep.subr.bf16.mxu0 0
    %5149 = vmatpush1.bf16.msra.mxu0 0
    %5150 = vmatprep.subr.bf16.mxu0 0
    %5151 = vmatpush1.bf16.msra.mxu0 0
    %5152 = vmatprep.subr.bf16.mxu0 0
    %5153 = vmatpush1.bf16.msra.mxu0 0
    %5154 = vmatprep.subr.bf16.mxu0 0
    %5155 = vmatpush1.bf16.msra.mxu0 0
    %5156 = vmatprep.subr.bf16.mxu0 0
    %5157 = vmatpush1.bf16.msra.mxu0 0
    %5158 = vmatprep.subr.bf16.mxu0 0
    %5159 = vmatpush1.bf16.msra.mxu0 0
    %5160 = vmatprep.subr.bf16.mxu0 0
    %5161 = vmatpush1.bf16.msra.mxu0 0
    %5162 = vmatprep.subr.bf16.mxu0 0
    %5163 = vmatpush1.bf16.msra.mxu0 0
    %5164 = vmatprep.subr.bf16.mxu0 0
    %5165 = vmatpush1.bf16.msra.mxu0 0
    %5166 = vmatprep.mubr.bf16.mxu0 0
    %5167 = vmatmul.mubr.bf16.gmra.mrb[0].mxu0 %v317
    %v5168 = vpop.f32.mrb[0].mxu0
    %v5169 = vadd.f32 %v76, %v5168
    %v5170 = vpop.f32.mrb[0].mxu0
    %v5171 = vpop.f32.mrb[0].mxu0
    %v5172 = vadd.f32 %v81, %v5171
    %v5173 = vpop.f32.mrb[0].mxu0
    %5174 = vmatprep.mubr.bf16.mxu0 0
    %5175 = vmatmul.mubr.bf16.gmra.mrb[0].mxu0 %v320
    %v5176 = vpop.f32.mrb[0].mxu0
    %v5177 = vadd.f32 %v86, %v5176
    %v5178 = vpop.f32.mrb[0].mxu0
    %v5179 = vpop.f32.mrb[0].mxu0
    %v5180 = vadd.f32 %v91, %v5179
    %v5181 = vpop.f32.mrb[0].mxu0
    %5182 = vmatprep.mubr.bf16.mxu0 0
    %5183 = vmatmul.mubr.bf16.gmra.mrb[0].mxu0 %v323
    %v5184 = vpop.f32.mrb[0].mxu0
    %v5185 = vadd.f32 %v96, %v5184
    %v5186 = vpop.f32.mrb[0].mxu0
    %v5187 = vpop.f32.mrb[0].mxu0
    %v5188 = vadd.f32 %v101, %v5187
    %v5189 = vpop.f32.mrb[0].mxu0
    %5190 = vmatprep.mubr.bf16.mxu0 0
    %5191 = vmatmul.mubr.bf16.gmra.mrb[0].mxu0 %v326
    %v5192 = vpop.f32.mrb[0].mxu0
    %v5193 = vadd.f32 %v106, %v5192
    %v5194 = vpop.f32.mrb[0].mxu0
    %v5195 = vpop.f32.mrb[0].mxu0
    %v5196 = vadd.f32 %v111, %v5195
    %v5197 = vpop.f32.mrb[0].mxu0
    %5198 = vmatprep.mubr.bf16.mxu0 0
    %5199 = vmatmul.mubr.bf16.gmra.mrb[0].mxu0 %v329
    %v5200 = vpop.f32.mrb[0].mxu0
    %v5201 = vadd.f32 %v116, %v5200
    %v5202 = vpop.f32.mrb[0].mxu0
    %v5203 = vpop.f32.mrb[0].mxu0
    %v5204 = vadd.f32 %v121, %v5203
    %v5205 = vpop.f32.mrb[0].mxu0
    %5206 = vmatprep.mubr.bf16.mxu0 0
    %5207 = vmatmul.mubr.bf16.gmra.mrb[0].mxu0 %v332
    %v5208 = vpop.f32.mrb[0].mxu0
    %v5209 = vadd.f32 %v126, %v5208
    %v5210 = vpop.f32.mrb[0].mxu0
    %v5211 = vpop.f32.mrb[0].mxu0
    %v5212 = vadd.f32 %v131, %v5211
    %v5213 = vpop.f32.mrb[0].mxu0
    %5214 = vmatprep.mubr.bf16.mxu0 0
    %5215 = vmatmul.mubr.bf16.gmra.mrb[0].mxu0 %v335
    %v5216 = vpop.f32.mrb[0].mxu0
    %v5217 = vadd.f32 %v136, %v5216
    %v5218 = vpop.f32.mrb[0].mxu0
    %v5219 = vpop.f32.mrb[0].mxu0
    %v5220 = vadd.f32 %v141, %v5219
    %v5221 = vpop.f32.mrb[0].mxu0
    %5222 = vmatprep.mubr.bf16.mxu0 0
    %5223 = vmatmul.mubr.bf16.gmra.mrb[0].mxu0 %v338
    %v5224 = vpop.f32.mrb[0].mxu0
    %v5225 = vadd.f32 %v146, %v5224
    %v5226 = vpop.f32.mrb[0].mxu0
    %v5227 = vpop.f32.mrb[0].mxu0
    %v5228 = vadd.f32 %v151, %v5227
    %v5229 = vpop.f32.mrb[0].mxu0
    %5230 = vdwg.mxu0
    %v5231 = vxor.u32 %v5169, 2147483648
    %v5232 = vxor.u32 %v5172, 2147483648
    %v5233 = vxor.u32 %v5177, 2147483648
    %v5234 = vxor.u32 %v5180, 2147483648
    %v5235 = vxor.u32 %v5185, 2147483648
    %v5236 = vxor.u32 %v5188, 2147483648
    %v5237 = vxor.u32 %v5193, 2147483648
    %v5238 = vxor.u32 %v5196, 2147483648
    %v5239 = vmul.f32 %v5231, 1.442695
    %v5240 = vpow.pop %v5239
    %v5241 = vmul.f32 %v5232, 1.442695
    %v5242 = vpow.pop %v5241
    %v5243 = vmul.f32 %v5233, 1.442695
    %v5244 = vpow.pop %v5243
    %v5245 = vmul.f32 %v5234, 1.442695
    %v5246 = vpow.pop %v5245
    %v5247 = vmul.f32 %v5235, 1.442695
    %v5248 = vpow.pop %v5247
    %v5249 = vmul.f32 %v5236, 1.442695
    %v5250 = vpow.pop %v5249
    %v5251 = vmul.f32 %v5237, 1.442695
    %v5252 = vpow.pop %v5251
    %v5253 = vmul.f32 %v5238, 1.442695
    %v5254 = vpow.pop %v5253
    %v5255 = vadd.f32 %v5240, 1.0
    %v5256 = vadd.f32 %v5242, 1.0
    %v5257 = vadd.f32 %v5244, 1.0
    %v5258 = vadd.f32 %v5246, 1.0
    %v5259 = vadd.f32 %v5248, 1.0
    %v5260 = vadd.f32 %v5250, 1.0
    %v5261 = vadd.f32 %v5252, 1.0
    %v5262 = vadd.f32 %v5254, 1.0
    %v5263 = vrcp.pop %v5255
    %v5264 = vmul.f32 1.0, %v5263
    %v5265 = vrcp.pop %v5256
    %v5266 = vmul.f32 1.0, %v5265
    %v5267 = vrcp.pop %v5257
    %v5268 = vmul.f32 1.0, %v5267
    %v5269 = vrcp.pop %v5258
    %v5270 = vmul.f32 1.0, %v5269
    %v5271 = vrcp.pop %v5259
    %v5272 = vmul.f32 1.0, %v5271
    %v5273 = vrcp.pop %v5260
    %v5274 = vmul.f32 1.0, %v5273
    %v5275 = vrcp.pop %v5261
    %v5276 = vmul.f32 1.0, %v5275
    %v5277 = vrcp.pop %v5262
    %v5278 = vmul.f32 1.0, %v5277
    %v5279 = vtanh.pop %v5201
    %v5280 = vtanh.pop %v5204
    %v5281 = vtanh.pop %v5209
    %v5282 = vtanh.pop %v5212
    %v5283 = vxor.u32 %v5217, 2147483648
    %v5284 = vxor.u32 %v5220, 2147483648
    %v5285 = vxor.u32 %v5225, 2147483648
    %v5286 = vxor.u32 %v5228, 2147483648
    %v5287 = vmul.f32 %v5283, 1.442695
    %v5288 = vpow.pop %v5287
    %v5289 = vmul.f32 %v5284, 1.442695
    %v5290 = vpow.pop %v5289
    %v5291 = vmul.f32 %v5285, 1.442695
    %v5292 = vpow.pop %v5291
    %v5293 = vmul.f32 %v5286, 1.442695
    %v5294 = vpow.pop %v5293
    %v5295 = vadd.f32 %v5288, 1.0
    %v5296 = vadd.f32 %v5290, 1.0
    %v5297 = vadd.f32 %v5292, 1.0
    %v5298 = vadd.f32 %v5294, 1.0
    %v5299 = vrcp.pop %v5295
    %v5300 = vmul.f32 1.0, %v5299
    %v5301 = vrcp.pop %v5296
    %v5302 = vmul.f32 1.0, %v5301
    %v5303 = vrcp.pop %v5297
    %v5304 = vmul.f32 1.0, %v5303
    %v5305 = vrcp.pop %v5298
    %v5306 = vmul.f32 1.0, %v5305
    %v5307 = vmul.f32 %v5272, %v5120
    %v5308 = vmul.f32 %v5274, %v5121
    %v5309 = vmul.f32 %v5276, %v5122
    %v5310 = vmul.f32 %v5278, %v5123
    %v5311 = vmul.f32 %v5264, %v5279
    %v5312 = vmul.f32 %v5266, %v5280
    %v5313 = vmul.f32 %v5268, %v5281
    %v5314 = vmul.f32 %v5270, %v5282
    %v5315 = vadd.f32 %v5307, %v5311
    %v5316 = vadd.f32 %v5308, %v5312
    %v5317 = vadd.f32 %v5309, %v5313
    %v5318 = vadd.f32 %v5310, %v5314
    %v5319 = vtanh.pop %v5315
    %v5320 = vtanh.pop %v5316
    %v5321 = vtanh.pop %v5317
    %v5322 = vtanh.pop %v5318
    %v5323 = vmul.f32 %v5300, %v5319
    %v5324 = vmul.f32 %v5302, %v5320
    %v5325 = vmul.f32 %v5304, %v5321
    %v5326 = vmul.f32 %v5306, %v5322
    %v5327 = vpack.c.bf16 %v5125, %v5124
    %v5328 = vpack.c.bf16 %v5127, %v5126
    %5329 = vmatprep.subr.bf16.mxu0 0
    %5330 = vmatpush1.bf16.msra.mxu0 %v2166
    %5331 = vmatprep.subr.bf16.mxu0 0
    %5332 = vmatpush1.bf16.msra.mxu0 %v2167
    %5333 = vmatprep.subr.bf16.mxu0 0
    %5334 = vmatpush1.bf16.msra.mxu0 %v5327
    %5335 = vmatprep.subr.bf16.mxu0 0
    %5336 = vmatpush1.bf16.msra.mxu0 %v5328
    %5337 = vmatprep.subr.bf16.mxu0 0
    %5338 = vmatpush1.bf16.msra.mxu0 0
    %5339 = vmatprep.subr.bf16.mxu0 0
    %5340 = vmatpush1.bf16.msra.mxu0 0
    %5341 = vmatprep.subr.bf16.mxu0 0
    %5342 = vmatpush1.bf16.msra.mxu0 0
    %5343 = vmatprep.subr.bf16.mxu0 0
    %5344 = vmatpush1.bf16.msra.mxu0 0
    %5345 = vmatprep.subr.bf16.mxu0 0
    %5346 = vmatpush1.bf16.msra.mxu0 0
    %5347 = vmatprep.subr.bf16.mxu0 0
    %5348 = vmatpush1.bf16.msra.mxu0 0
    %5349 = vmatprep.subr.bf16.mxu0 0
    %5350 = vmatpush1.bf16.msra.mxu0 0
    %5351 = vmatprep.subr.bf16.mxu0 0
    %5352 = vmatpush1.bf16.msra.mxu0 0
    %5353 = vmatprep.subr.bf16.mxu0 0
    %5354 = vmatpush1.bf16.msra.mxu0 0
    %5355 = vmatprep.subr.bf16.mxu0 0
    %5356 = vmatpush1.bf16.msra.mxu0 0
    %5357 = vmatprep.subr.bf16.mxu0 0
    %5358 = vmatpush1.bf16.msra.mxu0 0
    %5359 = vmatprep.subr.bf16.mxu0 0
    %5360 = vmatpush1.bf16.msra.mxu0 0
    %5361 = vmatprep.mubr.bf16.mxu0 0
    %5362 = vmatmul.mubr.bf16.gmra.mrb[0].mxu0 %v586
    %v5363 = vpop.f32.mrb[0].mxu0
    %v5364 = vadd.f32 %v172, %v5363
    %v5365 = vpop.f32.mrb[0].mxu0
    %v5366 = vpop.f32.mrb[0].mxu0
    %v5367 = vadd.f32 %v177, %v5366
    %v5368 = vpop.f32.mrb[0].mxu0
    %5369 = vmatprep.mubr.bf16.mxu0 0
    %5370 = vmatmul.mubr.bf16.gmra.mrb[0].mxu0 %v589
    %v5371 = vpop.f32.mrb[0].mxu0
    %v5372 = vadd.f32 %v182, %v5371
    %v5373 = vpop.f32.mrb[0].mxu0
    %v5374 = vpop.f32.mrb[0].mxu0
    %v5375 = vadd.f32 %v187, %v5374
    %v5376 = vpop.f32.mrb[0].mxu0
    %5377 = vmatprep.mubr.bf16.mxu0 0
    %5378 = vmatmul.mubr.bf16.gmra.mrb[0].mxu0 %v592
    %v5379 = vpop.f32.mrb[0].mxu0
    %v5380 = vadd.f32 %v192, %v5379
    %v5381 = vpop.f32.mrb[0].mxu0
    %v5382 = vpop.f32.mrb[0].mxu0
    %v5383 = vadd.f32 %v197, %v5382
    %v5384 = vpop.f32.mrb[0].mxu0
    %5385 = vmatprep.mubr.bf16.mxu0 0
    %5386 = vmatmul.mubr.bf16.gmra.mrb[0].mxu0 %v595
    %v5387 = vpop.f32.mrb[0].mxu0
    %v5388 = vadd.f32 %v202, %v5387
    %v5389 = vpop.f32.mrb[0].mxu0
    %v5390 = vpop.f32.mrb[0].mxu0
    %v5391 = vadd.f32 %v207, %v5390
    %v5392 = vpop.f32.mrb[0].mxu0
    %5393 = vmatprep.mubr.bf16.mxu0 0
    %5394 = vmatmul.mubr.bf16.gmra.mrb[0].mxu0 %v598
    %v5395 = vpop.f32.mrb[0].mxu0
    %v5396 = vadd.f32 %v212, %v5395
    %v5397 = vpop.f32.mrb[0].mxu0
    %v5398 = vpop.f32.mrb[0].mxu0
    %v5399 = vadd.f32 %v217, %v5398
    %v5400 = vpop.f32.mrb[0].mxu0
    %5401 = vmatprep.mubr.bf16.mxu0 0
    %5402 = vmatmul.mubr.bf16.gmra.mrb[0].mxu0 %v601
    %v5403 = vpop.f32.mrb[0].mxu0
    %v5404 = vadd.f32 %v222, %v5403
    %v5405 = vpop.f32.mrb[0].mxu0
    %v5406 = vpop.f32.mrb[0].mxu0
    %v5407 = vadd.f32 %v227, %v5406
    %v5408 = vpop.f32.mrb[0].mxu0
    %5409 = vmatprep.mubr.bf16.mxu0 0
    %5410 = vmatmul.mubr.bf16.gmra.mrb[0].mxu0 %v604
    %v5411 = vpop.f32.mrb[0].mxu0
    %v5412 = vadd.f32 %v232, %v5411
    %v5413 = vpop.f32.mrb[0].mxu0
    %v5414 = vpop.f32.mrb[0].mxu0
    %v5415 = vadd.f32 %v237, %v5414
    %v5416 = vpop.f32.mrb[0].mxu0
    %5417 = vmatprep.mubr.bf16.mxu0 0
    %5418 = vmatmul.mubr.bf16.gmra.mrb[0].mxu0 %v607
    %v5419 = vpop.f32.mrb[0].mxu0
    %v5420 = vadd.f32 %v242, %v5419
    %v5421 = vpop.f32.mrb[0].mxu0
    %v5422 = vpop.f32.mrb[0].mxu0
    %v5423 = vadd.f32 %v247, %v5422
    %v5424 = vpop.f32.mrb[0].mxu0
    %5425 = vdwg.mxu0
    %v5426 = vxor.u32 %v5364, 2147483648
    %v5427 = vxor.u32 %v5367, 2147483648
    %v5428 = vxor.u32 %v5372, 2147483648
    %v5429 = vxor.u32 %v5375, 2147483648
    %v5430 = vxor.u32 %v5380, 2147483648
    %v5431 = vxor.u32 %v5383, 2147483648
    %v5432 = vxor.u32 %v5388, 2147483648
    %v5433 = vxor.u32 %v5391, 2147483648
    %v5434 = vmul.f32 %v5426, 1.442695
    %v5435 = vpow.pop %v5434
    %v5436 = vmul.f32 %v5427, 1.442695
    %v5437 = vpow.pop %v5436
    %v5438 = vmul.f32 %v5428, 1.442695
    %v5439 = vpow.pop %v5438
    %v5440 = vmul.f32 %v5429, 1.442695
    %v5441 = vpow.pop %v5440
    %v5442 = vmul.f32 %v5430, 1.442695
    %v5443 = vpow.pop %v5442
    %v5444 = vmul.f32 %v5431, 1.442695
    %v5445 = vpow.pop %v5444
    %v5446 = vmul.f32 %v5432, 1.442695
    %v5447 = vpow.pop %v5446
    %v5448 = vmul.f32 %v5433, 1.442695
    %v5449 = vpow.pop %v5448
    %v5450 = vadd.f32 %v5435, 1.0
    %v5451 = vadd.f32 %v5437, 1.0
    %v5452 = vadd.f32 %v5439, 1.0
    %v5453 = vadd.f32 %v5441, 1.0
    %v5454 = vadd.f32 %v5443, 1.0
    %v5455 = vadd.f32 %v5445, 1.0
    %v5456 = vadd.f32 %v5447, 1.0
    %v5457 = vadd.f32 %v5449, 1.0
    %v5458 = vrcp.pop %v5450
    %v5459 = vmul.f32 1.0, %v5458
    %v5460 = vrcp.pop %v5451
    %v5461 = vmul.f32 1.0, %v5460
    %v5462 = vrcp.pop %v5452
    %v5463 = vmul.f32 1.0, %v5462
    %v5464 = vrcp.pop %v5453
    %v5465 = vmul.f32 1.0, %v5464
    %v5466 = vrcp.pop %v5454
    %v5467 = vmul.f32 1.0, %v5466
    %v5468 = vrcp.pop %v5455
    %v5469 = vmul.f32 1.0, %v5468
    %v5470 = vrcp.pop %v5456
    %v5471 = vmul.f32 1.0, %v5470
    %v5472 = vrcp.pop %v5457
    %v5473 = vmul.f32 1.0, %v5472
    %v5474 = vtanh.pop %v5396
    %v5475 = vtanh.pop %v5399
    %v5476 = vtanh.pop %v5404
    %v5477 = vtanh.pop %v5407
    %v5478 = vxor.u32 %v5412, 2147483648
    %v5479 = vxor.u32 %v5415, 2147483648
    %v5480 = vxor.u32 %v5420, 2147483648
    %v5481 = vxor.u32 %v5423, 2147483648
    %v5482 = vmul.f32 %v5478, 1.442695
    %v5483 = vpow.pop %v5482
    %v5484 = vmul.f32 %v5479, 1.442695
    %v5485 = vpow.pop %v5484
    %v5486 = vmul.f32 %v5480, 1.442695
    %v5487 = vpow.pop %v5486
    %v5488 = vmul.f32 %v5481, 1.442695
    %v5489 = vpow.pop %v5488
    %v5490 = vadd.f32 %v5483, 1.0
    %v5491 = vadd.f32 %v5485, 1.0
    %v5492 = vadd.f32 %v5487, 1.0
    %v5493 = vadd.f32 %v5489, 1.0
    %v5494 = vrcp.pop %v5490
    %v5495 = vmul.f32 1.0, %v5494
    %v5496 = vrcp.pop %v5491
    %v5497 = vmul.f32 1.0, %v5496
    %v5498 = vrcp.pop %v5492
    %v5499 = vmul.f32 1.0, %v5498
    %v5500 = vrcp.pop %v5493
    %v5501 = vmul.f32 1.0, %v5500
    %v5502 = vmul.f32 %v5467, %v5128
    %v5503 = vmul.f32 %v5469, %v5129
    %v5504 = vmul.f32 %v5471, %v5130
    %v5505 = vmul.f32 %v5473, %v5131
    %v5506 = vmul.f32 %v5459, %v5474
    %v5507 = vmul.f32 %v5461, %v5475
    %v5508 = vmul.f32 %v5463, %v5476
    %v5509 = vmul.f32 %v5465, %v5477
    %v5510 = vadd.f32 %v5502, %v5506
    %v5511 = vadd.f32 %v5503, %v5507
    %v5512 = vadd.f32 %v5504, %v5508
    %v5513 = vadd.f32 %v5505, %v5509
    %v5514 = vtanh.pop %v5510
    %v5515 = vtanh.pop %v5511
    %v5516 = vtanh.pop %v5512
    %v5517 = vtanh.pop %v5513
    %v5518 = vmul.f32 %v5495, %v5514
    %v5519 = vmul.f32 %v5497, %v5515
    %v5520 = vmul.f32 %v5499, %v5516
    %v5521 = vmul.f32 %v5501, %v5517
    %v5522 = vsel %vm2571, %v5323, %v5116
    %v5523 = vsel %vm2571, %v5324, %v5117
    %v5524 = vsel %vm2571, %v5325, %v5118
    %v5525 = vsel %vm2571, %v5326, %v5119
    %v5526 = vsel %vm2571, %v5315, %v5120
    %v5527 = vsel %vm2571, %v5316, %v5121
    %v5528 = vsel %vm2571, %v5317, %v5122
    %v5529 = vsel %vm2571, %v5318, %v5123
    %v5530 = vsel %vm2570, %v5518, %v5124
    %v5531 = vsel %vm2570, %v5519, %v5125
    %v5532 = vsel %vm2570, %v5520, %v5126
    %v5533 = vsel %vm2570, %v5521, %v5127
    %v5534 = vsel %vm2570, %v5510, %v5128
    %v5535 = vsel %vm2570, %v5511, %v5129
    %v5536 = vsel %vm2570, %v5512, %v5130
    %v5537 = vsel %vm2570, %v5513, %v5131
    %v5538 = vpack.c.bf16 %v5523, %v5522
    %v5539 = vpack.c.bf16 %v5525, %v5524
    %5540 = vmatprep.subr.bf16.mxu0 0
    %5541 = vmatpush1.bf16.msra.mxu0 %v1931
    %5542 = vmatprep.subr.bf16.mxu0 0
    %5543 = vmatpush1.bf16.msra.mxu0 %v1932
    %5544 = vmatprep.subr.bf16.mxu0 0
    %5545 = vmatpush1.bf16.msra.mxu0 %v5538
    %5546 = vmatprep.subr.bf16.mxu0 0
    %5547 = vmatpush1.bf16.msra.mxu0 %v5539
    %5548 = vmatprep.subr.bf16.mxu0 0
    %5549 = vmatpush1.bf16.msra.mxu0 0
    %5550 = vmatprep.subr.bf16.mxu0 0
    %5551 = vmatpush1.bf16.msra.mxu0 0
    %5552 = vmatprep.subr.bf16.mxu0 0
    %5553 = vmatpush1.bf16.msra.mxu0 0
    %5554 = vmatprep.subr.bf16.mxu0 0
    %5555 = vmatpush1.bf16.msra.mxu0 0
    %5556 = vmatprep.subr.bf16.mxu0 0
    %5557 = vmatpush1.bf16.msra.mxu0 0
    %5558 = vmatprep.subr.bf16.mxu0 0
    %5559 = vmatpush1.bf16.msra.mxu0 0
    %5560 = vmatprep.subr.bf16.mxu0 0
    %5561 = vmatpush1.bf16.msra.mxu0 0
    %5562 = vmatprep.subr.bf16.mxu0 0
    %5563 = vmatpush1.bf16.msra.mxu0 0
    %5564 = vmatprep.subr.bf16.mxu0 0
    %5565 = vmatpush1.bf16.msra.mxu0 0
    %5566 = vmatprep.subr.bf16.mxu0 0
    %5567 = vmatpush1.bf16.msra.mxu0 0
    %5568 = vmatprep.subr.bf16.mxu0 0
    %5569 = vmatpush1.bf16.msra.mxu0 0
    %5570 = vmatprep.subr.bf16.mxu0 0
    %5571 = vmatpush1.bf16.msra.mxu0 0
    %5572 = vmatprep.mubr.bf16.mxu0 0
    %5573 = vmatmul.mubr.bf16.gmra.mrb[0].mxu0 %v317
    %v5574 = vpop.f32.mrb[0].mxu0
    %v5575 = vadd.f32 %v76, %v5574
    %v5576 = vpop.f32.mrb[0].mxu0
    %v5577 = vpop.f32.mrb[0].mxu0
    %v5578 = vadd.f32 %v81, %v5577
    %v5579 = vpop.f32.mrb[0].mxu0
    %5580 = vmatprep.mubr.bf16.mxu0 0
    %5581 = vmatmul.mubr.bf16.gmra.mrb[0].mxu0 %v320
    %v5582 = vpop.f32.mrb[0].mxu0
    %v5583 = vadd.f32 %v86, %v5582
    %v5584 = vpop.f32.mrb[0].mxu0
    %v5585 = vpop.f32.mrb[0].mxu0
    %v5586 = vadd.f32 %v91, %v5585
    %v5587 = vpop.f32.mrb[0].mxu0
    %5588 = vmatprep.mubr.bf16.mxu0 0
    %5589 = vmatmul.mubr.bf16.gmra.mrb[0].mxu0 %v323
    %v5590 = vpop.f32.mrb[0].mxu0
    %v5591 = vadd.f32 %v96, %v5590
    %v5592 = vpop.f32.mrb[0].mxu0
    %v5593 = vpop.f32.mrb[0].mxu0
    %v5594 = vadd.f32 %v101, %v5593
    %v5595 = vpop.f32.mrb[0].mxu0
    %5596 = vmatprep.mubr.bf16.mxu0 0
    %5597 = vmatmul.mubr.bf16.gmra.mrb[0].mxu0 %v326
    %v5598 = vpop.f32.mrb[0].mxu0
    %v5599 = vadd.f32 %v106, %v5598
    %v5600 = vpop.f32.mrb[0].mxu0
    %v5601 = vpop.f32.mrb[0].mxu0
    %v5602 = vadd.f32 %v111, %v5601
    %v5603 = vpop.f32.mrb[0].mxu0
    %5604 = vmatprep.mubr.bf16.mxu0 0
    %5605 = vmatmul.mubr.bf16.gmra.mrb[0].mxu0 %v329
    %v5606 = vpop.f32.mrb[0].mxu0
    %v5607 = vadd.f32 %v116, %v5606
    %v5608 = vpop.f32.mrb[0].mxu0
    %v5609 = vpop.f32.mrb[0].mxu0
    %v5610 = vadd.f32 %v121, %v5609
    %v5611 = vpop.f32.mrb[0].mxu0
    %5612 = vmatprep.mubr.bf16.mxu0 0
    %5613 = vmatmul.mubr.bf16.gmra.mrb[0].mxu0 %v332
    %v5614 = vpop.f32.mrb[0].mxu0
    %v5615 = vadd.f32 %v126, %v5614
    %v5616 = vpop.f32.mrb[0].mxu0
    %v5617 = vpop.f32.mrb[0].mxu0
    %v5618 = vadd.f32 %v131, %v5617
    %v5619 = vpop.f32.mrb[0].mxu0
    %5620 = vmatprep.mubr.bf16.mxu0 0
    %5621 = vmatmul.mubr.bf16.gmra.mrb[0].mxu0 %v335
    %v5622 = vpop.f32.mrb[0].mxu0
    %v5623 = vadd.f32 %v136, %v5622
    %v5624 = vpop.f32.mrb[0].mxu0
    %v5625 = vpop.f32.mrb[0].mxu0
    %v5626 = vadd.f32 %v141, %v5625
    %v5627 = vpop.f32.mrb[0].mxu0
    %5628 = vmatprep.mubr.bf16.mxu0 0
    %5629 = vmatmul.mubr.bf16.gmra.mrb[0].mxu0 %v338
    %v5630 = vpop.f32.mrb[0].mxu0
    %v5631 = vadd.f32 %v146, %v5630
    %v5632 = vpop.f32.mrb[0].mxu0
    %v5633 = vpop.f32.mrb[0].mxu0
    %v5634 = vadd.f32 %v151, %v5633
    %v5635 = vpop.f32.mrb[0].mxu0
    %5636 = vdwg.mxu0
    %v5637 = vxor.u32 %v5575, 2147483648
    %v5638 = vxor.u32 %v5578, 2147483648
    %v5639 = vxor.u32 %v5583, 2147483648
    %v5640 = vxor.u32 %v5586, 2147483648
    %v5641 = vxor.u32 %v5591, 2147483648
    %v5642 = vxor.u32 %v5594, 2147483648
    %v5643 = vxor.u32 %v5599, 2147483648
    %v5644 = vxor.u32 %v5602, 2147483648
    %v5645 = vmul.f32 %v5637, 1.442695
    %v5646 = vpow.pop %v5645
    %v5647 = vmul.f32 %v5638, 1.442695
    %v5648 = vpow.pop %v5647
    %v5649 = vmul.f32 %v5639, 1.442695
    %v5650 = vpow.pop %v5649
    %v5651 = vmul.f32 %v5640, 1.442695
    %v5652 = vpow.pop %v5651
    %v5653 = vmul.f32 %v5641, 1.442695
    %v5654 = vpow.pop %v5653
    %v5655 = vmul.f32 %v5642, 1.442695
    %v5656 = vpow.pop %v5655
    %v5657 = vmul.f32 %v5643, 1.442695
    %v5658 = vpow.pop %v5657
    %v5659 = vmul.f32 %v5644, 1.442695
    %v5660 = vpow.pop %v5659
    %v5661 = vadd.f32 %v5646, 1.0
    %v5662 = vadd.f32 %v5648, 1.0
    %v5663 = vadd.f32 %v5650, 1.0
    %v5664 = vadd.f32 %v5652, 1.0
    %v5665 = vadd.f32 %v5654, 1.0
    %v5666 = vadd.f32 %v5656, 1.0
    %v5667 = vadd.f32 %v5658, 1.0
    %v5668 = vadd.f32 %v5660, 1.0
    %v5669 = vrcp.pop %v5661
    %v5670 = vmul.f32 1.0, %v5669
    %v5671 = vrcp.pop %v5662
    %v5672 = vmul.f32 1.0, %v5671
    %v5673 = vrcp.pop %v5663
    %v5674 = vmul.f32 1.0, %v5673
    %v5675 = vrcp.pop %v5664
    %v5676 = vmul.f32 1.0, %v5675
    %v5677 = vrcp.pop %v5665
    %v5678 = vmul.f32 1.0, %v5677
    %v5679 = vrcp.pop %v5666
    %v5680 = vmul.f32 1.0, %v5679
    %v5681 = vrcp.pop %v5667
    %v5682 = vmul.f32 1.0, %v5681
    %v5683 = vrcp.pop %v5668
    %v5684 = vmul.f32 1.0, %v5683
    %v5685 = vtanh.pop %v5607
    %v5686 = vtanh.pop %v5610
    %v5687 = vtanh.pop %v5615
    %v5688 = vtanh.pop %v5618
    %v5689 = vxor.u32 %v5623, 2147483648
    %v5690 = vxor.u32 %v5626, 2147483648
    %v5691 = vxor.u32 %v5631, 2147483648
    %v5692 = vxor.u32 %v5634, 2147483648
    %v5693 = vmul.f32 %v5689, 1.442695
    %v5694 = vpow.pop %v5693
    %v5695 = vmul.f32 %v5690, 1.442695
    %v5696 = vpow.pop %v5695
    %v5697 = vmul.f32 %v5691, 1.442695
    %v5698 = vpow.pop %v5697
    %v5699 = vmul.f32 %v5692, 1.442695
    %v5700 = vpow.pop %v5699
    %v5701 = vadd.f32 %v5694, 1.0
    %v5702 = vadd.f32 %v5696, 1.0
    %v5703 = vadd.f32 %v5698, 1.0
    %v5704 = vadd.f32 %v5700, 1.0
    %v5705 = vrcp.pop %v5701
    %v5706 = vmul.f32 1.0, %v5705
    %v5707 = vrcp.pop %v5702
    %v5708 = vmul.f32 1.0, %v5707
    %v5709 = vrcp.pop %v5703
    %v5710 = vmul.f32 1.0, %v5709
    %v5711 = vrcp.pop %v5704
    %v5712 = vmul.f32 1.0, %v5711
    %v5713 = vmul.f32 %v5678, %v5526
    %v5714 = vmul.f32 %v5680, %v5527
    %v5715 = vmul.f32 %v5682, %v5528
    %v5716 = vmul.f32 %v5684, %v5529
    %v5717 = vmul.f32 %v5670, %v5685
    %v5718 = vmul.f32 %v5672, %v5686
    %v5719 = vmul.f32 %v5674, %v5687
    %v5720 = vmul.f32 %v5676, %v5688
    %v5721 = vadd.f32 %v5713, %v5717
    %v5722 = vadd.f32 %v5714, %v5718
    %v5723 = vadd.f32 %v5715, %v5719
    %v5724 = vadd.f32 %v5716, %v5720
    %v5725 = vtanh.pop %v5721
    %v5726 = vtanh.pop %v5722
    %v5727 = vtanh.pop %v5723
    %v5728 = vtanh.pop %v5724
    %v5729 = vmul.f32 %v5706, %v5725
    %v5730 = vmul.f32 %v5708, %v5726
    %v5731 = vmul.f32 %v5710, %v5727
    %v5732 = vmul.f32 %v5712, %v5728
    %v5733 = vpack.c.bf16 %v5531, %v5530
    %v5734 = vpack.c.bf16 %v5533, %v5532
    %5735 = vmatprep.subr.bf16.mxu0 0
    %5736 = vmatpush1.bf16.msra.mxu0 %v1724
    %5737 = vmatprep.subr.bf16.mxu0 0
    %5738 = vmatpush1.bf16.msra.mxu0 %v1725
    %5739 = vmatprep.subr.bf16.mxu0 0
    %5740 = vmatpush1.bf16.msra.mxu0 %v5733
    %5741 = vmatprep.subr.bf16.mxu0 0
    %5742 = vmatpush1.bf16.msra.mxu0 %v5734
    %5743 = vmatprep.subr.bf16.mxu0 0
    %5744 = vmatpush1.bf16.msra.mxu0 0
    %5745 = vmatprep.subr.bf16.mxu0 0
    %5746 = vmatpush1.bf16.msra.mxu0 0
    %5747 = vmatprep.subr.bf16.mxu0 0
    %5748 = vmatpush1.bf16.msra.mxu0 0
    %5749 = vmatprep.subr.bf16.mxu0 0
    %5750 = vmatpush1.bf16.msra.mxu0 0
    %5751 = vmatprep.subr.bf16.mxu0 0
    %5752 = vmatpush1.bf16.msra.mxu0 0
    %5753 = vmatprep.subr.bf16.mxu0 0
    %5754 = vmatpush1.bf16.msra.mxu0 0
    %5755 = vmatprep.subr.bf16.mxu0 0
    %5756 = vmatpush1.bf16.msra.mxu0 0
    %5757 = vmatprep.subr.bf16.mxu0 0
    %5758 = vmatpush1.bf16.msra.mxu0 0
    %5759 = vmatprep.subr.bf16.mxu0 0
    %5760 = vmatpush1.bf16.msra.mxu0 0
    %5761 = vmatprep.subr.bf16.mxu0 0
    %5762 = vmatpush1.bf16.msra.mxu0 0
    %5763 = vmatprep.subr.bf16.mxu0 0
    %5764 = vmatpush1.bf16.msra.mxu0 0
    %5765 = vmatprep.subr.bf16.mxu0 0
    %5766 = vmatpush1.bf16.msra.mxu0 0
    %5767 = vmatprep.mubr.bf16.mxu0 0
    %5768 = vmatmul.mubr.bf16.gmra.mrb[0].mxu0 %v586
    %v5769 = vpop.f32.mrb[0].mxu0
    %v5770 = vadd.f32 %v172, %v5769
    %v5771 = vpop.f32.mrb[0].mxu0
    %v5772 = vpop.f32.mrb[0].mxu0
    %v5773 = vadd.f32 %v177, %v5772
    %v5774 = vpop.f32.mrb[0].mxu0
    %5775 = vmatprep.mubr.bf16.mxu0 0
    %5776 = vmatmul.mubr.bf16.gmra.mrb[0].mxu0 %v589
    %v5777 = vpop.f32.mrb[0].mxu0
    %v5778 = vadd.f32 %v182, %v5777
    %v5779 = vpop.f32.mrb[0].mxu0
    %v5780 = vpop.f32.mrb[0].mxu0
    %v5781 = vadd.f32 %v187, %v5780
    %v5782 = vpop.f32.mrb[0].mxu0
    %5783 = vmatprep.mubr.bf16.mxu0 0
    %5784 = vmatmul.mubr.bf16.gmra.mrb[0].mxu0 %v592
    %v5785 = vpop.f32.mrb[0].mxu0
    %v5786 = vadd.f32 %v192, %v5785
    %v5787 = vpop.f32.mrb[0].mxu0
    %v5788 = vpop.f32.mrb[0].mxu0
    %v5789 = vadd.f32 %v197, %v5788
    %v5790 = vpop.f32.mrb[0].mxu0
    %5791 = vmatprep.mubr.bf16.mxu0 0
    %5792 = vmatmul.mubr.bf16.gmra.mrb[0].mxu0 %v595
    %v5793 = vpop.f32.mrb[0].mxu0
    %v5794 = vadd.f32 %v202, %v5793
    %v5795 = vpop.f32.mrb[0].mxu0
    %v5796 = vpop.f32.mrb[0].mxu0
    %v5797 = vadd.f32 %v207, %v5796
    %v5798 = vpop.f32.mrb[0].mxu0
    %5799 = vmatprep.mubr.bf16.mxu0 0
    %5800 = vmatmul.mubr.bf16.gmra.mrb[0].mxu0 %v598
    %v5801 = vpop.f32.mrb[0].mxu0
    %v5802 = vadd.f32 %v212, %v5801
    %v5803 = vpop.f32.mrb[0].mxu0
    %v5804 = vpop.f32.mrb[0].mxu0
    %v5805 = vadd.f32 %v217, %v5804
    %v5806 = vpop.f32.mrb[0].mxu0
    %5807 = vmatprep.mubr.bf16.mxu0 0
    %5808 = vmatmul.mubr.bf16.gmra.mrb[0].mxu0 %v601
    %v5809 = vpop.f32.mrb[0].mxu0
    %v5810 = vadd.f32 %v222, %v5809
    %v5811 = vpop.f32.mrb[0].mxu0
    %v5812 = vpop.f32.mrb[0].mxu0
    %v5813 = vadd.f32 %v227, %v5812
    %v5814 = vpop.f32.mrb[0].mxu0
    %5815 = vmatprep.mubr.bf16.mxu0 0
    %5816 = vmatmul.mubr.bf16.gmra.mrb[0].mxu0 %v604
    %v5817 = vpop.f32.mrb[0].mxu0
    %v5818 = vadd.f32 %v232, %v5817
    %v5819 = vpop.f32.mrb[0].mxu0
    %v5820 = vpop.f32.mrb[0].mxu0
    %v5821 = vadd.f32 %v237, %v5820
    %v5822 = vpop.f32.mrb[0].mxu0
    %5823 = vmatprep.mubr.bf16.mxu0 0
    %5824 = vmatmul.mubr.bf16.gmra.mrb[0].mxu0 %v607
    %v5825 = vpop.f32.mrb[0].mxu0
    %v5826 = vadd.f32 %v242, %v5825
    %v5827 = vpop.f32.mrb[0].mxu0
    %v5828 = vpop.f32.mrb[0].mxu0
    %v5829 = vadd.f32 %v247, %v5828
    %v5830 = vpop.f32.mrb[0].mxu0
    %5831 = vdwg.mxu0
    %v5832 = vxor.u32 %v5770, 2147483648
    %v5833 = vxor.u32 %v5773, 2147483648
    %v5834 = vxor.u32 %v5778, 2147483648
    %v5835 = vxor.u32 %v5781, 2147483648
    %v5836 = vxor.u32 %v5786, 2147483648
    %v5837 = vxor.u32 %v5789, 2147483648
    %v5838 = vxor.u32 %v5794, 2147483648
    %v5839 = vxor.u32 %v5797, 2147483648
    %v5840 = vmul.f32 %v5832, 1.442695
    %v5841 = vpow.pop %v5840
    %v5842 = vmul.f32 %v5833, 1.442695
    %v5843 = vpow.pop %v5842
    %v5844 = vmul.f32 %v5834, 1.442695
    %v5845 = vpow.pop %v5844
    %v5846 = vmul.f32 %v5835, 1.442695
    %v5847 = vpow.pop %v5846
    %v5848 = vmul.f32 %v5836, 1.442695
    %v5849 = vpow.pop %v5848
    %v5850 = vmul.f32 %v5837, 1.442695
    %v5851 = vpow.pop %v5850
    %v5852 = vmul.f32 %v5838, 1.442695
    %v5853 = vpow.pop %v5852
    %v5854 = vmul.f32 %v5839, 1.442695
    %v5855 = vpow.pop %v5854
    %v5856 = vadd.f32 %v5841, 1.0
    %v5857 = vadd.f32 %v5843, 1.0
    %v5858 = vadd.f32 %v5845, 1.0
    %v5859 = vadd.f32 %v5847, 1.0
    %v5860 = vadd.f32 %v5849, 1.0
    %v5861 = vadd.f32 %v5851, 1.0
    %v5862 = vadd.f32 %v5853, 1.0
    %v5863 = vadd.f32 %v5855, 1.0
    %v5864 = vrcp.pop %v5856
    %v5865 = vmul.f32 1.0, %v5864
    %v5866 = vrcp.pop %v5857
    %v5867 = vmul.f32 1.0, %v5866
    %v5868 = vrcp.pop %v5858
    %v5869 = vmul.f32 1.0, %v5868
    %v5870 = vrcp.pop %v5859
    %v5871 = vmul.f32 1.0, %v5870
    %v5872 = vrcp.pop %v5860
    %v5873 = vmul.f32 1.0, %v5872
    %v5874 = vrcp.pop %v5861
    %v5875 = vmul.f32 1.0, %v5874
    %v5876 = vrcp.pop %v5862
    %v5877 = vmul.f32 1.0, %v5876
    %v5878 = vrcp.pop %v5863
    %v5879 = vmul.f32 1.0, %v5878
    %v5880 = vtanh.pop %v5802
    %v5881 = vtanh.pop %v5805
    %v5882 = vtanh.pop %v5810
    %v5883 = vtanh.pop %v5813
    %v5884 = vxor.u32 %v5818, 2147483648
    %v5885 = vxor.u32 %v5821, 2147483648
    %v5886 = vxor.u32 %v5826, 2147483648
    %v5887 = vxor.u32 %v5829, 2147483648
    %v5888 = vmul.f32 %v5884, 1.442695
    %v5889 = vpow.pop %v5888
    %v5890 = vmul.f32 %v5885, 1.442695
    %v5891 = vpow.pop %v5890
    %v5892 = vmul.f32 %v5886, 1.442695
    %v5893 = vpow.pop %v5892
    %v5894 = vmul.f32 %v5887, 1.442695
    %v5895 = vpow.pop %v5894
    %v5896 = vadd.f32 %v5889, 1.0
    %v5897 = vadd.f32 %v5891, 1.0
    %v5898 = vadd.f32 %v5893, 1.0
    %v5899 = vadd.f32 %v5895, 1.0
    %v5900 = vrcp.pop %v5896
    %v5901 = vmul.f32 1.0, %v5900
    %v5902 = vrcp.pop %v5897
    %v5903 = vmul.f32 1.0, %v5902
    %v5904 = vrcp.pop %v5898
    %v5905 = vmul.f32 1.0, %v5904
    %v5906 = vrcp.pop %v5899
    %v5907 = vmul.f32 1.0, %v5906
    %v5908 = vmul.f32 %v5873, %v5534
    %v5909 = vmul.f32 %v5875, %v5535
    %v5910 = vmul.f32 %v5877, %v5536
    %v5911 = vmul.f32 %v5879, %v5537
    %v5912 = vmul.f32 %v5865, %v5880
    %v5913 = vmul.f32 %v5867, %v5881
    %v5914 = vmul.f32 %v5869, %v5882
    %v5915 = vmul.f32 %v5871, %v5883
    %v5916 = vadd.f32 %v5908, %v5912
    %v5917 = vadd.f32 %v5909, %v5913
    %v5918 = vadd.f32 %v5910, %v5914
    %v5919 = vadd.f32 %v5911, %v5915
    %v5920 = vtanh.pop %v5916
    %v5921 = vtanh.pop %v5917
    %v5922 = vtanh.pop %v5918
    %v5923 = vtanh.pop %v5919
    %v5924 = vmul.f32 %v5901, %v5920
    %v5925 = vmul.f32 %v5903, %v5921
    %v5926 = vmul.f32 %v5905, %v5922
    %v5927 = vmul.f32 %v5907, %v5923
    %v5928 = vsel %vm2129, %v5729, %v5522
    %v5929 = vsel %vm2129, %v5730, %v5523
    %v5930 = vsel %vm2129, %v5731, %v5524
    %v5931 = vsel %vm2129, %v5732, %v5525
    %v5932 = vsel %vm2129, %v5721, %v5526
    %v5933 = vsel %vm2129, %v5722, %v5527
    %v5934 = vsel %vm2129, %v5723, %v5528
    %v5935 = vsel %vm2129, %v5724, %v5529
    %v5936 = vsel %vm2128, %v5924, %v5530
    %v5937 = vsel %vm2128, %v5925, %v5531
    %v5938 = vsel %vm2128, %v5926, %v5532
    %v5939 = vsel %vm2128, %v5927, %v5533
    %v5940 = vsel %vm2128, %v5916, %v5534
    %v5941 = vsel %vm2128, %v5917, %v5535
    %v5942 = vsel %vm2128, %v5918, %v5536
    %v5943 = vsel %vm2128, %v5919, %v5537
    %v5944 = vpack.c.bf16 %v5929, %v5928
    %v5945 = vpack.c.bf16 %v5931, %v5930
    %5946 = vmatprep.subr.bf16.mxu0 0
    %5947 = vmatpush1.bf16.msra.mxu0 %v1489
    %5948 = vmatprep.subr.bf16.mxu0 0
    %5949 = vmatpush1.bf16.msra.mxu0 %v1490
    %5950 = vmatprep.subr.bf16.mxu0 0
    %5951 = vmatpush1.bf16.msra.mxu0 %v5944
    %5952 = vmatprep.subr.bf16.mxu0 0
    %5953 = vmatpush1.bf16.msra.mxu0 %v5945
    %5954 = vmatprep.subr.bf16.mxu0 0
    %5955 = vmatpush1.bf16.msra.mxu0 0
    %5956 = vmatprep.subr.bf16.mxu0 0
    %5957 = vmatpush1.bf16.msra.mxu0 0
    %5958 = vmatprep.subr.bf16.mxu0 0
    %5959 = vmatpush1.bf16.msra.mxu0 0
    %5960 = vmatprep.subr.bf16.mxu0 0
    %5961 = vmatpush1.bf16.msra.mxu0 0
    %5962 = vmatprep.subr.bf16.mxu0 0
    %5963 = vmatpush1.bf16.msra.mxu0 0
    %5964 = vmatprep.subr.bf16.mxu0 0
    %5965 = vmatpush1.bf16.msra.mxu0 0
    %5966 = vmatprep.subr.bf16.mxu0 0
    %5967 = vmatpush1.bf16.msra.mxu0 0
    %5968 = vmatprep.subr.bf16.mxu0 0
    %5969 = vmatpush1.bf16.msra.mxu0 0
    %5970 = vmatprep.subr.bf16.mxu0 0
    %5971 = vmatpush1.bf16.msra.mxu0 0
    %5972 = vmatprep.subr.bf16.mxu0 0
    %5973 = vmatpush1.bf16.msra.mxu0 0
    %5974 = vmatprep.subr.bf16.mxu0 0
    %5975 = vmatpush1.bf16.msra.mxu0 0
    %5976 = vmatprep.subr.bf16.mxu0 0
    %5977 = vmatpush1.bf16.msra.mxu0 0
    %5978 = vmatprep.mubr.bf16.mxu0 0
    %5979 = vmatmul.mubr.bf16.gmra.mrb[0].mxu0 %v317
    %v5980 = vpop.f32.mrb[0].mxu0
    %v5981 = vadd.f32 %v76, %v5980
    %v5982 = vpop.f32.mrb[0].mxu0
    %v5983 = vpop.f32.mrb[0].mxu0
    %v5984 = vadd.f32 %v81, %v5983
    %v5985 = vpop.f32.mrb[0].mxu0
    %5986 = vmatprep.mubr.bf16.mxu0 0
    %5987 = vmatmul.mubr.bf16.gmra.mrb[0].mxu0 %v320
    %v5988 = vpop.f32.mrb[0].mxu0
    %v5989 = vadd.f32 %v86, %v5988
    %v5990 = vpop.f32.mrb[0].mxu0
    %v5991 = vpop.f32.mrb[0].mxu0
    %v5992 = vadd.f32 %v91, %v5991
    %v5993 = vpop.f32.mrb[0].mxu0
    %5994 = vmatprep.mubr.bf16.mxu0 0
    %5995 = vmatmul.mubr.bf16.gmra.mrb[0].mxu0 %v323
    %v5996 = vpop.f32.mrb[0].mxu0
    %v5997 = vadd.f32 %v96, %v5996
    %v5998 = vpop.f32.mrb[0].mxu0
    %v5999 = vpop.f32.mrb[0].mxu0
    %v6000 = vadd.f32 %v101, %v5999
    %v6001 = vpop.f32.mrb[0].mxu0
    %6002 = vmatprep.mubr.bf16.mxu0 0
    %6003 = vmatmul.mubr.bf16.gmra.mrb[0].mxu0 %v326
    %v6004 = vpop.f32.mrb[0].mxu0
    %v6005 = vadd.f32 %v106, %v6004
    %v6006 = vpop.f32.mrb[0].mxu0
    %v6007 = vpop.f32.mrb[0].mxu0
    %v6008 = vadd.f32 %v111, %v6007
    %v6009 = vpop.f32.mrb[0].mxu0
    %6010 = vmatprep.mubr.bf16.mxu0 0
    %6011 = vmatmul.mubr.bf16.gmra.mrb[0].mxu0 %v329
    %v6012 = vpop.f32.mrb[0].mxu0
    %v6013 = vadd.f32 %v116, %v6012
    %v6014 = vpop.f32.mrb[0].mxu0
    %v6015 = vpop.f32.mrb[0].mxu0
    %v6016 = vadd.f32 %v121, %v6015
    %v6017 = vpop.f32.mrb[0].mxu0
    %6018 = vmatprep.mubr.bf16.mxu0 0
    %6019 = vmatmul.mubr.bf16.gmra.mrb[0].mxu0 %v332
    %v6020 = vpop.f32.mrb[0].mxu0
    %v6021 = vadd.f32 %v126, %v6020
    %v6022 = vpop.f32.mrb[0].mxu0
    %v6023 = vpop.f32.mrb[0].mxu0
    %v6024 = vadd.f32 %v131, %v6023
    %v6025 = vpop.f32.mrb[0].mxu0
    %6026 = vmatprep.mubr.bf16.mxu0 0
    %6027 = vmatmul.mubr.bf16.gmra.mrb[0].mxu0 %v335
    %v6028 = vpop.f32.mrb[0].mxu0
    %v6029 = vadd.f32 %v136, %v6028
    %v6030 = vpop.f32.mrb[0].mxu0
    %v6031 = vpop.f32.mrb[0].mxu0
    %v6032 = vadd.f32 %v141, %v6031
    %v6033 = vpop.f32.mrb[0].mxu0
    %6034 = vmatprep.mubr.bf16.mxu0 0
    %6035 = vmatmul.mubr.bf16.gmra.mrb[0].mxu0 %v338
    %v6036 = vpop.f32.mrb[0].mxu0
    %v6037 = vadd.f32 %v146, %v6036
    %v6038 = vpop.f32.mrb[0].mxu0
    %v6039 = vpop.f32.mrb[0].mxu0
    %v6040 = vadd.f32 %v151, %v6039
    %v6041 = vpop.f32.mrb[0].mxu0
    %6042 = vdwg.mxu0
    %v6043 = vxor.u32 %v5981, 2147483648
    %v6044 = vxor.u32 %v5984, 2147483648
    %v6045 = vxor.u32 %v5989, 2147483648
    %v6046 = vxor.u32 %v5992, 2147483648
    %v6047 = vxor.u32 %v5997, 2147483648
    %v6048 = vxor.u32 %v6000, 2147483648
    %v6049 = vxor.u32 %v6005, 2147483648
    %v6050 = vxor.u32 %v6008, 2147483648
    %v6051 = vmul.f32 %v6043, 1.442695
    %v6052 = vpow.pop %v6051
    %v6053 = vmul.f32 %v6044, 1.442695
    %v6054 = vpow.pop %v6053
    %v6055 = vmul.f32 %v6045, 1.442695
    %v6056 = vpow.pop %v6055
    %v6057 = vmul.f32 %v6046, 1.442695
    %v6058 = vpow.pop %v6057
    %v6059 = vmul.f32 %v6047, 1.442695
    %v6060 = vpow.pop %v6059
    %v6061 = vmul.f32 %v6048, 1.442695
    %v6062 = vpow.pop %v6061
    %v6063 = vmul.f32 %v6049, 1.442695
    %v6064 = vpow.pop %v6063
    %v6065 = vmul.f32 %v6050, 1.442695
    %v6066 = vpow.pop %v6065
    %v6067 = vadd.f32 %v6052, 1.0
    %v6068 = vadd.f32 %v6054, 1.0
    %v6069 = vadd.f32 %v6056, 1.0
    %v6070 = vadd.f32 %v6058, 1.0
    %v6071 = vadd.f32 %v6060, 1.0
    %v6072 = vadd.f32 %v6062, 1.0
    %v6073 = vadd.f32 %v6064, 1.0
    %v6074 = vadd.f32 %v6066, 1.0
    %v6075 = vrcp.pop %v6067
    %v6076 = vmul.f32 1.0, %v6075
    %v6077 = vrcp.pop %v6068
    %v6078 = vmul.f32 1.0, %v6077
    %v6079 = vrcp.pop %v6069
    %v6080 = vmul.f32 1.0, %v6079
    %v6081 = vrcp.pop %v6070
    %v6082 = vmul.f32 1.0, %v6081
    %v6083 = vrcp.pop %v6071
    %v6084 = vmul.f32 1.0, %v6083
    %v6085 = vrcp.pop %v6072
    %v6086 = vmul.f32 1.0, %v6085
    %v6087 = vrcp.pop %v6073
    %v6088 = vmul.f32 1.0, %v6087
    %v6089 = vrcp.pop %v6074
    %v6090 = vmul.f32 1.0, %v6089
    %v6091 = vtanh.pop %v6013
    %v6092 = vtanh.pop %v6016
    %v6093 = vtanh.pop %v6021
    %v6094 = vtanh.pop %v6024
    %v6095 = vxor.u32 %v6029, 2147483648
    %v6096 = vxor.u32 %v6032, 2147483648
    %v6097 = vxor.u32 %v6037, 2147483648
    %v6098 = vxor.u32 %v6040, 2147483648
    %v6099 = vmul.f32 %v6095, 1.442695
    %v6100 = vpow.pop %v6099
    %v6101 = vmul.f32 %v6096, 1.442695
    %v6102 = vpow.pop %v6101
    %v6103 = vmul.f32 %v6097, 1.442695
    %v6104 = vpow.pop %v6103
    %v6105 = vmul.f32 %v6098, 1.442695
    %v6106 = vpow.pop %v6105
    %v6107 = vadd.f32 %v6100, 1.0
    %v6108 = vadd.f32 %v6102, 1.0
    %v6109 = vadd.f32 %v6104, 1.0
    %v6110 = vadd.f32 %v6106, 1.0
    %v6111 = vrcp.pop %v6107
    %v6112 = vmul.f32 1.0, %v6111
    %v6113 = vrcp.pop %v6108
    %v6114 = vmul.f32 1.0, %v6113
    %v6115 = vrcp.pop %v6109
    %v6116 = vmul.f32 1.0, %v6115
    %v6117 = vrcp.pop %v6110
    %v6118 = vmul.f32 1.0, %v6117
    %v6119 = vmul.f32 %v6084, %v5932
    %v6120 = vmul.f32 %v6086, %v5933
    %v6121 = vmul.f32 %v6088, %v5934
    %v6122 = vmul.f32 %v6090, %v5935
    %v6123 = vmul.f32 %v6076, %v6091
    %v6124 = vmul.f32 %v6078, %v6092
    %v6125 = vmul.f32 %v6080, %v6093
    %v6126 = vmul.f32 %v6082, %v6094
    %v6127 = vadd.f32 %v6119, %v6123
    %v6128 = vadd.f32 %v6120, %v6124
    %v6129 = vadd.f32 %v6121, %v6125
    %v6130 = vadd.f32 %v6122, %v6126
    %v6131 = vtanh.pop %v6127
    %v6132 = vtanh.pop %v6128
    %v6133 = vtanh.pop %v6129
    %v6134 = vtanh.pop %v6130
    %v6135 = vmul.f32 %v6112, %v6131
    %v6136 = vmul.f32 %v6114, %v6132
    %v6137 = vmul.f32 %v6116, %v6133
    %v6138 = vmul.f32 %v6118, %v6134
    %v6139 = vpack.c.bf16 %v5937, %v5936
    %v6140 = vpack.c.bf16 %v5939, %v5938
    %6141 = vmatprep.subr.bf16.mxu0 0
    %6142 = vmatpush1.bf16.msra.mxu0 %v1282
    %6143 = vmatprep.subr.bf16.mxu0 0
    %6144 = vmatpush1.bf16.msra.mxu0 %v1283
    %6145 = vmatprep.subr.bf16.mxu0 0
    %6146 = vmatpush1.bf16.msra.mxu0 %v6139
    %6147 = vmatprep.subr.bf16.mxu0 0
    %6148 = vmatpush1.bf16.msra.mxu0 %v6140
    %6149 = vmatprep.subr.bf16.mxu0 0
    %6150 = vmatpush1.bf16.msra.mxu0 0
    %6151 = vmatprep.subr.bf16.mxu0 0
    %6152 = vmatpush1.bf16.msra.mxu0 0
    %6153 = vmatprep.subr.bf16.mxu0 0
    %6154 = vmatpush1.bf16.msra.mxu0 0
    %6155 = vmatprep.subr.bf16.mxu0 0
    %6156 = vmatpush1.bf16.msra.mxu0 0
    %6157 = vmatprep.subr.bf16.mxu0 0
    %6158 = vmatpush1.bf16.msra.mxu0 0
    %6159 = vmatprep.subr.bf16.mxu0 0
    %6160 = vmatpush1.bf16.msra.mxu0 0
    %6161 = vmatprep.subr.bf16.mxu0 0
    %6162 = vmatpush1.bf16.msra.mxu0 0
    %6163 = vmatprep.subr.bf16.mxu0 0
    %6164 = vmatpush1.bf16.msra.mxu0 0
    %6165 = vmatprep.subr.bf16.mxu0 0
    %6166 = vmatpush1.bf16.msra.mxu0 0
    %6167 = vmatprep.subr.bf16.mxu0 0
    %6168 = vmatpush1.bf16.msra.mxu0 0
    %6169 = vmatprep.subr.bf16.mxu0 0
    %6170 = vmatpush1.bf16.msra.mxu0 0
    %6171 = vmatprep.subr.bf16.mxu0 0
    %6172 = vmatpush1.bf16.msra.mxu0 0
    %6173 = vmatprep.mubr.bf16.mxu0 0
    %6174 = vmatmul.mubr.bf16.gmra.mrb[0].mxu0 %v586
    %v6175 = vpop.f32.mrb[0].mxu0
    %v6176 = vadd.f32 %v172, %v6175
    %v6177 = vpop.f32.mrb[0].mxu0
    %v6178 = vpop.f32.mrb[0].mxu0
    %v6179 = vadd.f32 %v177, %v6178
    %v6180 = vpop.f32.mrb[0].mxu0
    %6181 = vmatprep.mubr.bf16.mxu0 0
    %6182 = vmatmul.mubr.bf16.gmra.mrb[0].mxu0 %v589
    %v6183 = vpop.f32.mrb[0].mxu0
    %v6184 = vadd.f32 %v182, %v6183
    %v6185 = vpop.f32.mrb[0].mxu0
    %v6186 = vpop.f32.mrb[0].mxu0
    %v6187 = vadd.f32 %v187, %v6186
    %v6188 = vpop.f32.mrb[0].mxu0
    %6189 = vmatprep.mubr.bf16.mxu0 0
    %6190 = vmatmul.mubr.bf16.gmra.mrb[0].mxu0 %v592
    %v6191 = vpop.f32.mrb[0].mxu0
    %v6192 = vadd.f32 %v192, %v6191
    %v6193 = vpop.f32.mrb[0].mxu0
    %v6194 = vpop.f32.mrb[0].mxu0
    %v6195 = vadd.f32 %v197, %v6194
    %v6196 = vpop.f32.mrb[0].mxu0
    %6197 = vmatprep.mubr.bf16.mxu0 0
    %6198 = vmatmul.mubr.bf16.gmra.mrb[0].mxu0 %v595
    %v6199 = vpop.f32.mrb[0].mxu0
    %v6200 = vadd.f32 %v202, %v6199
    %v6201 = vpop.f32.mrb[0].mxu0
    %v6202 = vpop.f32.mrb[0].mxu0
    %v6203 = vadd.f32 %v207, %v6202
    %v6204 = vpop.f32.mrb[0].mxu0
    %6205 = vmatprep.mubr.bf16.mxu0 0
    %6206 = vmatmul.mubr.bf16.gmra.mrb[0].mxu0 %v598
    %v6207 = vpop.f32.mrb[0].mxu0
    %v6208 = vadd.f32 %v212, %v6207
    %v6209 = vpop.f32.mrb[0].mxu0
    %v6210 = vpop.f32.mrb[0].mxu0
    %v6211 = vadd.f32 %v217, %v6210
    %v6212 = vpop.f32.mrb[0].mxu0
    %6213 = vmatprep.mubr.bf16.mxu0 0
    %6214 = vmatmul.mubr.bf16.gmra.mrb[0].mxu0 %v601
    %v6215 = vpop.f32.mrb[0].mxu0
    %v6216 = vadd.f32 %v222, %v6215
    %v6217 = vpop.f32.mrb[0].mxu0
    %v6218 = vpop.f32.mrb[0].mxu0
    %v6219 = vadd.f32 %v227, %v6218
    %v6220 = vpop.f32.mrb[0].mxu0
    %6221 = vmatprep.mubr.bf16.mxu0 0
    %6222 = vmatmul.mubr.bf16.gmra.mrb[0].mxu0 %v604
    %v6223 = vpop.f32.mrb[0].mxu0
    %v6224 = vadd.f32 %v232, %v6223
    %v6225 = vpop.f32.mrb[0].mxu0
    %v6226 = vpop.f32.mrb[0].mxu0
    %v6227 = vadd.f32 %v237, %v6226
    %v6228 = vpop.f32.mrb[0].mxu0
    %6229 = vmatprep.mubr.bf16.mxu0 0
    %6230 = vmatmul.mubr.bf16.gmra.mrb[0].mxu0 %v607
    %v6231 = vpop.f32.mrb[0].mxu0
    %v6232 = vadd.f32 %v242, %v6231
    %v6233 = vpop.f32.mrb[0].mxu0
    %v6234 = vpop.f32.mrb[0].mxu0
    %v6235 = vadd.f32 %v247, %v6234
    %v6236 = vpop.f32.mrb[0].mxu0
    %6237 = vdwg.mxu0
    %v6238 = vxor.u32 %v6176, 2147483648
    %v6239 = vxor.u32 %v6179, 2147483648
    %v6240 = vxor.u32 %v6184, 2147483648
    %v6241 = vxor.u32 %v6187, 2147483648
    %v6242 = vxor.u32 %v6192, 2147483648
    %v6243 = vxor.u32 %v6195, 2147483648
    %v6244 = vxor.u32 %v6200, 2147483648
    %v6245 = vxor.u32 %v6203, 2147483648
    %v6246 = vmul.f32 %v6238, 1.442695
    %v6247 = vpow.pop %v6246
    %v6248 = vmul.f32 %v6239, 1.442695
    %v6249 = vpow.pop %v6248
    %v6250 = vmul.f32 %v6240, 1.442695
    %v6251 = vpow.pop %v6250
    %v6252 = vmul.f32 %v6241, 1.442695
    %v6253 = vpow.pop %v6252
    %v6254 = vmul.f32 %v6242, 1.442695
    %v6255 = vpow.pop %v6254
    %v6256 = vmul.f32 %v6243, 1.442695
    %v6257 = vpow.pop %v6256
    %v6258 = vmul.f32 %v6244, 1.442695
    %v6259 = vpow.pop %v6258
    %v6260 = vmul.f32 %v6245, 1.442695
    %v6261 = vpow.pop %v6260
    %v6262 = vadd.f32 %v6247, 1.0
    %v6263 = vadd.f32 %v6249, 1.0
    %v6264 = vadd.f32 %v6251, 1.0
    %v6265 = vadd.f32 %v6253, 1.0
    %v6266 = vadd.f32 %v6255, 1.0
    %v6267 = vadd.f32 %v6257, 1.0
    %v6268 = vadd.f32 %v6259, 1.0
    %v6269 = vadd.f32 %v6261, 1.0
    %v6270 = vrcp.pop %v6262
    %v6271 = vmul.f32 1.0, %v6270
    %v6272 = vrcp.pop %v6263
    %v6273 = vmul.f32 1.0, %v6272
    %v6274 = vrcp.pop %v6264
    %v6275 = vmul.f32 1.0, %v6274
    %v6276 = vrcp.pop %v6265
    %v6277 = vmul.f32 1.0, %v6276
    %v6278 = vrcp.pop %v6266
    %v6279 = vmul.f32 1.0, %v6278
    %v6280 = vrcp.pop %v6267
    %v6281 = vmul.f32 1.0, %v6280
    %v6282 = vrcp.pop %v6268
    %v6283 = vmul.f32 1.0, %v6282
    %v6284 = vrcp.pop %v6269
    %v6285 = vmul.f32 1.0, %v6284
    %v6286 = vtanh.pop %v6208
    %v6287 = vtanh.pop %v6211
    %v6288 = vtanh.pop %v6216
    %v6289 = vtanh.pop %v6219
    %v6290 = vxor.u32 %v6224, 2147483648
    %v6291 = vxor.u32 %v6227, 2147483648
    %v6292 = vxor.u32 %v6232, 2147483648
    %v6293 = vxor.u32 %v6235, 2147483648
    %v6294 = vmul.f32 %v6290, 1.442695
    %v6295 = vpow.pop %v6294
    %v6296 = vmul.f32 %v6291, 1.442695
    %v6297 = vpow.pop %v6296
    %v6298 = vmul.f32 %v6292, 1.442695
    %v6299 = vpow.pop %v6298
    %v6300 = vmul.f32 %v6293, 1.442695
    %v6301 = vpow.pop %v6300
    %v6302 = vadd.f32 %v6295, 1.0
    %v6303 = vadd.f32 %v6297, 1.0
    %v6304 = vadd.f32 %v6299, 1.0
    %v6305 = vadd.f32 %v6301, 1.0
    %v6306 = vrcp.pop %v6302
    %v6307 = vmul.f32 1.0, %v6306
    %v6308 = vrcp.pop %v6303
    %v6309 = vmul.f32 1.0, %v6308
    %v6310 = vrcp.pop %v6304
    %v6311 = vmul.f32 1.0, %v6310
    %v6312 = vrcp.pop %v6305
    %v6313 = vmul.f32 1.0, %v6312
    %v6314 = vmul.f32 %v6279, %v5940
    %v6315 = vmul.f32 %v6281, %v5941
    %v6316 = vmul.f32 %v6283, %v5942
    %v6317 = vmul.f32 %v6285, %v5943
    %v6318 = vmul.f32 %v6271, %v6286
    %v6319 = vmul.f32 %v6273, %v6287
    %v6320 = vmul.f32 %v6275, %v6288
    %v6321 = vmul.f32 %v6277, %v6289
    %v6322 = vadd.f32 %v6314, %v6318
    %v6323 = vadd.f32 %v6315, %v6319
    %v6324 = vadd.f32 %v6316, %v6320
    %v6325 = vadd.f32 %v6317, %v6321
    %v6326 = vtanh.pop %v6322
    %v6327 = vtanh.pop %v6323
    %v6328 = vtanh.pop %v6324
    %v6329 = vtanh.pop %v6325
    %v6330 = vmul.f32 %v6307, %v6326
    %v6331 = vmul.f32 %v6309, %v6327
    %v6332 = vmul.f32 %v6311, %v6328
    %v6333 = vmul.f32 %v6313, %v6329
    %v6334 = vsel %vm1687, %v6135, %v5928
    %v6335 = vsel %vm1687, %v6136, %v5929
    %v6336 = vsel %vm1687, %v6137, %v5930
    %v6337 = vsel %vm1687, %v6138, %v5931
    %v6338 = vsel %vm1687, %v6127, %v5932
    %v6339 = vsel %vm1687, %v6128, %v5933
    %v6340 = vsel %vm1687, %v6129, %v5934
    %v6341 = vsel %vm1687, %v6130, %v5935
    %v6342 = vsel %vm1686, %v6330, %v5936
    %v6343 = vsel %vm1686, %v6331, %v5937
    %v6344 = vsel %vm1686, %v6332, %v5938
    %v6345 = vsel %vm1686, %v6333, %v5939
    %v6346 = vsel %vm1686, %v6322, %v5940
    %v6347 = vsel %vm1686, %v6323, %v5941
    %v6348 = vsel %vm1686, %v6324, %v5942
    %v6349 = vsel %vm1686, %v6325, %v5943
    %v6350 = vpack.c.bf16 %v6335, %v6334
    %v6351 = vpack.c.bf16 %v6337, %v6336
    %6352 = vmatprep.subr.bf16.mxu0 0
    %6353 = vmatpush1.bf16.msra.mxu0 %v1047
    %6354 = vmatprep.subr.bf16.mxu0 0
    %6355 = vmatpush1.bf16.msra.mxu0 %v1048
    %6356 = vmatprep.subr.bf16.mxu0 0
    %6357 = vmatpush1.bf16.msra.mxu0 %v6350
    %6358 = vmatprep.subr.bf16.mxu0 0
    %6359 = vmatpush1.bf16.msra.mxu0 %v6351
    %6360 = vmatprep.subr.bf16.mxu0 0
    %6361 = vmatpush1.bf16.msra.mxu0 0
    %6362 = vmatprep.subr.bf16.mxu0 0
    %6363 = vmatpush1.bf16.msra.mxu0 0
    %6364 = vmatprep.subr.bf16.mxu0 0
    %6365 = vmatpush1.bf16.msra.mxu0 0
    %6366 = vmatprep.subr.bf16.mxu0 0
    %6367 = vmatpush1.bf16.msra.mxu0 0
    %6368 = vmatprep.subr.bf16.mxu0 0
    %6369 = vmatpush1.bf16.msra.mxu0 0
    %6370 = vmatprep.subr.bf16.mxu0 0
    %6371 = vmatpush1.bf16.msra.mxu0 0
    %6372 = vmatprep.subr.bf16.mxu0 0
    %6373 = vmatpush1.bf16.msra.mxu0 0
    %6374 = vmatprep.subr.bf16.mxu0 0
    %6375 = vmatpush1.bf16.msra.mxu0 0
    %6376 = vmatprep.subr.bf16.mxu0 0
    %6377 = vmatpush1.bf16.msra.mxu0 0
    %6378 = vmatprep.subr.bf16.mxu0 0
    %6379 = vmatpush1.bf16.msra.mxu0 0
    %6380 = vmatprep.subr.bf16.mxu0 0
    %6381 = vmatpush1.bf16.msra.mxu0 0
    %6382 = vmatprep.subr.bf16.mxu0 0
    %6383 = vmatpush1.bf16.msra.mxu0 0
    %6384 = vmatprep.mubr.bf16.mxu0 0
    %6385 = vmatmul.mubr.bf16.gmra.mrb[0].mxu0 %v317
    %v6386 = vpop.f32.mrb[0].mxu0
    %v6387 = vadd.f32 %v76, %v6386
    %v6388 = vpop.f32.mrb[0].mxu0
    %v6389 = vpop.f32.mrb[0].mxu0
    %v6390 = vadd.f32 %v81, %v6389
    %v6391 = vpop.f32.mrb[0].mxu0
    %6392 = vmatprep.mubr.bf16.mxu0 0
    %6393 = vmatmul.mubr.bf16.gmra.mrb[0].mxu0 %v320
    %v6394 = vpop.f32.mrb[0].mxu0
    %v6395 = vadd.f32 %v86, %v6394
    %v6396 = vpop.f32.mrb[0].mxu0
    %v6397 = vpop.f32.mrb[0].mxu0
    %v6398 = vadd.f32 %v91, %v6397
    %v6399 = vpop.f32.mrb[0].mxu0
    %6400 = vmatprep.mubr.bf16.mxu0 0
    %6401 = vmatmul.mubr.bf16.gmra.mrb[0].mxu0 %v323
    %v6402 = vpop.f32.mrb[0].mxu0
    %v6403 = vadd.f32 %v96, %v6402
    %v6404 = vpop.f32.mrb[0].mxu0
    %v6405 = vpop.f32.mrb[0].mxu0
    %v6406 = vadd.f32 %v101, %v6405
    %v6407 = vpop.f32.mrb[0].mxu0
    %6408 = vmatprep.mubr.bf16.mxu0 0
    %6409 = vmatmul.mubr.bf16.gmra.mrb[0].mxu0 %v326
    %v6410 = vpop.f32.mrb[0].mxu0
    %v6411 = vadd.f32 %v106, %v6410
    %v6412 = vpop.f32.mrb[0].mxu0
    %v6413 = vpop.f32.mrb[0].mxu0
    %v6414 = vadd.f32 %v111, %v6413
    %v6415 = vpop.f32.mrb[0].mxu0
    %6416 = vmatprep.mubr.bf16.mxu0 0
    %6417 = vmatmul.mubr.bf16.gmra.mrb[0].mxu0 %v329
    %v6418 = vpop.f32.mrb[0].mxu0
    %v6419 = vadd.f32 %v116, %v6418
    %v6420 = vpop.f32.mrb[0].mxu0
    %v6421 = vpop.f32.mrb[0].mxu0
    %v6422 = vadd.f32 %v121, %v6421
    %v6423 = vpop.f32.mrb[0].mxu0
    %6424 = vmatprep.mubr.bf16.mxu0 0
    %6425 = vmatmul.mubr.bf16.gmra.mrb[0].mxu0 %v332
    %v6426 = vpop.f32.mrb[0].mxu0
    %v6427 = vadd.f32 %v126, %v6426
    %v6428 = vpop.f32.mrb[0].mxu0
    %v6429 = vpop.f32.mrb[0].mxu0
    %v6430 = vadd.f32 %v131, %v6429
    %v6431 = vpop.f32.mrb[0].mxu0
    %6432 = vmatprep.mubr.bf16.mxu0 0
    %6433 = vmatmul.mubr.bf16.gmra.mrb[0].mxu0 %v335
    %v6434 = vpop.f32.mrb[0].mxu0
    %v6435 = vadd.f32 %v136, %v6434
    %v6436 = vpop.f32.mrb[0].mxu0
    %v6437 = vpop.f32.mrb[0].mxu0
    %v6438 = vadd.f32 %v141, %v6437
    %v6439 = vpop.f32.mrb[0].mxu0
    %6440 = vmatprep.mubr.bf16.mxu0 0
    %6441 = vmatmul.mubr.bf16.gmra.mrb[0].mxu0 %v338
    %v6442 = vpop.f32.mrb[0].mxu0
    %v6443 = vadd.f32 %v146, %v6442
    %v6444 = vpop.f32.mrb[0].mxu0
    %v6445 = vpop.f32.mrb[0].mxu0
    %v6446 = vadd.f32 %v151, %v6445
    %v6447 = vpop.f32.mrb[0].mxu0
    %6448 = vdwg.mxu0
    %v6449 = vxor.u32 %v6387, 2147483648
    %v6450 = vxor.u32 %v6390, 2147483648
    %v6451 = vxor.u32 %v6395, 2147483648
    %v6452 = vxor.u32 %v6398, 2147483648
    %v6453 = vxor.u32 %v6403, 2147483648
    %v6454 = vxor.u32 %v6406, 2147483648
    %v6455 = vxor.u32 %v6411, 2147483648
    %v6456 = vxor.u32 %v6414, 2147483648
    %v6457 = vmul.f32 %v6449, 1.442695
    %v6458 = vpow.pop %v6457
    %v6459 = vmul.f32 %v6450, 1.442695
    %v6460 = vpow.pop %v6459
    %v6461 = vmul.f32 %v6451, 1.442695
    %v6462 = vpow.pop %v6461
    %v6463 = vmul.f32 %v6452, 1.442695
    %v6464 = vpow.pop %v6463
    %v6465 = vmul.f32 %v6453, 1.442695
    %v6466 = vpow.pop %v6465
    %v6467 = vmul.f32 %v6454, 1.442695
    %v6468 = vpow.pop %v6467
    %v6469 = vmul.f32 %v6455, 1.442695
    %v6470 = vpow.pop %v6469
    %v6471 = vmul.f32 %v6456, 1.442695
    %v6472 = vpow.pop %v6471
    %v6473 = vadd.f32 %v6458, 1.0
    %v6474 = vadd.f32 %v6460, 1.0
    %v6475 = vadd.f32 %v6462, 1.0
    %v6476 = vadd.f32 %v6464, 1.0
    %v6477 = vadd.f32 %v6466, 1.0
    %v6478 = vadd.f32 %v6468, 1.0
    %v6479 = vadd.f32 %v6470, 1.0
    %v6480 = vadd.f32 %v6472, 1.0
    %v6481 = vrcp.pop %v6473
    %v6482 = vmul.f32 1.0, %v6481
    %v6483 = vrcp.pop %v6474
    %v6484 = vmul.f32 1.0, %v6483
    %v6485 = vrcp.pop %v6475
    %v6486 = vmul.f32 1.0, %v6485
    %v6487 = vrcp.pop %v6476
    %v6488 = vmul.f32 1.0, %v6487
    %v6489 = vrcp.pop %v6477
    %v6490 = vmul.f32 1.0, %v6489
    %v6491 = vrcp.pop %v6478
    %v6492 = vmul.f32 1.0, %v6491
    %v6493 = vrcp.pop %v6479
    %v6494 = vmul.f32 1.0, %v6493
    %v6495 = vrcp.pop %v6480
    %v6496 = vmul.f32 1.0, %v6495
    %v6497 = vtanh.pop %v6419
    %v6498 = vtanh.pop %v6422
    %v6499 = vtanh.pop %v6427
    %v6500 = vtanh.pop %v6430
    %v6501 = vxor.u32 %v6435, 2147483648
    %v6502 = vxor.u32 %v6438, 2147483648
    %v6503 = vxor.u32 %v6443, 2147483648
    %v6504 = vxor.u32 %v6446, 2147483648
    %v6505 = vmul.f32 %v6501, 1.442695
    %v6506 = vpow.pop %v6505
    %v6507 = vmul.f32 %v6502, 1.442695
    %v6508 = vpow.pop %v6507
    %v6509 = vmul.f32 %v6503, 1.442695
    %v6510 = vpow.pop %v6509
    %v6511 = vmul.f32 %v6504, 1.442695
    %v6512 = vpow.pop %v6511
    %v6513 = vadd.f32 %v6506, 1.0
    %v6514 = vadd.f32 %v6508, 1.0
    %v6515 = vadd.f32 %v6510, 1.0
    %v6516 = vadd.f32 %v6512, 1.0
    %v6517 = vrcp.pop %v6513
    %v6518 = vmul.f32 1.0, %v6517
    %v6519 = vrcp.pop %v6514
    %v6520 = vmul.f32 1.0, %v6519
    %v6521 = vrcp.pop %v6515
    %v6522 = vmul.f32 1.0, %v6521
    %v6523 = vrcp.pop %v6516
    %v6524 = vmul.f32 1.0, %v6523
    %v6525 = vmul.f32 %v6490, %v6338
    %v6526 = vmul.f32 %v6492, %v6339
    %v6527 = vmul.f32 %v6494, %v6340
    %v6528 = vmul.f32 %v6496, %v6341
    %v6529 = vmul.f32 %v6482, %v6497
    %v6530 = vmul.f32 %v6484, %v6498
    %v6531 = vmul.f32 %v6486, %v6499
    %v6532 = vmul.f32 %v6488, %v6500
    %v6533 = vadd.f32 %v6525, %v6529
    %v6534 = vadd.f32 %v6526, %v6530
    %v6535 = vadd.f32 %v6527, %v6531
    %v6536 = vadd.f32 %v6528, %v6532
    %v6537 = vtanh.pop %v6533
    %v6538 = vtanh.pop %v6534
    %v6539 = vtanh.pop %v6535
    %v6540 = vtanh.pop %v6536
    %v6541 = vmul.f32 %v6518, %v6537
    %v6542 = vmul.f32 %v6520, %v6538
    %v6543 = vmul.f32 %v6522, %v6539
    %v6544 = vmul.f32 %v6524, %v6540
    %v6545 = vpack.c.bf16 %v6343, %v6342
    %v6546 = vpack.c.bf16 %v6345, %v6344
    %6547 = vmatprep.subr.bf16.mxu0 0
    %6548 = vmatpush1.bf16.msra.mxu0 %v840
    %6549 = vmatprep.subr.bf16.mxu0 0
    %6550 = vmatpush1.bf16.msra.mxu0 %v841
    %6551 = vmatprep.subr.bf16.mxu0 0
    %6552 = vmatpush1.bf16.msra.mxu0 %v6545
    %6553 = vmatprep.subr.bf16.mxu0 0
    %6554 = vmatpush1.bf16.msra.mxu0 %v6546
    %6555 = vmatprep.subr.bf16.mxu0 0
    %6556 = vmatpush1.bf16.msra.mxu0 0
    %6557 = vmatprep.subr.bf16.mxu0 0
    %6558 = vmatpush1.bf16.msra.mxu0 0
    %6559 = vmatprep.subr.bf16.mxu0 0
    %6560 = vmatpush1.bf16.msra.mxu0 0
    %6561 = vmatprep.subr.bf16.mxu0 0
    %6562 = vmatpush1.bf16.msra.mxu0 0
    %6563 = vmatprep.subr.bf16.mxu0 0
    %6564 = vmatpush1.bf16.msra.mxu0 0
    %6565 = vmatprep.subr.bf16.mxu0 0
    %6566 = vmatpush1.bf16.msra.mxu0 0
    %6567 = vmatprep.subr.bf16.mxu0 0
    %6568 = vmatpush1.bf16.msra.mxu0 0
    %6569 = vmatprep.subr.bf16.mxu0 0
    %6570 = vmatpush1.bf16.msra.mxu0 0
    %6571 = vmatprep.subr.bf16.mxu0 0
    %6572 = vmatpush1.bf16.msra.mxu0 0
    %6573 = vmatprep.subr.bf16.mxu0 0
    %6574 = vmatpush1.bf16.msra.mxu0 0
    %6575 = vmatprep.subr.bf16.mxu0 0
    %6576 = vmatpush1.bf16.msra.mxu0 0
    %6577 = vmatprep.subr.bf16.mxu0 0
    %6578 = vmatpush1.bf16.msra.mxu0 0
    %6579 = vmatprep.mubr.bf16.mxu0 0
    %6580 = vmatmul.mubr.bf16.gmra.mrb[0].mxu0 %v586
    %v6581 = vpop.f32.mrb[0].mxu0
    %v6582 = vadd.f32 %v172, %v6581
    %v6583 = vpop.f32.mrb[0].mxu0
    %v6584 = vpop.f32.mrb[0].mxu0
    %v6585 = vadd.f32 %v177, %v6584
    %v6586 = vpop.f32.mrb[0].mxu0
    %6587 = vmatprep.mubr.bf16.mxu0 0
    %6588 = vmatmul.mubr.bf16.gmra.mrb[0].mxu0 %v589
    %v6589 = vpop.f32.mrb[0].mxu0
    %v6590 = vadd.f32 %v182, %v6589
    %v6591 = vpop.f32.mrb[0].mxu0
    %v6592 = vpop.f32.mrb[0].mxu0
    %v6593 = vadd.f32 %v187, %v6592
    %v6594 = vpop.f32.mrb[0].mxu0
    %6595 = vmatprep.mubr.bf16.mxu0 0
    %6596 = vmatmul.mubr.bf16.gmra.mrb[0].mxu0 %v592
    %v6597 = vpop.f32.mrb[0].mxu0
    %v6598 = vadd.f32 %v192, %v6597
    %v6599 = vpop.f32.mrb[0].mxu0
    %v6600 = vpop.f32.mrb[0].mxu0
    %v6601 = vadd.f32 %v197, %v6600
    %v6602 = vpop.f32.mrb[0].mxu0
    %6603 = vmatprep.mubr.bf16.mxu0 0
    %6604 = vmatmul.mubr.bf16.gmra.mrb[0].mxu0 %v595
    %v6605 = vpop.f32.mrb[0].mxu0
    %v6606 = vadd.f32 %v202, %v6605
    %v6607 = vpop.f32.mrb[0].mxu0
    %v6608 = vpop.f32.mrb[0].mxu0
    %v6609 = vadd.f32 %v207, %v6608
    %v6610 = vpop.f32.mrb[0].mxu0
    %6611 = vmatprep.mubr.bf16.mxu0 0
    %6612 = vmatmul.mubr.bf16.gmra.mrb[0].mxu0 %v598
    %v6613 = vpop.f32.mrb[0].mxu0
    %v6614 = vadd.f32 %v212, %v6613
    %v6615 = vpop.f32.mrb[0].mxu0
    %v6616 = vpop.f32.mrb[0].mxu0
    %v6617 = vadd.f32 %v217, %v6616
    %v6618 = vpop.f32.mrb[0].mxu0
    %6619 = vmatprep.mubr.bf16.mxu0 0
    %6620 = vmatmul.mubr.bf16.gmra.mrb[0].mxu0 %v601
    %v6621 = vpop.f32.mrb[0].mxu0
    %v6622 = vadd.f32 %v222, %v6621
    %v6623 = vpop.f32.mrb[0].mxu0
    %v6624 = vpop.f32.mrb[0].mxu0
    %v6625 = vadd.f32 %v227, %v6624
    %v6626 = vpop.f32.mrb[0].mxu0
    %6627 = vmatprep.mubr.bf16.mxu0 0
    %6628 = vmatmul.mubr.bf16.gmra.mrb[0].mxu0 %v604
    %v6629 = vpop.f32.mrb[0].mxu0
    %v6630 = vadd.f32 %v232, %v6629
    %v6631 = vpop.f32.mrb[0].mxu0
    %v6632 = vpop.f32.mrb[0].mxu0
    %v6633 = vadd.f32 %v237, %v6632
    %v6634 = vpop.f32.mrb[0].mxu0
    %6635 = vmatprep.mubr.bf16.mxu0 0
    %6636 = vmatmul.mubr.bf16.gmra.mrb[0].mxu0 %v607
    %v6637 = vpop.f32.mrb[0].mxu0
    %v6638 = vadd.f32 %v242, %v6637
    %v6639 = vpop.f32.mrb[0].mxu0
    %v6640 = vpop.f32.mrb[0].mxu0
    %v6641 = vadd.f32 %v247, %v6640
    %v6642 = vpop.f32.mrb[0].mxu0
    %6643 = vdwg.mxu0
    %v6644 = vxor.u32 %v6582, 2147483648
    %v6645 = vxor.u32 %v6585, 2147483648
    %v6646 = vxor.u32 %v6590, 2147483648
    %v6647 = vxor.u32 %v6593, 2147483648
    %v6648 = vxor.u32 %v6598, 2147483648
    %v6649 = vxor.u32 %v6601, 2147483648
    %v6650 = vxor.u32 %v6606, 2147483648
    %v6651 = vxor.u32 %v6609, 2147483648
    %v6652 = vmul.f32 %v6644, 1.442695
    %v6653 = vpow.pop %v6652
    %v6654 = vmul.f32 %v6645, 1.442695
    %v6655 = vpow.pop %v6654
    %v6656 = vmul.f32 %v6646, 1.442695
    %v6657 = vpow.pop %v6656
    %v6658 = vmul.f32 %v6647, 1.442695
    %v6659 = vpow.pop %v6658
    %v6660 = vmul.f32 %v6648, 1.442695
    %v6661 = vpow.pop %v6660
    %v6662 = vmul.f32 %v6649, 1.442695
    %v6663 = vpow.pop %v6662
    %v6664 = vmul.f32 %v6650, 1.442695
    %v6665 = vpow.pop %v6664
    %v6666 = vmul.f32 %v6651, 1.442695
    %v6667 = vpow.pop %v6666
    %v6668 = vadd.f32 %v6653, 1.0
    %v6669 = vadd.f32 %v6655, 1.0
    %v6670 = vadd.f32 %v6657, 1.0
    %v6671 = vadd.f32 %v6659, 1.0
    %v6672 = vadd.f32 %v6661, 1.0
    %v6673 = vadd.f32 %v6663, 1.0
    %v6674 = vadd.f32 %v6665, 1.0
    %v6675 = vadd.f32 %v6667, 1.0
    %v6676 = vrcp.pop %v6668
    %v6677 = vmul.f32 1.0, %v6676
    %v6678 = vrcp.pop %v6669
    %v6679 = vmul.f32 1.0, %v6678
    %v6680 = vrcp.pop %v6670
    %v6681 = vmul.f32 1.0, %v6680
    %v6682 = vrcp.pop %v6671
    %v6683 = vmul.f32 1.0, %v6682
    %v6684 = vrcp.pop %v6672
    %v6685 = vmul.f32 1.0, %v6684
    %v6686 = vrcp.pop %v6673
    %v6687 = vmul.f32 1.0, %v6686
    %v6688 = vrcp.pop %v6674
    %v6689 = vmul.f32 1.0, %v6688
    %v6690 = vrcp.pop %v6675
    %v6691 = vmul.f32 1.0, %v6690
    %v6692 = vtanh.pop %v6614
    %v6693 = vtanh.pop %v6617
    %v6694 = vtanh.pop %v6622
    %v6695 = vtanh.pop %v6625
    %v6696 = vxor.u32 %v6630, 2147483648
    %v6697 = vxor.u32 %v6633, 2147483648
    %v6698 = vxor.u32 %v6638, 2147483648
    %v6699 = vxor.u32 %v6641, 2147483648
    %v6700 = vmul.f32 %v6696, 1.442695
    %v6701 = vpow.pop %v6700
    %v6702 = vmul.f32 %v6697, 1.442695
    %v6703 = vpow.pop %v6702
    %v6704 = vmul.f32 %v6698, 1.442695
    %v6705 = vpow.pop %v6704
    %v6706 = vmul.f32 %v6699, 1.442695
    %v6707 = vpow.pop %v6706
    %v6708 = vadd.f32 %v6701, 1.0
    %v6709 = vadd.f32 %v6703, 1.0
    %v6710 = vadd.f32 %v6705, 1.0
    %v6711 = vadd.f32 %v6707, 1.0
    %v6712 = vrcp.pop %v6708
    %v6713 = vmul.f32 1.0, %v6712
    %v6714 = vrcp.pop %v6709
    %v6715 = vmul.f32 1.0, %v6714
    %v6716 = vrcp.pop %v6710
    %v6717 = vmul.f32 1.0, %v6716
    %v6718 = vrcp.pop %v6711
    %v6719 = vmul.f32 1.0, %v6718
    %v6720 = vmul.f32 %v6685, %v6346
    %v6721 = vmul.f32 %v6687, %v6347
    %v6722 = vmul.f32 %v6689, %v6348
    %v6723 = vmul.f32 %v6691, %v6349
    %v6724 = vmul.f32 %v6677, %v6692
    %v6725 = vmul.f32 %v6679, %v6693
    %v6726 = vmul.f32 %v6681, %v6694
    %v6727 = vmul.f32 %v6683, %v6695
    %v6728 = vadd.f32 %v6720, %v6724
    %v6729 = vadd.f32 %v6721, %v6725
    %v6730 = vadd.f32 %v6722, %v6726
    %v6731 = vadd.f32 %v6723, %v6727
    %v6732 = vtanh.pop %v6728
    %v6733 = vtanh.pop %v6729
    %v6734 = vtanh.pop %v6730
    %v6735 = vtanh.pop %v6731
    %v6736 = vmul.f32 %v6713, %v6732
    %v6737 = vmul.f32 %v6715, %v6733
    %v6738 = vmul.f32 %v6717, %v6734
    %v6739 = vmul.f32 %v6719, %v6735
    %v6740 = vsel %vm1245, %v6541, %v6334
    %v6741 = vsel %vm1245, %v6542, %v6335
    %v6742 = vsel %vm1245, %v6543, %v6336
    %v6743 = vsel %vm1245, %v6544, %v6337
    %v6744 = vsel %vm1245, %v6533, %v6338
    %v6745 = vsel %vm1245, %v6534, %v6339
    %v6746 = vsel %vm1245, %v6535, %v6340
    %v6747 = vsel %vm1245, %v6536, %v6341
    %v6748 = vsel %vm1244, %v6736, %v6342
    %v6749 = vsel %vm1244, %v6737, %v6343
    %v6750 = vsel %vm1244, %v6738, %v6344
    %v6751 = vsel %vm1244, %v6739, %v6345
    %v6752 = vsel %vm1244, %v6728, %v6346
    %v6753 = vsel %vm1244, %v6729, %v6347
    %v6754 = vsel %vm1244, %v6730, %v6348
    %v6755 = vsel %vm1244, %v6731, %v6349
    %v6756 = vpack.c.bf16 %v6741, %v6740
    %v6757 = vpack.c.bf16 %v6743, %v6742
    %6758 = vmatprep.subr.bf16.mxu0 0
    %6759 = vmatpush1.bf16.msra.mxu0 %v541
    %6760 = vmatprep.subr.bf16.mxu0 0
    %6761 = vmatpush1.bf16.msra.mxu0 %v542
    %6762 = vmatprep.subr.bf16.mxu0 0
    %6763 = vmatpush1.bf16.msra.mxu0 %v6756
    %6764 = vmatprep.subr.bf16.mxu0 0
    %6765 = vmatpush1.bf16.msra.mxu0 %v6757
    %6766 = vmatprep.subr.bf16.mxu0 0
    %6767 = vmatpush1.bf16.msra.mxu0 0
    %6768 = vmatprep.subr.bf16.mxu0 0
    %6769 = vmatpush1.bf16.msra.mxu0 0
    %6770 = vmatprep.subr.bf16.mxu0 0
    %6771 = vmatpush1.bf16.msra.mxu0 0
    %6772 = vmatprep.subr.bf16.mxu0 0
    %6773 = vmatpush1.bf16.msra.mxu0 0
    %6774 = vmatprep.subr.bf16.mxu0 0
    %6775 = vmatpush1.bf16.msra.mxu0 0
    %6776 = vmatprep.subr.bf16.mxu0 0
    %6777 = vmatpush1.bf16.msra.mxu0 0
    %6778 = vmatprep.subr.bf16.mxu0 0
    %6779 = vmatpush1.bf16.msra.mxu0 0
    %6780 = vmatprep.subr.bf16.mxu0 0
    %6781 = vmatpush1.bf16.msra.mxu0 0
    %6782 = vmatprep.subr.bf16.mxu0 0
    %6783 = vmatpush1.bf16.msra.mxu0 0
    %6784 = vmatprep.subr.bf16.mxu0 0
    %6785 = vmatpush1.bf16.msra.mxu0 0
    %6786 = vmatprep.subr.bf16.mxu0 0
    %6787 = vmatpush1.bf16.msra.mxu0 0
    %6788 = vmatprep.subr.bf16.mxu0 0
    %6789 = vmatpush1.bf16.msra.mxu0 0
    %6790 = vmatprep.mubr.bf16.mxu0 0
    %6791 = vmatmul.mubr.bf16.gmra.mrb[0].mxu0 %v317
    %v6792 = vpop.f32.mrb[0].mxu0
    %v6793 = vadd.f32 %v76, %v6792
    %v6794 = vpop.f32.mrb[0].mxu0
    %v6795 = vpop.f32.mrb[0].mxu0
    %v6796 = vadd.f32 %v81, %v6795
    %v6797 = vpop.f32.mrb[0].mxu0
    %6798 = vmatprep.mubr.bf16.mxu0 0
    %6799 = vmatmul.mubr.bf16.gmra.mrb[0].mxu0 %v320
    %v6800 = vpop.f32.mrb[0].mxu0
    %v6801 = vadd.f32 %v86, %v6800
    %v6802 = vpop.f32.mrb[0].mxu0
    %v6803 = vpop.f32.mrb[0].mxu0
    %v6804 = vadd.f32 %v91, %v6803
    %v6805 = vpop.f32.mrb[0].mxu0
    %6806 = vmatprep.mubr.bf16.mxu0 0
    %6807 = vmatmul.mubr.bf16.gmra.mrb[0].mxu0 %v323
    %v6808 = vpop.f32.mrb[0].mxu0
    %v6809 = vadd.f32 %v96, %v6808
    %v6810 = vpop.f32.mrb[0].mxu0
    %v6811 = vpop.f32.mrb[0].mxu0
    %v6812 = vadd.f32 %v101, %v6811
    %v6813 = vpop.f32.mrb[0].mxu0
    %6814 = vmatprep.mubr.bf16.mxu0 0
    %6815 = vmatmul.mubr.bf16.gmra.mrb[0].mxu0 %v326
    %v6816 = vpop.f32.mrb[0].mxu0
    %v6817 = vadd.f32 %v106, %v6816
    %v6818 = vpop.f32.mrb[0].mxu0
    %v6819 = vpop.f32.mrb[0].mxu0
    %v6820 = vadd.f32 %v111, %v6819
    %v6821 = vpop.f32.mrb[0].mxu0
    %6822 = vmatprep.mubr.bf16.mxu0 0
    %6823 = vmatmul.mubr.bf16.gmra.mrb[0].mxu0 %v329
    %v6824 = vpop.f32.mrb[0].mxu0
    %v6825 = vadd.f32 %v116, %v6824
    %v6826 = vpop.f32.mrb[0].mxu0
    %v6827 = vpop.f32.mrb[0].mxu0
    %v6828 = vadd.f32 %v121, %v6827
    %v6829 = vpop.f32.mrb[0].mxu0
    %6830 = vmatprep.mubr.bf16.mxu0 0
    %6831 = vmatmul.mubr.bf16.gmra.mrb[0].mxu0 %v332
    %v6832 = vpop.f32.mrb[0].mxu0
    %v6833 = vadd.f32 %v126, %v6832
    %v6834 = vpop.f32.mrb[0].mxu0
    %v6835 = vpop.f32.mrb[0].mxu0
    %v6836 = vadd.f32 %v131, %v6835
    %v6837 = vpop.f32.mrb[0].mxu0
    %6838 = vmatprep.mubr.bf16.mxu0 0
    %6839 = vmatmul.mubr.bf16.gmra.mrb[0].mxu0 %v335
    %v6840 = vpop.f32.mrb[0].mxu0
    %v6841 = vadd.f32 %v136, %v6840
    %v6842 = vpop.f32.mrb[0].mxu0
    %v6843 = vpop.f32.mrb[0].mxu0
    %v6844 = vadd.f32 %v141, %v6843
    %v6845 = vpop.f32.mrb[0].mxu0
    %6846 = vmatprep.mubr.bf16.mxu0 0
    %6847 = vmatmul.mubr.bf16.gmra.mrb[0].mxu0 %v338
    %v6848 = vpop.f32.mrb[0].mxu0
    %v6849 = vadd.f32 %v146, %v6848
    %v6850 = vpop.f32.mrb[0].mxu0
    %v6851 = vpop.f32.mrb[0].mxu0
    %v6852 = vadd.f32 %v151, %v6851
    %v6853 = vpop.f32.mrb[0].mxu0
    %6854 = vdwg.mxu0
    %v6855 = vxor.u32 %v6793, 2147483648
    %v6856 = vxor.u32 %v6796, 2147483648
    %v6857 = vxor.u32 %v6801, 2147483648
    %v6858 = vxor.u32 %v6804, 2147483648
    %v6859 = vxor.u32 %v6809, 2147483648
    %v6860 = vxor.u32 %v6812, 2147483648
    %v6861 = vxor.u32 %v6817, 2147483648
    %v6862 = vxor.u32 %v6820, 2147483648
    %v6863 = vmul.f32 %v6855, 1.442695
    %v6864 = vpow.pop %v6863
    %v6865 = vmul.f32 %v6856, 1.442695
    %v6866 = vpow.pop %v6865
    %v6867 = vmul.f32 %v6857, 1.442695
    %v6868 = vpow.pop %v6867
    %v6869 = vmul.f32 %v6858, 1.442695
    %v6870 = vpow.pop %v6869
    %v6871 = vmul.f32 %v6859, 1.442695
    %v6872 = vpow.pop %v6871
    %v6873 = vmul.f32 %v6860, 1.442695
    %v6874 = vpow.pop %v6873
    %v6875 = vmul.f32 %v6861, 1.442695
    %v6876 = vpow.pop %v6875
    %v6877 = vmul.f32 %v6862, 1.442695
    %v6878 = vpow.pop %v6877
    %v6879 = vadd.f32 %v6864, 1.0
    %v6880 = vadd.f32 %v6866, 1.0
    %v6881 = vadd.f32 %v6868, 1.0
    %v6882 = vadd.f32 %v6870, 1.0
    %v6883 = vadd.f32 %v6872, 1.0
    %v6884 = vadd.f32 %v6874, 1.0
    %v6885 = vadd.f32 %v6876, 1.0
    %v6886 = vadd.f32 %v6878, 1.0
    %v6887 = vrcp.pop %v6879
    %v6888 = vmul.f32 1.0, %v6887
    %v6889 = vrcp.pop %v6880
    %v6890 = vmul.f32 1.0, %v6889
    %v6891 = vrcp.pop %v6881
    %v6892 = vmul.f32 1.0, %v6891
    %v6893 = vrcp.pop %v6882
    %v6894 = vmul.f32 1.0, %v6893
    %v6895 = vrcp.pop %v6883
    %v6896 = vmul.f32 1.0, %v6895
    %v6897 = vrcp.pop %v6884
    %v6898 = vmul.f32 1.0, %v6897
    %v6899 = vrcp.pop %v6885
    %v6900 = vmul.f32 1.0, %v6899
    %v6901 = vrcp.pop %v6886
    %v6902 = vmul.f32 1.0, %v6901
    %v6903 = vtanh.pop %v6825
    %v6904 = vtanh.pop %v6828
    %v6905 = vtanh.pop %v6833
    %v6906 = vtanh.pop %v6836
    %v6907 = vxor.u32 %v6841, 2147483648
    %v6908 = vxor.u32 %v6844, 2147483648
    %v6909 = vxor.u32 %v6849, 2147483648
    %v6910 = vxor.u32 %v6852, 2147483648
    %v6911 = vmul.f32 %v6907, 1.442695
    %v6912 = vpow.pop %v6911
    %v6913 = vmul.f32 %v6908, 1.442695
    %v6914 = vpow.pop %v6913
    %v6915 = vmul.f32 %v6909, 1.442695
    %v6916 = vpow.pop %v6915
    %v6917 = vmul.f32 %v6910, 1.442695
    %v6918 = vpow.pop %v6917
    %v6919 = vadd.f32 %v6912, 1.0
    %v6920 = vadd.f32 %v6914, 1.0
    %v6921 = vadd.f32 %v6916, 1.0
    %v6922 = vadd.f32 %v6918, 1.0
    %v6923 = vrcp.pop %v6919
    %v6924 = vmul.f32 1.0, %v6923
    %v6925 = vrcp.pop %v6920
    %v6926 = vmul.f32 1.0, %v6925
    %v6927 = vrcp.pop %v6921
    %v6928 = vmul.f32 1.0, %v6927
    %v6929 = vrcp.pop %v6922
    %v6930 = vmul.f32 1.0, %v6929
    %v6931 = vmul.f32 %v6896, %v6744
    %v6932 = vmul.f32 %v6898, %v6745
    %v6933 = vmul.f32 %v6900, %v6746
    %v6934 = vmul.f32 %v6902, %v6747
    %v6935 = vmul.f32 %v6888, %v6903
    %v6936 = vmul.f32 %v6890, %v6904
    %v6937 = vmul.f32 %v6892, %v6905
    %v6938 = vmul.f32 %v6894, %v6906
    %v6939 = vadd.f32 %v6931, %v6935
    %v6940 = vadd.f32 %v6932, %v6936
    %v6941 = vadd.f32 %v6933, %v6937
    %v6942 = vadd.f32 %v6934, %v6938
    %v6943 = vtanh.pop %v6939
    %v6944 = vtanh.pop %v6940
    %v6945 = vtanh.pop %v6941
    %v6946 = vtanh.pop %v6942
    %v6947 = vmul.f32 %v6924, %v6943
    %v6948 = vmul.f32 %v6926, %v6944
    %v6949 = vmul.f32 %v6928, %v6945
    %v6950 = vmul.f32 %v6930, %v6946
    %v6951 = vpack.c.bf16 %v6749, %v6748
    %v6952 = vpack.c.bf16 %v6751, %v6750
    %6953 = vmatprep.subr.bf16.mxu0 0
    %6954 = vmatpush1.bf16.msra.mxu0 %v271
    %6955 = vmatprep.subr.bf16.mxu0 0
    %6956 = vmatpush1.bf16.msra.mxu0 %v272
    %6957 = vmatprep.subr.bf16.mxu0 0
    %6958 = vmatpush1.bf16.msra.mxu0 %v6951
    %6959 = vmatprep.subr.bf16.mxu0 0
    %6960 = vmatpush1.bf16.msra.mxu0 %v6952
    %6961 = vmatprep.subr.bf16.mxu0 0
    %6962 = vmatpush1.bf16.msra.mxu0 0
    %6963 = vmatprep.subr.bf16.mxu0 0
    %6964 = vmatpush1.bf16.msra.mxu0 0
    %6965 = vmatprep.subr.bf16.mxu0 0
    %6966 = vmatpush1.bf16.msra.mxu0 0
    %6967 = vmatprep.subr.bf16.mxu0 0
    %6968 = vmatpush1.bf16.msra.mxu0 0
    %6969 = vmatprep.subr.bf16.mxu0 0
    %6970 = vmatpush1.bf16.msra.mxu0 0
    %6971 = vmatprep.subr.bf16.mxu0 0
    %6972 = vmatpush1.bf16.msra.mxu0 0
    %6973 = vmatprep.subr.bf16.mxu0 0
    %6974 = vmatpush1.bf16.msra.mxu0 0
    %6975 = vmatprep.subr.bf16.mxu0 0
    %6976 = vmatpush1.bf16.msra.mxu0 0
    %6977 = vmatprep.subr.bf16.mxu0 0
    %6978 = vmatpush1.bf16.msra.mxu0 0
    %6979 = vmatprep.subr.bf16.mxu0 0
    %6980 = vmatpush1.bf16.msra.mxu0 0
    %6981 = vmatprep.subr.bf16.mxu0 0
    %6982 = vmatpush1.bf16.msra.mxu0 0
    %6983 = vmatprep.subr.bf16.mxu0 0
    %6984 = vmatpush1.bf16.msra.mxu0 0
    %6985 = vmatprep.mubr.bf16.mxu0 0
    %6986 = vmatmul.mubr.bf16.gmra.mrb[0].mxu0 %v586
    %v6987 = vpop.f32.mrb[0].mxu0
    %v6988 = vadd.f32 %v172, %v6987
    %v6989 = vpop.f32.mrb[0].mxu0
    %v6990 = vpop.f32.mrb[0].mxu0
    %v6991 = vadd.f32 %v177, %v6990
    %v6992 = vpop.f32.mrb[0].mxu0
    %6993 = vmatprep.mubr.bf16.mxu0 0
    %6994 = vmatmul.mubr.bf16.gmra.mrb[0].mxu0 %v589
    %v6995 = vpop.f32.mrb[0].mxu0
    %v6996 = vadd.f32 %v182, %v6995
    %v6997 = vpop.f32.mrb[0].mxu0
    %v6998 = vpop.f32.mrb[0].mxu0
    %v6999 = vadd.f32 %v187, %v6998
    %v7000 = vpop.f32.mrb[0].mxu0
    %7001 = vmatprep.mubr.bf16.mxu0 0
    %7002 = vmatmul.mubr.bf16.gmra.mrb[0].mxu0 %v592
    %v7003 = vpop.f32.mrb[0].mxu0
    %v7004 = vadd.f32 %v192, %v7003
    %v7005 = vpop.f32.mrb[0].mxu0
    %v7006 = vpop.f32.mrb[0].mxu0
    %v7007 = vadd.f32 %v197, %v7006
    %v7008 = vpop.f32.mrb[0].mxu0
    %7009 = vmatprep.mubr.bf16.mxu0 0
    %7010 = vmatmul.mubr.bf16.gmra.mrb[0].mxu0 %v595
    %v7011 = vpop.f32.mrb[0].mxu0
    %v7012 = vadd.f32 %v202, %v7011
    %v7013 = vpop.f32.mrb[0].mxu0
    %v7014 = vpop.f32.mrb[0].mxu0
    %v7015 = vadd.f32 %v207, %v7014
    %v7016 = vpop.f32.mrb[0].mxu0
    %7017 = vmatprep.mubr.bf16.mxu0 0
    %7018 = vmatmul.mubr.bf16.gmra.mrb[0].mxu0 %v598
    %v7019 = vpop.f32.mrb[0].mxu0
    %v7020 = vadd.f32 %v212, %v7019
    %v7021 = vpop.f32.mrb[0].mxu0
    %v7022 = vpop.f32.mrb[0].mxu0
    %v7023 = vadd.f32 %v217, %v7022
    %v7024 = vpop.f32.mrb[0].mxu0
    %7025 = vmatprep.mubr.bf16.mxu0 0
    %7026 = vmatmul.mubr.bf16.gmra.mrb[0].mxu0 %v601
    %v7027 = vpop.f32.mrb[0].mxu0
    %v7028 = vadd.f32 %v222, %v7027
    %v7029 = vpop.f32.mrb[0].mxu0
    %v7030 = vpop.f32.mrb[0].mxu0
    %v7031 = vadd.f32 %v227, %v7030
    %v7032 = vpop.f32.mrb[0].mxu0
    %7033 = vmatprep.mubr.bf16.mxu0 0
    %7034 = vmatmul.mubr.bf16.gmra.mrb[0].mxu0 %v604
    %v7035 = vpop.f32.mrb[0].mxu0
    %v7036 = vadd.f32 %v232, %v7035
    %v7037 = vpop.f32.mrb[0].mxu0
    %v7038 = vpop.f32.mrb[0].mxu0
    %v7039 = vadd.f32 %v237, %v7038
    %v7040 = vpop.f32.mrb[0].mxu0
    %7041 = vmatprep.mubr.bf16.mxu0 0
    %7042 = vmatmul.mubr.bf16.gmra.mrb[0].mxu0 %v607
    %v7043 = vpop.f32.mrb[0].mxu0
    %v7044 = vadd.f32 %v242, %v7043
    %v7045 = vpop.f32.mrb[0].mxu0
    %v7046 = vpop.f32.mrb[0].mxu0
    %v7047 = vadd.f32 %v247, %v7046
    %v7048 = vpop.f32.mrb[0].mxu0
    %7049 = vdwg.mxu0
    %v7050 = vxor.u32 %v6988, 2147483648
    %v7051 = vxor.u32 %v6991, 2147483648
    %v7052 = vxor.u32 %v6996, 2147483648
    %v7053 = vxor.u32 %v6999, 2147483648
    %v7054 = vxor.u32 %v7004, 2147483648
    %v7055 = vxor.u32 %v7007, 2147483648
    %v7056 = vxor.u32 %v7012, 2147483648
    %v7057 = vxor.u32 %v7015, 2147483648
    %v7058 = vmul.f32 %v7050, 1.442695
    %v7059 = vpow.pop %v7058
    %v7060 = vmul.f32 %v7051, 1.442695
    %v7061 = vpow.pop %v7060
    %v7062 = vmul.f32 %v7052, 1.442695
    %v7063 = vpow.pop %v7062
    %v7064 = vmul.f32 %v7053, 1.442695
    %v7065 = vpow.pop %v7064
    %v7066 = vmul.f32 %v7054, 1.442695
    %v7067 = vpow.pop %v7066
    %v7068 = vmul.f32 %v7055, 1.442695
    %v7069 = vpow.pop %v7068
    %v7070 = vmul.f32 %v7056, 1.442695
    %v7071 = vpow.pop %v7070
    %v7072 = vmul.f32 %v7057, 1.442695
    %v7073 = vpow.pop %v7072
    %v7074 = vadd.f32 %v7059, 1.0
    %v7075 = vadd.f32 %v7061, 1.0
    %v7076 = vadd.f32 %v7063, 1.0
    %v7077 = vadd.f32 %v7065, 1.0
    %v7078 = vadd.f32 %v7067, 1.0
    %v7079 = vadd.f32 %v7069, 1.0
    %v7080 = vadd.f32 %v7071, 1.0
    %v7081 = vadd.f32 %v7073, 1.0
    %v7082 = vrcp.pop %v7074
    %v7083 = vmul.f32 1.0, %v7082
    %v7084 = vrcp.pop %v7075
    %v7085 = vmul.f32 1.0, %v7084
    %v7086 = vrcp.pop %v7076
    %v7087 = vmul.f32 1.0, %v7086
    %v7088 = vrcp.pop %v7077
    %v7089 = vmul.f32 1.0, %v7088
    %v7090 = vrcp.pop %v7078
    %v7091 = vmul.f32 1.0, %v7090
    %v7092 = vrcp.pop %v7079
    %v7093 = vmul.f32 1.0, %v7092
    %v7094 = vrcp.pop %v7080
    %v7095 = vmul.f32 1.0, %v7094
    %v7096 = vrcp.pop %v7081
    %v7097 = vmul.f32 1.0, %v7096
    %v7098 = vtanh.pop %v7020
    %v7099 = vtanh.pop %v7023
    %v7100 = vtanh.pop %v7028
    %v7101 = vtanh.pop %v7031
    %v7102 = vxor.u32 %v7036, 2147483648
    %v7103 = vxor.u32 %v7039, 2147483648
    %v7104 = vxor.u32 %v7044, 2147483648
    %v7105 = vxor.u32 %v7047, 2147483648
    %v7106 = vmul.f32 %v7102, 1.442695
    %v7107 = vpow.pop %v7106
    %v7108 = vmul.f32 %v7103, 1.442695
    %v7109 = vpow.pop %v7108
    %v7110 = vmul.f32 %v7104, 1.442695
    %v7111 = vpow.pop %v7110
    %v7112 = vmul.f32 %v7105, 1.442695
    %v7113 = vpow.pop %v7112
    %v7114 = vadd.f32 %v7107, 1.0
    %v7115 = vadd.f32 %v7109, 1.0
    %v7116 = vadd.f32 %v7111, 1.0
    %v7117 = vadd.f32 %v7113, 1.0
    %v7118 = vrcp.pop %v7114
    %v7119 = vmul.f32 1.0, %v7118
    %v7120 = vrcp.pop %v7115
    %v7121 = vmul.f32 1.0, %v7120
    %v7122 = vrcp.pop %v7116
    %v7123 = vmul.f32 1.0, %v7122
    %v7124 = vrcp.pop %v7117
    %v7125 = vmul.f32 1.0, %v7124
    %v7126 = vmul.f32 %v7091, %v6752
    %v7127 = vmul.f32 %v7093, %v6753
    %v7128 = vmul.f32 %v7095, %v6754
    %v7129 = vmul.f32 %v7097, %v6755
    %v7130 = vmul.f32 %v7083, %v7098
    %v7131 = vmul.f32 %v7085, %v7099
    %v7132 = vmul.f32 %v7087, %v7100
    %v7133 = vmul.f32 %v7089, %v7101
    %v7134 = vadd.f32 %v7126, %v7130
    %v7135 = vadd.f32 %v7127, %v7131
    %v7136 = vadd.f32 %v7128, %v7132
    %v7137 = vadd.f32 %v7129, %v7133
    %v7138 = vtanh.pop %v7134
    %v7139 = vtanh.pop %v7135
    %v7140 = vtanh.pop %v7136
    %v7141 = vtanh.pop %v7137
    %v7142 = vmul.f32 %v7119, %v7138
    %v7143 = vmul.f32 %v7121, %v7139
    %v7144 = vmul.f32 %v7123, %v7140
    %v7145 = vmul.f32 %v7125, %v7141
    %v7146 = vsel %vm803, %v6947, %v6740
    %v7147 = vsel %vm803, %v6948, %v6741
    %v7148 = vsel %vm803, %v6949, %v6742
    %v7149 = vsel %vm803, %v6950, %v6743
    %v7150 = vsel %vm802, %v7142, %v6748
    %v7151 = vsel %vm802, %v7143, %v6749
    %v7152 = vsel %vm802, %v7144, %v6750
    %v7153 = vsel %vm802, %v7145, %v6751
    %7154 = vst [vmem:[#allocation2] sm:$0xff] %v7146
    %7155 = vst [vmem:[#allocation2 + $0x8] sm:$0xff] %v7147
    %7156 = vst [vmem:[#allocation2 + $0x10] sm:$0xff] %v7148
    %7157 = vst [vmem:[#allocation2 + $0x18] sm:$0xff] %v7149
    %7158 = vst [vmem:[#allocation2 + $0x20] sm:$0xff] %v7150
    %7159 = vst [vmem:[#allocation2 + $0x28] sm:$0xff] %v7151
    %7160 = vst [vmem:[#allocation2 + $0x30] sm:$0xff] %v7152
    %7161 = vst [vmem:[#allocation2 + $0x38] sm:$0xff] %v7153
    // Predicated region
    $region26: #{tpu_custom_call.1} parent=1 // pred_check
      _
    $region27: #{tpu_custom_call.1} parent=1 // pred_check_branch
      %7163 = sbr.rel (0) target = $region29
    $region28: #{tpu_custom_call.1} parent=1 // pred_region
      %s7165 = ssub.s32 1024, 1024
      %7166 = vsyncadd [#allocation3], %s7165
      %s7167 = sshll.u32 [#allocation2], 4
      %s7168 = int_to_ptr.vmem [resolvable:$true] %s7167
      %7173 = dma.vmem_to_hbm [thread:$0]  %s7168, 1024, %s6, [#allocation3], 128, 128, 8
    $region29: #{tpu_custom_call.1} parent=1 // pred_fallthru
      _
    // Predicated region
    $region30: #{tpu_custom_call.1} parent=1 // pred_check
      _
    $region31: #{tpu_custom_call.1} parent=1 // pred_check_branch
      %7175 = sbr.rel (0) target = $region33
    $region32: #{tpu_custom_call.1} parent=1 // pred_region
      %7176 = dma.done [#allocation3], 1024
    $region33: #{tpu_custom_call.1} parent=1 // pred_fallthru
      _
    %7177 = vsyncpa [#allocation3], 1

</llo_original>
